<compile_context>
chip_gen: v5e
topology: v5e:2x2
jax: 0.10.0
libtpu: 0.0.40
codegen_flags: <defaults>
</compile_context>

<pallas_src>
import math

import jax
import jax.numpy as jnp
from jax.experimental import pallas as pl
from jax.experimental.pallas import tpu as pltpu

# ------------------------- config (small, module-consistent) -----------------
HIDDEN = 64                      # config['hidden_dim']
NUM_HEADS = 4                    # config['num_heads']
HEAD_DIM = HIDDEN // NUM_HEADS
NUM_LAYERS = 2                   # config['num_layers']
MAX_DOF = 7                      # config['max_dof']
D1 = MAX_DOF + 1                 # 8
NUM_TOKENS = 2 * D1 + 1          # 17
POSE_DIM = 9
MLP_DIM = 4 * HIDDEN
LN_EPS = 1e-5
DEFAULT_BATCH_TILE = 16          # batch elements per grid step (multiple of 8)

F32 = jnp.float32
BF16 = jnp.bfloat16


def _layer_norm(x, g, b):
    mu = jnp.mean(x, axis=-1, keepdims=True)
    xc = x - mu
    var = jnp.mean(xc * xc, axis=-1, keepdims=True)
    return xc * jax.lax.rsqrt(var + LN_EPS) * g + b


def _round_up(x, m):
    return ((x + m - 1) // m) * m


# ------------------------------- Pallas kernel -------------------------------
def pose_model_kernel(pose_ref, col_ref, addc_ref, basemask_ref,
                      wp_ref,
                      ln1g_ref, ln1b_ref, wqkv_ref, bqkv_ref, wo_ref, bo_ref,
                      ln2g_ref, ln2b_ref, w1_ref, b1_ref, w2_ref, b2_ref,
                      wfin_ref, bfin_ref,
                      out_ref):
    poses = pose_ref[0]                          # (S, 9)  f32, S = BT * 17
    amask = basemask_ref[...] + col_ref[0]       # (S, S)  block-diag + causal + dof

    # token features: pose projection; (row-masked) bias + pos-enc are folded
    # into the precomputed additive constant `addc`.
    x = jnp.dot(poses.astype(BF16), wp_ref[...],
                preferred_element_type=F32) + addc_ref[...]          # (S, H) f32

    scale = 1.0 / math.sqrt(HEAD_DIM)
    for l in range(NUM_LAYERS):
        # ---------------- multi-head self-attention (pre-LN) ----------------
        h = _layer_norm(x, ln1g_ref[l], ln1b_ref[l]).astype(BF16)
        qkv = jnp.dot(h, wqkv_ref[l], preferred_element_type=F32) + bqkv_ref[l]
        ctxs = []
        for hh in range(NUM_HEADS):
            lo = hh * HEAD_DIM
            qh = qkv[:, lo:lo + HEAD_DIM].astype(BF16)
            kh = qkv[:, HIDDEN + lo:HIDDEN + lo + HEAD_DIM].astype(BF16)
            vh = qkv[:, 2 * HIDDEN + lo:2 * HIDDEN + lo + HEAD_DIM].astype(BF16)
            sc = jax.lax.dot_general(qh, kh, (((1,), (1,)), ((), ())),
                                     preferred_element_type=F32) * scale + amask
            sc = sc - jnp.max(sc, axis=-1, keepdims=True)
            p = jnp.exp(sc)
            p = p * pl.reciprocal(jnp.sum(p, axis=-1, keepdims=True), approx=True)
            ctxs.append(jnp.dot(p.astype(BF16), vh, preferred_element_type=F32))
        ctx = jnp.concatenate(ctxs, axis=1).astype(BF16)             # (S, H)
        x = x + jnp.dot(ctx, wo_ref[l], preferred_element_type=F32) + bo_ref[l]
        # --------------------------- MLP (pre-LN) ---------------------------
        h2 = _layer_norm(x, ln2g_ref[l], ln2b_ref[l]).astype(BF16)
        m = jnp.dot(h2, w1_ref[l], preferred_element_type=F32) + b1_ref[l]
        # TODO(synk): TransformerEncoderBlock source not provided; tanh-GELU assumed.
        m = jax.nn.gelu(m, approximate=True).astype(BF16)
        m = jnp.dot(m, w2_ref[l], preferred_element_type=F32) + b2_ref[l]
        x = x + m

    out_ref[0] = jnp.dot(x.astype(BF16), wfin_ref[...],
                         preferred_element_type=F32) + bfin_ref[...]


# ------------------------------- JAX wrapper ----------------------------------
@jax.jit
def pose_model_forward(params, ref_link_poses, target_pose, dof_mask):
    B = ref_link_poses.shape[0]
    bt = min(DEFAULT_BATCH_TILE, _round_up(B, 8))
    Bp = _round_up(B, bt)
    G = Bp // bt
    S = bt * NUM_TOKENS

    pad = Bp - B
    ref_p = jnp.pad(ref_link_poses.astype(F32), ((0, pad), (0, 0), (0, 0)))
    tgt_p = jnp.pad(target_pose.astype(F32), ((0, pad), (0, 0)))
    dof_p = jnp.pad(dof_mask, ((0, pad), (0, 0)))

    # [delta-query zeros ; ref poses ; target pose] per batch, flattened per tile.
    poses = jnp.concatenate(
        [jnp.zeros((Bp, D1, POSE_DIM), F32), ref_p, tgt_p[:, None, :]], axis=1)
    poses = poses.reshape(G, S, POSE_DIM)

    # Per-column additive dof contribution of the attention mask (tiny).
    dof_add = jnp.where(dof_p, -jnp.inf, 0.0).astype(F32)           # (Bp, D1)
    col = jnp.concatenate([dof_add, dof_add, jnp.zeros((Bp, 1), F32)], axis=1)
    col = col.reshape(G, 1, S)

    # Static per-tile constants: pos-enc + row-masked projection bias, and the
    # block-diagonal + causal base mask (so no (B, 17, 17) mask is ever shipped).
    tok = jnp.arange(S) % NUM_TOKENS
    blk = jnp.arange(S) // NUM_TOKENS
    rowmask = (tok >= D1).astype(F32)[:, None]          # bias only on ref/tgt rows
    add_const = jnp.tile(params['pos_enc'], (bt, 1)) + rowmask * params['b_proj']
    cross = blk[:, None] != blk[None, :]
    causal = (tok[None, :] > tok[:, None]) & (tok[None, :] < D1)
    base_mask = jnp.where(cross | causal, -jnp.inf, 0.0).astype(F32)    # (S, S)

    def const_spec(shape):
        zeros = (0,) * len(shape)
        return pl.BlockSpec(shape, lambda g, _z=zeros: _z)

    grid_spec = pltpu.PrefetchScalarGridSpec(
        num_scalar_prefetch=0,
        grid=(G,),
        in_specs=[
            pl.BlockSpec((1, S, POSE_DIM), lambda g: (g, 0, 0)),    # poses
            pl.BlockSpec((1, 1, S), lambda g: (g, 0, 0)),           # dof col mask
            const_spec((S, HIDDEN)),                                # add_const
            const_spec((S, S)),                                     # base_mask
            const_spec((POSE_DIM, HIDDEN)),                         # w_proj
            const_spec((NUM_LAYERS, 1, HIDDEN)),                    # ln1_g
            const_spec((NUM_LAYERS, 1, HIDDEN)),                    # ln1_b
            const_spec((NUM_LAYERS, HIDDEN, 3 * HIDDEN)),           # wqkv (fused)
            const_spec((NUM_LAYERS, 1, 3 * HIDDEN)),                # bqkv
            const_spec((NUM_LAYERS, HIDDEN, HIDDEN)),               # wo
            const_spec((NUM_LAYERS, 1, HIDDEN)),                    # bo
            const_spec((NUM_LAYERS, 1, HIDDEN)),                    # ln2_g
            const_spec((NUM_LAYERS, 1, HIDDEN)),                    # ln2_b
            const_spec((NUM_LAYERS, HIDDEN, MLP_DIM)),              # w1
            const_spec((NUM_LAYERS, 1, MLP_DIM)),                   # b1
            const_spec((NUM_LAYERS, MLP_DIM, HIDDEN)),              # w2
            const_spec((NUM_LAYERS, 1, HIDDEN)),                    # b2
            const_spec((HIDDEN, POSE_DIM)),                         # w_final
            const_spec((1, POSE_DIM)),                              # b_final
        ],
        out_specs=pl.BlockSpec((1, S, POSE_DIM), lambda g: (g, 0, 0)),
    )
    out = pl.pallas_call(
        pose_model_kernel,
        out_shape=jax.ShapeDtypeStruct((G, S, POSE_DIM), F32),
        grid_spec=grid_spec,
        compiler_params=pltpu.CompilerParams(
            dimension_semantics=("parallel",)),   # megacore-shardable on v7x
    )(poses, col, add_const, base_mask,
      params['w_proj'], params['ln1_g'], params['ln1_b'],
      params['wqkv'], params['bqkv'], params['wo'], params['bo'],
      params['ln2_g'], params['ln2_b'],
      params['w1'], params['b1'], params['w2'], params['b2'],
      params['w_final'], params['b_final'])
    return out.reshape(Bp, NUM_TOKENS, POSE_DIM)[:B]


# ------------------------------- policy glue ----------------------------------
def get_mask(dof_mask):
    """SinglestepPosePlanningPolicy.get_mask as (B, T, T) additive mask
    (pure JAX; used only by the reference -- the kernel builds its own mask)."""
    B = dof_mask.shape[0]
    neg_inf = jnp.float32(-jnp.inf)
    r = jnp.arange(NUM_TOKENS)
    causal = jnp.where(r[None, :] > r[:, None], neg_inf, jnp.float32(0.0))
    causal = causal.at[:, D1:].set(0.0)
    dof = jnp.where(dof_mask, neg_inf, jnp.float32(0.0))            # (B, D1)
    ext = jnp.broadcast_to(dof[:, None, :], (B, NUM_TOKENS, D1))
    mask = jnp.broadcast_to(causal[None], (B, NUM_TOKENS, NUM_TOKENS))
    mask = mask.at[:, :, :D1].add(ext)
    mask = mask.at[:, :, D1:2 * D1].add(ext)
    return mask


def get_action(params, data_dict):
    delta = pose_model_forward(params, data_dict['PA_9d'],
                               data_dict['goal_pose_9d'], data_dict['dof_mask'])
    return delta[:, :D1]


def policy_forward(params, data_dict):
    rel_poses = data_dict['TAB_9d_h'][:, 0]                          # (B, D1, 9)
    delta_poses = pose_model_forward(params, data_dict['PA_9d'],
                                     data_dict['goal_pose_9d'],
                                     data_dict['dof_mask'])
    se = (delta_poses[:, :D1] - rel_poses) ** 2                      # (B, D1, 9)
    keep = (~data_dict['dof_mask']).astype(F32)                      # (B, D1)
    # F.mse_loss(...)[~dof_mask].mean(): masked mean over selected rows x 9 dims
    loss = jnp.sum(se * keep[..., None]) / (jnp.sum(keep) * POSE_DIM)
    out = dict(data_dict)
    out['loss'] = loss
    out['delta_poses'] = delta_poses
    return out


# ------------------------------ parameter setup --------------------------------
def sinusoidal_pos_enc(seq_len, dim):
    pos = jnp.arange(seq_len, dtype=F32)[:, None]
    i = jnp.arange(0, dim, 2, dtype=F32)
    div = jnp.exp(-jnp.log(10000.0) * i / dim)
    pe = jnp.zeros((seq_len, dim), F32)
    pe = pe.at[:, 0::2].set(jnp.sin(pos * div))
    pe = pe.at[:, 1::2].set(jnp.cos(pos * div))
    return pe


def init_params(key):
    def xavier(k, shape):
        fan_in, fan_out = shape[-2], shape[-1]
        lim = math.sqrt(6.0 / (fan_in + fan_out))
        return jax.random.uniform(k, shape, F32, -lim, lim)

    ks = jax.random.split(key, 8)
    wq = xavier(ks[1], (NUM_LAYERS, HIDDEN, HIDDEN))
    wk = xavier(ks[2], (NUM_LAYERS, HIDDEN, HIDDEN))
    wv = xavier(ks[3], (NUM_LAYERS, HIDDEN, HIDDEN))
    return {
        'pos_enc': sinusoidal_pos_enc(NUM_TOKENS, HIDDEN),
        'w_proj': xavier(ks[0], (POSE_DIM, HIDDEN)).astype(BF16),
        'b_proj': jnp.zeros((1, HIDDEN), F32),
        'ln1_g': jnp.ones((NUM_LAYERS, 1, HIDDEN), F32),
        'ln1_b': jnp.zeros((NUM_LAYERS, 1, HIDDEN), F32),
        'wqkv': jnp.concatenate([wq, wk, wv], axis=-1).astype(BF16),
        'bqkv': jnp.zeros((NUM_LAYERS, 1, 3 * HIDDEN), F32),
        'wo': xavier(ks[4], (NUM_LAYERS, HIDDEN, HIDDEN)).astype(BF16),
        'bo': jnp.zeros((NUM_LAYERS, 1, HIDDEN), F32),
        'ln2_g': jnp.ones((NUM_LAYERS, 1, HIDDEN), F32),
        'ln2_b': jnp.zeros((NUM_LAYERS, 1, HIDDEN), F32),
        'w1': xavier(ks[5], (NUM_LAYERS, HIDDEN, MLP_DIM)).astype(BF16),
        'b1': jnp.zeros((NUM_LAYERS, 1, MLP_DIM), F32),
        'w2': xavier(ks[6], (NUM_LAYERS, MLP_DIM, HIDDEN)).astype(BF16),
        'b2': jnp.zeros((NUM_LAYERS, 1, HIDDEN), F32),
        # torch zero-inits final_layer; small random weights used instead.
        'w_final': (0.02 * jax.random.normal(ks[7], (HIDDEN, POSE_DIM), F32)).astype(BF16),
        'b_final': jnp.zeros((1, POSE_DIM), F32),
    }


# ----------------------------- pure-JAX reference ------------------------------
def pose_model_reference(params, ref_link_poses, target_pose, mask):
    """Same math as the kernel (bf16 matmul inputs, f32 accumulation)."""
    def mm(a, w):
        return jnp.dot(a.astype(BF16), w.astype(BF16), preferred_element_type=F32)

    B = ref_link_poses.shape[0]
    ref_feat = mm(ref_link_poses, params['w_proj']) + params['b_proj']
    tgt_feat = (mm(target_pose, params['w_proj']) + params['b_proj'])[:, None, :]
    x = jnp.concatenate([jnp.zeros_like(ref_feat), ref_feat, tgt_feat], axis=1)
    x = x + params['pos_enc'][None]
    scale = 1.0 / math.sqrt(HEAD_DIM)
    for l in range(NUM_LAYERS):
        h = _layer_norm(x, params['ln1_g'][l], params['ln1_b'][l])
        qkv = mm(h, params['wqkv'][l]) + params['bqkv'][l]
        q, k, v = qkv[..., :HIDDEN], qkv[..., HIDDEN:2 * HIDDEN], qkv[..., 2 * HIDDEN:]
        split = lambda t: t.reshape(B, NUM_TOKENS, NUM_HEADS, HEAD_DIM).transpose(0, 2, 1, 3)
        qh, kh, vh = split(q), split(k), split(v)
        sc = jnp.einsum('bhqd,bhkd->bhqk', qh.astype(BF16), kh.astype(BF16),
                        preferred_element_type=F32) * scale + mask[:, None]
        p = jax.nn.softmax(sc, axis=-1)
        ctx = jnp.einsum('bhqk,bhkd->bhqd', p.astype(BF16), vh.astype(BF16),
                         preferred_element_type=F32)
        ctx = ctx.transpose(0, 2, 1, 3).reshape(B, NUM_TOKENS, HIDDEN)
        x = x + mm(ctx, params['wo'][l]) + params['bo'][l]
        h2 = _layer_norm(x, params['ln2_g'][l], params['ln2_b'][l])
        m = mm(h2, params['w1'][l]) + params['b1'][l]
        m = jax.nn.gelu(m, approximate=True)
        x = x + mm(m, params['w2'][l]) + params['b2'][l]
    return mm(x, params['w_final']) + params['b_final']


# ------------------------------------ main -------------------------------------
if __name__ == "__main__":
    key = jax.random.PRNGKey(0)
    pk, dk1, dk2, dk3 = jax.random.split(key, 4)
    params = init_params(pk)

    B = 2
    PA_9d = jax.random.normal(dk1, (B, D1, POSE_DIM), F32)
    goal_pose_9d = jax.random.normal(dk2, (B, POSE_DIM), F32)
    TAB_9d_h = jax.random.normal(dk3, (B, 1, D1, POSE_DIM), F32)
    dof_mask = jnp.array(
        [[False] * D1,
         [False] * (D1 - 2) + [True] * 2], dtype=bool)               # (B, D1)

    data = {'PA_9d': PA_9d, 'goal_pose_9d': goal_pose_9d,
            'TAB_9d_h': TAB_9d_h, 'dof_mask': dof_mask}

    out = policy_forward(params, data)
    jax.block_until_ready(out['loss'])

    # correctness check vs. a pure-JAX reference of the same math
    delta_kernel = jax.block_until_ready(
        pose_model_forward(params, PA_9d, goal_pose_9d, dof_mask))
    delta_ref = pose_model_reference(params, PA_9d, goal_pose_9d, get_mask(dof_mask))
    max_err = float(jnp.max(jnp.abs(delta_kernel - delta_ref)))
    assert max_err < 2e-2, f"kernel/reference mismatch, max_err={max_err}"
    assert bool(jnp.isfinite(out['loss']))

    print("KERNEL_OK")
</pallas_src>

<mosaic_0001>
module attributes {stable_mosaic.version = 11 : i64} {
  func.func @pose_model_kernel(%arg0: i32, %arg1: memref<1x136x9xf32, #tpu.memory_space<vmem>>, %arg2: memref<1x1x136xf32, #tpu.memory_space<vmem>>, %arg3: memref<136x64xf32, #tpu.memory_space<vmem>>, %arg4: memref<136x136xf32, #tpu.memory_space<vmem>>, %arg5: memref<9x64xbf16, #tpu.memory_space<vmem>>, %arg6: memref<2x1x64xf32, #tpu.memory_space<vmem>>, %arg7: memref<2x1x64xf32, #tpu.memory_space<vmem>>, %arg8: memref<2x64x192xbf16, #tpu.memory_space<vmem>>, %arg9: memref<2x1x192xf32, #tpu.memory_space<vmem>>, %arg10: memref<2x64x64xbf16, #tpu.memory_space<vmem>>, %arg11: memref<2x1x64xf32, #tpu.memory_space<vmem>>, %arg12: memref<2x1x64xf32, #tpu.memory_space<vmem>>, %arg13: memref<2x1x64xf32, #tpu.memory_space<vmem>>, %arg14: memref<2x64x256xbf16, #tpu.memory_space<vmem>>, %arg15: memref<2x1x256xf32, #tpu.memory_space<vmem>>, %arg16: memref<2x256x64xbf16, #tpu.memory_space<vmem>>, %arg17: memref<2x1x64xf32, #tpu.memory_space<vmem>>, %arg18: memref<64x9xbf16, #tpu.memory_space<vmem>>, %arg19: memref<1x9xf32, #tpu.memory_space<vmem>>, %arg20: memref<1x136x9xf32, #tpu.memory_space<vmem>>) attributes {dimension_semantics = [#tpu.dimension_semantics<parallel>], iteration_bounds = array<i64: 1>, scalar_prefetch = 0 : i64, scratch_operands = 0 : i64, tpu.core_type = #tpu.core_type<tc>, window_params = [{transform_indices = @transform_0, window_bounds = array<i64: 1, 136, 9>}, {transform_indices = @transform_1, window_bounds = array<i64: 1, 1, 136>}, {pipeline_mode = #tpu.pipeline_mode<synchronous>, transform_indices = @transform_2, window_bounds = array<i64: 136, 64>}, {pipeline_mode = #tpu.pipeline_mode<synchronous>, transform_indices = @transform_3, window_bounds = array<i64: 136, 136>}, {pipeline_mode = #tpu.pipeline_mode<synchronous>, transform_indices = @transform_4, window_bounds = array<i64: 9, 64>}, {pipeline_mode = #tpu.pipeline_mode<synchronous>, transform_indices = @transform_5, window_bounds = array<i64: 2, 1, 64>}, {pipeline_mode = #tpu.pipeline_mode<synchronous>, transform_indices = @transform_6, window_bounds = array<i64: 2, 1, 64>}, {pipeline_mode = #tpu.pipeline_mode<synchronous>, transform_indices = @transform_7, window_bounds = array<i64: 2, 64, 192>}, {pipeline_mode = #tpu.pipeline_mode<synchronous>, transform_indices = @transform_8, window_bounds = array<i64: 2, 1, 192>}, {pipeline_mode = #tpu.pipeline_mode<synchronous>, transform_indices = @transform_9, window_bounds = array<i64: 2, 64, 64>}, {pipeline_mode = #tpu.pipeline_mode<synchronous>, transform_indices = @transform_10, window_bounds = array<i64: 2, 1, 64>}, {pipeline_mode = #tpu.pipeline_mode<synchronous>, transform_indices = @transform_11, window_bounds = array<i64: 2, 1, 64>}, {pipeline_mode = #tpu.pipeline_mode<synchronous>, transform_indices = @transform_12, window_bounds = array<i64: 2, 1, 64>}, {pipeline_mode = #tpu.pipeline_mode<synchronous>, transform_indices = @transform_13, window_bounds = array<i64: 2, 64, 256>}, {pipeline_mode = #tpu.pipeline_mode<synchronous>, transform_indices = @transform_14, window_bounds = array<i64: 2, 1, 256>}, {pipeline_mode = #tpu.pipeline_mode<synchronous>, transform_indices = @transform_15, window_bounds = array<i64: 2, 256, 64>}, {pipeline_mode = #tpu.pipeline_mode<synchronous>, transform_indices = @transform_16, window_bounds = array<i64: 2, 1, 64>}, {pipeline_mode = #tpu.pipeline_mode<synchronous>, transform_indices = @transform_17, window_bounds = array<i64: 64, 9>}, {pipeline_mode = #tpu.pipeline_mode<synchronous>, transform_indices = @transform_18, window_bounds = array<i64: 1, 9>}, {transform_indices = @transform_19, window_bounds = array<i64: 1, 136, 9>}]} {
    %c0 = arith.constant 0 : index
    %c0_0 = arith.constant 0 : index
    %c0_1 = arith.constant 0 : index
    %0 = vector.load %arg1[%c0, %c0_0, %c0_1] : memref<1x136x9xf32, #tpu.memory_space<vmem>>, vector<1x136x9xf32>
    %1 = vector.shape_cast %0 : vector<1x136x9xf32> to vector<136x9xf32>
    %c0_2 = arith.constant 0 : index
    %c0_3 = arith.constant 0 : index
    %2 = vector.load %arg4[%c0_2, %c0_3] : memref<136x136xf32, #tpu.memory_space<vmem>>, vector<136x136xf32>
    %c0_4 = arith.constant 0 : index
    %c0_5 = arith.constant 0 : index
    %c0_6 = arith.constant 0 : index
    %3 = vector.load %arg2[%c0_4, %c0_5, %c0_6] : memref<1x1x136xf32, #tpu.memory_space<vmem>>, vector<1x1x136xf32>
    %4 = vector.shape_cast %3 : vector<1x1x136xf32> to vector<1x136xf32>
    %5 = vector.broadcast %4 : vector<1x136xf32> to vector<136x136xf32>
    %6 = arith.addf %2, %5 : vector<136x136xf32>
    %7 = arith.truncf %1 : vector<136x9xf32> to vector<136x9xbf16>
    %c0_7 = arith.constant 0 : index
    %c0_8 = arith.constant 0 : index
    %8 = vector.load %arg5[%c0_7, %c0_8] : memref<9x64xbf16, #tpu.memory_space<vmem>>, vector<9x64xbf16>
    %cst = arith.constant dense<0.000000e+00> : vector<136x64xf32>
    %9 = tpu.matmul %7, %8, %cst {dimension_numbers = #tpu.dot_dimension_numbers<[1], [0], [0], [1], [0, 0, 1, 1], [], []>} : vector<136x9xbf16>, vector<9x64xbf16>, vector<136x64xf32> -> vector<136x64xf32>
    %c0_9 = arith.constant 0 : index
    %c0_10 = arith.constant 0 : index
    %10 = vector.load %arg3[%c0_9, %c0_10] : memref<136x64xf32, #tpu.memory_space<vmem>>, vector<136x64xf32>
    %11 = arith.addf %9, %10 : vector<136x64xf32>
    %c0_11 = arith.constant 0 : index
    %c0_12 = arith.constant 0 : index
    %c0_13 = arith.constant 0 : index
    %12 = vector.load %arg6[%c0_11, %c0_12, %c0_13] : memref<2x1x64xf32, #tpu.memory_space<vmem>>, vector<1x1x64xf32>
    %13 = vector.shape_cast %12 : vector<1x1x64xf32> to vector<1x64xf32>
    %c0_14 = arith.constant 0 : index
    %c0_15 = arith.constant 0 : index
    %c0_16 = arith.constant 0 : index
    %14 = vector.load %arg7[%c0_14, %c0_15, %c0_16] : memref<2x1x64xf32, #tpu.memory_space<vmem>>, vector<1x1x64xf32>
    %15 = vector.shape_cast %14 : vector<1x1x64xf32> to vector<1x64xf32>
    %cst_17 = arith.constant dense<0.000000e+00> : vector<136xf32>
    %16 = vector.multi_reduction <add>, %11, %cst_17 [1] : vector<136x64xf32> to vector<136xf32>
    %17 = vector.shape_cast %16 : vector<136xf32> to vector<136x1xf32>
    %cst_18 = arith.constant 6.400000e+01 : f32
    %18 = vector.broadcast %cst_18 : f32 to vector<136x1xf32>
    %19 = arith.divf %17, %18 : vector<136x1xf32>
    %20 = vector.broadcast %19 : vector<136x1xf32> to vector<136x64xf32>
    %21 = arith.subf %11, %20 : vector<136x64xf32>
    %22 = arith.mulf %21, %21 : vector<136x64xf32>
    %cst_19 = arith.constant dense<0.000000e+00> : vector<136xf32>
    %23 = vector.multi_reduction <add>, %22, %cst_19 [1] : vector<136x64xf32> to vector<136xf32>
    %24 = vector.shape_cast %23 : vector<136xf32> to vector<136x1xf32>
    %cst_20 = arith.constant 6.400000e+01 : f32
    %25 = vector.broadcast %cst_20 : f32 to vector<136x1xf32>
    %26 = arith.divf %24, %25 : vector<136x1xf32>
    %cst_21 = arith.constant 9.99999974E-6 : f32
    %27 = vector.broadcast %cst_21 : f32 to vector<136x1xf32>
    %28 = arith.addf %26, %27 : vector<136x1xf32>
    %29 = math.rsqrt %28 : vector<136x1xf32>
    %30 = vector.broadcast %29 : vector<136x1xf32> to vector<136x64xf32>
    %31 = arith.mulf %21, %30 : vector<136x64xf32>
    %32 = vector.broadcast %13 : vector<1x64xf32> to vector<136x64xf32>
    %33 = arith.mulf %31, %32 : vector<136x64xf32>
    %34 = vector.broadcast %15 : vector<1x64xf32> to vector<136x64xf32>
    %35 = arith.addf %33, %34 : vector<136x64xf32>
    %36 = arith.truncf %35 : vector<136x64xf32> to vector<136x64xbf16>
    %c0_22 = arith.constant 0 : index
    %c0_23 = arith.constant 0 : index
    %c0_24 = arith.constant 0 : index
    %37 = vector.load %arg8[%c0_22, %c0_23, %c0_24] : memref<2x64x192xbf16, #tpu.memory_space<vmem>>, vector<1x64x192xbf16>
    %38 = vector.shape_cast %37 : vector<1x64x192xbf16> to vector<64x192xbf16>
    %cst_25 = arith.constant dense<0.000000e+00> : vector<136x192xf32>
    %39 = tpu.matmul %36, %38, %cst_25 {dimension_numbers = #tpu.dot_dimension_numbers<[1], [0], [0], [1], [0, 0, 1, 1], [], []>} : vector<136x64xbf16>, vector<64x192xbf16>, vector<136x192xf32> -> vector<136x192xf32>
    %c0_26 = arith.constant 0 : index
    %c0_27 = arith.constant 0 : index
    %c0_28 = arith.constant 0 : index
    %40 = vector.load %arg9[%c0_26, %c0_27, %c0_28] : memref<2x1x192xf32, #tpu.memory_space<vmem>>, vector<1x1x192xf32>
    %41 = vector.shape_cast %40 : vector<1x1x192xf32> to vector<1x192xf32>
    %42 = vector.broadcast %41 : vector<1x192xf32> to vector<136x192xf32>
    %43 = arith.addf %39, %42 : vector<136x192xf32>
    %44 = vector.extract_strided_slice %43 {offsets = [0, 0], sizes = [136, 16], strides = [1, 1]} : vector<136x192xf32> to vector<136x16xf32>
    %45 = arith.truncf %44 : vector<136x16xf32> to vector<136x16xbf16>
    %46 = vector.extract_strided_slice %43 {offsets = [0, 64], sizes = [136, 16], strides = [1, 1]} : vector<136x192xf32> to vector<136x16xf32>
    %47 = arith.truncf %46 : vector<136x16xf32> to vector<136x16xbf16>
    %48 = vector.extract_strided_slice %43 {offsets = [0, 128], sizes = [136, 16], strides = [1, 1]} : vector<136x192xf32> to vector<136x16xf32>
    %49 = arith.truncf %48 : vector<136x16xf32> to vector<136x16xbf16>
    %cst_29 = arith.constant dense<0.000000e+00> : vector<136x136xf32>
    %50 = tpu.matmul %45, %47, %cst_29 {dimension_numbers = #tpu.dot_dimension_numbers<[1], [1], [0], [0], [0, 0, 1, 0], [], []>} : vector<136x16xbf16>, vector<136x16xbf16>, vector<136x136xf32> -> vector<136x136xf32>
    %cst_30 = arith.constant 2.500000e-01 : f32
    %51 = vector.broadcast %cst_30 : f32 to vector<136x136xf32>
    %52 = arith.mulf %50, %51 : vector<136x136xf32>
    %53 = arith.addf %52, %6 : vector<136x136xf32>
    %cst_31 = arith.constant dense<0xFF800000> : vector<136xf32>
    %54 = vector.multi_reduction <maximumf>, %53, %cst_31 [1] : vector<136x136xf32> to vector<136xf32>
    %55 = vector.shape_cast %54 : vector<136xf32> to vector<136x1xf32>
    %56 = vector.broadcast %55 : vector<136x1xf32> to vector<136x136xf32>
    %57 = arith.subf %53, %56 : vector<136x136xf32>
    %58 = math.exp %57 : vector<136x136xf32>
    %cst_32 = arith.constant dense<0.000000e+00> : vector<136xf32>
    %59 = vector.multi_reduction <add>, %58, %cst_32 [1] : vector<136x136xf32> to vector<136xf32>
    %60 = vector.shape_cast %59 : vector<136xf32> to vector<136x1xf32>
    %61 = tpu.reciprocal %60 {approx = true} : vector<136x1xf32> -> vector<136x1xf32>
    %62 = vector.broadcast %61 : vector<136x1xf32> to vector<136x136xf32>
    %63 = arith.mulf %58, %62 : vector<136x136xf32>
    %64 = arith.truncf %63 : vector<136x136xf32> to vector<136x136xbf16>
    %cst_33 = arith.constant dense<0.000000e+00> : vector<136x16xf32>
    %65 = tpu.matmul %64, %49, %cst_33 {dimension_numbers = #tpu.dot_dimension_numbers<[1], [0], [0], [1], [0, 0, 1, 1], [], []>} : vector<136x136xbf16>, vector<136x16xbf16>, vector<136x16xf32> -> vector<136x16xf32>
    %66 = vector.extract_strided_slice %43 {offsets = [0, 16], sizes = [136, 16], strides = [1, 1]} : vector<136x192xf32> to vector<136x16xf32>
    %67 = arith.truncf %66 : vector<136x16xf32> to vector<136x16xbf16>
    %68 = vector.extract_strided_slice %43 {offsets = [0, 80], sizes = [136, 16], strides = [1, 1]} : vector<136x192xf32> to vector<136x16xf32>
    %69 = arith.truncf %68 : vector<136x16xf32> to vector<136x16xbf16>
    %70 = vector.extract_strided_slice %43 {offsets = [0, 144], sizes = [136, 16], strides = [1, 1]} : vector<136x192xf32> to vector<136x16xf32>
    %71 = arith.truncf %70 : vector<136x16xf32> to vector<136x16xbf16>
    %cst_34 = arith.constant dense<0.000000e+00> : vector<136x136xf32>
    %72 = tpu.matmul %67, %69, %cst_34 {dimension_numbers = #tpu.dot_dimension_numbers<[1], [1], [0], [0], [0, 0, 1, 0], [], []>} : vector<136x16xbf16>, vector<136x16xbf16>, vector<136x136xf32> -> vector<136x136xf32>
    %cst_35 = arith.constant 2.500000e-01 : f32
    %73 = vector.broadcast %cst_35 : f32 to vector<136x136xf32>
    %74 = arith.mulf %72, %73 : vector<136x136xf32>
    %75 = arith.addf %74, %6 : vector<136x136xf32>
    %cst_36 = arith.constant dense<0xFF800000> : vector<136xf32>
    %76 = vector.multi_reduction <maximumf>, %75, %cst_36 [1] : vector<136x136xf32> to vector<136xf32>
    %77 = vector.shape_cast %76 : vector<136xf32> to vector<136x1xf32>
    %78 = vector.broadcast %77 : vector<136x1xf32> to vector<136x136xf32>
    %79 = arith.subf %75, %78 : vector<136x136xf32>
    %80 = math.exp %79 : vector<136x136xf32>
    %cst_37 = arith.constant dense<0.000000e+00> : vector<136xf32>
    %81 = vector.multi_reduction <add>, %80, %cst_37 [1] : vector<136x136xf32> to vector<136xf32>
    %82 = vector.shape_cast %81 : vector<136xf32> to vector<136x1xf32>
    %83 = tpu.reciprocal %82 {approx = true} : vector<136x1xf32> -> vector<136x1xf32>
    %84 = vector.broadcast %83 : vector<136x1xf32> to vector<136x136xf32>
    %85 = arith.mulf %80, %84 : vector<136x136xf32>
    %86 = arith.truncf %85 : vector<136x136xf32> to vector<136x136xbf16>
    %cst_38 = arith.constant dense<0.000000e+00> : vector<136x16xf32>
    %87 = tpu.matmul %86, %71, %cst_38 {dimension_numbers = #tpu.dot_dimension_numbers<[1], [0], [0], [1], [0, 0, 1, 1], [], []>} : vector<136x136xbf16>, vector<136x16xbf16>, vector<136x16xf32> -> vector<136x16xf32>
    %88 = vector.extract_strided_slice %43 {offsets = [0, 32], sizes = [136, 16], strides = [1, 1]} : vector<136x192xf32> to vector<136x16xf32>
    %89 = arith.truncf %88 : vector<136x16xf32> to vector<136x16xbf16>
    %90 = vector.extract_strided_slice %43 {offsets = [0, 96], sizes = [136, 16], strides = [1, 1]} : vector<136x192xf32> to vector<136x16xf32>
    %91 = arith.truncf %90 : vector<136x16xf32> to vector<136x16xbf16>
    %92 = vector.extract_strided_slice %43 {offsets = [0, 160], sizes = [136, 16], strides = [1, 1]} : vector<136x192xf32> to vector<136x16xf32>
    %93 = arith.truncf %92 : vector<136x16xf32> to vector<136x16xbf16>
    %cst_39 = arith.constant dense<0.000000e+00> : vector<136x136xf32>
    %94 = tpu.matmul %89, %91, %cst_39 {dimension_numbers = #tpu.dot_dimension_numbers<[1], [1], [0], [0], [0, 0, 1, 0], [], []>} : vector<136x16xbf16>, vector<136x16xbf16>, vector<136x136xf32> -> vector<136x136xf32>
    %cst_40 = arith.constant 2.500000e-01 : f32
    %95 = vector.broadcast %cst_40 : f32 to vector<136x136xf32>
    %96 = arith.mulf %94, %95 : vector<136x136xf32>
    %97 = arith.addf %96, %6 : vector<136x136xf32>
    %cst_41 = arith.constant dense<0xFF800000> : vector<136xf32>
    %98 = vector.multi_reduction <maximumf>, %97, %cst_41 [1] : vector<136x136xf32> to vector<136xf32>
    %99 = vector.shape_cast %98 : vector<136xf32> to vector<136x1xf32>
    %100 = vector.broadcast %99 : vector<136x1xf32> to vector<136x136xf32>
    %101 = arith.subf %97, %100 : vector<136x136xf32>
    %102 = math.exp %101 : vector<136x136xf32>
    %cst_42 = arith.constant dense<0.000000e+00> : vector<136xf32>
    %103 = vector.multi_reduction <add>, %102, %cst_42 [1] : vector<136x136xf32> to vector<136xf32>
    %104 = vector.shape_cast %103 : vector<136xf32> to vector<136x1xf32>
    %105 = tpu.reciprocal %104 {approx = true} : vector<136x1xf32> -> vector<136x1xf32>
    %106 = vector.broadcast %105 : vector<136x1xf32> to vector<136x136xf32>
    %107 = arith.mulf %102, %106 : vector<136x136xf32>
    %108 = arith.truncf %107 : vector<136x136xf32> to vector<136x136xbf16>
    %cst_43 = arith.constant dense<0.000000e+00> : vector<136x16xf32>
    %109 = tpu.matmul %108, %93, %cst_43 {dimension_numbers = #tpu.dot_dimension_numbers<[1], [0], [0], [1], [0, 0, 1, 1], [], []>} : vector<136x136xbf16>, vector<136x16xbf16>, vector<136x16xf32> -> vector<136x16xf32>
    %110 = vector.extract_strided_slice %43 {offsets = [0, 48], sizes = [136, 16], strides = [1, 1]} : vector<136x192xf32> to vector<136x16xf32>
    %111 = arith.truncf %110 : vector<136x16xf32> to vector<136x16xbf16>
    %112 = vector.extract_strided_slice %43 {offsets = [0, 112], sizes = [136, 16], strides = [1, 1]} : vector<136x192xf32> to vector<136x16xf32>
    %113 = arith.truncf %112 : vector<136x16xf32> to vector<136x16xbf16>
    %114 = vector.extract_strided_slice %43 {offsets = [0, 176], sizes = [136, 16], strides = [1, 1]} : vector<136x192xf32> to vector<136x16xf32>
    %115 = arith.truncf %114 : vector<136x16xf32> to vector<136x16xbf16>
    %cst_44 = arith.constant dense<0.000000e+00> : vector<136x136xf32>
    %116 = tpu.matmul %111, %113, %cst_44 {dimension_numbers = #tpu.dot_dimension_numbers<[1], [1], [0], [0], [0, 0, 1, 0], [], []>} : vector<136x16xbf16>, vector<136x16xbf16>, vector<136x136xf32> -> vector<136x136xf32>
    %cst_45 = arith.constant 2.500000e-01 : f32
    %117 = vector.broadcast %cst_45 : f32 to vector<136x136xf32>
    %118 = arith.mulf %116, %117 : vector<136x136xf32>
    %119 = arith.addf %118, %6 : vector<136x136xf32>
    %cst_46 = arith.constant dense<0xFF800000> : vector<136xf32>
    %120 = vector.multi_reduction <maximumf>, %119, %cst_46 [1] : vector<136x136xf32> to vector<136xf32>
    %121 = vector.shape_cast %120 : vector<136xf32> to vector<136x1xf32>
    %122 = vector.broadcast %121 : vector<136x1xf32> to vector<136x136xf32>
    %123 = arith.subf %119, %122 : vector<136x136xf32>
    %124 = math.exp %123 : vector<136x136xf32>
    %cst_47 = arith.constant dense<0.000000e+00> : vector<136xf32>
    %125 = vector.multi_reduction <add>, %124, %cst_47 [1] : vector<136x136xf32> to vector<136xf32>
    %126 = vector.shape_cast %125 : vector<136xf32> to vector<136x1xf32>
    %127 = tpu.reciprocal %126 {approx = true} : vector<136x1xf32> -> vector<136x1xf32>
    %128 = vector.broadcast %127 : vector<136x1xf32> to vector<136x136xf32>
    %129 = arith.mulf %124, %128 : vector<136x136xf32>
    %130 = arith.truncf %129 : vector<136x136xf32> to vector<136x136xbf16>
    %cst_48 = arith.constant dense<0.000000e+00> : vector<136x16xf32>
    %131 = tpu.matmul %130, %115, %cst_48 {dimension_numbers = #tpu.dot_dimension_numbers<[1], [0], [0], [1], [0, 0, 1, 1], [], []>} : vector<136x136xbf16>, vector<136x16xbf16>, vector<136x16xf32> -> vector<136x16xf32>
    %132 = tpu.concatenate %65, %87, %109, %131 in 1 : vector<136x16xf32>, vector<136x16xf32>, vector<136x16xf32>, vector<136x16xf32> -> vector<136x64xf32>
    %133 = arith.truncf %132 : vector<136x64xf32> to vector<136x64xbf16>
    %c0_49 = arith.constant 0 : index
    %c0_50 = arith.constant 0 : index
    %c0_51 = arith.constant 0 : index
    %134 = vector.load %arg10[%c0_49, %c0_50, %c0_51] : memref<2x64x64xbf16, #tpu.memory_space<vmem>>, vector<1x64x64xbf16>
    %135 = vector.shape_cast %134 : vector<1x64x64xbf16> to vector<64x64xbf16>
    %cst_52 = arith.constant dense<0.000000e+00> : vector<136x64xf32>
    %136 = tpu.matmul %133, %135, %cst_52 {dimension_numbers = #tpu.dot_dimension_numbers<[1], [0], [0], [1], [0, 0, 1, 1], [], []>} : vector<136x64xbf16>, vector<64x64xbf16>, vector<136x64xf32> -> vector<136x64xf32>
    %137 = arith.addf %11, %136 : vector<136x64xf32>
    %c0_53 = arith.constant 0 : index
    %c0_54 = arith.constant 0 : index
    %c0_55 = arith.constant 0 : index
    %138 = vector.load %arg11[%c0_53, %c0_54, %c0_55] : memref<2x1x64xf32, #tpu.memory_space<vmem>>, vector<1x1x64xf32>
    %139 = vector.shape_cast %138 : vector<1x1x64xf32> to vector<1x64xf32>
    %140 = vector.broadcast %139 : vector<1x64xf32> to vector<136x64xf32>
    %141 = arith.addf %137, %140 : vector<136x64xf32>
    %c0_56 = arith.constant 0 : index
    %c0_57 = arith.constant 0 : index
    %c0_58 = arith.constant 0 : index
    %142 = vector.load %arg12[%c0_56, %c0_57, %c0_58] : memref<2x1x64xf32, #tpu.memory_space<vmem>>, vector<1x1x64xf32>
    %143 = vector.shape_cast %142 : vector<1x1x64xf32> to vector<1x64xf32>
    %c0_59 = arith.constant 0 : index
    %c0_60 = arith.constant 0 : index
    %c0_61 = arith.constant 0 : index
    %144 = vector.load %arg13[%c0_59, %c0_60, %c0_61] : memref<2x1x64xf32, #tpu.memory_space<vmem>>, vector<1x1x64xf32>
    %145 = vector.shape_cast %144 : vector<1x1x64xf32> to vector<1x64xf32>
    %cst_62 = arith.constant dense<0.000000e+00> : vector<136xf32>
    %146 = vector.multi_reduction <add>, %141, %cst_62 [1] : vector<136x64xf32> to vector<136xf32>
    %147 = vector.shape_cast %146 : vector<136xf32> to vector<136x1xf32>
    %cst_63 = arith.constant 6.400000e+01 : f32
    %148 = vector.broadcast %cst_63 : f32 to vector<136x1xf32>
    %149 = arith.divf %147, %148 : vector<136x1xf32>
    %150 = vector.broadcast %149 : vector<136x1xf32> to vector<136x64xf32>
    %151 = arith.subf %141, %150 : vector<136x64xf32>
    %152 = arith.mulf %151, %151 : vector<136x64xf32>
    %cst_64 = arith.constant dense<0.000000e+00> : vector<136xf32>
    %153 = vector.multi_reduction <add>, %152, %cst_64 [1] : vector<136x64xf32> to vector<136xf32>
    %154 = vector.shape_cast %153 : vector<136xf32> to vector<136x1xf32>
    %cst_65 = arith.constant 6.400000e+01 : f32
    %155 = vector.broadcast %cst_65 : f32 to vector<136x1xf32>
    %156 = arith.divf %154, %155 : vector<136x1xf32>
    %cst_66 = arith.constant 9.99999974E-6 : f32
    %157 = vector.broadcast %cst_66 : f32 to vector<136x1xf32>
    %158 = arith.addf %156, %157 : vector<136x1xf32>
    %159 = math.rsqrt %158 : vector<136x1xf32>
    %160 = vector.broadcast %159 : vector<136x1xf32> to vector<136x64xf32>
    %161 = arith.mulf %151, %160 : vector<136x64xf32>
    %162 = vector.broadcast %143 : vector<1x64xf32> to vector<136x64xf32>
    %163 = arith.mulf %161, %162 : vector<136x64xf32>
    %164 = vector.broadcast %145 : vector<1x64xf32> to vector<136x64xf32>
    %165 = arith.addf %163, %164 : vector<136x64xf32>
    %166 = arith.truncf %165 : vector<136x64xf32> to vector<136x64xbf16>
    %c0_67 = arith.constant 0 : index
    %c0_68 = arith.constant 0 : index
    %c0_69 = arith.constant 0 : index
    %167 = vector.load %arg14[%c0_67, %c0_68, %c0_69] : memref<2x64x256xbf16, #tpu.memory_space<vmem>>, vector<1x64x256xbf16>
    %168 = vector.shape_cast %167 : vector<1x64x256xbf16> to vector<64x256xbf16>
    %cst_70 = arith.constant dense<0.000000e+00> : vector<136x256xf32>
    %169 = tpu.matmul %166, %168, %cst_70 {dimension_numbers = #tpu.dot_dimension_numbers<[1], [0], [0], [1], [0, 0, 1, 1], [], []>} : vector<136x64xbf16>, vector<64x256xbf16>, vector<136x256xf32> -> vector<136x256xf32>
    %c0_71 = arith.constant 0 : index
    %c0_72 = arith.constant 0 : index
    %c0_73 = arith.constant 0 : index
    %170 = vector.load %arg15[%c0_71, %c0_72, %c0_73] : memref<2x1x256xf32, #tpu.memory_space<vmem>>, vector<1x1x256xf32>
    %171 = vector.shape_cast %170 : vector<1x1x256xf32> to vector<1x256xf32>
    %172 = vector.broadcast %171 : vector<1x256xf32> to vector<136x256xf32>
    %173 = arith.addf %169, %172 : vector<136x256xf32>
    %174 = arith.mulf %173, %173 : vector<136x256xf32>
    %175 = arith.mulf %173, %174 : vector<136x256xf32>
    %cst_74 = arith.constant 4.471500e-02 : f32
    %176 = vector.broadcast %cst_74 : f32 to vector<136x256xf32>
    %177 = arith.mulf %176, %175 : vector<136x256xf32>
    %178 = arith.addf %173, %177 : vector<136x256xf32>
    %cst_75 = arith.constant 0.797884583 : f32
    %179 = vector.broadcast %cst_75 : f32 to vector<136x256xf32>
    %180 = arith.mulf %179, %178 : vector<136x256xf32>
    %181 = math.tanh %180 : vector<136x256xf32>
    %cst_76 = arith.constant 1.000000e+00 : f32
    %182 = vector.broadcast %cst_76 : f32 to vector<136x256xf32>
    %183 = arith.addf %182, %181 : vector<136x256xf32>
    %cst_77 = arith.constant 5.000000e-01 : f32
    %184 = vector.broadcast %cst_77 : f32 to vector<136x256xf32>
    %185 = arith.mulf %184, %183 : vector<136x256xf32>
    %186 = arith.mulf %173, %185 : vector<136x256xf32>
    %187 = arith.truncf %186 : vector<136x256xf32> to vector<136x256xbf16>
    %c0_78 = arith.constant 0 : index
    %c0_79 = arith.constant 0 : index
    %c0_80 = arith.constant 0 : index
    %188 = vector.load %arg16[%c0_78, %c0_79, %c0_80] : memref<2x256x64xbf16, #tpu.memory_space<vmem>>, vector<1x256x64xbf16>
    %189 = vector.shape_cast %188 : vector<1x256x64xbf16> to vector<256x64xbf16>
    %cst_81 = arith.constant dense<0.000000e+00> : vector<136x64xf32>
    %190 = tpu.matmul %187, %189, %cst_81 {dimension_numbers = #tpu.dot_dimension_numbers<[1], [0], [0], [1], [0, 0, 1, 1], [], []>} : vector<136x256xbf16>, vector<256x64xbf16>, vector<136x64xf32> -> vector<136x64xf32>
    %c0_82 = arith.constant 0 : index
    %c0_83 = arith.constant 0 : index
    %c0_84 = arith.constant 0 : index
    %191 = vector.load %arg17[%c0_82, %c0_83, %c0_84] : memref<2x1x64xf32, #tpu.memory_space<vmem>>, vector<1x1x64xf32>
    %192 = vector.shape_cast %191 : vector<1x1x64xf32> to vector<1x64xf32>
    %193 = vector.broadcast %192 : vector<1x64xf32> to vector<136x64xf32>
    %194 = arith.addf %190, %193 : vector<136x64xf32>
    %195 = arith.addf %141, %194 : vector<136x64xf32>
    %c1 = arith.constant 1 : index
    %c0_85 = arith.constant 0 : index
    %c0_86 = arith.constant 0 : index
    %196 = vector.load %arg6[%c1, %c0_85, %c0_86] : memref<2x1x64xf32, #tpu.memory_space<vmem>>, vector<1x1x64xf32>
    %197 = vector.shape_cast %196 : vector<1x1x64xf32> to vector<1x64xf32>
    %c1_87 = arith.constant 1 : index
    %c0_88 = arith.constant 0 : index
    %c0_89 = arith.constant 0 : index
    %198 = vector.load %arg7[%c1_87, %c0_88, %c0_89] : memref<2x1x64xf32, #tpu.memory_space<vmem>>, vector<1x1x64xf32>
    %199 = vector.shape_cast %198 : vector<1x1x64xf32> to vector<1x64xf32>
    %cst_90 = arith.constant dense<0.000000e+00> : vector<136xf32>
    %200 = vector.multi_reduction <add>, %195, %cst_90 [1] : vector<136x64xf32> to vector<136xf32>
    %201 = vector.shape_cast %200 : vector<136xf32> to vector<136x1xf32>
    %cst_91 = arith.constant 6.400000e+01 : f32
    %202 = vector.broadcast %cst_91 : f32 to vector<136x1xf32>
    %203 = arith.divf %201, %202 : vector<136x1xf32>
    %204 = vector.broadcast %203 : vector<136x1xf32> to vector<136x64xf32>
    %205 = arith.subf %195, %204 : vector<136x64xf32>
    %206 = arith.mulf %205, %205 : vector<136x64xf32>
    %cst_92 = arith.constant dense<0.000000e+00> : vector<136xf32>
    %207 = vector.multi_reduction <add>, %206, %cst_92 [1] : vector<136x64xf32> to vector<136xf32>
    %208 = vector.shape_cast %207 : vector<136xf32> to vector<136x1xf32>
    %cst_93 = arith.constant 6.400000e+01 : f32
    %209 = vector.broadcast %cst_93 : f32 to vector<136x1xf32>
    %210 = arith.divf %208, %209 : vector<136x1xf32>
    %cst_94 = arith.constant 9.99999974E-6 : f32
    %211 = vector.broadcast %cst_94 : f32 to vector<136x1xf32>
    %212 = arith.addf %210, %211 : vector<136x1xf32>
    %213 = math.rsqrt %212 : vector<136x1xf32>
    %214 = vector.broadcast %213 : vector<136x1xf32> to vector<136x64xf32>
    %215 = arith.mulf %205, %214 : vector<136x64xf32>
    %216 = vector.broadcast %197 : vector<1x64xf32> to vector<136x64xf32>
    %217 = arith.mulf %215, %216 : vector<136x64xf32>
    %218 = vector.broadcast %199 : vector<1x64xf32> to vector<136x64xf32>
    %219 = arith.addf %217, %218 : vector<136x64xf32>
    %220 = arith.truncf %219 : vector<136x64xf32> to vector<136x64xbf16>
    %c1_95 = arith.constant 1 : index
    %c0_96 = arith.constant 0 : index
    %c0_97 = arith.constant 0 : index
    %221 = vector.load %arg8[%c1_95, %c0_96, %c0_97] : memref<2x64x192xbf16, #tpu.memory_space<vmem>>, vector<1x64x192xbf16>
    %222 = vector.shape_cast %221 : vector<1x64x192xbf16> to vector<64x192xbf16>
    %cst_98 = arith.constant dense<0.000000e+00> : vector<136x192xf32>
    %223 = tpu.matmul %220, %222, %cst_98 {dimension_numbers = #tpu.dot_dimension_numbers<[1], [0], [0], [1], [0, 0, 1, 1], [], []>} : vector<136x64xbf16>, vector<64x192xbf16>, vector<136x192xf32> -> vector<136x192xf32>
    %c1_99 = arith.constant 1 : index
    %c0_100 = arith.constant 0 : index
    %c0_101 = arith.constant 0 : index
    %224 = vector.load %arg9[%c1_99, %c0_100, %c0_101] : memref<2x1x192xf32, #tpu.memory_space<vmem>>, vector<1x1x192xf32>
    %225 = vector.shape_cast %224 : vector<1x1x192xf32> to vector<1x192xf32>
    %226 = vector.broadcast %225 : vector<1x192xf32> to vector<136x192xf32>
    %227 = arith.addf %223, %226 : vector<136x192xf32>
    %228 = vector.extract_strided_slice %227 {offsets = [0, 0], sizes = [136, 16], strides = [1, 1]} : vector<136x192xf32> to vector<136x16xf32>
    %229 = arith.truncf %228 : vector<136x16xf32> to vector<136x16xbf16>
    %230 = vector.extract_strided_slice %227 {offsets = [0, 64], sizes = [136, 16], strides = [1, 1]} : vector<136x192xf32> to vector<136x16xf32>
    %231 = arith.truncf %230 : vector<136x16xf32> to vector<136x16xbf16>
    %232 = vector.extract_strided_slice %227 {offsets = [0, 128], sizes = [136, 16], strides = [1, 1]} : vector<136x192xf32> to vector<136x16xf32>
    %233 = arith.truncf %232 : vector<136x16xf32> to vector<136x16xbf16>
    %cst_102 = arith.constant dense<0.000000e+00> : vector<136x136xf32>
    %234 = tpu.matmul %229, %231, %cst_102 {dimension_numbers = #tpu.dot_dimension_numbers<[1], [1], [0], [0], [0, 0, 1, 0], [], []>} : vector<136x16xbf16>, vector<136x16xbf16>, vector<136x136xf32> -> vector<136x136xf32>
    %cst_103 = arith.constant 2.500000e-01 : f32
    %235 = vector.broadcast %cst_103 : f32 to vector<136x136xf32>
    %236 = arith.mulf %234, %235 : vector<136x136xf32>
    %237 = arith.addf %236, %6 : vector<136x136xf32>
    %cst_104 = arith.constant dense<0xFF800000> : vector<136xf32>
    %238 = vector.multi_reduction <maximumf>, %237, %cst_104 [1] : vector<136x136xf32> to vector<136xf32>
    %239 = vector.shape_cast %238 : vector<136xf32> to vector<136x1xf32>
    %240 = vector.broadcast %239 : vector<136x1xf32> to vector<136x136xf32>
    %241 = arith.subf %237, %240 : vector<136x136xf32>
    %242 = math.exp %241 : vector<136x136xf32>
    %cst_105 = arith.constant dense<0.000000e+00> : vector<136xf32>
    %243 = vector.multi_reduction <add>, %242, %cst_105 [1] : vector<136x136xf32> to vector<136xf32>
    %244 = vector.shape_cast %243 : vector<136xf32> to vector<136x1xf32>
    %245 = tpu.reciprocal %244 {approx = true} : vector<136x1xf32> -> vector<136x1xf32>
    %246 = vector.broadcast %245 : vector<136x1xf32> to vector<136x136xf32>
    %247 = arith.mulf %242, %246 : vector<136x136xf32>
    %248 = arith.truncf %247 : vector<136x136xf32> to vector<136x136xbf16>
    %cst_106 = arith.constant dense<0.000000e+00> : vector<136x16xf32>
    %249 = tpu.matmul %248, %233, %cst_106 {dimension_numbers = #tpu.dot_dimension_numbers<[1], [0], [0], [1], [0, 0, 1, 1], [], []>} : vector<136x136xbf16>, vector<136x16xbf16>, vector<136x16xf32> -> vector<136x16xf32>
    %250 = vector.extract_strided_slice %227 {offsets = [0, 16], sizes = [136, 16], strides = [1, 1]} : vector<136x192xf32> to vector<136x16xf32>
    %251 = arith.truncf %250 : vector<136x16xf32> to vector<136x16xbf16>
    %252 = vector.extract_strided_slice %227 {offsets = [0, 80], sizes = [136, 16], strides = [1, 1]} : vector<136x192xf32> to vector<136x16xf32>
    %253 = arith.truncf %252 : vector<136x16xf32> to vector<136x16xbf16>
    %254 = vector.extract_strided_slice %227 {offsets = [0, 144], sizes = [136, 16], strides = [1, 1]} : vector<136x192xf32> to vector<136x16xf32>
    %255 = arith.truncf %254 : vector<136x16xf32> to vector<136x16xbf16>
    %cst_107 = arith.constant dense<0.000000e+00> : vector<136x136xf32>
    %256 = tpu.matmul %251, %253, %cst_107 {dimension_numbers = #tpu.dot_dimension_numbers<[1], [1], [0], [0], [0, 0, 1, 0], [], []>} : vector<136x16xbf16>, vector<136x16xbf16>, vector<136x136xf32> -> vector<136x136xf32>
    %cst_108 = arith.constant 2.500000e-01 : f32
    %257 = vector.broadcast %cst_108 : f32 to vector<136x136xf32>
    %258 = arith.mulf %256, %257 : vector<136x136xf32>
    %259 = arith.addf %258, %6 : vector<136x136xf32>
    %cst_109 = arith.constant dense<0xFF800000> : vector<136xf32>
    %260 = vector.multi_reduction <maximumf>, %259, %cst_109 [1] : vector<136x136xf32> to vector<136xf32>
    %261 = vector.shape_cast %260 : vector<136xf32> to vector<136x1xf32>
    %262 = vector.broadcast %261 : vector<136x1xf32> to vector<136x136xf32>
    %263 = arith.subf %259, %262 : vector<136x136xf32>
    %264 = math.exp %263 : vector<136x136xf32>
    %cst_110 = arith.constant dense<0.000000e+00> : vector<136xf32>
    %265 = vector.multi_reduction <add>, %264, %cst_110 [1] : vector<136x136xf32> to vector<136xf32>
    %266 = vector.shape_cast %265 : vector<136xf32> to vector<136x1xf32>
    %267 = tpu.reciprocal %266 {approx = true} : vector<136x1xf32> -> vector<136x1xf32>
    %268 = vector.broadcast %267 : vector<136x1xf32> to vector<136x136xf32>
    %269 = arith.mulf %264, %268 : vector<136x136xf32>
    %270 = arith.truncf %269 : vector<136x136xf32> to vector<136x136xbf16>
    %cst_111 = arith.constant dense<0.000000e+00> : vector<136x16xf32>
    %271 = tpu.matmul %270, %255, %cst_111 {dimension_numbers = #tpu.dot_dimension_numbers<[1], [0], [0], [1], [0, 0, 1, 1], [], []>} : vector<136x136xbf16>, vector<136x16xbf16>, vector<136x16xf32> -> vector<136x16xf32>
    %272 = vector.extract_strided_slice %227 {offsets = [0, 32], sizes = [136, 16], strides = [1, 1]} : vector<136x192xf32> to vector<136x16xf32>
    %273 = arith.truncf %272 : vector<136x16xf32> to vector<136x16xbf16>
    %274 = vector.extract_strided_slice %227 {offsets = [0, 96], sizes = [136, 16], strides = [1, 1]} : vector<136x192xf32> to vector<136x16xf32>
    %275 = arith.truncf %274 : vector<136x16xf32> to vector<136x16xbf16>
    %276 = vector.extract_strided_slice %227 {offsets = [0, 160], sizes = [136, 16], strides = [1, 1]} : vector<136x192xf32> to vector<136x16xf32>
    %277 = arith.truncf %276 : vector<136x16xf32> to vector<136x16xbf16>
    %cst_112 = arith.constant dense<0.000000e+00> : vector<136x136xf32>
    %278 = tpu.matmul %273, %275, %cst_112 {dimension_numbers = #tpu.dot_dimension_numbers<[1], [1], [0], [0], [0, 0, 1, 0], [], []>} : vector<136x16xbf16>, vector<136x16xbf16>, vector<136x136xf32> -> vector<136x136xf32>
    %cst_113 = arith.constant 2.500000e-01 : f32
    %279 = vector.broadcast %cst_113 : f32 to vector<136x136xf32>
    %280 = arith.mulf %278, %279 : vector<136x136xf32>
    %281 = arith.addf %280, %6 : vector<136x136xf32>
    %cst_114 = arith.constant dense<0xFF800000> : vector<136xf32>
    %282 = vector.multi_reduction <maximumf>, %281, %cst_114 [1] : vector<136x136xf32> to vector<136xf32>
    %283 = vector.shape_cast %282 : vector<136xf32> to vector<136x1xf32>
    %284 = vector.broadcast %283 : vector<136x1xf32> to vector<136x136xf32>
    %285 = arith.subf %281, %284 : vector<136x136xf32>
    %286 = math.exp %285 : vector<136x136xf32>
    %cst_115 = arith.constant dense<0.000000e+00> : vector<136xf32>
    %287 = vector.multi_reduction <add>, %286, %cst_115 [1] : vector<136x136xf32> to vector<136xf32>
    %288 = vector.shape_cast %287 : vector<136xf32> to vector<136x1xf32>
    %289 = tpu.reciprocal %288 {approx = true} : vector<136x1xf32> -> vector<136x1xf32>
    %290 = vector.broadcast %289 : vector<136x1xf32> to vector<136x136xf32>
    %291 = arith.mulf %286, %290 : vector<136x136xf32>
    %292 = arith.truncf %291 : vector<136x136xf32> to vector<136x136xbf16>
    %cst_116 = arith.constant dense<0.000000e+00> : vector<136x16xf32>
    %293 = tpu.matmul %292, %277, %cst_116 {dimension_numbers = #tpu.dot_dimension_numbers<[1], [0], [0], [1], [0, 0, 1, 1], [], []>} : vector<136x136xbf16>, vector<136x16xbf16>, vector<136x16xf32> -> vector<136x16xf32>
    %294 = vector.extract_strided_slice %227 {offsets = [0, 48], sizes = [136, 16], strides = [1, 1]} : vector<136x192xf32> to vector<136x16xf32>
    %295 = arith.truncf %294 : vector<136x16xf32> to vector<136x16xbf16>
    %296 = vector.extract_strided_slice %227 {offsets = [0, 112], sizes = [136, 16], strides = [1, 1]} : vector<136x192xf32> to vector<136x16xf32>
    %297 = arith.truncf %296 : vector<136x16xf32> to vector<136x16xbf16>
    %298 = vector.extract_strided_slice %227 {offsets = [0, 176], sizes = [136, 16], strides = [1, 1]} : vector<136x192xf32> to vector<136x16xf32>
    %299 = arith.truncf %298 : vector<136x16xf32> to vector<136x16xbf16>
    %cst_117 = arith.constant dense<0.000000e+00> : vector<136x136xf32>
    %300 = tpu.matmul %295, %297, %cst_117 {dimension_numbers = #tpu.dot_dimension_numbers<[1], [1], [0], [0], [0, 0, 1, 0], [], []>} : vector<136x16xbf16>, vector<136x16xbf16>, vector<136x136xf32> -> vector<136x136xf32>
    %cst_118 = arith.constant 2.500000e-01 : f32
    %301 = vector.broadcast %cst_118 : f32 to vector<136x136xf32>
    %302 = arith.mulf %300, %301 : vector<136x136xf32>
    %303 = arith.addf %302, %6 : vector<136x136xf32>
    %cst_119 = arith.constant dense<0xFF800000> : vector<136xf32>
    %304 = vector.multi_reduction <maximumf>, %303, %cst_119 [1] : vector<136x136xf32> to vector<136xf32>
    %305 = vector.shape_cast %304 : vector<136xf32> to vector<136x1xf32>
    %306 = vector.broadcast %305 : vector<136x1xf32> to vector<136x136xf32>
    %307 = arith.subf %303, %306 : vector<136x136xf32>
    %308 = math.exp %307 : vector<136x136xf32>
    %cst_120 = arith.constant dense<0.000000e+00> : vector<136xf32>
    %309 = vector.multi_reduction <add>, %308, %cst_120 [1] : vector<136x136xf32> to vector<136xf32>
    %310 = vector.shape_cast %309 : vector<136xf32> to vector<136x1xf32>
    %311 = tpu.reciprocal %310 {approx = true} : vector<136x1xf32> -> vector<136x1xf32>
    %312 = vector.broadcast %311 : vector<136x1xf32> to vector<136x136xf32>
    %313 = arith.mulf %308, %312 : vector<136x136xf32>
    %314 = arith.truncf %313 : vector<136x136xf32> to vector<136x136xbf16>
    %cst_121 = arith.constant dense<0.000000e+00> : vector<136x16xf32>
    %315 = tpu.matmul %314, %299, %cst_121 {dimension_numbers = #tpu.dot_dimension_numbers<[1], [0], [0], [1], [0, 0, 1, 1], [], []>} : vector<136x136xbf16>, vector<136x16xbf16>, vector<136x16xf32> -> vector<136x16xf32>
    %316 = tpu.concatenate %249, %271, %293, %315 in 1 : vector<136x16xf32>, vector<136x16xf32>, vector<136x16xf32>, vector<136x16xf32> -> vector<136x64xf32>
    %317 = arith.truncf %316 : vector<136x64xf32> to vector<136x64xbf16>
    %c1_122 = arith.constant 1 : index
    %c0_123 = arith.constant 0 : index
    %c0_124 = arith.constant 0 : index
    %318 = vector.load %arg10[%c1_122, %c0_123, %c0_124] : memref<2x64x64xbf16, #tpu.memory_space<vmem>>, vector<1x64x64xbf16>
    %319 = vector.shape_cast %318 : vector<1x64x64xbf16> to vector<64x64xbf16>
    %cst_125 = arith.constant dense<0.000000e+00> : vector<136x64xf32>
    %320 = tpu.matmul %317, %319, %cst_125 {dimension_numbers = #tpu.dot_dimension_numbers<[1], [0], [0], [1], [0, 0, 1, 1], [], []>} : vector<136x64xbf16>, vector<64x64xbf16>, vector<136x64xf32> -> vector<136x64xf32>
    %321 = arith.addf %195, %320 : vector<136x64xf32>
    %c1_126 = arith.constant 1 : index
    %c0_127 = arith.constant 0 : index
    %c0_128 = arith.constant 0 : index
    %322 = vector.load %arg11[%c1_126, %c0_127, %c0_128] : memref<2x1x64xf32, #tpu.memory_space<vmem>>, vector<1x1x64xf32>
    %323 = vector.shape_cast %322 : vector<1x1x64xf32> to vector<1x64xf32>
    %324 = vector.broadcast %323 : vector<1x64xf32> to vector<136x64xf32>
    %325 = arith.addf %321, %324 : vector<136x64xf32>
    %c1_129 = arith.constant 1 : index
    %c0_130 = arith.constant 0 : index
    %c0_131 = arith.constant 0 : index
    %326 = vector.load %arg12[%c1_129, %c0_130, %c0_131] : memref<2x1x64xf32, #tpu.memory_space<vmem>>, vector<1x1x64xf32>
    %327 = vector.shape_cast %326 : vector<1x1x64xf32> to vector<1x64xf32>
    %c1_132 = arith.constant 1 : index
    %c0_133 = arith.constant 0 : index
    %c0_134 = arith.constant 0 : index
    %328 = vector.load %arg13[%c1_132, %c0_133, %c0_134] : memref<2x1x64xf32, #tpu.memory_space<vmem>>, vector<1x1x64xf32>
    %329 = vector.shape_cast %328 : vector<1x1x64xf32> to vector<1x64xf32>
    %cst_135 = arith.constant dense<0.000000e+00> : vector<136xf32>
    %330 = vector.multi_reduction <add>, %325, %cst_135 [1] : vector<136x64xf32> to vector<136xf32>
    %331 = vector.shape_cast %330 : vector<136xf32> to vector<136x1xf32>
    %cst_136 = arith.constant 6.400000e+01 : f32
    %332 = vector.broadcast %cst_136 : f32 to vector<136x1xf32>
    %333 = arith.divf %331, %332 : vector<136x1xf32>
    %334 = vector.broadcast %333 : vector<136x1xf32> to vector<136x64xf32>
    %335 = arith.subf %325, %334 : vector<136x64xf32>
    %336 = arith.mulf %335, %335 : vector<136x64xf32>
    %cst_137 = arith.constant dense<0.000000e+00> : vector<136xf32>
    %337 = vector.multi_reduction <add>, %336, %cst_137 [1] : vector<136x64xf32> to vector<136xf32>
    %338 = vector.shape_cast %337 : vector<136xf32> to vector<136x1xf32>
    %cst_138 = arith.constant 6.400000e+01 : f32
    %339 = vector.broadcast %cst_138 : f32 to vector<136x1xf32>
    %340 = arith.divf %338, %339 : vector<136x1xf32>
    %cst_139 = arith.constant 9.99999974E-6 : f32
    %341 = vector.broadcast %cst_139 : f32 to vector<136x1xf32>
    %342 = arith.addf %340, %341 : vector<136x1xf32>
    %343 = math.rsqrt %342 : vector<136x1xf32>
    %344 = vector.broadcast %343 : vector<136x1xf32> to vector<136x64xf32>
    %345 = arith.mulf %335, %344 : vector<136x64xf32>
    %346 = vector.broadcast %327 : vector<1x64xf32> to vector<136x64xf32>
    %347 = arith.mulf %345, %346 : vector<136x64xf32>
    %348 = vector.broadcast %329 : vector<1x64xf32> to vector<136x64xf32>
    %349 = arith.addf %347, %348 : vector<136x64xf32>
    %350 = arith.truncf %349 : vector<136x64xf32> to vector<136x64xbf16>
    %c1_140 = arith.constant 1 : index
    %c0_141 = arith.constant 0 : index
    %c0_142 = arith.constant 0 : index
    %351 = vector.load %arg14[%c1_140, %c0_141, %c0_142] : memref<2x64x256xbf16, #tpu.memory_space<vmem>>, vector<1x64x256xbf16>
    %352 = vector.shape_cast %351 : vector<1x64x256xbf16> to vector<64x256xbf16>
    %cst_143 = arith.constant dense<0.000000e+00> : vector<136x256xf32>
    %353 = tpu.matmul %350, %352, %cst_143 {dimension_numbers = #tpu.dot_dimension_numbers<[1], [0], [0], [1], [0, 0, 1, 1], [], []>} : vector<136x64xbf16>, vector<64x256xbf16>, vector<136x256xf32> -> vector<136x256xf32>
    %c1_144 = arith.constant 1 : index
    %c0_145 = arith.constant 0 : index
    %c0_146 = arith.constant 0 : index
    %354 = vector.load %arg15[%c1_144, %c0_145, %c0_146] : memref<2x1x256xf32, #tpu.memory_space<vmem>>, vector<1x1x256xf32>
    %355 = vector.shape_cast %354 : vector<1x1x256xf32> to vector<1x256xf32>
    %356 = vector.broadcast %355 : vector<1x256xf32> to vector<136x256xf32>
    %357 = arith.addf %353, %356 : vector<136x256xf32>
    %358 = arith.mulf %357, %357 : vector<136x256xf32>
    %359 = arith.mulf %357, %358 : vector<136x256xf32>
    %cst_147 = arith.constant 4.471500e-02 : f32
    %360 = vector.broadcast %cst_147 : f32 to vector<136x256xf32>
    %361 = arith.mulf %360, %359 : vector<136x256xf32>
    %362 = arith.addf %357, %361 : vector<136x256xf32>
    %cst_148 = arith.constant 0.797884583 : f32
    %363 = vector.broadcast %cst_148 : f32 to vector<136x256xf32>
    %364 = arith.mulf %363, %362 : vector<136x256xf32>
    %365 = math.tanh %364 : vector<136x256xf32>
    %cst_149 = arith.constant 1.000000e+00 : f32
    %366 = vector.broadcast %cst_149 : f32 to vector<136x256xf32>
    %367 = arith.addf %366, %365 : vector<136x256xf32>
    %cst_150 = arith.constant 5.000000e-01 : f32
    %368 = vector.broadcast %cst_150 : f32 to vector<136x256xf32>
    %369 = arith.mulf %368, %367 : vector<136x256xf32>
    %370 = arith.mulf %357, %369 : vector<136x256xf32>
    %371 = arith.truncf %370 : vector<136x256xf32> to vector<136x256xbf16>
    %c1_151 = arith.constant 1 : index
    %c0_152 = arith.constant 0 : index
    %c0_153 = arith.constant 0 : index
    %372 = vector.load %arg16[%c1_151, %c0_152, %c0_153] : memref<2x256x64xbf16, #tpu.memory_space<vmem>>, vector<1x256x64xbf16>
    %373 = vector.shape_cast %372 : vector<1x256x64xbf16> to vector<256x64xbf16>
    %cst_154 = arith.constant dense<0.000000e+00> : vector<136x64xf32>
    %374 = tpu.matmul %371, %373, %cst_154 {dimension_numbers = #tpu.dot_dimension_numbers<[1], [0], [0], [1], [0, 0, 1, 1], [], []>} : vector<136x256xbf16>, vector<256x64xbf16>, vector<136x64xf32> -> vector<136x64xf32>
    %c1_155 = arith.constant 1 : index
    %c0_156 = arith.constant 0 : index
    %c0_157 = arith.constant 0 : index
    %375 = vector.load %arg17[%c1_155, %c0_156, %c0_157] : memref<2x1x64xf32, #tpu.memory_space<vmem>>, vector<1x1x64xf32>
    %376 = vector.shape_cast %375 : vector<1x1x64xf32> to vector<1x64xf32>
    %377 = vector.broadcast %376 : vector<1x64xf32> to vector<136x64xf32>
    %378 = arith.addf %374, %377 : vector<136x64xf32>
    %379 = arith.addf %325, %378 : vector<136x64xf32>
    %380 = arith.truncf %379 : vector<136x64xf32> to vector<136x64xbf16>
    %c0_158 = arith.constant 0 : index
    %c0_159 = arith.constant 0 : index
    %381 = vector.load %arg18[%c0_158, %c0_159] : memref<64x9xbf16, #tpu.memory_space<vmem>>, vector<64x9xbf16>
    %cst_160 = arith.constant dense<0.000000e+00> : vector<136x9xf32>
    %382 = tpu.matmul %380, %381, %cst_160 {dimension_numbers = #tpu.dot_dimension_numbers<[1], [0], [0], [1], [0, 0, 1, 1], [], []>} : vector<136x64xbf16>, vector<64x9xbf16>, vector<136x9xf32> -> vector<136x9xf32>
    %c0_161 = arith.constant 0 : index
    %c0_162 = arith.constant 0 : index
    %383 = vector.load %arg19[%c0_161, %c0_162] : memref<1x9xf32, #tpu.memory_space<vmem>>, vector<1x9xf32>
    %384 = vector.broadcast %383 : vector<1x9xf32> to vector<136x9xf32>
    %385 = arith.addf %382, %384 : vector<136x9xf32>
    %c0_163 = arith.constant 0 : index
    %c0_164 = arith.constant 0 : index
    %c0_165 = arith.constant 0 : index
    %386 = vector.load %arg20[%c0_163, %c0_164, %c0_165] : memref<1x136x9xf32, #tpu.memory_space<vmem>>, vector<1x136x9xf32>
    %387 = vector.shape_cast %386 : vector<1x136x9xf32> to vector<136x9xf32>
    %388 = vector.shape_cast %385 : vector<136x9xf32> to vector<1x136x9xf32>
    tpu.vector_store %arg20[%c0_163, %c0_164, %c0_165], %388 {strides = array<i32>} : memref<1x136x9xf32, #tpu.memory_space<vmem>>, vector<1x136x9xf32>,
    return
  }
  func.func @transform_0(%arg0: i32) -> (i32, i32, i32) {
    %c0_i32 = arith.constant 0 : i32
    %c0_i32_0 = arith.constant 0 : i32
    %c0_i32_1 = arith.constant 0 : i32
    return %arg0, %c0_i32, %c0_i32_0 : i32, i32, i32
  }
  func.func @transform_1(%arg0: i32) -> (i32, i32, i32) {
    %c0_i32 = arith.constant 0 : i32
    %c0_i32_0 = arith.constant 0 : i32
    %c0_i32_1 = arith.constant 0 : i32
    return %arg0, %c0_i32, %c0_i32_0 : i32, i32, i32
  }
  func.func @transform_2(%arg0: i32) -> (i32, i32) {
    %c0_i32 = arith.constant 0 : i32
    %c0_i32_0 = arith.constant 0 : i32
    %c0_i32_1 = arith.constant 0 : i32
    return %c0_i32, %c0_i32_0 : i32, i32
  }
  func.func @transform_3(%arg0: i32) -> (i32, i32) {
    %c0_i32 = arith.constant 0 : i32
    %c0_i32_0 = arith.constant 0 : i32
    %c0_i32_1 = arith.constant 0 : i32
    return %c0_i32, %c0_i32_0 : i32, i32
  }
  func.func @transform_4(%arg0: i32) -> (i32, i32) {
    %c0_i32 = arith.constant 0 : i32
    %c0_i32_0 = arith.constant 0 : i32
    %c0_i32_1 = arith.constant 0 : i32
    return %c0_i32, %c0_i32_0 : i32, i32
  }
  func.func @transform_5(%arg0: i32) -> (i32, i32, i32) {
    %c0_i32 = arith.constant 0 : i32
    %c0_i32_0 = arith.constant 0 : i32
    %c0_i32_1 = arith.constant 0 : i32
    %c0_i32_2 = arith.constant 0 : i32
    return %c0_i32, %c0_i32_0, %c0_i32_1 : i32, i32, i32
  }
  func.func @transform_6(%arg0: i32) -> (i32, i32, i32) {
    %c0_i32 = arith.constant 0 : i32
    %c0_i32_0 = arith.constant 0 : i32
    %c0_i32_1 = arith.constant 0 : i32
    %c0_i32_2 = arith.constant 0 : i32
    return %c0_i32, %c0_i32_0, %c0_i32_1 : i32, i32, i32
  }
  func.func @transform_7(%arg0: i32) -> (i32, i32, i32) {
    %c0_i32 = arith.constant 0 : i32
    %c0_i32_0 = arith.constant 0 : i32
    %c0_i32_1 = arith.constant 0 : i32
    %c0_i32_2 = arith.constant 0 : i32
    return %c0_i32, %c0_i32_0, %c0_i32_1 : i32, i32, i32
  }
  func.func @transform_8(%arg0: i32) -> (i32, i32, i32) {
    %c0_i32 = arith.constant 0 : i32
    %c0_i32_0 = arith.constant 0 : i32
    %c0_i32_1 = arith.constant 0 : i32
    %c0_i32_2 = arith.constant 0 : i32
    return %c0_i32, %c0_i32_0, %c0_i32_1 : i32, i32, i32
  }
  func.func @transform_9(%arg0: i32) -> (i32, i32, i32) {
    %c0_i32 = arith.constant 0 : i32
    %c0_i32_0 = arith.constant 0 : i32
    %c0_i32_1 = arith.constant 0 : i32
    %c0_i32_2 = arith.constant 0 : i32
    return %c0_i32, %c0_i32_0, %c0_i32_1 : i32, i32, i32
  }
  func.func @transform_10(%arg0: i32) -> (i32, i32, i32) {
    %c0_i32 = arith.constant 0 : i32
    %c0_i32_0 = arith.constant 0 : i32
    %c0_i32_1 = arith.constant 0 : i32
    %c0_i32_2 = arith.constant 0 : i32
    return %c0_i32, %c0_i32_0, %c0_i32_1 : i32, i32, i32
  }
  func.func @transform_11(%arg0: i32) -> (i32, i32, i32) {
    %c0_i32 = arith.constant 0 : i32
    %c0_i32_0 = arith.constant 0 : i32
    %c0_i32_1 = arith.constant 0 : i32
    %c0_i32_2 = arith.constant 0 : i32
    return %c0_i32, %c0_i32_0, %c0_i32_1 : i32, i32, i32
  }
  func.func @transform_12(%arg0: i32) -> (i32, i32, i32) {
    %c0_i32 = arith.constant 0 : i32
    %c0_i32_0 = arith.constant 0 : i32
    %c0_i32_1 = arith.constant 0 : i32
    %c0_i32_2 = arith.constant 0 : i32
    return %c0_i32, %c0_i32_0, %c0_i32_1 : i32, i32, i32
  }
  func.func @transform_13(%arg0: i32) -> (i32, i32, i32) {
    %c0_i32 = arith.constant 0 : i32
    %c0_i32_0 = arith.constant 0 : i32
    %c0_i32_1 = arith.constant 0 : i32
    %c0_i32_2 = arith.constant 0 : i32
    return %c0_i32, %c0_i32_0, %c0_i32_1 : i32, i32, i32
  }
  func.func @transform_14(%arg0: i32) -> (i32, i32, i32) {
    %c0_i32 = arith.constant 0 : i32
    %c0_i32_0 = arith.constant 0 : i32
    %c0_i32_1 = arith.constant 0 : i32
    %c0_i32_2 = arith.constant 0 : i32
    return %c0_i32, %c0_i32_0, %c0_i32_1 : i32, i32, i32
  }
  func.func @transform_15(%arg0: i32) -> (i32, i32, i32) {
    %c0_i32 = arith.constant 0 : i32
    %c0_i32_0 = arith.constant 0 : i32
    %c0_i32_1 = arith.constant 0 : i32
    %c0_i32_2 = arith.constant 0 : i32
    return %c0_i32, %c0_i32_0, %c0_i32_1 : i32, i32, i32
  }
  func.func @transform_16(%arg0: i32) -> (i32, i32, i32) {
    %c0_i32 = arith.constant 0 : i32
    %c0_i32_0 = arith.constant 0 : i32
    %c0_i32_1 = arith.constant 0 : i32
    %c0_i32_2 = arith.constant 0 : i32
    return %c0_i32, %c0_i32_0, %c0_i32_1 : i32, i32, i32
  }
  func.func @transform_17(%arg0: i32) -> (i32, i32) {
    %c0_i32 = arith.constant 0 : i32
    %c0_i32_0 = arith.constant 0 : i32
    %c0_i32_1 = arith.constant 0 : i32
    return %c0_i32, %c0_i32_0 : i32, i32
  }
  func.func @transform_18(%arg0: i32) -> (i32, i32) {
    %c0_i32 = arith.constant 0 : i32
    %c0_i32_0 = arith.constant 0 : i32
    %c0_i32_1 = arith.constant 0 : i32
    return %c0_i32, %c0_i32_0 : i32, i32
  }
  func.func @transform_19(%arg0: i32) -> (i32, i32, i32) {
    %c0_i32 = arith.constant 0 : i32
    %c0_i32_0 = arith.constant 0 : i32
    %c0_i32_1 = arith.constant 0 : i32
    return %arg0, %c0_i32, %c0_i32_0 : i32, i32, i32
  }
}

</mosaic_0001>

<llo_original>
// kernel: tile.9
$region0: #{tile.9}
  %s0 = inlined_call_operand.vmem [shape: f32[8,17,64], index: 0, kind: input, shape index: {}]
  %s1 = inlined_call_operand.vmem [shape: f32[136,64], index: 1, kind: output, shape index: {}]
  %v2 = vld [vmem:[%s0] sm:$0xff]
  %vm3 = vcmask 523264
  %4 = vst.msk [vmem:[%s1] sm:$0xff] %vm3, %v2
  %s5 = scalar_lea.vmem %s0, 8
  %v6 = vld [vmem:[%s5] sm:$0xff]
  %vm7 = vcmask 523264
  %s8 = scalar_lea.vmem %s1, 8
  %9 = vst.msk [vmem:[%s8] sm:$0xff] %vm7, %v6
  %s10 = scalar_lea.vmem %s0, 16
  %s11 = smov 3
  %v12 = vld [vmem:[%s10] ss:$8 sm:%s11]
  %vm13 = vcmask 523264
  %s14 = scalar_lea.vmem %s1, 16
  %15 = vst.msk [vmem:[%s14] sm:$0x3] %vm13, %v12
  %s16 = scalar_lea.vmem %s0, 25
  %v17 = vld [vmem:[%s16] sm:$0xff]
  %vm18 = vcmask 523264
  %s19 = scalar_lea.vmem %s1, 18
  %20 = vst.msk [vmem:[%s19] sm:$0xff] %vm18, %v17
  %s21 = scalar_lea.vmem %s0, 33
  %v22 = vld [vmem:[%s21] sm:$0xff]
  %vm23 = vcmask 523264
  %s24 = scalar_lea.vmem %s1, 26
  %25 = vst.msk [vmem:[%s24] sm:$0xff] %vm23, %v22
  %s26 = scalar_lea.vmem %s0, 48
  %v27 = vld [vmem:[%s26] sm:$0xff]
  %vm28 = vcmask 523264
  %s29 = scalar_lea.vmem %s1, 34
  %30 = vst.msk [vmem:[%s29] sm:$0xff] %vm28, %v27
  %s31 = scalar_lea.vmem %s0, 56
  %v32 = vld [vmem:[%s31] sm:$0xff]
  %vm33 = vcmask 523264
  %s34 = scalar_lea.vmem %s1, 42
  %35 = vst.msk [vmem:[%s34] sm:$0xff] %vm33, %v32
  %s36 = scalar_lea.vmem %s0, 64
  %s37 = smov 3
  %v38 = vld [vmem:[%s36] ss:$8 sm:%s37]
  %vm39 = vcmask 523264
  %s40 = scalar_lea.vmem %s1, 50
  %41 = vst.msk [vmem:[%s40] sm:$0x3] %vm39, %v38
  %s42 = scalar_lea.vmem %s0, 73
  %v43 = vld [vmem:[%s42] sm:$0xff]
  %vm44 = vcmask 523264
  %s45 = scalar_lea.vmem %s1, 52
  %46 = vst.msk [vmem:[%s45] sm:$0xff] %vm44, %v43
  %s47 = scalar_lea.vmem %s0, 81
  %v48 = vld [vmem:[%s47] sm:$0xff]
  %vm49 = vcmask 523264
  %s50 = scalar_lea.vmem %s1, 60
  %51 = vst.msk [vmem:[%s50] sm:$0xff] %vm49, %v48
  %s52 = scalar_lea.vmem %s0, 96
  %v53 = vld [vmem:[%s52] sm:$0xff]
  %vm54 = vcmask 523264
  %s55 = scalar_lea.vmem %s1, 68
  %56 = vst.msk [vmem:[%s55] sm:$0xff] %vm54, %v53
  %s57 = scalar_lea.vmem %s0, 104
  %v58 = vld [vmem:[%s57] sm:$0xff]
  %vm59 = vcmask 523264
  %s60 = scalar_lea.vmem %s1, 76
  %61 = vst.msk [vmem:[%s60] sm:$0xff] %vm59, %v58
  %s62 = scalar_lea.vmem %s0, 112
  %s63 = smov 3
  %v64 = vld [vmem:[%s62] ss:$8 sm:%s63]
  %vm65 = vcmask 523264
  %s66 = scalar_lea.vmem %s1, 84
  %67 = vst.msk [vmem:[%s66] sm:$0x3] %vm65, %v64
  %s68 = scalar_lea.vmem %s0, 121
  %v69 = vld [vmem:[%s68] sm:$0xff]
  %vm70 = vcmask 523264
  %s71 = scalar_lea.vmem %s1, 86
  %72 = vst.msk [vmem:[%s71] sm:$0xff] %vm70, %v69
  %s73 = scalar_lea.vmem %s0, 129
  %v74 = vld [vmem:[%s73] sm:$0xff]
  %vm75 = vcmask 523264
  %s76 = scalar_lea.vmem %s1, 94
  %77 = vst.msk [vmem:[%s76] sm:$0xff] %vm75, %v74
  %s78 = scalar_lea.vmem %s0, 144
  %v79 = vld [vmem:[%s78] sm:$0xff]
  %vm80 = vcmask 523264
  %s81 = scalar_lea.vmem %s1, 102
  %82 = vst.msk [vmem:[%s81] sm:$0xff] %vm80, %v79
  %s83 = scalar_lea.vmem %s0, 152
  %v84 = vld [vmem:[%s83] sm:$0xff]
  %vm85 = vcmask 523264
  %s86 = scalar_lea.vmem %s1, 110
  %87 = vst.msk [vmem:[%s86] sm:$0xff] %vm85, %v84
  %s88 = scalar_lea.vmem %s0, 160
  %s89 = smov 3
  %v90 = vld [vmem:[%s88] ss:$8 sm:%s89]
  %vm91 = vcmask 523264
  %s92 = scalar_lea.vmem %s1, 118
  %93 = vst.msk [vmem:[%s92] sm:$0x3] %vm91, %v90
  %s94 = scalar_lea.vmem %s0, 169
  %v95 = vld [vmem:[%s94] sm:$0xff]
  %vm96 = vcmask 523264
  %s97 = scalar_lea.vmem %s1, 120
  %98 = vst.msk [vmem:[%s97] sm:$0xff] %vm96, %v95
  %s99 = scalar_lea.vmem %s0, 177
  %v100 = vld [vmem:[%s99] sm:$0xff]
  %vm101 = vcmask 523264
  %s102 = scalar_lea.vmem %s1, 128
  %103 = vst.msk [vmem:[%s102] sm:$0xff] %vm101, %v100

// kernel: pose_model_forward.1
$region0: #{pose_model_forward.1}
  #allocation0 [shape = 'u32[]', space=smem, size = 0x4, offset = 0x4, fixed_abs, tag = 'smem constant byte address 0x4 - core index']
  #allocation1 [shape = 'u32[72,128]{1,0:T(1,128)}', space=vmem, size = 0x9000, scoped, tag = 'internal scratch']
  %s0 = inlined_call_operand.vmem [shape: f32[1,136,9], index: 0, kind: input, shape index: {}]
  %s1 = inlined_call_operand.vmem [shape: f32[1,1,136], index: 1, kind: input, shape index: {}]
  %s2 = inlined_call_operand.vmem [shape: f32[136,64], index: 2, kind: input, shape index: {}]
  %s3 = inlined_call_operand.vmem [shape: f32[136,136], index: 3, kind: input, shape index: {}]
  %s4 = inlined_call_operand.vmem [shape: bf16[9,64], index: 4, kind: input, shape index: {}]
  %s5 = inlined_call_operand.vmem [shape: f32[2,1,64], index: 5, kind: input, shape index: {}]
  %s6 = inlined_call_operand.vmem [shape: f32[2,1,64], index: 6, kind: input, shape index: {}]
  %s7 = inlined_call_operand.vmem [shape: bf16[2,64,192], index: 7, kind: input, shape index: {}]
  %s8 = inlined_call_operand.vmem [shape: f32[2,1,192], index: 8, kind: input, shape index: {}]
  %s9 = inlined_call_operand.vmem [shape: bf16[2,64,64], index: 9, kind: input, shape index: {}]
  %s10 = inlined_call_operand.vmem [shape: f32[2,1,64], index: 10, kind: input, shape index: {}]
  %s11 = inlined_call_operand.vmem [shape: f32[2,1,64], index: 11, kind: input, shape index: {}]
  %s12 = inlined_call_operand.vmem [shape: f32[2,1,64], index: 12, kind: input, shape index: {}]
  %s13 = inlined_call_operand.vmem [shape: bf16[2,64,256], index: 13, kind: input, shape index: {}]
  %s14 = inlined_call_operand.vmem [shape: f32[2,1,256], index: 14, kind: input, shape index: {}]
  %s15 = inlined_call_operand.vmem [shape: bf16[2,256,64], index: 15, kind: input, shape index: {}]
  %s16 = inlined_call_operand.vmem [shape: f32[2,1,64], index: 16, kind: input, shape index: {}]
  %s17 = inlined_call_operand.vmem [shape: bf16[64,9], index: 17, kind: input, shape index: {}]
  %s18 = inlined_call_operand.vmem [shape: f32[1,9], index: 18, kind: input, shape index: {}]
  %s19 = inlined_call_operand.vmem [shape: f32[1,136,9], index: 19, kind: output, shape index: {}]
  %s20 = sld [smem:[#allocation0]]
  $region86: #{pose_model_forward.1} parent=0
    _
  %s22 = ssub.s32 1, %s20
  %s23 = scalar_select 0, %s22, %s20
  // Predicated region
  $region2: #{pose_model_forward.1} parent=0 // pred_check
    _
  $region3: #{pose_model_forward.1} parent=0 // pred_check_branch
    %25 = sbr.rel (0) target = $region5
  $region4: #{pose_model_forward.1} parent=0 // pred_region
    _
  $region5: #{pose_model_forward.1} parent=0 // pred_fallthru
    _
  // Predicated region
  $region6: #{pose_model_forward.1} parent=0 // pred_check
    _
  $region7: #{pose_model_forward.1} parent=0 // pred_check_branch
    %27 = sbr.rel (0) target = $region9
  $region8: #{pose_model_forward.1} parent=0 // pred_region
    _
  $region9: #{pose_model_forward.1} parent=0 // pred_fallthru
    _
  // Predicated region
  $region10: #{pose_model_forward.1} parent=0 // pred_check
    _
  $region11: #{pose_model_forward.1} parent=0 // pred_check_branch
    %29 = sbr.rel (0) target = $region13
  $region12: #{pose_model_forward.1} parent=0 // pred_region
    _
  $region13: #{pose_model_forward.1} parent=0 // pred_fallthru
    _
  // Predicated region
  $region14: #{pose_model_forward.1} parent=0 // pred_check
    _
  $region15: #{pose_model_forward.1} parent=0 // pred_check_branch
    %31 = sbr.rel (0) target = $region17
  $region16: #{pose_model_forward.1} parent=0 // pred_region
    _
  $region17: #{pose_model_forward.1} parent=0 // pred_fallthru
    _
  // Predicated region
  $region18: #{pose_model_forward.1} parent=0 // pred_check
    _
  $region19: #{pose_model_forward.1} parent=0 // pred_check_branch
    %33 = sbr.rel (0) target = $region21
  $region20: #{pose_model_forward.1} parent=0 // pred_region
    _
  $region21: #{pose_model_forward.1} parent=0 // pred_fallthru
    _
  // Predicated region
  $region22: #{pose_model_forward.1} parent=0 // pred_check
    _
  $region23: #{pose_model_forward.1} parent=0 // pred_check_branch
    %35 = sbr.rel (0) target = $region25
  $region24: #{pose_model_forward.1} parent=0 // pred_region
    _
  $region25: #{pose_model_forward.1} parent=0 // pred_fallthru
    _
  // Predicated region
  $region26: #{pose_model_forward.1} parent=0 // pred_check
    _
  $region27: #{pose_model_forward.1} parent=0 // pred_check_branch
    %37 = sbr.rel (0) target = $region29
  $region28: #{pose_model_forward.1} parent=0 // pred_region
    _
  $region29: #{pose_model_forward.1} parent=0 // pred_fallthru
    _
  // Predicated region
  $region30: #{pose_model_forward.1} parent=0 // pred_check
    _
  $region31: #{pose_model_forward.1} parent=0 // pred_check_branch
    %39 = sbr.rel (0) target = $region33
  $region32: #{pose_model_forward.1} parent=0 // pred_region
    _
  $region33: #{pose_model_forward.1} parent=0 // pred_fallthru
    _
  // Predicated region
  $region34: #{pose_model_forward.1} parent=0 // pred_check
    _
  $region35: #{pose_model_forward.1} parent=0 // pred_check_branch
    %41 = sbr.rel (0) target = $region37
  $region36: #{pose_model_forward.1} parent=0 // pred_region
    _
  $region37: #{pose_model_forward.1} parent=0 // pred_fallthru
    _
  // Predicated region
  $region38: #{pose_model_forward.1} parent=0 // pred_check
    _
  $region39: #{pose_model_forward.1} parent=0 // pred_check_branch
    %43 = sbr.rel (0) target = $region41
  $region40: #{pose_model_forward.1} parent=0 // pred_region
    _
  $region41: #{pose_model_forward.1} parent=0 // pred_fallthru
    _
  // Predicated region
  $region42: #{pose_model_forward.1} parent=0 // pred_check
    _
  $region43: #{pose_model_forward.1} parent=0 // pred_check_branch
    %45 = sbr.rel (0) target = $region45
  $region44: #{pose_model_forward.1} parent=0 // pred_region
    _
  $region45: #{pose_model_forward.1} parent=0 // pred_fallthru
    _
  // Predicated region
  $region46: #{pose_model_forward.1} parent=0 // pred_check
    _
  $region47: #{pose_model_forward.1} parent=0 // pred_check_branch
    %47 = sbr.rel (0) target = $region49
  $region48: #{pose_model_forward.1} parent=0 // pred_region
    _
  $region49: #{pose_model_forward.1} parent=0 // pred_fallthru
    _
  // Predicated region
  $region50: #{pose_model_forward.1} parent=0 // pred_check
    _
  $region51: #{pose_model_forward.1} parent=0 // pred_check_branch
    %49 = sbr.rel (0) target = $region53
  $region52: #{pose_model_forward.1} parent=0 // pred_region
    _
  $region53: #{pose_model_forward.1} parent=0 // pred_fallthru
    _
  // Predicated region
  $region54: #{pose_model_forward.1} parent=0 // pred_check
    _
  $region55: #{pose_model_forward.1} parent=0 // pred_check_branch
    %51 = sbr.rel (0) target = $region57
  $region56: #{pose_model_forward.1} parent=0 // pred_region
    _
  $region57: #{pose_model_forward.1} parent=0 // pred_fallthru
    _
  // Predicated region
  $region58: #{pose_model_forward.1} parent=0 // pred_check
    _
  $region59: #{pose_model_forward.1} parent=0 // pred_check_branch
    %53 = sbr.rel (0) target = $region61
  $region60: #{pose_model_forward.1} parent=0 // pred_region
    _
  $region61: #{pose_model_forward.1} parent=0 // pred_fallthru
    _
  // Predicated region
  $region62: #{pose_model_forward.1} parent=0 // pred_check
    _
  $region63: #{pose_model_forward.1} parent=0 // pred_check_branch
    %55 = sbr.rel (0) target = $region65
  $region64: #{pose_model_forward.1} parent=0 // pred_region
    _
  $region65: #{pose_model_forward.1} parent=0 // pred_fallthru
    _
  // Predicated region
  $region66: #{pose_model_forward.1} parent=0 // pred_check
    _
  $region67: #{pose_model_forward.1} parent=0 // pred_check_branch
    %57 = sbr.rel (0) target = $region69
  $region68: #{pose_model_forward.1} parent=0 // pred_region
    _
  $region69: #{pose_model_forward.1} parent=0 // pred_fallthru
    _
  // Predicated region
  $region70: #{pose_model_forward.1} parent=0 // pred_check
    _
  $region71: #{pose_model_forward.1} parent=0 // pred_check_branch
    %59 = sbr.rel (0) target = $region73
  $region72: #{pose_model_forward.1} parent=0 // pred_region
    _
  $region73: #{pose_model_forward.1} parent=0 // pred_fallthru
    _
  // Predicated region
  $region74: #{pose_model_forward.1} parent=0 // pred_check
    _
  $region75: #{pose_model_forward.1} parent=0 // pred_check_branch
    %61 = sbr.rel (0) target = $region77
  $region76: #{pose_model_forward.1} parent=0 // pred_region
    _
  $region77: #{pose_model_forward.1} parent=0 // pred_fallthru
    _
  %v63 = vld [vmem:[%s0] sm:$0xff]
  %v64 = vld [vmem:[%s0 + $0x8] sm:$0xff]
  %v65 = vld [vmem:[%s0 + $0x10] sm:$0xff]
  %v66 = vld [vmem:[%s0 + $0x18] sm:$0xff]
  %v67 = vld [vmem:[%s0 + $0x20] sm:$0xff]
  %v68 = vld [vmem:[%s0 + $0x28] sm:$0xff]
  %v69 = vld [vmem:[%s0 + $0x30] sm:$0xff]
  %v70 = vld [vmem:[%s0 + $0x38] sm:$0xff]
  %v71 = vld [vmem:[%s0 + $0x40] sm:$0xff]
  %v72 = vld [vmem:[%s0 + $0x48] sm:$0xff]
  %v73 = vld [vmem:[%s0 + $0x50] sm:$0xff]
  %v74 = vld [vmem:[%s0 + $0x58] sm:$0xff]
  %v75 = vld [vmem:[%s0 + $0x60] sm:$0xff]
  %v76 = vld [vmem:[%s0 + $0x68] sm:$0xff]
  %v77 = vld [vmem:[%s0 + $0x70] sm:$0xff]
  %v78 = vld [vmem:[%s0 + $0x78] sm:$0xff]
  %v79 = vld [vmem:[%s0 + $0x80] sm:$0xff]
  %v80 = vld [vmem:[%s3] sm:$0xff]
  %v81 = vld [vmem:[%s3 + $0x8] sm:$0xff]
  %v82 = vld [vmem:[%s3 + $0x10] sm:$0xff]
  %v83 = vld [vmem:[%s3 + $0x18] sm:$0xff]
  %v84 = vld [vmem:[%s3 + $0x20] sm:$0xff]
  %v85 = vld [vmem:[%s3 + $0x28] sm:$0xff]
  %v86 = vld [vmem:[%s3 + $0x30] sm:$0xff]
  %v87 = vld [vmem:[%s3 + $0x38] sm:$0xff]
  %v88 = vld [vmem:[%s3 + $0x40] sm:$0xff]
  %v89 = vld [vmem:[%s3 + $0x48] sm:$0xff]
  %v90 = vld [vmem:[%s3 + $0x50] sm:$0xff]
  %v91 = vld [vmem:[%s3 + $0x58] sm:$0xff]
  %v92 = vld [vmem:[%s3 + $0x60] sm:$0xff]
  %v93 = vld [vmem:[%s3 + $0x68] sm:$0xff]
  %v94 = vld [vmem:[%s3 + $0x70] sm:$0xff]
  %v95 = vld [vmem:[%s3 + $0x78] sm:$0xff]
  %v96 = vld [vmem:[%s3 + $0x80] sm:$0xff]
  %v97 = vld [vmem:[%s3 + $0x88] sm:$0xff]
  %v98 = vld [vmem:[%s3 + $0x90] sm:$0xff]
  %v99 = vld [vmem:[%s3 + $0x98] sm:$0xff]
  %v100 = vld [vmem:[%s3 + $0xa0] sm:$0xff]
  %v101 = vld [vmem:[%s3 + $0xa8] sm:$0xff]
  %v102 = vld [vmem:[%s3 + $0xb0] sm:$0xff]
  %v103 = vld [vmem:[%s3 + $0xb8] sm:$0xff]
  %v104 = vld [vmem:[%s3 + $0xc0] sm:$0xff]
  %v105 = vld [vmem:[%s3 + $0xc8] sm:$0xff]
  %v106 = vld [vmem:[%s3 + $0xd0] sm:$0xff]
  %v107 = vld [vmem:[%s3 + $0xd8] sm:$0xff]
  %v108 = vld [vmem:[%s3 + $0xe0] sm:$0xff]
  %v109 = vld [vmem:[%s3 + $0xe8] sm:$0xff]
  %v110 = vld [vmem:[%s3 + $0xf0] sm:$0xff]
  %v111 = vld [vmem:[%s3 + $0xf8] sm:$0xff]
  %v112 = vld [vmem:[%s3 + $0x100] sm:$0xff]
  %v113 = vld [vmem:[%s3 + $0x108] sm:$0xff]
  %v114 = vld [vmem:[%s1] sm:$0x3]
  %v116 = vperm.slane %v114, 0
  %v117 = vperm.slane %v114, 1
  %v120 = vadd.f32 %v80, %v116
  %v121 = vadd.f32 %v81, %v117
  %v122 = vadd.f32 %v82, %v116
  %v123 = vadd.f32 %v83, %v117
  %v124 = vadd.f32 %v84, %v116
  %v125 = vadd.f32 %v85, %v117
  %v126 = vadd.f32 %v86, %v116
  %v127 = vadd.f32 %v87, %v117
  %v128 = vadd.f32 %v88, %v116
  %v129 = vadd.f32 %v89, %v117
  %v130 = vadd.f32 %v90, %v116
  %v131 = vadd.f32 %v91, %v117
  %v132 = vadd.f32 %v92, %v116
  %v133 = vadd.f32 %v93, %v117
  %v134 = vadd.f32 %v94, %v116
  %v135 = vadd.f32 %v95, %v117
  %v136 = vadd.f32 %v96, %v116
  %v137 = vadd.f32 %v97, %v117
  %v138 = vadd.f32 %v98, %v116
  %v139 = vadd.f32 %v99, %v117
  %v140 = vadd.f32 %v100, %v116
  %v141 = vadd.f32 %v101, %v117
  %v142 = vadd.f32 %v102, %v116
  %v143 = vadd.f32 %v103, %v117
  %v144 = vadd.f32 %v104, %v116
  %v145 = vadd.f32 %v105, %v117
  %v146 = vadd.f32 %v106, %v116
  %v147 = vadd.f32 %v107, %v117
  %v148 = vadd.f32 %v108, %v116
  %v149 = vadd.f32 %v109, %v117
  %v150 = vadd.f32 %v110, %v116
  %v151 = vadd.f32 %v111, %v117
  %v152 = vadd.f32 %v112, %v116
  %v153 = vadd.f32 %v113, %v117
  %v154 = vpack.c.bf16 %v64, %v63
  %v155 = vpack.c.bf16 %v66, %v65
  %v156 = vpack.c.bf16 %v68, %v67
  %v157 = vpack.c.bf16 %v70, %v69
  %v158 = vpack.c.bf16 %v72, %v71
  %v159 = vpack.c.bf16 %v74, %v73
  %v160 = vpack.c.bf16 %v76, %v75
  %v161 = vpack.c.bf16 %v78, %v77
  %v162 = vpack.c.bf16 %v79, %v79
  %v163 = vld [vmem:[%s4] sm:$0xf]
  %v164 = vld [vmem:[%s4 + $0x4] sm:$0x1]
  %v165 = vld [vmem:[%s2] sm:$0xff]
  %v166 = vld [vmem:[%s2 + $0x8] sm:$0xff]
  %v167 = vld [vmem:[%s2 + $0x10] sm:$0xff]
  %v168 = vld [vmem:[%s2 + $0x18] sm:$0xff]
  %v169 = vld [vmem:[%s2 + $0x20] sm:$0xff]
  %v170 = vld [vmem:[%s2 + $0x28] sm:$0xff]
  %v171 = vld [vmem:[%s2 + $0x30] sm:$0xff]
  %v172 = vld [vmem:[%s2 + $0x38] sm:$0xff]
  %v173 = vld [vmem:[%s2 + $0x40] sm:$0xff]
  %v174 = vld [vmem:[%s2 + $0x48] sm:$0xff]
  %v175 = vld [vmem:[%s2 + $0x50] sm:$0xff]
  %v176 = vld [vmem:[%s2 + $0x58] sm:$0xff]
  %v177 = vld [vmem:[%s2 + $0x60] sm:$0xff]
  %v178 = vld [vmem:[%s2 + $0x68] sm:$0xff]
  %v179 = vld [vmem:[%s2 + $0x70] sm:$0xff]
  %v180 = vld [vmem:[%s2 + $0x78] sm:$0xff]
  %v181 = vld [vmem:[%s2 + $0x80] sm:$0xff]
  %v184 = vunpack.c.l.b16 %v163
  %v185 = vunpack.c.l.b16 %v164
  %v186 = vpack.c.b16 %v185, %v184
  %vm187 = vcmask 72704
  %v189 = vsel %vm187, %v154, 0
  %v192 = vsel %vm187, %v155, 0
  %v195 = vsel %vm187, %v156, 0
  %v198 = vsel %vm187, %v157, 0
  %v201 = vsel %vm187, %v158, 0
  %v204 = vsel %vm187, %v159, 0
  %v207 = vsel %vm187, %v160, 0
  %v210 = vsel %vm187, %v161, 0
  %v213 = vsel %vm187, %v162, 0
  %vm215 = vcmask 1043456
  %vm216 = vcmask 1044480
  %v217 = vsel %vm215, 4294967295, 65535
  %v218 = vsel %vm216, %v217, 0
  %v220 = vand.u32 %v186, %v218
  %222 = vmatpush.bf16.msra.mxu0 0
  %223 = vmatpush.bf16.msra.mxu0 0
  %224 = vmatpush.bf16.msra.mxu0 0
  %225 = vmatpush.bf16.msra.mxu0 0
  %226 = vmatpush.bf16.msra.mxu0 0
  %227 = vmatpush.bf16.msra.mxu0 0
  %228 = vmatpush.bf16.msra.mxu0 0
  %229 = vmatpush.bf16.msra.mxu0 %v220
  %230 = vmatmul.bf16.gmra.mxu0 %v189
  %v231 = vpop.f32.mrf.mxu0
  %v232 = vadd.f32 %v165, %v231
  %v233 = vpop.f32.mrf.mxu0
  %v234 = vadd.f32 %v166, %v233
  %235 = vmatmul.bf16.gmra.mxu0 %v192
  %v236 = vpop.f32.mrf.mxu0
  %v237 = vadd.f32 %v167, %v236
  %v238 = vpop.f32.mrf.mxu0
  %v239 = vadd.f32 %v168, %v238
  %240 = vmatmul.bf16.gmra.mxu0 %v195
  %v241 = vpop.f32.mrf.mxu0
  %v242 = vadd.f32 %v169, %v241
  %v243 = vpop.f32.mrf.mxu0
  %v244 = vadd.f32 %v170, %v243
  %245 = vmatmul.bf16.gmra.mxu0 %v198
  %v246 = vpop.f32.mrf.mxu0
  %v247 = vadd.f32 %v171, %v246
  %v248 = vpop.f32.mrf.mxu0
  %v249 = vadd.f32 %v172, %v248
  %250 = vmatmul.bf16.gmra.mxu0 %v201
  %v251 = vpop.f32.mrf.mxu0
  %v252 = vadd.f32 %v173, %v251
  %v253 = vpop.f32.mrf.mxu0
  %v254 = vadd.f32 %v174, %v253
  %255 = vmatmul.bf16.gmra.mxu0 %v204
  %v256 = vpop.f32.mrf.mxu0
  %v257 = vadd.f32 %v175, %v256
  %v258 = vpop.f32.mrf.mxu0
  %v259 = vadd.f32 %v176, %v258
  %260 = vmatmul.bf16.gmra.mxu0 %v207
  %v261 = vpop.f32.mrf.mxu0
  %v262 = vadd.f32 %v177, %v261
  %v263 = vpop.f32.mrf.mxu0
  %v264 = vadd.f32 %v178, %v263
  %265 = vmatmul.bf16.gmra.mxu0 %v210
  %v266 = vpop.f32.mrf.mxu0
  %v267 = vadd.f32 %v179, %v266
  %v268 = vpop.f32.mrf.mxu0
  %v269 = vadd.f32 %v180, %v268
  %270 = vmatmul.bf16.gmra.mxu0 %v213
  %v271 = vpop.f32.mrf.mxu0
  %v272 = vadd.f32 %v181, %v271
  %v273 = vpop.f32.mrf.mxu0
  %274 = vdwg.mxu0
  %v275 = vld [vmem:[%s5] sm:$0x1]
  %v276 = vld [vmem:[%s6] sm:$0x1]
  %vm277 = vcmask 523264
  %v278 = vsel %vm277, %v232, 0.0
  %279 = vadd.xlane.f32.xlu0 %v278
  %v280 = vpop.xlane.xlu0 %279
  %v281 = vsel %vm277, %v234, 0.0
  %282 = vadd.xlane.f32.xlu0 %v281
  %v283 = vpop.xlane.xlu0 %282
  %v284 = vsel %vm277, %v237, 0.0
  %285 = vadd.xlane.f32.xlu0 %v284
  %v286 = vpop.xlane.xlu0 %285
  %v287 = vsel %vm277, %v239, 0.0
  %288 = vadd.xlane.f32.xlu0 %v287
  %v289 = vpop.xlane.xlu0 %288
  %v290 = vsel %vm277, %v242, 0.0
  %291 = vadd.xlane.f32.xlu0 %v290
  %v292 = vpop.xlane.xlu0 %291
  %v293 = vsel %vm277, %v244, 0.0
  %294 = vadd.xlane.f32.xlu0 %v293
  %v295 = vpop.xlane.xlu0 %294
  %v296 = vsel %vm277, %v247, 0.0
  %297 = vadd.xlane.f32.xlu0 %v296
  %v298 = vpop.xlane.xlu0 %297
  %v299 = vsel %vm277, %v249, 0.0
  %300 = vadd.xlane.f32.xlu0 %v299
  %v301 = vpop.xlane.xlu0 %300
  %v302 = vsel %vm277, %v252, 0.0
  %303 = vadd.xlane.f32.xlu0 %v302
  %v304 = vpop.xlane.xlu0 %303
  %v305 = vsel %vm277, %v254, 0.0
  %306 = vadd.xlane.f32.xlu0 %v305
  %v307 = vpop.xlane.xlu0 %306
  %v308 = vsel %vm277, %v257, 0.0
  %309 = vadd.xlane.f32.xlu0 %v308
  %v310 = vpop.xlane.xlu0 %309
  %v311 = vsel %vm277, %v259, 0.0
  %312 = vadd.xlane.f32.xlu0 %v311
  %v313 = vpop.xlane.xlu0 %312
  %v314 = vsel %vm277, %v262, 0.0
  %315 = vadd.xlane.f32.xlu0 %v314
  %v316 = vpop.xlane.xlu0 %315
  %v317 = vsel %vm277, %v264, 0.0
  %318 = vadd.xlane.f32.xlu0 %v317
  %v319 = vpop.xlane.xlu0 %318
  %v320 = vsel %vm277, %v267, 0.0
  %321 = vadd.xlane.f32.xlu0 %v320
  %v322 = vpop.xlane.xlu0 %321
  %v323 = vsel %vm277, %v269, 0.0
  %324 = vadd.xlane.f32.xlu0 %v323
  %v325 = vpop.xlane.xlu0 %324
  %v326 = vsel %vm277, %v272, 0.0
  %327 = vadd.xlane.f32.xlu0 %v326
  %v328 = vpop.xlane.xlu0 %327
  %v329 = vrcp.pop 64.0
  %v330 = vmul.f32 64.0, %v329
  %v331 = vsub.f32 1.0, %v330
  %v332 = vmul.f32 %v329, %v331
  %v333 = vadd.f32 %v329, %v332
  %vm334 = vweird.f32 %v329
  %v335 = vsel %vm334, %v329, %v333
  %v336 = vmul.f32 %v280, %v335
  %v337 = vmul.f32 %v283, %v335
  %v338 = vmul.f32 %v286, %v335
  %v339 = vmul.f32 %v289, %v335
  %v340 = vmul.f32 %v292, %v335
  %v341 = vmul.f32 %v295, %v335
  %v342 = vmul.f32 %v298, %v335
  %v343 = vmul.f32 %v301, %v335
  %v344 = vmul.f32 %v304, %v335
  %v345 = vmul.f32 %v307, %v335
  %v346 = vmul.f32 %v310, %v335
  %v347 = vmul.f32 %v313, %v335
  %v348 = vmul.f32 %v316, %v335
  %v349 = vmul.f32 %v319, %v335
  %v350 = vmul.f32 %v322, %v335
  %v351 = vmul.f32 %v325, %v335
  %v352 = vmul.f32 %v328, %v335
  %v353 = vsub.f32 %v232, %v336
  %v354 = vsub.f32 %v234, %v337
  %v355 = vsub.f32 %v237, %v338
  %v356 = vsub.f32 %v239, %v339
  %v357 = vsub.f32 %v242, %v340
  %v358 = vsub.f32 %v244, %v341
  %v359 = vsub.f32 %v247, %v342
  %v360 = vsub.f32 %v249, %v343
  %v361 = vsub.f32 %v252, %v344
  %v362 = vsub.f32 %v254, %v345
  %v363 = vsub.f32 %v257, %v346
  %v364 = vsub.f32 %v259, %v347
  %v365 = vsub.f32 %v262, %v348
  %v366 = vsub.f32 %v264, %v349
  %v367 = vsub.f32 %v267, %v350
  %v368 = vsub.f32 %v269, %v351
  %v369 = vsub.f32 %v272, %v352
  %v370 = vmul.f32 %v353, %v353
  %v371 = vmul.f32 %v354, %v354
  %v372 = vmul.f32 %v355, %v355
  %v373 = vmul.f32 %v356, %v356
  %v374 = vmul.f32 %v357, %v357
  %v375 = vmul.f32 %v358, %v358
  %v376 = vmul.f32 %v359, %v359
  %v377 = vmul.f32 %v360, %v360
  %v378 = vmul.f32 %v361, %v361
  %v379 = vmul.f32 %v362, %v362
  %v380 = vmul.f32 %v363, %v363
  %v381 = vmul.f32 %v364, %v364
  %v382 = vmul.f32 %v365, %v365
  %v383 = vmul.f32 %v366, %v366
  %v384 = vmul.f32 %v367, %v367
  %v385 = vmul.f32 %v368, %v368
  %v386 = vmul.f32 %v369, %v369
  %v387 = vsel %vm277, %v370, 0.0
  %388 = vadd.xlane.f32.xlu0 %v387
  %v389 = vpop.xlane.xlu0 %388
  %v390 = vsel %vm277, %v371, 0.0
  %391 = vadd.xlane.f32.xlu0 %v390
  %v392 = vpop.xlane.xlu0 %391
  %v393 = vsel %vm277, %v372, 0.0
  %394 = vadd.xlane.f32.xlu0 %v393
  %v395 = vpop.xlane.xlu0 %394
  %v396 = vsel %vm277, %v373, 0.0
  %397 = vadd.xlane.f32.xlu0 %v396
  %v398 = vpop.xlane.xlu0 %397
  %v399 = vsel %vm277, %v374, 0.0
  %400 = vadd.xlane.f32.xlu0 %v399
  %v401 = vpop.xlane.xlu0 %400
  %v402 = vsel %vm277, %v375, 0.0
  %403 = vadd.xlane.f32.xlu0 %v402
  %v404 = vpop.xlane.xlu0 %403
  %v405 = vsel %vm277, %v376, 0.0
  %406 = vadd.xlane.f32.xlu0 %v405
  %v407 = vpop.xlane.xlu0 %406
  %v408 = vsel %vm277, %v377, 0.0
  %409 = vadd.xlane.f32.xlu0 %v408
  %v410 = vpop.xlane.xlu0 %409
  %v411 = vsel %vm277, %v378, 0.0
  %412 = vadd.xlane.f32.xlu0 %v411
  %v413 = vpop.xlane.xlu0 %412
  %v414 = vsel %vm277, %v379, 0.0
  %415 = vadd.xlane.f32.xlu0 %v414
  %v416 = vpop.xlane.xlu0 %415
  %v417 = vsel %vm277, %v380, 0.0
  %418 = vadd.xlane.f32.xlu0 %v417
  %v419 = vpop.xlane.xlu0 %418
  %v420 = vsel %vm277, %v381, 0.0
  %421 = vadd.xlane.f32.xlu0 %v420
  %v422 = vpop.xlane.xlu0 %421
  %v423 = vsel %vm277, %v382, 0.0
  %424 = vadd.xlane.f32.xlu0 %v423
  %v425 = vpop.xlane.xlu0 %424
  %v426 = vsel %vm277, %v383, 0.0
  %427 = vadd.xlane.f32.xlu0 %v426
  %v428 = vpop.xlane.xlu0 %427
  %v429 = vsel %vm277, %v384, 0.0
  %430 = vadd.xlane.f32.xlu0 %v429
  %v431 = vpop.xlane.xlu0 %430
  %v432 = vsel %vm277, %v385, 0.0
  %433 = vadd.xlane.f32.xlu0 %v432
  %v434 = vpop.xlane.xlu0 %433
  %v435 = vsel %vm277, %v386, 0.0
  %436 = vadd.xlane.f32.xlu0 %v435
  %v437 = vpop.xlane.xlu0 %436
  %v438 = vmul.f32 %v389, %v335
  %v439 = vmul.f32 %v392, %v335
  %v440 = vmul.f32 %v395, %v335
  %v441 = vmul.f32 %v398, %v335
  %v442 = vmul.f32 %v401, %v335
  %v443 = vmul.f32 %v404, %v335
  %v444 = vmul.f32 %v407, %v335
  %v445 = vmul.f32 %v410, %v335
  %v446 = vmul.f32 %v413, %v335
  %v447 = vmul.f32 %v416, %v335
  %v448 = vmul.f32 %v419, %v335
  %v449 = vmul.f32 %v422, %v335
  %v450 = vmul.f32 %v425, %v335
  %v451 = vmul.f32 %v428, %v335
  %v452 = vmul.f32 %v431, %v335
  %v453 = vmul.f32 %v434, %v335
  %v454 = vmul.f32 %v437, %v335
  %v455 = vadd.f32 %v438, 1e-05
  %v456 = vadd.f32 %v439, 1e-05
  %v457 = vadd.f32 %v440, 1e-05
  %v458 = vadd.f32 %v441, 1e-05
  %v459 = vadd.f32 %v442, 1e-05
  %v460 = vadd.f32 %v443, 1e-05
  %v461 = vadd.f32 %v444, 1e-05
  %v462 = vadd.f32 %v445, 1e-05
  %v463 = vadd.f32 %v446, 1e-05
  %v464 = vadd.f32 %v447, 1e-05
  %v465 = vadd.f32 %v448, 1e-05
  %v466 = vadd.f32 %v449, 1e-05
  %v467 = vadd.f32 %v450, 1e-05
  %v468 = vadd.f32 %v451, 1e-05
  %v469 = vadd.f32 %v452, 1e-05
  %v470 = vadd.f32 %v453, 1e-05
  %v471 = vadd.f32 %v454, 1e-05
  %v472 = vrsqrt.pop %v455
  %v473 = vmul.f32 %v472, %v455
  %v474 = vmul.f32 %v473, %v472
  %v475 = vmul.f32 0.5, %v474
  %v476 = vsub.f32 1.5, %v475
  %v477 = vmul.f32 %v472, %v476
  %vm478 = vweird.f32 %v455
  %vm479 = vweird.f32 %v472
  %vm480 = vmor %vm478, %vm479
  %v481 = vsel %vm480, %v472, %v477
  %v482 = vrsqrt.pop %v456
  %v483 = vmul.f32 %v482, %v456
  %v484 = vmul.f32 %v483, %v482
  %v485 = vmul.f32 0.5, %v484
  %v486 = vsub.f32 1.5, %v485
  %v487 = vmul.f32 %v482, %v486
  %vm488 = vweird.f32 %v456
  %vm489 = vweird.f32 %v482
  %vm490 = vmor %vm488, %vm489
  %v491 = vsel %vm490, %v482, %v487
  %v492 = vrsqrt.pop %v457
  %v493 = vmul.f32 %v492, %v457
  %v494 = vmul.f32 %v493, %v492
  %v495 = vmul.f32 0.5, %v494
  %v496 = vsub.f32 1.5, %v495
  %v497 = vmul.f32 %v492, %v496
  %vm498 = vweird.f32 %v457
  %vm499 = vweird.f32 %v492
  %vm500 = vmor %vm498, %vm499
  %v501 = vsel %vm500, %v492, %v497
  %v502 = vrsqrt.pop %v458
  %v503 = vmul.f32 %v502, %v458
  %v504 = vmul.f32 %v503, %v502
  %v505 = vmul.f32 0.5, %v504
  %v506 = vsub.f32 1.5, %v505
  %v507 = vmul.f32 %v502, %v506
  %vm508 = vweird.f32 %v458
  %vm509 = vweird.f32 %v502
  %vm510 = vmor %vm508, %vm509
  %v511 = vsel %vm510, %v502, %v507
  %v512 = vrsqrt.pop %v459
  %v513 = vmul.f32 %v512, %v459
  %v514 = vmul.f32 %v513, %v512
  %v515 = vmul.f32 0.5, %v514
  %v516 = vsub.f32 1.5, %v515
  %v517 = vmul.f32 %v512, %v516
  %vm518 = vweird.f32 %v459
  %vm519 = vweird.f32 %v512
  %vm520 = vmor %vm518, %vm519
  %v521 = vsel %vm520, %v512, %v517
  %v522 = vrsqrt.pop %v460
  %v523 = vmul.f32 %v522, %v460
  %v524 = vmul.f32 %v523, %v522
  %v525 = vmul.f32 0.5, %v524
  %v526 = vsub.f32 1.5, %v525
  %v527 = vmul.f32 %v522, %v526
  %vm528 = vweird.f32 %v460
  %vm529 = vweird.f32 %v522
  %vm530 = vmor %vm528, %vm529
  %v531 = vsel %vm530, %v522, %v527
  %v532 = vrsqrt.pop %v461
  %v533 = vmul.f32 %v532, %v461
  %v534 = vmul.f32 %v533, %v532
  %v535 = vmul.f32 0.5, %v534
  %v536 = vsub.f32 1.5, %v535
  %v537 = vmul.f32 %v532, %v536
  %vm538 = vweird.f32 %v461
  %vm539 = vweird.f32 %v532
  %vm540 = vmor %vm538, %vm539
  %v541 = vsel %vm540, %v532, %v537
  %v542 = vrsqrt.pop %v462
  %v543 = vmul.f32 %v542, %v462
  %v544 = vmul.f32 %v543, %v542
  %v545 = vmul.f32 0.5, %v544
  %v546 = vsub.f32 1.5, %v545
  %v547 = vmul.f32 %v542, %v546
  %vm548 = vweird.f32 %v462
  %vm549 = vweird.f32 %v542
  %vm550 = vmor %vm548, %vm549
  %v551 = vsel %vm550, %v542, %v547
  %v552 = vrsqrt.pop %v463
  %v553 = vmul.f32 %v552, %v463
  %v554 = vmul.f32 %v553, %v552
  %v555 = vmul.f32 0.5, %v554
  %v556 = vsub.f32 1.5, %v555
  %v557 = vmul.f32 %v552, %v556
  %vm558 = vweird.f32 %v463
  %vm559 = vweird.f32 %v552
  %vm560 = vmor %vm558, %vm559
  %v561 = vsel %vm560, %v552, %v557
  %v562 = vrsqrt.pop %v464
  %v563 = vmul.f32 %v562, %v464
  %v564 = vmul.f32 %v563, %v562
  %v565 = vmul.f32 0.5, %v564
  %v566 = vsub.f32 1.5, %v565
  %v567 = vmul.f32 %v562, %v566
  %vm568 = vweird.f32 %v464
  %vm569 = vweird.f32 %v562
  %vm570 = vmor %vm568, %vm569
  %v571 = vsel %vm570, %v562, %v567
  %v572 = vrsqrt.pop %v465
  %v573 = vmul.f32 %v572, %v465
  %v574 = vmul.f32 %v573, %v572
  %v575 = vmul.f32 0.5, %v574
  %v576 = vsub.f32 1.5, %v575
  %v577 = vmul.f32 %v572, %v576
  %vm578 = vweird.f32 %v465
  %vm579 = vweird.f32 %v572
  %vm580 = vmor %vm578, %vm579
  %v581 = vsel %vm580, %v572, %v577
  %v582 = vrsqrt.pop %v466
  %v583 = vmul.f32 %v582, %v466
  %v584 = vmul.f32 %v583, %v582
  %v585 = vmul.f32 0.5, %v584
  %v586 = vsub.f32 1.5, %v585
  %v587 = vmul.f32 %v582, %v586
  %vm588 = vweird.f32 %v466
  %vm589 = vweird.f32 %v582
  %vm590 = vmor %vm588, %vm589
  %v591 = vsel %vm590, %v582, %v587
  %v592 = vrsqrt.pop %v467
  %v593 = vmul.f32 %v592, %v467
  %v594 = vmul.f32 %v593, %v592
  %v595 = vmul.f32 0.5, %v594
  %v596 = vsub.f32 1.5, %v595
  %v597 = vmul.f32 %v592, %v596
  %vm598 = vweird.f32 %v467
  %vm599 = vweird.f32 %v592
  %vm600 = vmor %vm598, %vm599
  %v601 = vsel %vm600, %v592, %v597
  %v602 = vrsqrt.pop %v468
  %v603 = vmul.f32 %v602, %v468
  %v604 = vmul.f32 %v603, %v602
  %v605 = vmul.f32 0.5, %v604
  %v606 = vsub.f32 1.5, %v605
  %v607 = vmul.f32 %v602, %v606
  %vm608 = vweird.f32 %v468
  %vm609 = vweird.f32 %v602
  %vm610 = vmor %vm608, %vm609
  %v611 = vsel %vm610, %v602, %v607
  %v612 = vrsqrt.pop %v469
  %v613 = vmul.f32 %v612, %v469
  %v614 = vmul.f32 %v613, %v612
  %v615 = vmul.f32 0.5, %v614
  %v616 = vsub.f32 1.5, %v615
  %v617 = vmul.f32 %v612, %v616
  %vm618 = vweird.f32 %v469
  %vm619 = vweird.f32 %v612
  %vm620 = vmor %vm618, %vm619
  %v621 = vsel %vm620, %v612, %v617
  %v622 = vrsqrt.pop %v470
  %v623 = vmul.f32 %v622, %v470
  %v624 = vmul.f32 %v623, %v622
  %v625 = vmul.f32 0.5, %v624
  %v626 = vsub.f32 1.5, %v625
  %v627 = vmul.f32 %v622, %v626
  %vm628 = vweird.f32 %v470
  %vm629 = vweird.f32 %v622
  %vm630 = vmor %vm628, %vm629
  %v631 = vsel %vm630, %v622, %v627
  %v632 = vrsqrt.pop %v471
  %v633 = vmul.f32 %v632, %v471
  %v634 = vmul.f32 %v633, %v632
  %v635 = vmul.f32 0.5, %v634
  %v636 = vsub.f32 1.5, %v635
  %v637 = vmul.f32 %v632, %v636
  %vm638 = vweird.f32 %v471
  %vm639 = vweird.f32 %v632
  %vm640 = vmor %vm638, %vm639
  %v641 = vsel %vm640, %v632, %v637
  %v642 = vmul.f32 %v353, %v481
  %v643 = vmul.f32 %v354, %v491
  %v644 = vmul.f32 %v355, %v501
  %v645 = vmul.f32 %v356, %v511
  %v646 = vmul.f32 %v357, %v521
  %v647 = vmul.f32 %v358, %v531
  %v648 = vmul.f32 %v359, %v541
  %v649 = vmul.f32 %v360, %v551
  %v650 = vmul.f32 %v361, %v561
  %v651 = vmul.f32 %v362, %v571
  %v652 = vmul.f32 %v363, %v581
  %v653 = vmul.f32 %v364, %v591
  %v654 = vmul.f32 %v365, %v601
  %v655 = vmul.f32 %v366, %v611
  %v656 = vmul.f32 %v367, %v621
  %v657 = vmul.f32 %v368, %v631
  %v658 = vmul.f32 %v369, %v641
  %v660 = vperm.slane %v275, 0
  %v662 = vmul.f32 %v642, %v660
  %v663 = vmul.f32 %v643, %v660
  %v664 = vmul.f32 %v644, %v660
  %v665 = vmul.f32 %v645, %v660
  %v666 = vmul.f32 %v646, %v660
  %v667 = vmul.f32 %v647, %v660
  %v668 = vmul.f32 %v648, %v660
  %v669 = vmul.f32 %v649, %v660
  %v670 = vmul.f32 %v650, %v660
  %v671 = vmul.f32 %v651, %v660
  %v672 = vmul.f32 %v652, %v660
  %v673 = vmul.f32 %v653, %v660
  %v674 = vmul.f32 %v654, %v660
  %v675 = vmul.f32 %v655, %v660
  %v676 = vmul.f32 %v656, %v660
  %v677 = vmul.f32 %v657, %v660
  %v678 = vmul.f32 %v658, %v660
  %v680 = vperm.slane %v276, 0
  %v682 = vadd.f32 %v662, %v680
  %v683 = vadd.f32 %v663, %v680
  %v684 = vadd.f32 %v664, %v680
  %v685 = vadd.f32 %v665, %v680
  %v686 = vadd.f32 %v666, %v680
  %v687 = vadd.f32 %v667, %v680
  %v688 = vadd.f32 %v668, %v680
  %v689 = vadd.f32 %v669, %v680
  %v690 = vadd.f32 %v670, %v680
  %v691 = vadd.f32 %v671, %v680
  %v692 = vadd.f32 %v672, %v680
  %v693 = vadd.f32 %v673, %v680
  %v694 = vadd.f32 %v674, %v680
  %v695 = vadd.f32 %v675, %v680
  %v696 = vadd.f32 %v676, %v680
  %v697 = vadd.f32 %v677, %v680
  %v698 = vadd.f32 %v678, %v680
  %v699 = vpack.c.bf16 %v683, %v682
  %v700 = vpack.c.bf16 %v685, %v684
  %v701 = vpack.c.bf16 %v687, %v686
  %v702 = vpack.c.bf16 %v689, %v688
  %v703 = vpack.c.bf16 %v691, %v690
  %v704 = vpack.c.bf16 %v693, %v692
  %v705 = vpack.c.bf16 %v695, %v694
  %v706 = vpack.c.bf16 %v697, %v696
  %v707 = vpack.c.bf16 %v698, %v698
  %v708 = vld [vmem:[%s7] sm:$0xff]
  %v709 = vld [vmem:[%s7 + $0x8] sm:$0xff]
  %v710 = vld [vmem:[%s7 + $0x10] sm:$0xff]
  %v711 = vld [vmem:[%s7 + $0x18] sm:$0xff]
  %v712 = vld [vmem:[%s7 + $0x20] sm:$0xff]
  %v713 = vld [vmem:[%s7 + $0x28] sm:$0xff]
  %v714 = vld [vmem:[%s7 + $0x30] sm:$0xff]
  %v715 = vld [vmem:[%s7 + $0x38] sm:$0xff]
  %v716 = vld [vmem:[%s8] sm:$0x3]
  %v718 = vperm.slane %v716, 0
  %v719 = vperm.slane %v716, 1
  %v730 = vunpack.c.l.b16 %v708
  %v731 = vunpack.c.h.b16 %v708
  %v732 = vunpack.c.l.b16 %v709
  %v733 = vunpack.c.h.b16 %v709
  %v734 = vunpack.c.l.b16 %v710
  %v735 = vunpack.c.h.b16 %v710
  %v736 = vunpack.c.l.b16 %v711
  %v737 = vunpack.c.h.b16 %v711
  %v738 = vunpack.c.l.b16 %v712
  %v739 = vunpack.c.h.b16 %v712
  %v740 = vunpack.c.l.b16 %v713
  %v741 = vunpack.c.h.b16 %v713
  %v742 = vunpack.c.l.b16 %v714
  %v743 = vunpack.c.h.b16 %v714
  %v744 = vunpack.c.l.b16 %v715
  %v745 = vunpack.c.h.b16 %v715
  %v746 = vpack.c.b16 %v732, %v730
  %v747 = vpack.c.b16 %v733, %v731
  %v748 = vpack.c.b16 %v736, %v734
  %v749 = vpack.c.b16 %v737, %v735
  %v750 = vpack.c.b16 %v740, %v738
  %v751 = vpack.c.b16 %v741, %v739
  %v752 = vpack.c.b16 %v744, %v742
  %v753 = vpack.c.b16 %v745, %v743
  %v763 = vsel %vm277, %v699, 0
  %v766 = vsel %vm277, %v700, 0
  %v769 = vsel %vm277, %v701, 0
  %v772 = vsel %vm277, %v702, 0
  %v775 = vsel %vm277, %v703, 0
  %v778 = vsel %vm277, %v704, 0
  %v781 = vsel %vm277, %v705, 0
  %v784 = vsel %vm277, %v706, 0
  %v787 = vsel %vm277, %v707, 0
  %789 = vmatpush.bf16.msra.mxu0 0
  %790 = vmatpush.bf16.msra.mxu0 0
  %791 = vmatpush.bf16.msra.mxu0 0
  %792 = vmatpush.bf16.msra.mxu0 0
  %793 = vmatpush.bf16.msra.mxu0 %v752
  %794 = vmatpush.bf16.msra.mxu0 %v750
  %795 = vmatpush.bf16.msra.mxu0 %v748
  %796 = vmatpush.bf16.msra.mxu0 %v746
  %797 = vmatmul.bf16.gmra.mxu0 %v763
  %v798 = vpop.f32.mrf.mxu0
  %v799 = vadd.f32 %v718, %v798
  %v800 = vpop.f32.mrf.mxu0
  %v801 = vadd.f32 %v718, %v800
  %802 = vmatmul.bf16.gmra.mxu0 %v766
  %v803 = vpop.f32.mrf.mxu0
  %v804 = vadd.f32 %v718, %v803
  %v805 = vpop.f32.mrf.mxu0
  %v806 = vadd.f32 %v718, %v805
  %807 = vmatmul.bf16.gmra.mxu0 %v769
  %v808 = vpop.f32.mrf.mxu0
  %v809 = vadd.f32 %v718, %v808
  %v810 = vpop.f32.mrf.mxu0
  %v811 = vadd.f32 %v718, %v810
  %812 = vmatmul.bf16.gmra.mxu0 %v772
  %v813 = vpop.f32.mrf.mxu0
  %v814 = vadd.f32 %v718, %v813
  %v815 = vpop.f32.mrf.mxu0
  %v816 = vadd.f32 %v718, %v815
  %817 = vmatmul.bf16.gmra.mxu0 %v775
  %v818 = vpop.f32.mrf.mxu0
  %v819 = vadd.f32 %v718, %v818
  %v820 = vpop.f32.mrf.mxu0
  %v821 = vadd.f32 %v718, %v820
  %822 = vmatmul.bf16.gmra.mxu0 %v778
  %v823 = vpop.f32.mrf.mxu0
  %v824 = vadd.f32 %v718, %v823
  %v825 = vpop.f32.mrf.mxu0
  %v826 = vadd.f32 %v718, %v825
  %827 = vmatmul.bf16.gmra.mxu0 %v781
  %v828 = vpop.f32.mrf.mxu0
  %v829 = vadd.f32 %v718, %v828
  %v830 = vpop.f32.mrf.mxu0
  %v831 = vadd.f32 %v718, %v830
  %832 = vmatmul.bf16.gmra.mxu0 %v784
  %v833 = vpop.f32.mrf.mxu0
  %v834 = vadd.f32 %v718, %v833
  %v835 = vpop.f32.mrf.mxu0
  %v836 = vadd.f32 %v718, %v835
  %837 = vmatmul.bf16.gmra.mxu0 %v787
  %v838 = vpop.f32.mrf.mxu0
  %v839 = vadd.f32 %v718, %v838
  %v840 = vpop.f32.mrf.mxu0
  %841 = vdwg.mxu0
  %842 = vmatpush.bf16.msra.mxu0 0
  %843 = vmatpush.bf16.msra.mxu0 0
  %844 = vmatpush.bf16.msra.mxu0 0
  %845 = vmatpush.bf16.msra.mxu0 0
  %846 = vmatpush.bf16.msra.mxu0 %v753
  %847 = vmatpush.bf16.msra.mxu0 %v751
  %848 = vmatpush.bf16.msra.mxu0 %v749
  %849 = vmatpush.bf16.msra.mxu0 %v747
  %850 = vmatmul.bf16.gmra.mxu0 %v763
  %v851 = vpop.f32.mrf.mxu0
  %v852 = vadd.f32 %v719, %v851
  %v853 = vpop.f32.mrf.mxu0
  %v854 = vadd.f32 %v719, %v853
  %855 = vmatmul.bf16.gmra.mxu0 %v766
  %v856 = vpop.f32.mrf.mxu0
  %v857 = vadd.f32 %v719, %v856
  %v858 = vpop.f32.mrf.mxu0
  %v859 = vadd.f32 %v719, %v858
  %860 = vmatmul.bf16.gmra.mxu0 %v769
  %v861 = vpop.f32.mrf.mxu0
  %v862 = vadd.f32 %v719, %v861
  %v863 = vpop.f32.mrf.mxu0
  %v864 = vadd.f32 %v719, %v863
  %865 = vmatmul.bf16.gmra.mxu0 %v772
  %v866 = vpop.f32.mrf.mxu0
  %v867 = vadd.f32 %v719, %v866
  %v868 = vpop.f32.mrf.mxu0
  %v869 = vadd.f32 %v719, %v868
  %870 = vmatmul.bf16.gmra.mxu0 %v775
  %v871 = vpop.f32.mrf.mxu0
  %v872 = vadd.f32 %v719, %v871
  %v873 = vpop.f32.mrf.mxu0
  %v874 = vadd.f32 %v719, %v873
  %875 = vmatmul.bf16.gmra.mxu0 %v778
  %v876 = vpop.f32.mrf.mxu0
  %v877 = vadd.f32 %v719, %v876
  %v878 = vpop.f32.mrf.mxu0
  %v879 = vadd.f32 %v719, %v878
  %880 = vmatmul.bf16.gmra.mxu0 %v781
  %v881 = vpop.f32.mrf.mxu0
  %v882 = vadd.f32 %v719, %v881
  %v883 = vpop.f32.mrf.mxu0
  %v884 = vadd.f32 %v719, %v883
  %885 = vmatmul.bf16.gmra.mxu0 %v784
  %v886 = vpop.f32.mrf.mxu0
  %v887 = vadd.f32 %v719, %v886
  %v888 = vpop.f32.mrf.mxu0
  %v889 = vadd.f32 %v719, %v888
  %890 = vmatmul.bf16.gmra.mxu0 %v787
  %v891 = vpop.f32.mrf.mxu0
  %v892 = vadd.f32 %v719, %v891
  %v893 = vpop.f32.mrf.mxu0
  %894 = vdwg.mxu0
  %v895 = vpack.c.bf16 %v801, %v799
  %v896 = vpack.c.bf16 %v806, %v804
  %v897 = vpack.c.bf16 %v811, %v809
  %v898 = vpack.c.bf16 %v816, %v814
  %v899 = vpack.c.bf16 %v821, %v819
  %v900 = vpack.c.bf16 %v826, %v824
  %v901 = vpack.c.bf16 %v831, %v829
  %v902 = vpack.c.bf16 %v836, %v834
  %v903 = vpack.c.bf16 %v839, %v839
  %v904 = vpack.c.bf16 %v854, %v852
  %v905 = vpack.c.bf16 %v859, %v857
  %v906 = vpack.c.bf16 %v864, %v862
  %v907 = vpack.c.bf16 %v869, %v867
  %v908 = vpack.c.bf16 %v874, %v872
  %v909 = vpack.c.bf16 %v879, %v877
  %v910 = vpack.c.bf16 %v884, %v882
  %v911 = vpack.c.bf16 %v889, %v887
  %v912 = vpack.c.bf16 %v892, %v892
  %922 = vrot.lane.b32.xlu0 %v895, 64
  %v923 = vpop.permute.xlu0 %922
  %924 = vrot.lane.b32.xlu0 %v896, 64
  %v925 = vpop.permute.xlu0 %924
  %926 = vrot.lane.b32.xlu0 %v897, 64
  %v927 = vpop.permute.xlu0 %926
  %928 = vrot.lane.b32.xlu0 %v898, 64
  %v929 = vpop.permute.xlu0 %928
  %930 = vrot.lane.b32.xlu0 %v899, 64
  %v931 = vpop.permute.xlu0 %930
  %932 = vrot.lane.b32.xlu0 %v900, 64
  %v933 = vpop.permute.xlu0 %932
  %934 = vrot.lane.b32.xlu0 %v901, 64
  %v935 = vpop.permute.xlu0 %934
  %936 = vrot.lane.b32.xlu0 %v902, 64
  %v937 = vpop.permute.xlu0 %936
  %938 = vrot.lane.b32.xlu0 %v903, 64
  %v939 = vpop.permute.xlu0 %938
  %vm940 = vcmask 130048
  %v942 = vsel %vm940, %v895, 0
  %v945 = vsel %vm940, %v896, 0
  %v948 = vsel %vm940, %v897, 0
  %v951 = vsel %vm940, %v898, 0
  %v954 = vsel %vm940, %v899, 0
  %v957 = vsel %vm940, %v900, 0
  %v960 = vsel %vm940, %v901, 0
  %v963 = vsel %vm940, %v902, 0
  %v966 = vsel %vm940, %v903, 0
  %v969 = vsel %vm940, %v923, 0
  %v972 = vsel %vm940, %v925, 0
  %v975 = vsel %vm940, %v927, 0
  %v978 = vsel %vm940, %v929, 0
  %v981 = vsel %vm940, %v931, 0
  %v984 = vsel %vm940, %v933, 0
  %v987 = vsel %vm940, %v935, 0
  %v990 = vsel %vm940, %v937, 0
  %v993 = vsel %vm940, %v939, 0
  %995 = vmatpush.bf16.xpose.msra.mxu0 %v990
  %996 = vmatpush.bf16.xpose.msra.mxu0 %v987
  %997 = vmatpush.bf16.xpose.msra.mxu0 %v984
  %998 = vmatpush.bf16.xpose.msra.mxu0 %v981
  %999 = vmatpush.bf16.xpose.msra.mxu0 %v978
  %1000 = vmatpush.bf16.xpose.msra.mxu0 %v975
  %1001 = vmatpush.bf16.xpose.msra.mxu0 %v972
  %1002 = vmatpush.bf16.xpose.msra.mxu0 %v969
  %1003 = vmatmul.bf16.gmra.mxu0 %v942
  %v1004 = vpop.f32.mrf.mxu0
  %v1005 = vadd.f32 0.0, %v1004
  %v1006 = vpop.f32.mrf.mxu0
  %v1007 = vadd.f32 0.0, %v1006
  %1008 = vmatmul.bf16.gmra.mxu0 %v945
  %v1009 = vpop.f32.mrf.mxu0
  %v1010 = vadd.f32 0.0, %v1009
  %v1011 = vpop.f32.mrf.mxu0
  %v1012 = vadd.f32 0.0, %v1011
  %1013 = vmatmul.bf16.gmra.mxu0 %v948
  %v1014 = vpop.f32.mrf.mxu0
  %v1015 = vadd.f32 0.0, %v1014
  %v1016 = vpop.f32.mrf.mxu0
  %v1017 = vadd.f32 0.0, %v1016
  %1018 = vmatmul.bf16.gmra.mxu0 %v951
  %v1019 = vpop.f32.mrf.mxu0
  %v1020 = vadd.f32 0.0, %v1019
  %v1021 = vpop.f32.mrf.mxu0
  %v1022 = vadd.f32 0.0, %v1021
  %1023 = vmatmul.bf16.gmra.mxu0 %v954
  %v1024 = vpop.f32.mrf.mxu0
  %v1025 = vadd.f32 0.0, %v1024
  %v1026 = vpop.f32.mrf.mxu0
  %v1027 = vadd.f32 0.0, %v1026
  %1028 = vmatmul.bf16.gmra.mxu0 %v957
  %v1029 = vpop.f32.mrf.mxu0
  %v1030 = vadd.f32 0.0, %v1029
  %v1031 = vpop.f32.mrf.mxu0
  %v1032 = vadd.f32 0.0, %v1031
  %1033 = vmatmul.bf16.gmra.mxu0 %v960
  %v1034 = vpop.f32.mrf.mxu0
  %v1035 = vadd.f32 0.0, %v1034
  %v1036 = vpop.f32.mrf.mxu0
  %v1037 = vadd.f32 0.0, %v1036
  %1038 = vmatmul.bf16.gmra.mxu0 %v963
  %v1039 = vpop.f32.mrf.mxu0
  %v1040 = vadd.f32 0.0, %v1039
  %v1041 = vpop.f32.mrf.mxu0
  %v1042 = vadd.f32 0.0, %v1041
  %1043 = vmatmul.bf16.gmra.mxu0 %v966
  %v1044 = vpop.f32.mrf.mxu0
  %v1045 = vadd.f32 0.0, %v1044
  %v1046 = vpop.f32.mrf.mxu0
  %1047 = vdwg.mxu0
  %1048 = vmatpush.bf16.xpose.msra.mxu0 0
  %1049 = vmatpush.bf16.xpose.msra.mxu0 0
  %1050 = vmatpush.bf16.xpose.msra.mxu0 0
  %1051 = vmatpush.bf16.xpose.msra.mxu0 0
  %1052 = vmatpush.bf16.xpose.msra.mxu0 0
  %1053 = vmatpush.bf16.xpose.msra.mxu0 0
  %1054 = vmatpush.bf16.xpose.msra.mxu0 0
  %1055 = vmatpush.bf16.xpose.msra.mxu0 %v993
  %1056 = vmatmul.bf16.gmra.mxu0 %v942
  %v1057 = vpop.f32.mrf.mxu0
  %v1058 = vadd.f32 0.0, %v1057
  %v1059 = vpop.f32.mrf.mxu0
  %v1060 = vadd.f32 0.0, %v1059
  %1061 = vmatmul.bf16.gmra.mxu0 %v945
  %v1062 = vpop.f32.mrf.mxu0
  %v1063 = vadd.f32 0.0, %v1062
  %v1064 = vpop.f32.mrf.mxu0
  %v1065 = vadd.f32 0.0, %v1064
  %1066 = vmatmul.bf16.gmra.mxu0 %v948
  %v1067 = vpop.f32.mrf.mxu0
  %v1068 = vadd.f32 0.0, %v1067
  %v1069 = vpop.f32.mrf.mxu0
  %v1070 = vadd.f32 0.0, %v1069
  %1071 = vmatmul.bf16.gmra.mxu0 %v951
  %v1072 = vpop.f32.mrf.mxu0
  %v1073 = vadd.f32 0.0, %v1072
  %v1074 = vpop.f32.mrf.mxu0
  %v1075 = vadd.f32 0.0, %v1074
  %1076 = vmatmul.bf16.gmra.mxu0 %v954
  %v1077 = vpop.f32.mrf.mxu0
  %v1078 = vadd.f32 0.0, %v1077
  %v1079 = vpop.f32.mrf.mxu0
  %v1080 = vadd.f32 0.0, %v1079
  %1081 = vmatmul.bf16.gmra.mxu0 %v957
  %v1082 = vpop.f32.mrf.mxu0
  %v1083 = vadd.f32 0.0, %v1082
  %v1084 = vpop.f32.mrf.mxu0
  %v1085 = vadd.f32 0.0, %v1084
  %1086 = vmatmul.bf16.gmra.mxu0 %v960
  %v1087 = vpop.f32.mrf.mxu0
  %v1088 = vadd.f32 0.0, %v1087
  %v1089 = vpop.f32.mrf.mxu0
  %v1090 = vadd.f32 0.0, %v1089
  %1091 = vmatmul.bf16.gmra.mxu0 %v963
  %v1092 = vpop.f32.mrf.mxu0
  %v1093 = vadd.f32 0.0, %v1092
  %v1094 = vpop.f32.mrf.mxu0
  %v1095 = vadd.f32 0.0, %v1094
  %1096 = vmatmul.bf16.gmra.mxu0 %v966
  %v1097 = vpop.f32.mrf.mxu0
  %v1098 = vadd.f32 0.0, %v1097
  %v1099 = vpop.f32.mrf.mxu0
  %1100 = vdwg.mxu0
  %v1101 = vmul.f32 %v1005, 0.25
  %v1102 = vmul.f32 %v1058, 0.25
  %v1103 = vmul.f32 %v1007, 0.25
  %v1104 = vmul.f32 %v1060, 0.25
  %v1105 = vmul.f32 %v1010, 0.25
  %v1106 = vmul.f32 %v1063, 0.25
  %v1107 = vmul.f32 %v1012, 0.25
  %v1108 = vmul.f32 %v1065, 0.25
  %v1109 = vmul.f32 %v1015, 0.25
  %v1110 = vmul.f32 %v1068, 0.25
  %v1111 = vmul.f32 %v1017, 0.25
  %v1112 = vmul.f32 %v1070, 0.25
  %v1113 = vmul.f32 %v1020, 0.25
  %v1114 = vmul.f32 %v1073, 0.25
  %v1115 = vmul.f32 %v1022, 0.25
  %v1116 = vmul.f32 %v1075, 0.25
  %v1117 = vmul.f32 %v1025, 0.25
  %v1118 = vmul.f32 %v1078, 0.25
  %v1119 = vmul.f32 %v1027, 0.25
  %v1120 = vmul.f32 %v1080, 0.25
  %v1121 = vmul.f32 %v1030, 0.25
  %v1122 = vmul.f32 %v1083, 0.25
  %v1123 = vmul.f32 %v1032, 0.25
  %v1124 = vmul.f32 %v1085, 0.25
  %v1125 = vmul.f32 %v1035, 0.25
  %v1126 = vmul.f32 %v1088, 0.25
  %v1127 = vmul.f32 %v1037, 0.25
  %v1128 = vmul.f32 %v1090, 0.25
  %v1129 = vmul.f32 %v1040, 0.25
  %v1130 = vmul.f32 %v1093, 0.25
  %v1131 = vmul.f32 %v1042, 0.25
  %v1132 = vmul.f32 %v1095, 0.25
  %v1133 = vmul.f32 %v1045, 0.25
  %v1134 = vmul.f32 %v1098, 0.25
  %v1135 = vadd.f32 %v1101, %v120
  %v1136 = vadd.f32 %v1102, %v121
  %v1137 = vadd.f32 %v1103, %v122
  %v1138 = vadd.f32 %v1104, %v123
  %v1139 = vadd.f32 %v1105, %v124
  %v1140 = vadd.f32 %v1106, %v125
  %v1141 = vadd.f32 %v1107, %v126
  %v1142 = vadd.f32 %v1108, %v127
  %v1143 = vadd.f32 %v1109, %v128
  %v1144 = vadd.f32 %v1110, %v129
  %v1145 = vadd.f32 %v1111, %v130
  %v1146 = vadd.f32 %v1112, %v131
  %v1147 = vadd.f32 %v1113, %v132
  %v1148 = vadd.f32 %v1114, %v133
  %v1149 = vadd.f32 %v1115, %v134
  %v1150 = vadd.f32 %v1116, %v135
  %v1151 = vadd.f32 %v1117, %v136
  %v1152 = vadd.f32 %v1118, %v137
  %v1153 = vadd.f32 %v1119, %v138
  %v1154 = vadd.f32 %v1120, %v139
  %v1155 = vadd.f32 %v1121, %v140
  %v1156 = vadd.f32 %v1122, %v141
  %v1157 = vadd.f32 %v1123, %v142
  %v1158 = vadd.f32 %v1124, %v143
  %v1159 = vadd.f32 %v1125, %v144
  %v1160 = vadd.f32 %v1126, %v145
  %v1161 = vadd.f32 %v1127, %v146
  %v1162 = vadd.f32 %v1128, %v147
  %v1163 = vadd.f32 %v1129, %v148
  %v1164 = vadd.f32 %v1130, %v149
  %v1165 = vadd.f32 %v1131, %v150
  %v1166 = vadd.f32 %v1132, %v151
  %v1167 = vadd.f32 %v1133, %v152
  %v1168 = vadd.f32 %v1134, %v153
  %vm1169 = vcmask 64512
  %v1170 = vsel %vm1169, %v1136, -inf
  %v1171 = vmax.f32 %v1135, %v1170
  %1172 = vmax.xlane.f32.xlu0 %v1171
  %v1173 = vpop.xlane.xlu0 %1172
  %v1174 = vsel %vm1169, %v1138, -inf
  %v1175 = vmax.f32 %v1137, %v1174
  %1176 = vmax.xlane.f32.xlu0 %v1175
  %v1177 = vpop.xlane.xlu0 %1176
  %v1178 = vsel %vm1169, %v1140, -inf
  %v1179 = vmax.f32 %v1139, %v1178
  %1180 = vmax.xlane.f32.xlu0 %v1179
  %v1181 = vpop.xlane.xlu0 %1180
  %v1182 = vsel %vm1169, %v1142, -inf
  %v1183 = vmax.f32 %v1141, %v1182
  %1184 = vmax.xlane.f32.xlu0 %v1183
  %v1185 = vpop.xlane.xlu0 %1184
  %v1186 = vsel %vm1169, %v1144, -inf
  %v1187 = vmax.f32 %v1143, %v1186
  %1188 = vmax.xlane.f32.xlu0 %v1187
  %v1189 = vpop.xlane.xlu0 %1188
  %v1190 = vsel %vm1169, %v1146, -inf
  %v1191 = vmax.f32 %v1145, %v1190
  %1192 = vmax.xlane.f32.xlu0 %v1191
  %v1193 = vpop.xlane.xlu0 %1192
  %v1194 = vsel %vm1169, %v1148, -inf
  %v1195 = vmax.f32 %v1147, %v1194
  %1196 = vmax.xlane.f32.xlu0 %v1195
  %v1197 = vpop.xlane.xlu0 %1196
  %v1198 = vsel %vm1169, %v1150, -inf
  %v1199 = vmax.f32 %v1149, %v1198
  %1200 = vmax.xlane.f32.xlu0 %v1199
  %v1201 = vpop.xlane.xlu0 %1200
  %v1202 = vsel %vm1169, %v1152, -inf
  %v1203 = vmax.f32 %v1151, %v1202
  %1204 = vmax.xlane.f32.xlu0 %v1203
  %v1205 = vpop.xlane.xlu0 %1204
  %v1206 = vsel %vm1169, %v1154, -inf
  %v1207 = vmax.f32 %v1153, %v1206
  %1208 = vmax.xlane.f32.xlu0 %v1207
  %v1209 = vpop.xlane.xlu0 %1208
  %v1210 = vsel %vm1169, %v1156, -inf
  %v1211 = vmax.f32 %v1155, %v1210
  %1212 = vmax.xlane.f32.xlu0 %v1211
  %v1213 = vpop.xlane.xlu0 %1212
  %v1214 = vsel %vm1169, %v1158, -inf
  %v1215 = vmax.f32 %v1157, %v1214
  %1216 = vmax.xlane.f32.xlu0 %v1215
  %v1217 = vpop.xlane.xlu0 %1216
  %v1218 = vsel %vm1169, %v1160, -inf
  %v1219 = vmax.f32 %v1159, %v1218
  %1220 = vmax.xlane.f32.xlu0 %v1219
  %v1221 = vpop.xlane.xlu0 %1220
  %v1222 = vsel %vm1169, %v1162, -inf
  %v1223 = vmax.f32 %v1161, %v1222
  %1224 = vmax.xlane.f32.xlu0 %v1223
  %v1225 = vpop.xlane.xlu0 %1224
  %v1226 = vsel %vm1169, %v1164, -inf
  %v1227 = vmax.f32 %v1163, %v1226
  %1228 = vmax.xlane.f32.xlu0 %v1227
  %v1229 = vpop.xlane.xlu0 %1228
  %v1230 = vsel %vm1169, %v1166, -inf
  %v1231 = vmax.f32 %v1165, %v1230
  %1232 = vmax.xlane.f32.xlu0 %v1231
  %v1233 = vpop.xlane.xlu0 %1232
  %v1234 = vsel %vm1169, %v1168, -inf
  %v1235 = vmax.f32 %v1167, %v1234
  %1236 = vmax.xlane.f32.xlu0 %v1235
  %v1237 = vpop.xlane.xlu0 %1236
  %v1238 = vsub.f32 %v1135, %v1173
  %v1239 = vsub.f32 %v1136, %v1173
  %v1240 = vsub.f32 %v1137, %v1177
  %v1241 = vsub.f32 %v1138, %v1177
  %v1242 = vsub.f32 %v1139, %v1181
  %v1243 = vsub.f32 %v1140, %v1181
  %v1244 = vsub.f32 %v1141, %v1185
  %v1245 = vsub.f32 %v1142, %v1185
  %v1246 = vsub.f32 %v1143, %v1189
  %v1247 = vsub.f32 %v1144, %v1189
  %v1248 = vsub.f32 %v1145, %v1193
  %v1249 = vsub.f32 %v1146, %v1193
  %v1250 = vsub.f32 %v1147, %v1197
  %v1251 = vsub.f32 %v1148, %v1197
  %v1252 = vsub.f32 %v1149, %v1201
  %v1253 = vsub.f32 %v1150, %v1201
  %v1254 = vsub.f32 %v1151, %v1205
  %v1255 = vsub.f32 %v1152, %v1205
  %v1256 = vsub.f32 %v1153, %v1209
  %v1257 = vsub.f32 %v1154, %v1209
  %v1258 = vsub.f32 %v1155, %v1213
  %v1259 = vsub.f32 %v1156, %v1213
  %v1260 = vsub.f32 %v1157, %v1217
  %v1261 = vsub.f32 %v1158, %v1217
  %v1262 = vsub.f32 %v1159, %v1221
  %v1263 = vsub.f32 %v1160, %v1221
  %v1264 = vsub.f32 %v1161, %v1225
  %v1265 = vsub.f32 %v1162, %v1225
  %v1266 = vsub.f32 %v1163, %v1229
  %v1267 = vsub.f32 %v1164, %v1229
  %v1268 = vsub.f32 %v1165, %v1233
  %v1269 = vsub.f32 %v1166, %v1233
  %v1270 = vsub.f32 %v1167, %v1237
  %v1271 = vsub.f32 %v1168, %v1237
  %v1272 = vmul.f32 %v1238, 1.442695
  %v1273 = vpow.pop %v1272
  %v1274 = vmul.f32 %v1239, 1.442695
  %v1275 = vpow.pop %v1274
  %v1276 = vmul.f32 %v1240, 1.442695
  %v1277 = vpow.pop %v1276
  %v1278 = vmul.f32 %v1241, 1.442695
  %v1279 = vpow.pop %v1278
  %v1280 = vmul.f32 %v1242, 1.442695
  %v1281 = vpow.pop %v1280
  %v1282 = vmul.f32 %v1243, 1.442695
  %v1283 = vpow.pop %v1282
  %v1284 = vmul.f32 %v1244, 1.442695
  %v1285 = vpow.pop %v1284
  %v1286 = vmul.f32 %v1245, 1.442695
  %v1287 = vpow.pop %v1286
  %v1288 = vmul.f32 %v1246, 1.442695
  %v1289 = vpow.pop %v1288
  %v1290 = vmul.f32 %v1247, 1.442695
  %v1291 = vpow.pop %v1290
  %v1292 = vmul.f32 %v1248, 1.442695
  %v1293 = vpow.pop %v1292
  %v1294 = vmul.f32 %v1249, 1.442695
  %v1295 = vpow.pop %v1294
  %v1296 = vmul.f32 %v1250, 1.442695
  %v1297 = vpow.pop %v1296
  %v1298 = vmul.f32 %v1251, 1.442695
  %v1299 = vpow.pop %v1298
  %v1300 = vmul.f32 %v1252, 1.442695
  %v1301 = vpow.pop %v1300
  %v1302 = vmul.f32 %v1253, 1.442695
  %v1303 = vpow.pop %v1302
  %v1304 = vmul.f32 %v1254, 1.442695
  %v1305 = vpow.pop %v1304
  %v1306 = vmul.f32 %v1255, 1.442695
  %v1307 = vpow.pop %v1306
  %v1308 = vmul.f32 %v1256, 1.442695
  %v1309 = vpow.pop %v1308
  %v1310 = vmul.f32 %v1257, 1.442695
  %v1311 = vpow.pop %v1310
  %v1312 = vmul.f32 %v1258, 1.442695
  %v1313 = vpow.pop %v1312
  %v1314 = vmul.f32 %v1259, 1.442695
  %v1315 = vpow.pop %v1314
  %v1316 = vmul.f32 %v1260, 1.442695
  %v1317 = vpow.pop %v1316
  %v1318 = vmul.f32 %v1261, 1.442695
  %v1319 = vpow.pop %v1318
  %v1320 = vmul.f32 %v1262, 1.442695
  %v1321 = vpow.pop %v1320
  %v1322 = vmul.f32 %v1263, 1.442695
  %v1323 = vpow.pop %v1322
  %v1324 = vmul.f32 %v1264, 1.442695
  %v1325 = vpow.pop %v1324
  %v1326 = vmul.f32 %v1265, 1.442695
  %v1327 = vpow.pop %v1326
  %v1328 = vmul.f32 %v1266, 1.442695
  %v1329 = vpow.pop %v1328
  %v1330 = vmul.f32 %v1267, 1.442695
  %v1331 = vpow.pop %v1330
  %v1332 = vmul.f32 %v1268, 1.442695
  %v1333 = vpow.pop %v1332
  %v1334 = vmul.f32 %v1269, 1.442695
  %v1335 = vpow.pop %v1334
  %v1336 = vmul.f32 %v1270, 1.442695
  %v1337 = vpow.pop %v1336
  %v1338 = vmul.f32 %v1271, 1.442695
  %v1339 = vpow.pop %v1338
  %v1340 = vsel %vm1169, %v1275, 0.0
  %v1341 = vadd.f32 %v1273, %v1340
  %1342 = vadd.xlane.f32.xlu0 %v1341
  %v1343 = vpop.xlane.xlu0 %1342
  %v1344 = vsel %vm1169, %v1279, 0.0
  %v1345 = vadd.f32 %v1277, %v1344
  %1346 = vadd.xlane.f32.xlu0 %v1345
  %v1347 = vpop.xlane.xlu0 %1346
  %v1348 = vsel %vm1169, %v1283, 0.0
  %v1349 = vadd.f32 %v1281, %v1348
  %1350 = vadd.xlane.f32.xlu0 %v1349
  %v1351 = vpop.xlane.xlu0 %1350
  %v1352 = vsel %vm1169, %v1287, 0.0
  %v1353 = vadd.f32 %v1285, %v1352
  %1354 = vadd.xlane.f32.xlu0 %v1353
  %v1355 = vpop.xlane.xlu0 %1354
  %v1356 = vsel %vm1169, %v1291, 0.0
  %v1357 = vadd.f32 %v1289, %v1356
  %1358 = vadd.xlane.f32.xlu0 %v1357
  %v1359 = vpop.xlane.xlu0 %1358
  %v1360 = vsel %vm1169, %v1295, 0.0
  %v1361 = vadd.f32 %v1293, %v1360
  %1362 = vadd.xlane.f32.xlu0 %v1361
  %v1363 = vpop.xlane.xlu0 %1362
  %v1364 = vsel %vm1169, %v1299, 0.0
  %v1365 = vadd.f32 %v1297, %v1364
  %1366 = vadd.xlane.f32.xlu0 %v1365
  %v1367 = vpop.xlane.xlu0 %1366
  %v1368 = vsel %vm1169, %v1303, 0.0
  %v1369 = vadd.f32 %v1301, %v1368
  %1370 = vadd.xlane.f32.xlu0 %v1369
  %v1371 = vpop.xlane.xlu0 %1370
  %v1372 = vsel %vm1169, %v1307, 0.0
  %v1373 = vadd.f32 %v1305, %v1372
  %1374 = vadd.xlane.f32.xlu0 %v1373
  %v1375 = vpop.xlane.xlu0 %1374
  %v1376 = vsel %vm1169, %v1311, 0.0
  %v1377 = vadd.f32 %v1309, %v1376
  %1378 = vadd.xlane.f32.xlu0 %v1377
  %v1379 = vpop.xlane.xlu0 %1378
  %v1380 = vsel %vm1169, %v1315, 0.0
  %v1381 = vadd.f32 %v1313, %v1380
  %1382 = vadd.xlane.f32.xlu0 %v1381
  %v1383 = vpop.xlane.xlu0 %1382
  %v1384 = vsel %vm1169, %v1319, 0.0
  %v1385 = vadd.f32 %v1317, %v1384
  %1386 = vadd.xlane.f32.xlu0 %v1385
  %v1387 = vpop.xlane.xlu0 %1386
  %v1388 = vsel %vm1169, %v1323, 0.0
  %v1389 = vadd.f32 %v1321, %v1388
  %1390 = vadd.xlane.f32.xlu0 %v1389
  %v1391 = vpop.xlane.xlu0 %1390
  %v1392 = vsel %vm1169, %v1327, 0.0
  %v1393 = vadd.f32 %v1325, %v1392
  %1394 = vadd.xlane.f32.xlu0 %v1393
  %v1395 = vpop.xlane.xlu0 %1394
  %v1396 = vsel %vm1169, %v1331, 0.0
  %v1397 = vadd.f32 %v1329, %v1396
  %1398 = vadd.xlane.f32.xlu0 %v1397
  %v1399 = vpop.xlane.xlu0 %1398
  %v1400 = vsel %vm1169, %v1335, 0.0
  %v1401 = vadd.f32 %v1333, %v1400
  %1402 = vadd.xlane.f32.xlu0 %v1401
  %v1403 = vpop.xlane.xlu0 %1402
  %v1404 = vsel %vm1169, %v1339, 0.0
  %v1405 = vadd.f32 %v1337, %v1404
  %1406 = vadd.xlane.f32.xlu0 %v1405
  %v1407 = vpop.xlane.xlu0 %1406
  %v1408 = vrcp.pop %v1343
  %v1409 = vrcp.pop %v1347
  %v1410 = vrcp.pop %v1351
  %v1411 = vrcp.pop %v1355
  %v1412 = vrcp.pop %v1359
  %v1413 = vrcp.pop %v1363
  %v1414 = vrcp.pop %v1367
  %v1415 = vrcp.pop %v1371
  %v1416 = vrcp.pop %v1375
  %v1417 = vrcp.pop %v1379
  %v1418 = vrcp.pop %v1383
  %v1419 = vrcp.pop %v1387
  %v1420 = vrcp.pop %v1391
  %v1421 = vrcp.pop %v1395
  %v1422 = vrcp.pop %v1399
  %v1423 = vrcp.pop %v1403
  %v1424 = vrcp.pop %v1407
  %v1425 = vmul.f32 %v1273, %v1408
  %v1426 = vmul.f32 %v1275, %v1408
  %v1427 = vmul.f32 %v1277, %v1409
  %v1428 = vmul.f32 %v1279, %v1409
  %v1429 = vmul.f32 %v1281, %v1410
  %v1430 = vmul.f32 %v1283, %v1410
  %v1431 = vmul.f32 %v1285, %v1411
  %v1432 = vmul.f32 %v1287, %v1411
  %v1433 = vmul.f32 %v1289, %v1412
  %v1434 = vmul.f32 %v1291, %v1412
  %v1435 = vmul.f32 %v1293, %v1413
  %v1436 = vmul.f32 %v1295, %v1413
  %v1437 = vmul.f32 %v1297, %v1414
  %v1438 = vmul.f32 %v1299, %v1414
  %v1439 = vmul.f32 %v1301, %v1415
  %v1440 = vmul.f32 %v1303, %v1415
  %v1441 = vmul.f32 %v1305, %v1416
  %v1442 = vmul.f32 %v1307, %v1416
  %v1443 = vmul.f32 %v1309, %v1417
  %v1444 = vmul.f32 %v1311, %v1417
  %v1445 = vmul.f32 %v1313, %v1418
  %v1446 = vmul.f32 %v1315, %v1418
  %v1447 = vmul.f32 %v1317, %v1419
  %v1448 = vmul.f32 %v1319, %v1419
  %v1449 = vmul.f32 %v1321, %v1420
  %v1450 = vmul.f32 %v1323, %v1420
  %v1451 = vmul.f32 %v1325, %v1421
  %v1452 = vmul.f32 %v1327, %v1421
  %v1453 = vmul.f32 %v1329, %v1422
  %v1454 = vmul.f32 %v1331, %v1422
  %v1455 = vmul.f32 %v1333, %v1423
  %v1456 = vmul.f32 %v1335, %v1423
  %v1457 = vmul.f32 %v1337, %v1424
  %v1458 = vmul.f32 %v1339, %v1424
  %v1459 = vpack.c.bf16 %v1427, %v1425
  %v1460 = vpack.c.bf16 %v1428, %v1426
  %v1461 = vpack.c.bf16 %v1431, %v1429
  %v1462 = vpack.c.bf16 %v1432, %v1430
  %v1463 = vpack.c.bf16 %v1435, %v1433
  %v1464 = vpack.c.bf16 %v1436, %v1434
  %v1465 = vpack.c.bf16 %v1439, %v1437
  %v1466 = vpack.c.bf16 %v1440, %v1438
  %v1467 = vpack.c.bf16 %v1443, %v1441
  %v1468 = vpack.c.bf16 %v1444, %v1442
  %v1469 = vpack.c.bf16 %v1447, %v1445
  %v1470 = vpack.c.bf16 %v1448, %v1446
  %v1471 = vpack.c.bf16 %v1451, %v1449
  %v1472 = vpack.c.bf16 %v1452, %v1450
  %v1473 = vpack.c.bf16 %v1455, %v1453
  %v1474 = vpack.c.bf16 %v1456, %v1454
  %v1475 = vpack.c.bf16 %v1457, %v1457
  %v1476 = vpack.c.bf16 %v1458, %v1458
  %v1478 = vsel %vm1169, %v1460, 0
  %v1481 = vsel %vm1169, %v1462, 0
  %v1484 = vsel %vm1169, %v1464, 0
  %v1487 = vsel %vm1169, %v1466, 0
  %v1490 = vsel %vm1169, %v1468, 0
  %v1493 = vsel %vm1169, %v1470, 0
  %v1496 = vsel %vm1169, %v1472, 0
  %v1499 = vsel %vm1169, %v1474, 0
  %v1502 = vsel %vm1169, %v1476, 0
  %v1505 = vsel %vm215, %v912, 0
  %1507 = vmatpush.bf16.msra.mxu0 %v911
  %1508 = vmatpush.bf16.msra.mxu0 %v910
  %1509 = vmatpush.bf16.msra.mxu0 %v909
  %1510 = vmatpush.bf16.msra.mxu0 %v908
  %1511 = vmatpush.bf16.msra.mxu0 %v907
  %1512 = vmatpush.bf16.msra.mxu0 %v906
  %1513 = vmatpush.bf16.msra.mxu0 %v905
  %1514 = vmatpush.bf16.msra.mxu0 %v904
  %1515 = vmatmul.bf16.gmra.mxu0 %v1459
  %v1516 = vpop.f32.mrf.mxu0
  %v1517 = vadd.f32 0.0, %v1516
  %v1518 = vpop.f32.mrf.mxu0
  %v1519 = vadd.f32 0.0, %v1518
  %1520 = vmatmul.bf16.gmra.mxu0 %v1461
  %v1521 = vpop.f32.mrf.mxu0
  %v1522 = vadd.f32 0.0, %v1521
  %v1523 = vpop.f32.mrf.mxu0
  %v1524 = vadd.f32 0.0, %v1523
  %1525 = vmatmul.bf16.gmra.mxu0 %v1463
  %v1526 = vpop.f32.mrf.mxu0
  %v1527 = vadd.f32 0.0, %v1526
  %v1528 = vpop.f32.mrf.mxu0
  %v1529 = vadd.f32 0.0, %v1528
  %1530 = vmatmul.bf16.gmra.mxu0 %v1465
  %v1531 = vpop.f32.mrf.mxu0
  %v1532 = vadd.f32 0.0, %v1531
  %v1533 = vpop.f32.mrf.mxu0
  %v1534 = vadd.f32 0.0, %v1533
  %1535 = vmatmul.bf16.gmra.mxu0 %v1467
  %v1536 = vpop.f32.mrf.mxu0
  %v1537 = vadd.f32 0.0, %v1536
  %v1538 = vpop.f32.mrf.mxu0
  %v1539 = vadd.f32 0.0, %v1538
  %1540 = vmatmul.bf16.gmra.mxu0 %v1469
  %v1541 = vpop.f32.mrf.mxu0
  %v1542 = vadd.f32 0.0, %v1541
  %v1543 = vpop.f32.mrf.mxu0
  %v1544 = vadd.f32 0.0, %v1543
  %1545 = vmatmul.bf16.gmra.mxu0 %v1471
  %v1546 = vpop.f32.mrf.mxu0
  %v1547 = vadd.f32 0.0, %v1546
  %v1548 = vpop.f32.mrf.mxu0
  %v1549 = vadd.f32 0.0, %v1548
  %1550 = vmatmul.bf16.gmra.mxu0 %v1473
  %v1551 = vpop.f32.mrf.mxu0
  %v1552 = vadd.f32 0.0, %v1551
  %v1553 = vpop.f32.mrf.mxu0
  %v1554 = vadd.f32 0.0, %v1553
  %1555 = vmatmul.bf16.gmra.mxu0 %v1475
  %v1556 = vpop.f32.mrf.mxu0
  %v1557 = vadd.f32 0.0, %v1556
  %v1558 = vpop.f32.mrf.mxu0
  %1559 = vdwg.mxu0
  %1560 = vmatpush.bf16.msra.mxu0 0
  %1561 = vmatpush.bf16.msra.mxu0 0
  %1562 = vmatpush.bf16.msra.mxu0 0
  %1563 = vmatpush.bf16.msra.mxu0 0
  %1564 = vmatpush.bf16.msra.mxu0 0
  %1565 = vmatpush.bf16.msra.mxu0 0
  %1566 = vmatpush.bf16.msra.mxu0 0
  %1567 = vmatpush.bf16.msra.mxu0 %v1505
  %1568 = vmatmul.bf16.gmra.mxu0 %v1478
  %v1569 = vpop.f32.mrf.mxu0
  %v1570 = vadd.f32 %v1517, %v1569
  %v1571 = vpop.f32.mrf.mxu0
  %v1572 = vadd.f32 %v1519, %v1571
  %1573 = vmatmul.bf16.gmra.mxu0 %v1481
  %v1574 = vpop.f32.mrf.mxu0
  %v1575 = vadd.f32 %v1522, %v1574
  %v1576 = vpop.f32.mrf.mxu0
  %v1577 = vadd.f32 %v1524, %v1576
  %1578 = vmatmul.bf16.gmra.mxu0 %v1484
  %v1579 = vpop.f32.mrf.mxu0
  %v1580 = vadd.f32 %v1527, %v1579
  %v1581 = vpop.f32.mrf.mxu0
  %v1582 = vadd.f32 %v1529, %v1581
  %1583 = vmatmul.bf16.gmra.mxu0 %v1487
  %v1584 = vpop.f32.mrf.mxu0
  %v1585 = vadd.f32 %v1532, %v1584
  %v1586 = vpop.f32.mrf.mxu0
  %v1587 = vadd.f32 %v1534, %v1586
  %1588 = vmatmul.bf16.gmra.mxu0 %v1490
  %v1589 = vpop.f32.mrf.mxu0
  %v1590 = vadd.f32 %v1537, %v1589
  %v1591 = vpop.f32.mrf.mxu0
  %v1592 = vadd.f32 %v1539, %v1591
  %1593 = vmatmul.bf16.gmra.mxu0 %v1493
  %v1594 = vpop.f32.mrf.mxu0
  %v1595 = vadd.f32 %v1542, %v1594
  %v1596 = vpop.f32.mrf.mxu0
  %v1597 = vadd.f32 %v1544, %v1596
  %1598 = vmatmul.bf16.gmra.mxu0 %v1496
  %v1599 = vpop.f32.mrf.mxu0
  %v1600 = vadd.f32 %v1547, %v1599
  %v1601 = vpop.f32.mrf.mxu0
  %v1602 = vadd.f32 %v1549, %v1601
  %1603 = vmatmul.bf16.gmra.mxu0 %v1499
  %v1604 = vpop.f32.mrf.mxu0
  %v1605 = vadd.f32 %v1552, %v1604
  %v1606 = vpop.f32.mrf.mxu0
  %v1607 = vadd.f32 %v1554, %v1606
  %1608 = vmatmul.bf16.gmra.mxu0 %v1502
  %v1609 = vpop.f32.mrf.mxu0
  %v1610 = vadd.f32 %v1557, %v1609
  %v1611 = vpop.f32.mrf.mxu0
  %1612 = vdwg.mxu0
  %1613 = vrot.lane.b32.xlu0 %v895, 112
  %v1614 = vpop.permute.xlu0 %1613
  %1615 = vrot.lane.b32.xlu0 %v896, 112
  %v1616 = vpop.permute.xlu0 %1615
  %1617 = vrot.lane.b32.xlu0 %v897, 112
  %v1618 = vpop.permute.xlu0 %1617
  %1619 = vrot.lane.b32.xlu0 %v898, 112
  %v1620 = vpop.permute.xlu0 %1619
  %1621 = vrot.lane.b32.xlu0 %v899, 112
  %v1622 = vpop.permute.xlu0 %1621
  %1623 = vrot.lane.b32.xlu0 %v900, 112
  %v1624 = vpop.permute.xlu0 %1623
  %1625 = vrot.lane.b32.xlu0 %v901, 112
  %v1626 = vpop.permute.xlu0 %1625
  %1627 = vrot.lane.b32.xlu0 %v902, 112
  %v1628 = vpop.permute.xlu0 %1627
  %1629 = vrot.lane.b32.xlu0 %v903, 112
  %v1630 = vpop.permute.xlu0 %1629
  %1631 = vrot.lane.b32.xlu0 %v895, 48
  %v1632 = vpop.permute.xlu0 %1631
  %1633 = vrot.lane.b32.xlu0 %v896, 48
  %v1634 = vpop.permute.xlu0 %1633
  %1635 = vrot.lane.b32.xlu0 %v897, 48
  %v1636 = vpop.permute.xlu0 %1635
  %1637 = vrot.lane.b32.xlu0 %v898, 48
  %v1638 = vpop.permute.xlu0 %1637
  %1639 = vrot.lane.b32.xlu0 %v899, 48
  %v1640 = vpop.permute.xlu0 %1639
  %1641 = vrot.lane.b32.xlu0 %v900, 48
  %v1642 = vpop.permute.xlu0 %1641
  %1643 = vrot.lane.b32.xlu0 %v901, 48
  %v1644 = vpop.permute.xlu0 %1643
  %1645 = vrot.lane.b32.xlu0 %v902, 48
  %v1646 = vpop.permute.xlu0 %1645
  %1647 = vrot.lane.b32.xlu0 %v903, 48
  %v1648 = vpop.permute.xlu0 %1647
  %v1650 = vsel %vm940, %v1614, 0
  %v1653 = vsel %vm940, %v1616, 0
  %v1656 = vsel %vm940, %v1618, 0
  %v1659 = vsel %vm940, %v1620, 0
  %v1662 = vsel %vm940, %v1622, 0
  %v1665 = vsel %vm940, %v1624, 0
  %v1668 = vsel %vm940, %v1626, 0
  %v1671 = vsel %vm940, %v1628, 0
  %v1674 = vsel %vm940, %v1630, 0
  %v1677 = vsel %vm940, %v1632, 0
  %v1680 = vsel %vm940, %v1634, 0
  %v1683 = vsel %vm940, %v1636, 0
  %v1686 = vsel %vm940, %v1638, 0
  %v1689 = vsel %vm940, %v1640, 0
  %v1692 = vsel %vm940, %v1642, 0
  %v1695 = vsel %vm940, %v1644, 0
  %v1698 = vsel %vm940, %v1646, 0
  %v1701 = vsel %vm940, %v1648, 0
  %1703 = vmatpush.bf16.xpose.msra.mxu0 %v1698
  %1704 = vmatpush.bf16.xpose.msra.mxu0 %v1695
  %1705 = vmatpush.bf16.xpose.msra.mxu0 %v1692
  %1706 = vmatpush.bf16.xpose.msra.mxu0 %v1689
  %1707 = vmatpush.bf16.xpose.msra.mxu0 %v1686
  %1708 = vmatpush.bf16.xpose.msra.mxu0 %v1683
  %1709 = vmatpush.bf16.xpose.msra.mxu0 %v1680
  %1710 = vmatpush.bf16.xpose.msra.mxu0 %v1677
  %1711 = vmatmul.bf16.gmra.mxu0 %v1650
  %v1712 = vpop.f32.mrf.mxu0
  %v1713 = vadd.f32 0.0, %v1712
  %v1714 = vpop.f32.mrf.mxu0
  %v1715 = vadd.f32 0.0, %v1714
  %1716 = vmatmul.bf16.gmra.mxu0 %v1653
  %v1717 = vpop.f32.mrf.mxu0
  %v1718 = vadd.f32 0.0, %v1717
  %v1719 = vpop.f32.mrf.mxu0
  %v1720 = vadd.f32 0.0, %v1719
  %1721 = vmatmul.bf16.gmra.mxu0 %v1656
  %v1722 = vpop.f32.mrf.mxu0
  %v1723 = vadd.f32 0.0, %v1722
  %v1724 = vpop.f32.mrf.mxu0
  %v1725 = vadd.f32 0.0, %v1724
  %1726 = vmatmul.bf16.gmra.mxu0 %v1659
  %v1727 = vpop.f32.mrf.mxu0
  %v1728 = vadd.f32 0.0, %v1727
  %v1729 = vpop.f32.mrf.mxu0
  %v1730 = vadd.f32 0.0, %v1729
  %1731 = vmatmul.bf16.gmra.mxu0 %v1662
  %v1732 = vpop.f32.mrf.mxu0
  %v1733 = vadd.f32 0.0, %v1732
  %v1734 = vpop.f32.mrf.mxu0
  %v1735 = vadd.f32 0.0, %v1734
  %1736 = vmatmul.bf16.gmra.mxu0 %v1665
  %v1737 = vpop.f32.mrf.mxu0
  %v1738 = vadd.f32 0.0, %v1737
  %v1739 = vpop.f32.mrf.mxu0
  %v1740 = vadd.f32 0.0, %v1739
  %1741 = vmatmul.bf16.gmra.mxu0 %v1668
  %v1742 = vpop.f32.mrf.mxu0
  %v1743 = vadd.f32 0.0, %v1742
  %v1744 = vpop.f32.mrf.mxu0
  %v1745 = vadd.f32 0.0, %v1744
  %1746 = vmatmul.bf16.gmra.mxu0 %v1671
  %v1747 = vpop.f32.mrf.mxu0
  %v1748 = vadd.f32 0.0, %v1747
  %v1749 = vpop.f32.mrf.mxu0
  %v1750 = vadd.f32 0.0, %v1749
  %1751 = vmatmul.bf16.gmra.mxu0 %v1674
  %v1752 = vpop.f32.mrf.mxu0
  %v1753 = vadd.f32 0.0, %v1752
  %v1754 = vpop.f32.mrf.mxu0
  %1755 = vdwg.mxu0
  %1756 = vmatpush.bf16.xpose.msra.mxu0 0
  %1757 = vmatpush.bf16.xpose.msra.mxu0 0
  %1758 = vmatpush.bf16.xpose.msra.mxu0 0
  %1759 = vmatpush.bf16.xpose.msra.mxu0 0
  %1760 = vmatpush.bf16.xpose.msra.mxu0 0
  %1761 = vmatpush.bf16.xpose.msra.mxu0 0
  %1762 = vmatpush.bf16.xpose.msra.mxu0 0
  %1763 = vmatpush.bf16.xpose.msra.mxu0 %v1701
  %1764 = vmatmul.bf16.gmra.mxu0 %v1650
  %v1765 = vpop.f32.mrf.mxu0
  %v1766 = vadd.f32 0.0, %v1765
  %v1767 = vpop.f32.mrf.mxu0
  %v1768 = vadd.f32 0.0, %v1767
  %1769 = vmatmul.bf16.gmra.mxu0 %v1653
  %v1770 = vpop.f32.mrf.mxu0
  %v1771 = vadd.f32 0.0, %v1770
  %v1772 = vpop.f32.mrf.mxu0
  %v1773 = vadd.f32 0.0, %v1772
  %1774 = vmatmul.bf16.gmra.mxu0 %v1656
  %v1775 = vpop.f32.mrf.mxu0
  %v1776 = vadd.f32 0.0, %v1775
  %v1777 = vpop.f32.mrf.mxu0
  %v1778 = vadd.f32 0.0, %v1777
  %1779 = vmatmul.bf16.gmra.mxu0 %v1659
  %v1780 = vpop.f32.mrf.mxu0
  %v1781 = vadd.f32 0.0, %v1780
  %v1782 = vpop.f32.mrf.mxu0
  %v1783 = vadd.f32 0.0, %v1782
  %1784 = vmatmul.bf16.gmra.mxu0 %v1662
  %v1785 = vpop.f32.mrf.mxu0
  %v1786 = vadd.f32 0.0, %v1785
  %v1787 = vpop.f32.mrf.mxu0
  %v1788 = vadd.f32 0.0, %v1787
  %1789 = vmatmul.bf16.gmra.mxu0 %v1665
  %v1790 = vpop.f32.mrf.mxu0
  %v1791 = vadd.f32 0.0, %v1790
  %v1792 = vpop.f32.mrf.mxu0
  %v1793 = vadd.f32 0.0, %v1792
  %1794 = vmatmul.bf16.gmra.mxu0 %v1668
  %v1795 = vpop.f32.mrf.mxu0
  %v1796 = vadd.f32 0.0, %v1795
  %v1797 = vpop.f32.mrf.mxu0
  %v1798 = vadd.f32 0.0, %v1797
  %1799 = vmatmul.bf16.gmra.mxu0 %v1671
  %v1800 = vpop.f32.mrf.mxu0
  %v1801 = vadd.f32 0.0, %v1800
  %v1802 = vpop.f32.mrf.mxu0
  %v1803 = vadd.f32 0.0, %v1802
  %1804 = vmatmul.bf16.gmra.mxu0 %v1674
  %v1805 = vpop.f32.mrf.mxu0
  %v1806 = vadd.f32 0.0, %v1805
  %v1807 = vpop.f32.mrf.mxu0
  %1808 = vdwg.mxu0
  %v1809 = vmul.f32 %v1713, 0.25
  %v1810 = vmul.f32 %v1766, 0.25
  %v1811 = vmul.f32 %v1715, 0.25
  %v1812 = vmul.f32 %v1768, 0.25
  %v1813 = vmul.f32 %v1718, 0.25
  %v1814 = vmul.f32 %v1771, 0.25
  %v1815 = vmul.f32 %v1720, 0.25
  %v1816 = vmul.f32 %v1773, 0.25
  %v1817 = vmul.f32 %v1723, 0.25
  %v1818 = vmul.f32 %v1776, 0.25
  %v1819 = vmul.f32 %v1725, 0.25
  %v1820 = vmul.f32 %v1778, 0.25
  %v1821 = vmul.f32 %v1728, 0.25
  %v1822 = vmul.f32 %v1781, 0.25
  %v1823 = vmul.f32 %v1730, 0.25
  %v1824 = vmul.f32 %v1783, 0.25
  %v1825 = vmul.f32 %v1733, 0.25
  %v1826 = vmul.f32 %v1786, 0.25
  %v1827 = vmul.f32 %v1735, 0.25
  %v1828 = vmul.f32 %v1788, 0.25
  %v1829 = vmul.f32 %v1738, 0.25
  %v1830 = vmul.f32 %v1791, 0.25
  %v1831 = vmul.f32 %v1740, 0.25
  %v1832 = vmul.f32 %v1793, 0.25
  %v1833 = vmul.f32 %v1743, 0.25
  %v1834 = vmul.f32 %v1796, 0.25
  %v1835 = vmul.f32 %v1745, 0.25
  %v1836 = vmul.f32 %v1798, 0.25
  %v1837 = vmul.f32 %v1748, 0.25
  %v1838 = vmul.f32 %v1801, 0.25
  %v1839 = vmul.f32 %v1750, 0.25
  %v1840 = vmul.f32 %v1803, 0.25
  %v1841 = vmul.f32 %v1753, 0.25
  %v1842 = vmul.f32 %v1806, 0.25
  %v1843 = vadd.f32 %v1809, %v120
  %v1844 = vadd.f32 %v1810, %v121
  %v1845 = vadd.f32 %v1811, %v122
  %v1846 = vadd.f32 %v1812, %v123
  %v1847 = vadd.f32 %v1813, %v124
  %v1848 = vadd.f32 %v1814, %v125
  %v1849 = vadd.f32 %v1815, %v126
  %v1850 = vadd.f32 %v1816, %v127
  %v1851 = vadd.f32 %v1817, %v128
  %v1852 = vadd.f32 %v1818, %v129
  %v1853 = vadd.f32 %v1819, %v130
  %v1854 = vadd.f32 %v1820, %v131
  %v1855 = vadd.f32 %v1821, %v132
  %v1856 = vadd.f32 %v1822, %v133
  %v1857 = vadd.f32 %v1823, %v134
  %v1858 = vadd.f32 %v1824, %v135
  %v1859 = vadd.f32 %v1825, %v136
  %v1860 = vadd.f32 %v1826, %v137
  %v1861 = vadd.f32 %v1827, %v138
  %v1862 = vadd.f32 %v1828, %v139
  %v1863 = vadd.f32 %v1829, %v140
  %v1864 = vadd.f32 %v1830, %v141
  %v1865 = vadd.f32 %v1831, %v142
  %v1866 = vadd.f32 %v1832, %v143
  %v1867 = vadd.f32 %v1833, %v144
  %v1868 = vadd.f32 %v1834, %v145
  %v1869 = vadd.f32 %v1835, %v146
  %v1870 = vadd.f32 %v1836, %v147
  %v1871 = vadd.f32 %v1837, %v148
  %v1872 = vadd.f32 %v1838, %v149
  %v1873 = vadd.f32 %v1839, %v150
  %v1874 = vadd.f32 %v1840, %v151
  %v1875 = vadd.f32 %v1841, %v152
  %v1876 = vadd.f32 %v1842, %v153
  %v1877 = vsel %vm1169, %v1844, -inf
  %v1878 = vmax.f32 %v1843, %v1877
  %1879 = vmax.xlane.f32.xlu0 %v1878
  %v1880 = vpop.xlane.xlu0 %1879
  %v1881 = vsel %vm1169, %v1846, -inf
  %v1882 = vmax.f32 %v1845, %v1881
  %1883 = vmax.xlane.f32.xlu0 %v1882
  %v1884 = vpop.xlane.xlu0 %1883
  %v1885 = vsel %vm1169, %v1848, -inf
  %v1886 = vmax.f32 %v1847, %v1885
  %1887 = vmax.xlane.f32.xlu0 %v1886
  %v1888 = vpop.xlane.xlu0 %1887
  %v1889 = vsel %vm1169, %v1850, -inf
  %v1890 = vmax.f32 %v1849, %v1889
  %1891 = vmax.xlane.f32.xlu0 %v1890
  %v1892 = vpop.xlane.xlu0 %1891
  %v1893 = vsel %vm1169, %v1852, -inf
  %v1894 = vmax.f32 %v1851, %v1893
  %1895 = vmax.xlane.f32.xlu0 %v1894
  %v1896 = vpop.xlane.xlu0 %1895
  %v1897 = vsel %vm1169, %v1854, -inf
  %v1898 = vmax.f32 %v1853, %v1897
  %1899 = vmax.xlane.f32.xlu0 %v1898
  %v1900 = vpop.xlane.xlu0 %1899
  %v1901 = vsel %vm1169, %v1856, -inf
  %v1902 = vmax.f32 %v1855, %v1901
  %1903 = vmax.xlane.f32.xlu0 %v1902
  %v1904 = vpop.xlane.xlu0 %1903
  %v1905 = vsel %vm1169, %v1858, -inf
  %v1906 = vmax.f32 %v1857, %v1905
  %1907 = vmax.xlane.f32.xlu0 %v1906
  %v1908 = vpop.xlane.xlu0 %1907
  %v1909 = vsel %vm1169, %v1860, -inf
  %v1910 = vmax.f32 %v1859, %v1909
  %1911 = vmax.xlane.f32.xlu0 %v1910
  %v1912 = vpop.xlane.xlu0 %1911
  %v1913 = vsel %vm1169, %v1862, -inf
  %v1914 = vmax.f32 %v1861, %v1913
  %1915 = vmax.xlane.f32.xlu0 %v1914
  %v1916 = vpop.xlane.xlu0 %1915
  %v1917 = vsel %vm1169, %v1864, -inf
  %v1918 = vmax.f32 %v1863, %v1917
  %1919 = vmax.xlane.f32.xlu0 %v1918
  %v1920 = vpop.xlane.xlu0 %1919
  %v1921 = vsel %vm1169, %v1866, -inf
  %v1922 = vmax.f32 %v1865, %v1921
  %1923 = vmax.xlane.f32.xlu0 %v1922
  %v1924 = vpop.xlane.xlu0 %1923
  %v1925 = vsel %vm1169, %v1868, -inf
  %v1926 = vmax.f32 %v1867, %v1925
  %1927 = vmax.xlane.f32.xlu0 %v1926
  %v1928 = vpop.xlane.xlu0 %1927
  %v1929 = vsel %vm1169, %v1870, -inf
  %v1930 = vmax.f32 %v1869, %v1929
  %1931 = vmax.xlane.f32.xlu0 %v1930
  %v1932 = vpop.xlane.xlu0 %1931
  %v1933 = vsel %vm1169, %v1872, -inf
  %v1934 = vmax.f32 %v1871, %v1933
  %1935 = vmax.xlane.f32.xlu0 %v1934
  %v1936 = vpop.xlane.xlu0 %1935
  %v1937 = vsel %vm1169, %v1874, -inf
  %v1938 = vmax.f32 %v1873, %v1937
  %1939 = vmax.xlane.f32.xlu0 %v1938
  %v1940 = vpop.xlane.xlu0 %1939
  %v1941 = vsel %vm1169, %v1876, -inf
  %v1942 = vmax.f32 %v1875, %v1941
  %1943 = vmax.xlane.f32.xlu0 %v1942
  %v1944 = vpop.xlane.xlu0 %1943
  %v1945 = vsub.f32 %v1843, %v1880
  %v1946 = vsub.f32 %v1844, %v1880
  %v1947 = vsub.f32 %v1845, %v1884
  %v1948 = vsub.f32 %v1846, %v1884
  %v1949 = vsub.f32 %v1847, %v1888
  %v1950 = vsub.f32 %v1848, %v1888
  %v1951 = vsub.f32 %v1849, %v1892
  %v1952 = vsub.f32 %v1850, %v1892
  %v1953 = vsub.f32 %v1851, %v1896
  %v1954 = vsub.f32 %v1852, %v1896
  %v1955 = vsub.f32 %v1853, %v1900
  %v1956 = vsub.f32 %v1854, %v1900
  %v1957 = vsub.f32 %v1855, %v1904
  %v1958 = vsub.f32 %v1856, %v1904
  %v1959 = vsub.f32 %v1857, %v1908
  %v1960 = vsub.f32 %v1858, %v1908
  %v1961 = vsub.f32 %v1859, %v1912
  %v1962 = vsub.f32 %v1860, %v1912
  %v1963 = vsub.f32 %v1861, %v1916
  %v1964 = vsub.f32 %v1862, %v1916
  %v1965 = vsub.f32 %v1863, %v1920
  %v1966 = vsub.f32 %v1864, %v1920
  %v1967 = vsub.f32 %v1865, %v1924
  %v1968 = vsub.f32 %v1866, %v1924
  %v1969 = vsub.f32 %v1867, %v1928
  %v1970 = vsub.f32 %v1868, %v1928
  %v1971 = vsub.f32 %v1869, %v1932
  %v1972 = vsub.f32 %v1870, %v1932
  %v1973 = vsub.f32 %v1871, %v1936
  %v1974 = vsub.f32 %v1872, %v1936
  %v1975 = vsub.f32 %v1873, %v1940
  %v1976 = vsub.f32 %v1874, %v1940
  %v1977 = vsub.f32 %v1875, %v1944
  %v1978 = vsub.f32 %v1876, %v1944
  %v1979 = vmul.f32 %v1945, 1.442695
  %v1980 = vpow.pop %v1979
  %v1981 = vmul.f32 %v1946, 1.442695
  %v1982 = vpow.pop %v1981
  %v1983 = vmul.f32 %v1947, 1.442695
  %v1984 = vpow.pop %v1983
  %v1985 = vmul.f32 %v1948, 1.442695
  %v1986 = vpow.pop %v1985
  %v1987 = vmul.f32 %v1949, 1.442695
  %v1988 = vpow.pop %v1987
  %v1989 = vmul.f32 %v1950, 1.442695
  %v1990 = vpow.pop %v1989
  %v1991 = vmul.f32 %v1951, 1.442695
  %v1992 = vpow.pop %v1991
  %v1993 = vmul.f32 %v1952, 1.442695
  %v1994 = vpow.pop %v1993
  %v1995 = vmul.f32 %v1953, 1.442695
  %v1996 = vpow.pop %v1995
  %v1997 = vmul.f32 %v1954, 1.442695
  %v1998 = vpow.pop %v1997
  %v1999 = vmul.f32 %v1955, 1.442695
  %v2000 = vpow.pop %v1999
  %v2001 = vmul.f32 %v1956, 1.442695
  %v2002 = vpow.pop %v2001
  %v2003 = vmul.f32 %v1957, 1.442695
  %v2004 = vpow.pop %v2003
  %v2005 = vmul.f32 %v1958, 1.442695
  %v2006 = vpow.pop %v2005
  %v2007 = vmul.f32 %v1959, 1.442695
  %v2008 = vpow.pop %v2007
  %v2009 = vmul.f32 %v1960, 1.442695
  %v2010 = vpow.pop %v2009
  %v2011 = vmul.f32 %v1961, 1.442695
  %v2012 = vpow.pop %v2011
  %v2013 = vmul.f32 %v1962, 1.442695
  %v2014 = vpow.pop %v2013
  %v2015 = vmul.f32 %v1963, 1.442695
  %v2016 = vpow.pop %v2015
  %v2017 = vmul.f32 %v1964, 1.442695
  %v2018 = vpow.pop %v2017
  %v2019 = vmul.f32 %v1965, 1.442695
  %v2020 = vpow.pop %v2019
  %v2021 = vmul.f32 %v1966, 1.442695
  %v2022 = vpow.pop %v2021
  %v2023 = vmul.f32 %v1967, 1.442695
  %v2024 = vpow.pop %v2023
  %v2025 = vmul.f32 %v1968, 1.442695
  %v2026 = vpow.pop %v2025
  %v2027 = vmul.f32 %v1969, 1.442695
  %v2028 = vpow.pop %v2027
  %v2029 = vmul.f32 %v1970, 1.442695
  %v2030 = vpow.pop %v2029
  %v2031 = vmul.f32 %v1971, 1.442695
  %v2032 = vpow.pop %v2031
  %v2033 = vmul.f32 %v1972, 1.442695
  %v2034 = vpow.pop %v2033
  %v2035 = vmul.f32 %v1973, 1.442695
  %v2036 = vpow.pop %v2035
  %v2037 = vmul.f32 %v1974, 1.442695
  %v2038 = vpow.pop %v2037
  %v2039 = vmul.f32 %v1975, 1.442695
  %v2040 = vpow.pop %v2039
  %v2041 = vmul.f32 %v1976, 1.442695
  %v2042 = vpow.pop %v2041
  %v2043 = vmul.f32 %v1977, 1.442695
  %v2044 = vpow.pop %v2043
  %v2045 = vmul.f32 %v1978, 1.442695
  %v2046 = vpow.pop %v2045
  %v2047 = vsel %vm1169, %v1982, 0.0
  %v2048 = vadd.f32 %v1980, %v2047
  %2049 = vadd.xlane.f32.xlu0 %v2048
  %v2050 = vpop.xlane.xlu0 %2049
  %v2051 = vsel %vm1169, %v1986, 0.0
  %v2052 = vadd.f32 %v1984, %v2051
  %2053 = vadd.xlane.f32.xlu0 %v2052
  %v2054 = vpop.xlane.xlu0 %2053
  %v2055 = vsel %vm1169, %v1990, 0.0
  %v2056 = vadd.f32 %v1988, %v2055
  %2057 = vadd.xlane.f32.xlu0 %v2056
  %v2058 = vpop.xlane.xlu0 %2057
  %v2059 = vsel %vm1169, %v1994, 0.0
  %v2060 = vadd.f32 %v1992, %v2059
  %2061 = vadd.xlane.f32.xlu0 %v2060
  %v2062 = vpop.xlane.xlu0 %2061
  %v2063 = vsel %vm1169, %v1998, 0.0
  %v2064 = vadd.f32 %v1996, %v2063
  %2065 = vadd.xlane.f32.xlu0 %v2064
  %v2066 = vpop.xlane.xlu0 %2065
  %v2067 = vsel %vm1169, %v2002, 0.0
  %v2068 = vadd.f32 %v2000, %v2067
  %2069 = vadd.xlane.f32.xlu0 %v2068
  %v2070 = vpop.xlane.xlu0 %2069
  %v2071 = vsel %vm1169, %v2006, 0.0
  %v2072 = vadd.f32 %v2004, %v2071
  %2073 = vadd.xlane.f32.xlu0 %v2072
  %v2074 = vpop.xlane.xlu0 %2073
  %v2075 = vsel %vm1169, %v2010, 0.0
  %v2076 = vadd.f32 %v2008, %v2075
  %2077 = vadd.xlane.f32.xlu0 %v2076
  %v2078 = vpop.xlane.xlu0 %2077
  %v2079 = vsel %vm1169, %v2014, 0.0
  %v2080 = vadd.f32 %v2012, %v2079
  %2081 = vadd.xlane.f32.xlu0 %v2080
  %v2082 = vpop.xlane.xlu0 %2081
  %v2083 = vsel %vm1169, %v2018, 0.0
  %v2084 = vadd.f32 %v2016, %v2083
  %2085 = vadd.xlane.f32.xlu0 %v2084
  %v2086 = vpop.xlane.xlu0 %2085
  %v2087 = vsel %vm1169, %v2022, 0.0
  %v2088 = vadd.f32 %v2020, %v2087
  %2089 = vadd.xlane.f32.xlu0 %v2088
  %v2090 = vpop.xlane.xlu0 %2089
  %v2091 = vsel %vm1169, %v2026, 0.0
  %v2092 = vadd.f32 %v2024, %v2091
  %2093 = vadd.xlane.f32.xlu0 %v2092
  %v2094 = vpop.xlane.xlu0 %2093
  %v2095 = vsel %vm1169, %v2030, 0.0
  %v2096 = vadd.f32 %v2028, %v2095
  %2097 = vadd.xlane.f32.xlu0 %v2096
  %v2098 = vpop.xlane.xlu0 %2097
  %v2099 = vsel %vm1169, %v2034, 0.0
  %v2100 = vadd.f32 %v2032, %v2099
  %2101 = vadd.xlane.f32.xlu0 %v2100
  %v2102 = vpop.xlane.xlu0 %2101
  %v2103 = vsel %vm1169, %v2038, 0.0
  %v2104 = vadd.f32 %v2036, %v2103
  %2105 = vadd.xlane.f32.xlu0 %v2104
  %v2106 = vpop.xlane.xlu0 %2105
  %v2107 = vsel %vm1169, %v2042, 0.0
  %v2108 = vadd.f32 %v2040, %v2107
  %2109 = vadd.xlane.f32.xlu0 %v2108
  %v2110 = vpop.xlane.xlu0 %2109
  %v2111 = vsel %vm1169, %v2046, 0.0
  %v2112 = vadd.f32 %v2044, %v2111
  %2113 = vadd.xlane.f32.xlu0 %v2112
  %v2114 = vpop.xlane.xlu0 %2113
  %v2115 = vrcp.pop %v2050
  %v2116 = vrcp.pop %v2054
  %v2117 = vrcp.pop %v2058
  %v2118 = vrcp.pop %v2062
  %v2119 = vrcp.pop %v2066
  %v2120 = vrcp.pop %v2070
  %v2121 = vrcp.pop %v2074
  %v2122 = vrcp.pop %v2078
  %v2123 = vrcp.pop %v2082
  %v2124 = vrcp.pop %v2086
  %v2125 = vrcp.pop %v2090
  %v2126 = vrcp.pop %v2094
  %v2127 = vrcp.pop %v2098
  %v2128 = vrcp.pop %v2102
  %v2129 = vrcp.pop %v2106
  %v2130 = vrcp.pop %v2110
  %v2131 = vrcp.pop %v2114
  %v2132 = vmul.f32 %v1980, %v2115
  %v2133 = vmul.f32 %v1982, %v2115
  %v2134 = vmul.f32 %v1984, %v2116
  %v2135 = vmul.f32 %v1986, %v2116
  %v2136 = vmul.f32 %v1988, %v2117
  %v2137 = vmul.f32 %v1990, %v2117
  %v2138 = vmul.f32 %v1992, %v2118
  %v2139 = vmul.f32 %v1994, %v2118
  %v2140 = vmul.f32 %v1996, %v2119
  %v2141 = vmul.f32 %v1998, %v2119
  %v2142 = vmul.f32 %v2000, %v2120
  %v2143 = vmul.f32 %v2002, %v2120
  %v2144 = vmul.f32 %v2004, %v2121
  %v2145 = vmul.f32 %v2006, %v2121
  %v2146 = vmul.f32 %v2008, %v2122
  %v2147 = vmul.f32 %v2010, %v2122
  %v2148 = vmul.f32 %v2012, %v2123
  %v2149 = vmul.f32 %v2014, %v2123
  %v2150 = vmul.f32 %v2016, %v2124
  %v2151 = vmul.f32 %v2018, %v2124
  %v2152 = vmul.f32 %v2020, %v2125
  %v2153 = vmul.f32 %v2022, %v2125
  %v2154 = vmul.f32 %v2024, %v2126
  %v2155 = vmul.f32 %v2026, %v2126
  %v2156 = vmul.f32 %v2028, %v2127
  %v2157 = vmul.f32 %v2030, %v2127
  %v2158 = vmul.f32 %v2032, %v2128
  %v2159 = vmul.f32 %v2034, %v2128
  %v2160 = vmul.f32 %v2036, %v2129
  %v2161 = vmul.f32 %v2038, %v2129
  %v2162 = vmul.f32 %v2040, %v2130
  %v2163 = vmul.f32 %v2042, %v2130
  %v2164 = vmul.f32 %v2044, %v2131
  %v2165 = vmul.f32 %v2046, %v2131
  %v2166 = vpack.c.bf16 %v2134, %v2132
  %v2167 = vpack.c.bf16 %v2135, %v2133
  %v2168 = vpack.c.bf16 %v2138, %v2136
  %v2169 = vpack.c.bf16 %v2139, %v2137
  %v2170 = vpack.c.bf16 %v2142, %v2140
  %v2171 = vpack.c.bf16 %v2143, %v2141
  %v2172 = vpack.c.bf16 %v2146, %v2144
  %v2173 = vpack.c.bf16 %v2147, %v2145
  %v2174 = vpack.c.bf16 %v2150, %v2148
  %v2175 = vpack.c.bf16 %v2151, %v2149
  %v2176 = vpack.c.bf16 %v2154, %v2152
  %v2177 = vpack.c.bf16 %v2155, %v2153
  %v2178 = vpack.c.bf16 %v2158, %v2156
  %v2179 = vpack.c.bf16 %v2159, %v2157
  %v2180 = vpack.c.bf16 %v2162, %v2160
  %v2181 = vpack.c.bf16 %v2163, %v2161
  %v2182 = vpack.c.bf16 %v2164, %v2164
  %v2183 = vpack.c.bf16 %v2165, %v2165
  %2193 = vrot.lane.b32.xlu0 %v904, 112
  %v2194 = vpop.permute.xlu0 %2193
  %2195 = vrot.lane.b32.xlu0 %v905, 112
  %v2196 = vpop.permute.xlu0 %2195
  %2197 = vrot.lane.b32.xlu0 %v906, 112
  %v2198 = vpop.permute.xlu0 %2197
  %2199 = vrot.lane.b32.xlu0 %v907, 112
  %v2200 = vpop.permute.xlu0 %2199
  %2201 = vrot.lane.b32.xlu0 %v908, 112
  %v2202 = vpop.permute.xlu0 %2201
  %2203 = vrot.lane.b32.xlu0 %v909, 112
  %v2204 = vpop.permute.xlu0 %2203
  %2205 = vrot.lane.b32.xlu0 %v910, 112
  %v2206 = vpop.permute.xlu0 %2205
  %2207 = vrot.lane.b32.xlu0 %v911, 112
  %v2208 = vpop.permute.xlu0 %2207
  %2209 = vrot.lane.b32.xlu0 %v912, 112
  %v2210 = vpop.permute.xlu0 %2209
  %v2220 = vsel %vm1169, %v2167, 0
  %v2223 = vsel %vm1169, %v2169, 0
  %v2226 = vsel %vm1169, %v2171, 0
  %v2229 = vsel %vm1169, %v2173, 0
  %v2232 = vsel %vm1169, %v2175, 0
  %v2235 = vsel %vm1169, %v2177, 0
  %v2238 = vsel %vm1169, %v2179, 0
  %v2241 = vsel %vm1169, %v2181, 0
  %v2244 = vsel %vm1169, %v2183, 0
  %v2247 = vsel %vm215, %v2210, 0
  %2249 = vmatpush.bf16.msra.mxu0 %v2208
  %2250 = vmatpush.bf16.msra.mxu0 %v2206
  %2251 = vmatpush.bf16.msra.mxu0 %v2204
  %2252 = vmatpush.bf16.msra.mxu0 %v2202
  %2253 = vmatpush.bf16.msra.mxu0 %v2200
  %2254 = vmatpush.bf16.msra.mxu0 %v2198
  %2255 = vmatpush.bf16.msra.mxu0 %v2196
  %2256 = vmatpush.bf16.msra.mxu0 %v2194
  %2257 = vmatmul.bf16.gmra.mxu0 %v2166
  %v2258 = vpop.f32.mrf.mxu0
  %v2259 = vadd.f32 0.0, %v2258
  %v2260 = vpop.f32.mrf.mxu0
  %v2261 = vadd.f32 0.0, %v2260
  %2262 = vmatmul.bf16.gmra.mxu0 %v2168
  %v2263 = vpop.f32.mrf.mxu0
  %v2264 = vadd.f32 0.0, %v2263
  %v2265 = vpop.f32.mrf.mxu0
  %v2266 = vadd.f32 0.0, %v2265
  %2267 = vmatmul.bf16.gmra.mxu0 %v2170
  %v2268 = vpop.f32.mrf.mxu0
  %v2269 = vadd.f32 0.0, %v2268
  %v2270 = vpop.f32.mrf.mxu0
  %v2271 = vadd.f32 0.0, %v2270
  %2272 = vmatmul.bf16.gmra.mxu0 %v2172
  %v2273 = vpop.f32.mrf.mxu0
  %v2274 = vadd.f32 0.0, %v2273
  %v2275 = vpop.f32.mrf.mxu0
  %v2276 = vadd.f32 0.0, %v2275
  %2277 = vmatmul.bf16.gmra.mxu0 %v2174
  %v2278 = vpop.f32.mrf.mxu0
  %v2279 = vadd.f32 0.0, %v2278
  %v2280 = vpop.f32.mrf.mxu0
  %v2281 = vadd.f32 0.0, %v2280
  %2282 = vmatmul.bf16.gmra.mxu0 %v2176
  %v2283 = vpop.f32.mrf.mxu0
  %v2284 = vadd.f32 0.0, %v2283
  %v2285 = vpop.f32.mrf.mxu0
  %v2286 = vadd.f32 0.0, %v2285
  %2287 = vmatmul.bf16.gmra.mxu0 %v2178
  %v2288 = vpop.f32.mrf.mxu0
  %v2289 = vadd.f32 0.0, %v2288
  %v2290 = vpop.f32.mrf.mxu0
  %v2291 = vadd.f32 0.0, %v2290
  %2292 = vmatmul.bf16.gmra.mxu0 %v2180
  %v2293 = vpop.f32.mrf.mxu0
  %v2294 = vadd.f32 0.0, %v2293
  %v2295 = vpop.f32.mrf.mxu0
  %v2296 = vadd.f32 0.0, %v2295
  %2297 = vmatmul.bf16.gmra.mxu0 %v2182
  %v2298 = vpop.f32.mrf.mxu0
  %v2299 = vadd.f32 0.0, %v2298
  %v2300 = vpop.f32.mrf.mxu0
  %2301 = vdwg.mxu0
  %2302 = vmatpush.bf16.msra.mxu0 0
  %2303 = vmatpush.bf16.msra.mxu0 0
  %2304 = vmatpush.bf16.msra.mxu0 0
  %2305 = vmatpush.bf16.msra.mxu0 0
  %2306 = vmatpush.bf16.msra.mxu0 0
  %2307 = vmatpush.bf16.msra.mxu0 0
  %2308 = vmatpush.bf16.msra.mxu0 0
  %2309 = vmatpush.bf16.msra.mxu0 %v2247
  %2310 = vmatmul.bf16.gmra.mxu0 %v2220
  %v2311 = vpop.f32.mrf.mxu0
  %v2312 = vadd.f32 %v2259, %v2311
  %v2313 = vpop.f32.mrf.mxu0
  %v2314 = vadd.f32 %v2261, %v2313
  %2315 = vmatmul.bf16.gmra.mxu0 %v2223
  %v2316 = vpop.f32.mrf.mxu0
  %v2317 = vadd.f32 %v2264, %v2316
  %v2318 = vpop.f32.mrf.mxu0
  %v2319 = vadd.f32 %v2266, %v2318
  %2320 = vmatmul.bf16.gmra.mxu0 %v2226
  %v2321 = vpop.f32.mrf.mxu0
  %v2322 = vadd.f32 %v2269, %v2321
  %v2323 = vpop.f32.mrf.mxu0
  %v2324 = vadd.f32 %v2271, %v2323
  %2325 = vmatmul.bf16.gmra.mxu0 %v2229
  %v2326 = vpop.f32.mrf.mxu0
  %v2327 = vadd.f32 %v2274, %v2326
  %v2328 = vpop.f32.mrf.mxu0
  %v2329 = vadd.f32 %v2276, %v2328
  %2330 = vmatmul.bf16.gmra.mxu0 %v2232
  %v2331 = vpop.f32.mrf.mxu0
  %v2332 = vadd.f32 %v2279, %v2331
  %v2333 = vpop.f32.mrf.mxu0
  %v2334 = vadd.f32 %v2281, %v2333
  %2335 = vmatmul.bf16.gmra.mxu0 %v2235
  %v2336 = vpop.f32.mrf.mxu0
  %v2337 = vadd.f32 %v2284, %v2336
  %v2338 = vpop.f32.mrf.mxu0
  %v2339 = vadd.f32 %v2286, %v2338
  %2340 = vmatmul.bf16.gmra.mxu0 %v2238
  %v2341 = vpop.f32.mrf.mxu0
  %v2342 = vadd.f32 %v2289, %v2341
  %v2343 = vpop.f32.mrf.mxu0
  %v2344 = vadd.f32 %v2291, %v2343
  %2345 = vmatmul.bf16.gmra.mxu0 %v2241
  %v2346 = vpop.f32.mrf.mxu0
  %v2347 = vadd.f32 %v2294, %v2346
  %v2348 = vpop.f32.mrf.mxu0
  %v2349 = vadd.f32 %v2296, %v2348
  %2350 = vmatmul.bf16.gmra.mxu0 %v2244
  %v2351 = vpop.f32.mrf.mxu0
  %v2352 = vadd.f32 %v2299, %v2351
  %v2353 = vpop.f32.mrf.mxu0
  %2354 = vdwg.mxu0
  %2355 = vrot.lane.b32.xlu0 %v895, 96
  %v2356 = vpop.permute.xlu0 %2355
  %2357 = vrot.lane.b32.xlu0 %v896, 96
  %v2358 = vpop.permute.xlu0 %2357
  %2359 = vrot.lane.b32.xlu0 %v897, 96
  %v2360 = vpop.permute.xlu0 %2359
  %2361 = vrot.lane.b32.xlu0 %v898, 96
  %v2362 = vpop.permute.xlu0 %2361
  %2363 = vrot.lane.b32.xlu0 %v899, 96
  %v2364 = vpop.permute.xlu0 %2363
  %2365 = vrot.lane.b32.xlu0 %v900, 96
  %v2366 = vpop.permute.xlu0 %2365
  %2367 = vrot.lane.b32.xlu0 %v901, 96
  %v2368 = vpop.permute.xlu0 %2367
  %2369 = vrot.lane.b32.xlu0 %v902, 96
  %v2370 = vpop.permute.xlu0 %2369
  %2371 = vrot.lane.b32.xlu0 %v903, 96
  %v2372 = vpop.permute.xlu0 %2371
  %2373 = vrot.lane.b32.xlu0 %v895, 32
  %v2374 = vpop.permute.xlu0 %2373
  %2375 = vrot.lane.b32.xlu0 %v896, 32
  %v2376 = vpop.permute.xlu0 %2375
  %2377 = vrot.lane.b32.xlu0 %v897, 32
  %v2378 = vpop.permute.xlu0 %2377
  %2379 = vrot.lane.b32.xlu0 %v898, 32
  %v2380 = vpop.permute.xlu0 %2379
  %2381 = vrot.lane.b32.xlu0 %v899, 32
  %v2382 = vpop.permute.xlu0 %2381
  %2383 = vrot.lane.b32.xlu0 %v900, 32
  %v2384 = vpop.permute.xlu0 %2383
  %2385 = vrot.lane.b32.xlu0 %v901, 32
  %v2386 = vpop.permute.xlu0 %2385
  %2387 = vrot.lane.b32.xlu0 %v902, 32
  %v2388 = vpop.permute.xlu0 %2387
  %2389 = vrot.lane.b32.xlu0 %v903, 32
  %v2390 = vpop.permute.xlu0 %2389
  %v2392 = vsel %vm940, %v2356, 0
  %v2395 = vsel %vm940, %v2358, 0
  %v2398 = vsel %vm940, %v2360, 0
  %v2401 = vsel %vm940, %v2362, 0
  %v2404 = vsel %vm940, %v2364, 0
  %v2407 = vsel %vm940, %v2366, 0
  %v2410 = vsel %vm940, %v2368, 0
  %v2413 = vsel %vm940, %v2370, 0
  %v2416 = vsel %vm940, %v2372, 0
  %v2419 = vsel %vm940, %v2374, 0
  %v2422 = vsel %vm940, %v2376, 0
  %v2425 = vsel %vm940, %v2378, 0
  %v2428 = vsel %vm940, %v2380, 0
  %v2431 = vsel %vm940, %v2382, 0
  %v2434 = vsel %vm940, %v2384, 0
  %v2437 = vsel %vm940, %v2386, 0
  %v2440 = vsel %vm940, %v2388, 0
  %v2443 = vsel %vm940, %v2390, 0
  %2445 = vmatpush.bf16.xpose.msra.mxu0 %v2440
  %2446 = vmatpush.bf16.xpose.msra.mxu0 %v2437
  %2447 = vmatpush.bf16.xpose.msra.mxu0 %v2434
  %2448 = vmatpush.bf16.xpose.msra.mxu0 %v2431
  %2449 = vmatpush.bf16.xpose.msra.mxu0 %v2428
  %2450 = vmatpush.bf16.xpose.msra.mxu0 %v2425
  %2451 = vmatpush.bf16.xpose.msra.mxu0 %v2422
  %2452 = vmatpush.bf16.xpose.msra.mxu0 %v2419
  %2453 = vmatmul.bf16.gmra.mxu0 %v2392
  %v2454 = vpop.f32.mrf.mxu0
  %v2455 = vadd.f32 0.0, %v2454
  %v2456 = vpop.f32.mrf.mxu0
  %v2457 = vadd.f32 0.0, %v2456
  %2458 = vmatmul.bf16.gmra.mxu0 %v2395
  %v2459 = vpop.f32.mrf.mxu0
  %v2460 = vadd.f32 0.0, %v2459
  %v2461 = vpop.f32.mrf.mxu0
  %v2462 = vadd.f32 0.0, %v2461
  %2463 = vmatmul.bf16.gmra.mxu0 %v2398
  %v2464 = vpop.f32.mrf.mxu0
  %v2465 = vadd.f32 0.0, %v2464
  %v2466 = vpop.f32.mrf.mxu0
  %v2467 = vadd.f32 0.0, %v2466
  %2468 = vmatmul.bf16.gmra.mxu0 %v2401
  %v2469 = vpop.f32.mrf.mxu0
  %v2470 = vadd.f32 0.0, %v2469
  %v2471 = vpop.f32.mrf.mxu0
  %v2472 = vadd.f32 0.0, %v2471
  %2473 = vmatmul.bf16.gmra.mxu0 %v2404
  %v2474 = vpop.f32.mrf.mxu0
  %v2475 = vadd.f32 0.0, %v2474
  %v2476 = vpop.f32.mrf.mxu0
  %v2477 = vadd.f32 0.0, %v2476
  %2478 = vmatmul.bf16.gmra.mxu0 %v2407
  %v2479 = vpop.f32.mrf.mxu0
  %v2480 = vadd.f32 0.0, %v2479
  %v2481 = vpop.f32.mrf.mxu0
  %v2482 = vadd.f32 0.0, %v2481
  %2483 = vmatmul.bf16.gmra.mxu0 %v2410
  %v2484 = vpop.f32.mrf.mxu0
  %v2485 = vadd.f32 0.0, %v2484
  %v2486 = vpop.f32.mrf.mxu0
  %v2487 = vadd.f32 0.0, %v2486
  %2488 = vmatmul.bf16.gmra.mxu0 %v2413
  %v2489 = vpop.f32.mrf.mxu0
  %v2490 = vadd.f32 0.0, %v2489
  %v2491 = vpop.f32.mrf.mxu0
  %v2492 = vadd.f32 0.0, %v2491
  %2493 = vmatmul.bf16.gmra.mxu0 %v2416
  %v2494 = vpop.f32.mrf.mxu0
  %v2495 = vadd.f32 0.0, %v2494
  %v2496 = vpop.f32.mrf.mxu0
  %2497 = vdwg.mxu0
  %2498 = vmatpush.bf16.xpose.msra.mxu0 0
  %2499 = vmatpush.bf16.xpose.msra.mxu0 0
  %2500 = vmatpush.bf16.xpose.msra.mxu0 0
  %2501 = vmatpush.bf16.xpose.msra.mxu0 0
  %2502 = vmatpush.bf16.xpose.msra.mxu0 0
  %2503 = vmatpush.bf16.xpose.msra.mxu0 0
  %2504 = vmatpush.bf16.xpose.msra.mxu0 0
  %2505 = vmatpush.bf16.xpose.msra.mxu0 %v2443
  %2506 = vmatmul.bf16.gmra.mxu0 %v2392
  %v2507 = vpop.f32.mrf.mxu0
  %v2508 = vadd.f32 0.0, %v2507
  %v2509 = vpop.f32.mrf.mxu0
  %v2510 = vadd.f32 0.0, %v2509
  %2511 = vmatmul.bf16.gmra.mxu0 %v2395
  %v2512 = vpop.f32.mrf.mxu0
  %v2513 = vadd.f32 0.0, %v2512
  %v2514 = vpop.f32.mrf.mxu0
  %v2515 = vadd.f32 0.0, %v2514
  %2516 = vmatmul.bf16.gmra.mxu0 %v2398
  %v2517 = vpop.f32.mrf.mxu0
  %v2518 = vadd.f32 0.0, %v2517
  %v2519 = vpop.f32.mrf.mxu0
  %v2520 = vadd.f32 0.0, %v2519
  %2521 = vmatmul.bf16.gmra.mxu0 %v2401
  %v2522 = vpop.f32.mrf.mxu0
  %v2523 = vadd.f32 0.0, %v2522
  %v2524 = vpop.f32.mrf.mxu0
  %v2525 = vadd.f32 0.0, %v2524
  %2526 = vmatmul.bf16.gmra.mxu0 %v2404
  %v2527 = vpop.f32.mrf.mxu0
  %v2528 = vadd.f32 0.0, %v2527
  %v2529 = vpop.f32.mrf.mxu0
  %v2530 = vadd.f32 0.0, %v2529
  %2531 = vmatmul.bf16.gmra.mxu0 %v2407
  %v2532 = vpop.f32.mrf.mxu0
  %v2533 = vadd.f32 0.0, %v2532
  %v2534 = vpop.f32.mrf.mxu0
  %v2535 = vadd.f32 0.0, %v2534
  %2536 = vmatmul.bf16.gmra.mxu0 %v2410
  %v2537 = vpop.f32.mrf.mxu0
  %v2538 = vadd.f32 0.0, %v2537
  %v2539 = vpop.f32.mrf.mxu0
  %v2540 = vadd.f32 0.0, %v2539
  %2541 = vmatmul.bf16.gmra.mxu0 %v2413
  %v2542 = vpop.f32.mrf.mxu0
  %v2543 = vadd.f32 0.0, %v2542
  %v2544 = vpop.f32.mrf.mxu0
  %v2545 = vadd.f32 0.0, %v2544
  %2546 = vmatmul.bf16.gmra.mxu0 %v2416
  %v2547 = vpop.f32.mrf.mxu0
  %v2548 = vadd.f32 0.0, %v2547
  %v2549 = vpop.f32.mrf.mxu0
  %2550 = vdwg.mxu0
  %v2551 = vmul.f32 %v2455, 0.25
  %v2552 = vmul.f32 %v2508, 0.25
  %v2553 = vmul.f32 %v2457, 0.25
  %v2554 = vmul.f32 %v2510, 0.25
  %v2555 = vmul.f32 %v2460, 0.25
  %v2556 = vmul.f32 %v2513, 0.25
  %v2557 = vmul.f32 %v2462, 0.25
  %v2558 = vmul.f32 %v2515, 0.25
  %v2559 = vmul.f32 %v2465, 0.25
  %v2560 = vmul.f32 %v2518, 0.25
  %v2561 = vmul.f32 %v2467, 0.25
  %v2562 = vmul.f32 %v2520, 0.25
  %v2563 = vmul.f32 %v2470, 0.25
  %v2564 = vmul.f32 %v2523, 0.25
  %v2565 = vmul.f32 %v2472, 0.25
  %v2566 = vmul.f32 %v2525, 0.25
  %v2567 = vmul.f32 %v2475, 0.25
  %v2568 = vmul.f32 %v2528, 0.25
  %v2569 = vmul.f32 %v2477, 0.25
  %v2570 = vmul.f32 %v2530, 0.25
  %v2571 = vmul.f32 %v2480, 0.25
  %v2572 = vmul.f32 %v2533, 0.25
  %v2573 = vmul.f32 %v2482, 0.25
  %v2574 = vmul.f32 %v2535, 0.25
  %v2575 = vmul.f32 %v2485, 0.25
  %v2576 = vmul.f32 %v2538, 0.25
  %v2577 = vmul.f32 %v2487, 0.25
  %v2578 = vmul.f32 %v2540, 0.25
  %v2579 = vmul.f32 %v2490, 0.25
  %v2580 = vmul.f32 %v2543, 0.25
  %v2581 = vmul.f32 %v2492, 0.25
  %v2582 = vmul.f32 %v2545, 0.25
  %v2583 = vmul.f32 %v2495, 0.25
  %v2584 = vmul.f32 %v2548, 0.25
  %v2585 = vadd.f32 %v2551, %v120
  %v2586 = vadd.f32 %v2552, %v121
  %v2587 = vadd.f32 %v2553, %v122
  %v2588 = vadd.f32 %v2554, %v123
  %v2589 = vadd.f32 %v2555, %v124
  %v2590 = vadd.f32 %v2556, %v125
  %v2591 = vadd.f32 %v2557, %v126
  %v2592 = vadd.f32 %v2558, %v127
  %v2593 = vadd.f32 %v2559, %v128
  %v2594 = vadd.f32 %v2560, %v129
  %v2595 = vadd.f32 %v2561, %v130
  %v2596 = vadd.f32 %v2562, %v131
  %v2597 = vadd.f32 %v2563, %v132
  %v2598 = vadd.f32 %v2564, %v133
  %v2599 = vadd.f32 %v2565, %v134
  %v2600 = vadd.f32 %v2566, %v135
  %v2601 = vadd.f32 %v2567, %v136
  %v2602 = vadd.f32 %v2568, %v137
  %v2603 = vadd.f32 %v2569, %v138
  %v2604 = vadd.f32 %v2570, %v139
  %v2605 = vadd.f32 %v2571, %v140
  %v2606 = vadd.f32 %v2572, %v141
  %v2607 = vadd.f32 %v2573, %v142
  %v2608 = vadd.f32 %v2574, %v143
  %v2609 = vadd.f32 %v2575, %v144
  %v2610 = vadd.f32 %v2576, %v145
  %v2611 = vadd.f32 %v2577, %v146
  %v2612 = vadd.f32 %v2578, %v147
  %v2613 = vadd.f32 %v2579, %v148
  %v2614 = vadd.f32 %v2580, %v149
  %v2615 = vadd.f32 %v2581, %v150
  %v2616 = vadd.f32 %v2582, %v151
  %v2617 = vadd.f32 %v2583, %v152
  %v2618 = vadd.f32 %v2584, %v153
  %v2619 = vsel %vm1169, %v2586, -inf
  %v2620 = vmax.f32 %v2585, %v2619
  %2621 = vmax.xlane.f32.xlu0 %v2620
  %v2622 = vpop.xlane.xlu0 %2621
  %v2623 = vsel %vm1169, %v2588, -inf
  %v2624 = vmax.f32 %v2587, %v2623
  %2625 = vmax.xlane.f32.xlu0 %v2624
  %v2626 = vpop.xlane.xlu0 %2625
  %v2627 = vsel %vm1169, %v2590, -inf
  %v2628 = vmax.f32 %v2589, %v2627
  %2629 = vmax.xlane.f32.xlu0 %v2628
  %v2630 = vpop.xlane.xlu0 %2629
  %v2631 = vsel %vm1169, %v2592, -inf
  %v2632 = vmax.f32 %v2591, %v2631
  %2633 = vmax.xlane.f32.xlu0 %v2632
  %v2634 = vpop.xlane.xlu0 %2633
  %v2635 = vsel %vm1169, %v2594, -inf
  %v2636 = vmax.f32 %v2593, %v2635
  %2637 = vmax.xlane.f32.xlu0 %v2636
  %v2638 = vpop.xlane.xlu0 %2637
  %v2639 = vsel %vm1169, %v2596, -inf
  %v2640 = vmax.f32 %v2595, %v2639
  %2641 = vmax.xlane.f32.xlu0 %v2640
  %v2642 = vpop.xlane.xlu0 %2641
  %v2643 = vsel %vm1169, %v2598, -inf
  %v2644 = vmax.f32 %v2597, %v2643
  %2645 = vmax.xlane.f32.xlu0 %v2644
  %v2646 = vpop.xlane.xlu0 %2645
  %v2647 = vsel %vm1169, %v2600, -inf
  %v2648 = vmax.f32 %v2599, %v2647
  %2649 = vmax.xlane.f32.xlu0 %v2648
  %v2650 = vpop.xlane.xlu0 %2649
  %v2651 = vsel %vm1169, %v2602, -inf
  %v2652 = vmax.f32 %v2601, %v2651
  %2653 = vmax.xlane.f32.xlu0 %v2652
  %v2654 = vpop.xlane.xlu0 %2653
  %v2655 = vsel %vm1169, %v2604, -inf
  %v2656 = vmax.f32 %v2603, %v2655
  %2657 = vmax.xlane.f32.xlu0 %v2656
  %v2658 = vpop.xlane.xlu0 %2657
  %v2659 = vsel %vm1169, %v2606, -inf
  %v2660 = vmax.f32 %v2605, %v2659
  %2661 = vmax.xlane.f32.xlu0 %v2660
  %v2662 = vpop.xlane.xlu0 %2661
  %v2663 = vsel %vm1169, %v2608, -inf
  %v2664 = vmax.f32 %v2607, %v2663
  %2665 = vmax.xlane.f32.xlu0 %v2664
  %v2666 = vpop.xlane.xlu0 %2665
  %v2667 = vsel %vm1169, %v2610, -inf
  %v2668 = vmax.f32 %v2609, %v2667
  %2669 = vmax.xlane.f32.xlu0 %v2668
  %v2670 = vpop.xlane.xlu0 %2669
  %v2671 = vsel %vm1169, %v2612, -inf
  %v2672 = vmax.f32 %v2611, %v2671
  %2673 = vmax.xlane.f32.xlu0 %v2672
  %v2674 = vpop.xlane.xlu0 %2673
  %v2675 = vsel %vm1169, %v2614, -inf
  %v2676 = vmax.f32 %v2613, %v2675
  %2677 = vmax.xlane.f32.xlu0 %v2676
  %v2678 = vpop.xlane.xlu0 %2677
  %v2679 = vsel %vm1169, %v2616, -inf
  %v2680 = vmax.f32 %v2615, %v2679
  %2681 = vmax.xlane.f32.xlu0 %v2680
  %v2682 = vpop.xlane.xlu0 %2681
  %v2683 = vsel %vm1169, %v2618, -inf
  %v2684 = vmax.f32 %v2617, %v2683
  %2685 = vmax.xlane.f32.xlu0 %v2684
  %v2686 = vpop.xlane.xlu0 %2685
  %v2687 = vsub.f32 %v2585, %v2622
  %v2688 = vsub.f32 %v2586, %v2622
  %v2689 = vsub.f32 %v2587, %v2626
  %v2690 = vsub.f32 %v2588, %v2626
  %v2691 = vsub.f32 %v2589, %v2630
  %v2692 = vsub.f32 %v2590, %v2630
  %v2693 = vsub.f32 %v2591, %v2634
  %v2694 = vsub.f32 %v2592, %v2634
  %v2695 = vsub.f32 %v2593, %v2638
  %v2696 = vsub.f32 %v2594, %v2638
  %v2697 = vsub.f32 %v2595, %v2642
  %v2698 = vsub.f32 %v2596, %v2642
  %v2699 = vsub.f32 %v2597, %v2646
  %v2700 = vsub.f32 %v2598, %v2646
  %v2701 = vsub.f32 %v2599, %v2650
  %v2702 = vsub.f32 %v2600, %v2650
  %v2703 = vsub.f32 %v2601, %v2654
  %v2704 = vsub.f32 %v2602, %v2654
  %v2705 = vsub.f32 %v2603, %v2658
  %v2706 = vsub.f32 %v2604, %v2658
  %v2707 = vsub.f32 %v2605, %v2662
  %v2708 = vsub.f32 %v2606, %v2662
  %v2709 = vsub.f32 %v2607, %v2666
  %v2710 = vsub.f32 %v2608, %v2666
  %v2711 = vsub.f32 %v2609, %v2670
  %v2712 = vsub.f32 %v2610, %v2670
  %v2713 = vsub.f32 %v2611, %v2674
  %v2714 = vsub.f32 %v2612, %v2674
  %v2715 = vsub.f32 %v2613, %v2678
  %v2716 = vsub.f32 %v2614, %v2678
  %v2717 = vsub.f32 %v2615, %v2682
  %v2718 = vsub.f32 %v2616, %v2682
  %v2719 = vsub.f32 %v2617, %v2686
  %v2720 = vsub.f32 %v2618, %v2686
  %v2721 = vmul.f32 %v2687, 1.442695
  %v2722 = vpow.pop %v2721
  %v2723 = vmul.f32 %v2688, 1.442695
  %v2724 = vpow.pop %v2723
  %v2725 = vmul.f32 %v2689, 1.442695
  %v2726 = vpow.pop %v2725
  %v2727 = vmul.f32 %v2690, 1.442695
  %v2728 = vpow.pop %v2727
  %v2729 = vmul.f32 %v2691, 1.442695
  %v2730 = vpow.pop %v2729
  %v2731 = vmul.f32 %v2692, 1.442695
  %v2732 = vpow.pop %v2731
  %v2733 = vmul.f32 %v2693, 1.442695
  %v2734 = vpow.pop %v2733
  %v2735 = vmul.f32 %v2694, 1.442695
  %v2736 = vpow.pop %v2735
  %v2737 = vmul.f32 %v2695, 1.442695
  %v2738 = vpow.pop %v2737
  %v2739 = vmul.f32 %v2696, 1.442695
  %v2740 = vpow.pop %v2739
  %v2741 = vmul.f32 %v2697, 1.442695
  %v2742 = vpow.pop %v2741
  %v2743 = vmul.f32 %v2698, 1.442695
  %v2744 = vpow.pop %v2743
  %v2745 = vmul.f32 %v2699, 1.442695
  %v2746 = vpow.pop %v2745
  %v2747 = vmul.f32 %v2700, 1.442695
  %v2748 = vpow.pop %v2747
  %v2749 = vmul.f32 %v2701, 1.442695
  %v2750 = vpow.pop %v2749
  %v2751 = vmul.f32 %v2702, 1.442695
  %v2752 = vpow.pop %v2751
  %v2753 = vmul.f32 %v2703, 1.442695
  %v2754 = vpow.pop %v2753
  %v2755 = vmul.f32 %v2704, 1.442695
  %v2756 = vpow.pop %v2755
  %v2757 = vmul.f32 %v2705, 1.442695
  %v2758 = vpow.pop %v2757
  %v2759 = vmul.f32 %v2706, 1.442695
  %v2760 = vpow.pop %v2759
  %v2761 = vmul.f32 %v2707, 1.442695
  %v2762 = vpow.pop %v2761
  %v2763 = vmul.f32 %v2708, 1.442695
  %v2764 = vpow.pop %v2763
  %v2765 = vmul.f32 %v2709, 1.442695
  %v2766 = vpow.pop %v2765
  %v2767 = vmul.f32 %v2710, 1.442695
  %v2768 = vpow.pop %v2767
  %v2769 = vmul.f32 %v2711, 1.442695
  %v2770 = vpow.pop %v2769
  %v2771 = vmul.f32 %v2712, 1.442695
  %v2772 = vpow.pop %v2771
  %v2773 = vmul.f32 %v2713, 1.442695
  %v2774 = vpow.pop %v2773
  %v2775 = vmul.f32 %v2714, 1.442695
  %v2776 = vpow.pop %v2775
  %v2777 = vmul.f32 %v2715, 1.442695
  %v2778 = vpow.pop %v2777
  %v2779 = vmul.f32 %v2716, 1.442695
  %v2780 = vpow.pop %v2779
  %v2781 = vmul.f32 %v2717, 1.442695
  %v2782 = vpow.pop %v2781
  %v2783 = vmul.f32 %v2718, 1.442695
  %v2784 = vpow.pop %v2783
  %v2785 = vmul.f32 %v2719, 1.442695
  %v2786 = vpow.pop %v2785
  %v2787 = vmul.f32 %v2720, 1.442695
  %v2788 = vpow.pop %v2787
  %v2789 = vsel %vm1169, %v2724, 0.0
  %v2790 = vadd.f32 %v2722, %v2789
  %2791 = vadd.xlane.f32.xlu0 %v2790
  %v2792 = vpop.xlane.xlu0 %2791
  %v2793 = vsel %vm1169, %v2728, 0.0
  %v2794 = vadd.f32 %v2726, %v2793
  %2795 = vadd.xlane.f32.xlu0 %v2794
  %v2796 = vpop.xlane.xlu0 %2795
  %v2797 = vsel %vm1169, %v2732, 0.0
  %v2798 = vadd.f32 %v2730, %v2797
  %2799 = vadd.xlane.f32.xlu0 %v2798
  %v2800 = vpop.xlane.xlu0 %2799
  %v2801 = vsel %vm1169, %v2736, 0.0
  %v2802 = vadd.f32 %v2734, %v2801
  %2803 = vadd.xlane.f32.xlu0 %v2802
  %v2804 = vpop.xlane.xlu0 %2803
  %v2805 = vsel %vm1169, %v2740, 0.0
  %v2806 = vadd.f32 %v2738, %v2805
  %2807 = vadd.xlane.f32.xlu0 %v2806
  %v2808 = vpop.xlane.xlu0 %2807
  %v2809 = vsel %vm1169, %v2744, 0.0
  %v2810 = vadd.f32 %v2742, %v2809
  %2811 = vadd.xlane.f32.xlu0 %v2810
  %v2812 = vpop.xlane.xlu0 %2811
  %v2813 = vsel %vm1169, %v2748, 0.0
  %v2814 = vadd.f32 %v2746, %v2813
  %2815 = vadd.xlane.f32.xlu0 %v2814
  %v2816 = vpop.xlane.xlu0 %2815
  %v2817 = vsel %vm1169, %v2752, 0.0
  %v2818 = vadd.f32 %v2750, %v2817
  %2819 = vadd.xlane.f32.xlu0 %v2818
  %v2820 = vpop.xlane.xlu0 %2819
  %v2821 = vsel %vm1169, %v2756, 0.0
  %v2822 = vadd.f32 %v2754, %v2821
  %2823 = vadd.xlane.f32.xlu0 %v2822
  %v2824 = vpop.xlane.xlu0 %2823
  %v2825 = vsel %vm1169, %v2760, 0.0
  %v2826 = vadd.f32 %v2758, %v2825
  %2827 = vadd.xlane.f32.xlu0 %v2826
  %v2828 = vpop.xlane.xlu0 %2827
  %v2829 = vsel %vm1169, %v2764, 0.0
  %v2830 = vadd.f32 %v2762, %v2829
  %2831 = vadd.xlane.f32.xlu0 %v2830
  %v2832 = vpop.xlane.xlu0 %2831
  %v2833 = vsel %vm1169, %v2768, 0.0
  %v2834 = vadd.f32 %v2766, %v2833
  %2835 = vadd.xlane.f32.xlu0 %v2834
  %v2836 = vpop.xlane.xlu0 %2835
  %v2837 = vsel %vm1169, %v2772, 0.0
  %v2838 = vadd.f32 %v2770, %v2837
  %2839 = vadd.xlane.f32.xlu0 %v2838
  %v2840 = vpop.xlane.xlu0 %2839
  %v2841 = vsel %vm1169, %v2776, 0.0
  %v2842 = vadd.f32 %v2774, %v2841
  %2843 = vadd.xlane.f32.xlu0 %v2842
  %v2844 = vpop.xlane.xlu0 %2843
  %v2845 = vsel %vm1169, %v2780, 0.0
  %v2846 = vadd.f32 %v2778, %v2845
  %2847 = vadd.xlane.f32.xlu0 %v2846
  %v2848 = vpop.xlane.xlu0 %2847
  %v2849 = vsel %vm1169, %v2784, 0.0
  %v2850 = vadd.f32 %v2782, %v2849
  %2851 = vadd.xlane.f32.xlu0 %v2850
  %v2852 = vpop.xlane.xlu0 %2851
  %v2853 = vsel %vm1169, %v2788, 0.0
  %v2854 = vadd.f32 %v2786, %v2853
  %2855 = vadd.xlane.f32.xlu0 %v2854
  %v2856 = vpop.xlane.xlu0 %2855
  %v2857 = vrcp.pop %v2792
  %v2858 = vrcp.pop %v2796
  %v2859 = vrcp.pop %v2800
  %v2860 = vrcp.pop %v2804
  %v2861 = vrcp.pop %v2808
  %v2862 = vrcp.pop %v2812
  %v2863 = vrcp.pop %v2816
  %v2864 = vrcp.pop %v2820
  %v2865 = vrcp.pop %v2824
  %v2866 = vrcp.pop %v2828
  %v2867 = vrcp.pop %v2832
  %v2868 = vrcp.pop %v2836
  %v2869 = vrcp.pop %v2840
  %v2870 = vrcp.pop %v2844
  %v2871 = vrcp.pop %v2848
  %v2872 = vrcp.pop %v2852
  %v2873 = vrcp.pop %v2856
  %v2874 = vmul.f32 %v2722, %v2857
  %v2875 = vmul.f32 %v2724, %v2857
  %v2876 = vmul.f32 %v2726, %v2858
  %v2877 = vmul.f32 %v2728, %v2858
  %v2878 = vmul.f32 %v2730, %v2859
  %v2879 = vmul.f32 %v2732, %v2859
  %v2880 = vmul.f32 %v2734, %v2860
  %v2881 = vmul.f32 %v2736, %v2860
  %v2882 = vmul.f32 %v2738, %v2861
  %v2883 = vmul.f32 %v2740, %v2861
  %v2884 = vmul.f32 %v2742, %v2862
  %v2885 = vmul.f32 %v2744, %v2862
  %v2886 = vmul.f32 %v2746, %v2863
  %v2887 = vmul.f32 %v2748, %v2863
  %v2888 = vmul.f32 %v2750, %v2864
  %v2889 = vmul.f32 %v2752, %v2864
  %v2890 = vmul.f32 %v2754, %v2865
  %v2891 = vmul.f32 %v2756, %v2865
  %v2892 = vmul.f32 %v2758, %v2866
  %v2893 = vmul.f32 %v2760, %v2866
  %v2894 = vmul.f32 %v2762, %v2867
  %v2895 = vmul.f32 %v2764, %v2867
  %v2896 = vmul.f32 %v2766, %v2868
  %v2897 = vmul.f32 %v2768, %v2868
  %v2898 = vmul.f32 %v2770, %v2869
  %v2899 = vmul.f32 %v2772, %v2869
  %v2900 = vmul.f32 %v2774, %v2870
  %v2901 = vmul.f32 %v2776, %v2870
  %v2902 = vmul.f32 %v2778, %v2871
  %v2903 = vmul.f32 %v2780, %v2871
  %v2904 = vmul.f32 %v2782, %v2872
  %v2905 = vmul.f32 %v2784, %v2872
  %v2906 = vmul.f32 %v2786, %v2873
  %v2907 = vmul.f32 %v2788, %v2873
  %v2908 = vpack.c.bf16 %v2876, %v2874
  %v2909 = vpack.c.bf16 %v2877, %v2875
  %v2910 = vpack.c.bf16 %v2880, %v2878
  %v2911 = vpack.c.bf16 %v2881, %v2879
  %v2912 = vpack.c.bf16 %v2884, %v2882
  %v2913 = vpack.c.bf16 %v2885, %v2883
  %v2914 = vpack.c.bf16 %v2888, %v2886
  %v2915 = vpack.c.bf16 %v2889, %v2887
  %v2916 = vpack.c.bf16 %v2892, %v2890
  %v2917 = vpack.c.bf16 %v2893, %v2891
  %v2918 = vpack.c.bf16 %v2896, %v2894
  %v2919 = vpack.c.bf16 %v2897, %v2895
  %v2920 = vpack.c.bf16 %v2900, %v2898
  %v2921 = vpack.c.bf16 %v2901, %v2899
  %v2922 = vpack.c.bf16 %v2904, %v2902
  %v2923 = vpack.c.bf16 %v2905, %v2903
  %v2924 = vpack.c.bf16 %v2906, %v2906
  %v2925 = vpack.c.bf16 %v2907, %v2907
  %2926 = vrot.lane.b32.xlu0 %v904, 96
  %v2927 = vpop.permute.xlu0 %2926
  %2928 = vrot.lane.b32.xlu0 %v905, 96
  %v2929 = vpop.permute.xlu0 %2928
  %2930 = vrot.lane.b32.xlu0 %v906, 96
  %v2931 = vpop.permute.xlu0 %2930
  %2932 = vrot.lane.b32.xlu0 %v907, 96
  %v2933 = vpop.permute.xlu0 %2932
  %2934 = vrot.lane.b32.xlu0 %v908, 96
  %v2935 = vpop.permute.xlu0 %2934
  %2936 = vrot.lane.b32.xlu0 %v909, 96
  %v2937 = vpop.permute.xlu0 %2936
  %2938 = vrot.lane.b32.xlu0 %v910, 96
  %v2939 = vpop.permute.xlu0 %2938
  %2940 = vrot.lane.b32.xlu0 %v911, 96
  %v2941 = vpop.permute.xlu0 %2940
  %2942 = vrot.lane.b32.xlu0 %v912, 96
  %v2943 = vpop.permute.xlu0 %2942
  %v2953 = vsel %vm1169, %v2909, 0
  %v2956 = vsel %vm1169, %v2911, 0
  %v2959 = vsel %vm1169, %v2913, 0
  %v2962 = vsel %vm1169, %v2915, 0
  %v2965 = vsel %vm1169, %v2917, 0
  %v2968 = vsel %vm1169, %v2919, 0
  %v2971 = vsel %vm1169, %v2921, 0
  %v2974 = vsel %vm1169, %v2923, 0
  %v2977 = vsel %vm1169, %v2925, 0
  %v2980 = vsel %vm215, %v2943, 0
  %2982 = vmatpush.bf16.msra.mxu0 %v2941
  %2983 = vmatpush.bf16.msra.mxu0 %v2939
  %2984 = vmatpush.bf16.msra.mxu0 %v2937
  %2985 = vmatpush.bf16.msra.mxu0 %v2935
  %2986 = vmatpush.bf16.msra.mxu0 %v2933
  %2987 = vmatpush.bf16.msra.mxu0 %v2931
  %2988 = vmatpush.bf16.msra.mxu0 %v2929
  %2989 = vmatpush.bf16.msra.mxu0 %v2927
  %2990 = vmatmul.bf16.gmra.mxu0 %v2908
  %v2991 = vpop.f32.mrf.mxu0
  %v2992 = vadd.f32 0.0, %v2991
  %v2993 = vpop.f32.mrf.mxu0
  %v2994 = vadd.f32 0.0, %v2993
  %2995 = vmatmul.bf16.gmra.mxu0 %v2910
  %v2996 = vpop.f32.mrf.mxu0
  %v2997 = vadd.f32 0.0, %v2996
  %v2998 = vpop.f32.mrf.mxu0
  %v2999 = vadd.f32 0.0, %v2998
  %3000 = vmatmul.bf16.gmra.mxu0 %v2912
  %v3001 = vpop.f32.mrf.mxu0
  %v3002 = vadd.f32 0.0, %v3001
  %v3003 = vpop.f32.mrf.mxu0
  %v3004 = vadd.f32 0.0, %v3003
  %3005 = vmatmul.bf16.gmra.mxu0 %v2914
  %v3006 = vpop.f32.mrf.mxu0
  %v3007 = vadd.f32 0.0, %v3006
  %v3008 = vpop.f32.mrf.mxu0
  %v3009 = vadd.f32 0.0, %v3008
  %3010 = vmatmul.bf16.gmra.mxu0 %v2916
  %v3011 = vpop.f32.mrf.mxu0
  %v3012 = vadd.f32 0.0, %v3011
  %v3013 = vpop.f32.mrf.mxu0
  %v3014 = vadd.f32 0.0, %v3013
  %3015 = vmatmul.bf16.gmra.mxu0 %v2918
  %v3016 = vpop.f32.mrf.mxu0
  %v3017 = vadd.f32 0.0, %v3016
  %v3018 = vpop.f32.mrf.mxu0
  %v3019 = vadd.f32 0.0, %v3018
  %3020 = vmatmul.bf16.gmra.mxu0 %v2920
  %v3021 = vpop.f32.mrf.mxu0
  %v3022 = vadd.f32 0.0, %v3021
  %v3023 = vpop.f32.mrf.mxu0
  %v3024 = vadd.f32 0.0, %v3023
  %3025 = vmatmul.bf16.gmra.mxu0 %v2922
  %v3026 = vpop.f32.mrf.mxu0
  %v3027 = vadd.f32 0.0, %v3026
  %v3028 = vpop.f32.mrf.mxu0
  %v3029 = vadd.f32 0.0, %v3028
  %3030 = vmatmul.bf16.gmra.mxu0 %v2924
  %v3031 = vpop.f32.mrf.mxu0
  %v3032 = vadd.f32 0.0, %v3031
  %v3033 = vpop.f32.mrf.mxu0
  %3034 = vdwg.mxu0
  %3035 = vmatpush.bf16.msra.mxu0 0
  %3036 = vmatpush.bf16.msra.mxu0 0
  %3037 = vmatpush.bf16.msra.mxu0 0
  %3038 = vmatpush.bf16.msra.mxu0 0
  %3039 = vmatpush.bf16.msra.mxu0 0
  %3040 = vmatpush.bf16.msra.mxu0 0
  %3041 = vmatpush.bf16.msra.mxu0 0
  %3042 = vmatpush.bf16.msra.mxu0 %v2980
  %3043 = vmatmul.bf16.gmra.mxu0 %v2953
  %v3044 = vpop.f32.mrf.mxu0
  %v3045 = vadd.f32 %v2992, %v3044
  %v3046 = vpop.f32.mrf.mxu0
  %v3047 = vadd.f32 %v2994, %v3046
  %3048 = vmatmul.bf16.gmra.mxu0 %v2956
  %v3049 = vpop.f32.mrf.mxu0
  %v3050 = vadd.f32 %v2997, %v3049
  %v3051 = vpop.f32.mrf.mxu0
  %v3052 = vadd.f32 %v2999, %v3051
  %3053 = vmatmul.bf16.gmra.mxu0 %v2959
  %v3054 = vpop.f32.mrf.mxu0
  %v3055 = vadd.f32 %v3002, %v3054
  %v3056 = vpop.f32.mrf.mxu0
  %v3057 = vadd.f32 %v3004, %v3056
  %3058 = vmatmul.bf16.gmra.mxu0 %v2962
  %v3059 = vpop.f32.mrf.mxu0
  %v3060 = vadd.f32 %v3007, %v3059
  %v3061 = vpop.f32.mrf.mxu0
  %v3062 = vadd.f32 %v3009, %v3061
  %3063 = vmatmul.bf16.gmra.mxu0 %v2965
  %v3064 = vpop.f32.mrf.mxu0
  %v3065 = vadd.f32 %v3012, %v3064
  %v3066 = vpop.f32.mrf.mxu0
  %v3067 = vadd.f32 %v3014, %v3066
  %3068 = vmatmul.bf16.gmra.mxu0 %v2968
  %v3069 = vpop.f32.mrf.mxu0
  %v3070 = vadd.f32 %v3017, %v3069
  %v3071 = vpop.f32.mrf.mxu0
  %v3072 = vadd.f32 %v3019, %v3071
  %3073 = vmatmul.bf16.gmra.mxu0 %v2971
  %v3074 = vpop.f32.mrf.mxu0
  %v3075 = vadd.f32 %v3022, %v3074
  %v3076 = vpop.f32.mrf.mxu0
  %v3077 = vadd.f32 %v3024, %v3076
  %3078 = vmatmul.bf16.gmra.mxu0 %v2974
  %v3079 = vpop.f32.mrf.mxu0
  %v3080 = vadd.f32 %v3027, %v3079
  %v3081 = vpop.f32.mrf.mxu0
  %v3082 = vadd.f32 %v3029, %v3081
  %3083 = vmatmul.bf16.gmra.mxu0 %v2977
  %v3084 = vpop.f32.mrf.mxu0
  %v3085 = vadd.f32 %v3032, %v3084
  %v3086 = vpop.f32.mrf.mxu0
  %3087 = vdwg.mxu0
  %3088 = vrot.lane.b32.xlu0 %v895, 80
  %v3089 = vpop.permute.xlu0 %3088
  %3090 = vrot.lane.b32.xlu0 %v896, 80
  %v3091 = vpop.permute.xlu0 %3090
  %3092 = vrot.lane.b32.xlu0 %v897, 80
  %v3093 = vpop.permute.xlu0 %3092
  %3094 = vrot.lane.b32.xlu0 %v898, 80
  %v3095 = vpop.permute.xlu0 %3094
  %3096 = vrot.lane.b32.xlu0 %v899, 80
  %v3097 = vpop.permute.xlu0 %3096
  %3098 = vrot.lane.b32.xlu0 %v900, 80
  %v3099 = vpop.permute.xlu0 %3098
  %3100 = vrot.lane.b32.xlu0 %v901, 80
  %v3101 = vpop.permute.xlu0 %3100
  %3102 = vrot.lane.b32.xlu0 %v902, 80
  %v3103 = vpop.permute.xlu0 %3102
  %3104 = vrot.lane.b32.xlu0 %v903, 80
  %v3105 = vpop.permute.xlu0 %3104
  %3106 = vrot.lane.b32.xlu0 %v895, 16
  %v3107 = vpop.permute.xlu0 %3106
  %3108 = vrot.lane.b32.xlu0 %v896, 16
  %v3109 = vpop.permute.xlu0 %3108
  %3110 = vrot.lane.b32.xlu0 %v897, 16
  %v3111 = vpop.permute.xlu0 %3110
  %3112 = vrot.lane.b32.xlu0 %v898, 16
  %v3113 = vpop.permute.xlu0 %3112
  %3114 = vrot.lane.b32.xlu0 %v899, 16
  %v3115 = vpop.permute.xlu0 %3114
  %3116 = vrot.lane.b32.xlu0 %v900, 16
  %v3117 = vpop.permute.xlu0 %3116
  %3118 = vrot.lane.b32.xlu0 %v901, 16
  %v3119 = vpop.permute.xlu0 %3118
  %3120 = vrot.lane.b32.xlu0 %v902, 16
  %v3121 = vpop.permute.xlu0 %3120
  %3122 = vrot.lane.b32.xlu0 %v903, 16
  %v3123 = vpop.permute.xlu0 %3122
  %v3125 = vsel %vm940, %v3089, 0
  %v3128 = vsel %vm940, %v3091, 0
  %v3131 = vsel %vm940, %v3093, 0
  %v3134 = vsel %vm940, %v3095, 0
  %v3137 = vsel %vm940, %v3097, 0
  %v3140 = vsel %vm940, %v3099, 0
  %v3143 = vsel %vm940, %v3101, 0
  %v3146 = vsel %vm940, %v3103, 0
  %v3149 = vsel %vm940, %v3105, 0
  %v3152 = vsel %vm940, %v3107, 0
  %v3155 = vsel %vm940, %v3109, 0
  %v3158 = vsel %vm940, %v3111, 0
  %v3161 = vsel %vm940, %v3113, 0
  %v3164 = vsel %vm940, %v3115, 0
  %v3167 = vsel %vm940, %v3117, 0
  %v3170 = vsel %vm940, %v3119, 0
  %v3173 = vsel %vm940, %v3121, 0
  %v3176 = vsel %vm940, %v3123, 0
  %3178 = vmatpush.bf16.xpose.msra.mxu0 %v3173
  %3179 = vmatpush.bf16.xpose.msra.mxu0 %v3170
  %3180 = vmatpush.bf16.xpose.msra.mxu0 %v3167
  %3181 = vmatpush.bf16.xpose.msra.mxu0 %v3164
  %3182 = vmatpush.bf16.xpose.msra.mxu0 %v3161
  %3183 = vmatpush.bf16.xpose.msra.mxu0 %v3158
  %3184 = vmatpush.bf16.xpose.msra.mxu0 %v3155
  %3185 = vmatpush.bf16.xpose.msra.mxu0 %v3152
  %3186 = vmatmul.bf16.gmra.mxu0 %v3125
  %v3187 = vpop.f32.mrf.mxu0
  %v3188 = vadd.f32 0.0, %v3187
  %v3189 = vpop.f32.mrf.mxu0
  %v3190 = vadd.f32 0.0, %v3189
  %3191 = vmatmul.bf16.gmra.mxu0 %v3128
  %v3192 = vpop.f32.mrf.mxu0
  %v3193 = vadd.f32 0.0, %v3192
  %v3194 = vpop.f32.mrf.mxu0
  %v3195 = vadd.f32 0.0, %v3194
  %3196 = vmatmul.bf16.gmra.mxu0 %v3131
  %v3197 = vpop.f32.mrf.mxu0
  %v3198 = vadd.f32 0.0, %v3197
  %v3199 = vpop.f32.mrf.mxu0
  %v3200 = vadd.f32 0.0, %v3199
  %3201 = vmatmul.bf16.gmra.mxu0 %v3134
  %v3202 = vpop.f32.mrf.mxu0
  %v3203 = vadd.f32 0.0, %v3202
  %v3204 = vpop.f32.mrf.mxu0
  %v3205 = vadd.f32 0.0, %v3204
  %3206 = vmatmul.bf16.gmra.mxu0 %v3137
  %v3207 = vpop.f32.mrf.mxu0
  %v3208 = vadd.f32 0.0, %v3207
  %v3209 = vpop.f32.mrf.mxu0
  %v3210 = vadd.f32 0.0, %v3209
  %3211 = vmatmul.bf16.gmra.mxu0 %v3140
  %v3212 = vpop.f32.mrf.mxu0
  %v3213 = vadd.f32 0.0, %v3212
  %v3214 = vpop.f32.mrf.mxu0
  %v3215 = vadd.f32 0.0, %v3214
  %3216 = vmatmul.bf16.gmra.mxu0 %v3143
  %v3217 = vpop.f32.mrf.mxu0
  %v3218 = vadd.f32 0.0, %v3217
  %v3219 = vpop.f32.mrf.mxu0
  %v3220 = vadd.f32 0.0, %v3219
  %3221 = vmatmul.bf16.gmra.mxu0 %v3146
  %v3222 = vpop.f32.mrf.mxu0
  %v3223 = vadd.f32 0.0, %v3222
  %v3224 = vpop.f32.mrf.mxu0
  %v3225 = vadd.f32 0.0, %v3224
  %3226 = vmatmul.bf16.gmra.mxu0 %v3149
  %v3227 = vpop.f32.mrf.mxu0
  %v3228 = vadd.f32 0.0, %v3227
  %v3229 = vpop.f32.mrf.mxu0
  %3230 = vdwg.mxu0
  %3231 = vmatpush.bf16.xpose.msra.mxu0 0
  %3232 = vmatpush.bf16.xpose.msra.mxu0 0
  %3233 = vmatpush.bf16.xpose.msra.mxu0 0
  %3234 = vmatpush.bf16.xpose.msra.mxu0 0
  %3235 = vmatpush.bf16.xpose.msra.mxu0 0
  %3236 = vmatpush.bf16.xpose.msra.mxu0 0
  %3237 = vmatpush.bf16.xpose.msra.mxu0 0
  %3238 = vmatpush.bf16.xpose.msra.mxu0 %v3176
  %3239 = vmatmul.bf16.gmra.mxu0 %v3125
  %v3240 = vpop.f32.mrf.mxu0
  %v3241 = vadd.f32 0.0, %v3240
  %v3242 = vpop.f32.mrf.mxu0
  %v3243 = vadd.f32 0.0, %v3242
  %3244 = vmatmul.bf16.gmra.mxu0 %v3128
  %v3245 = vpop.f32.mrf.mxu0
  %v3246 = vadd.f32 0.0, %v3245
  %v3247 = vpop.f32.mrf.mxu0
  %v3248 = vadd.f32 0.0, %v3247
  %3249 = vmatmul.bf16.gmra.mxu0 %v3131
  %v3250 = vpop.f32.mrf.mxu0
  %v3251 = vadd.f32 0.0, %v3250
  %v3252 = vpop.f32.mrf.mxu0
  %v3253 = vadd.f32 0.0, %v3252
  %3254 = vmatmul.bf16.gmra.mxu0 %v3134
  %v3255 = vpop.f32.mrf.mxu0
  %v3256 = vadd.f32 0.0, %v3255
  %v3257 = vpop.f32.mrf.mxu0
  %v3258 = vadd.f32 0.0, %v3257
  %3259 = vmatmul.bf16.gmra.mxu0 %v3137
  %v3260 = vpop.f32.mrf.mxu0
  %v3261 = vadd.f32 0.0, %v3260
  %v3262 = vpop.f32.mrf.mxu0
  %v3263 = vadd.f32 0.0, %v3262
  %3264 = vmatmul.bf16.gmra.mxu0 %v3140
  %v3265 = vpop.f32.mrf.mxu0
  %v3266 = vadd.f32 0.0, %v3265
  %v3267 = vpop.f32.mrf.mxu0
  %v3268 = vadd.f32 0.0, %v3267
  %3269 = vmatmul.bf16.gmra.mxu0 %v3143
  %v3270 = vpop.f32.mrf.mxu0
  %v3271 = vadd.f32 0.0, %v3270
  %v3272 = vpop.f32.mrf.mxu0
  %v3273 = vadd.f32 0.0, %v3272
  %3274 = vmatmul.bf16.gmra.mxu0 %v3146
  %v3275 = vpop.f32.mrf.mxu0
  %v3276 = vadd.f32 0.0, %v3275
  %v3277 = vpop.f32.mrf.mxu0
  %v3278 = vadd.f32 0.0, %v3277
  %3279 = vmatmul.bf16.gmra.mxu0 %v3149
  %v3280 = vpop.f32.mrf.mxu0
  %v3281 = vadd.f32 0.0, %v3280
  %v3282 = vpop.f32.mrf.mxu0
  %3283 = vdwg.mxu0
  %v3284 = vmul.f32 %v3188, 0.25
  %v3285 = vmul.f32 %v3241, 0.25
  %v3286 = vmul.f32 %v3190, 0.25
  %v3287 = vmul.f32 %v3243, 0.25
  %v3288 = vmul.f32 %v3193, 0.25
  %v3289 = vmul.f32 %v3246, 0.25
  %v3290 = vmul.f32 %v3195, 0.25
  %v3291 = vmul.f32 %v3248, 0.25
  %v3292 = vmul.f32 %v3198, 0.25
  %v3293 = vmul.f32 %v3251, 0.25
  %v3294 = vmul.f32 %v3200, 0.25
  %v3295 = vmul.f32 %v3253, 0.25
  %v3296 = vmul.f32 %v3203, 0.25
  %v3297 = vmul.f32 %v3256, 0.25
  %v3298 = vmul.f32 %v3205, 0.25
  %v3299 = vmul.f32 %v3258, 0.25
  %v3300 = vmul.f32 %v3208, 0.25
  %v3301 = vmul.f32 %v3261, 0.25
  %v3302 = vmul.f32 %v3210, 0.25
  %v3303 = vmul.f32 %v3263, 0.25
  %v3304 = vmul.f32 %v3213, 0.25
  %v3305 = vmul.f32 %v3266, 0.25
  %v3306 = vmul.f32 %v3215, 0.25
  %v3307 = vmul.f32 %v3268, 0.25
  %v3308 = vmul.f32 %v3218, 0.25
  %v3309 = vmul.f32 %v3271, 0.25
  %v3310 = vmul.f32 %v3220, 0.25
  %v3311 = vmul.f32 %v3273, 0.25
  %v3312 = vmul.f32 %v3223, 0.25
  %v3313 = vmul.f32 %v3276, 0.25
  %v3314 = vmul.f32 %v3225, 0.25
  %v3315 = vmul.f32 %v3278, 0.25
  %v3316 = vmul.f32 %v3228, 0.25
  %v3317 = vmul.f32 %v3281, 0.25
  %v3318 = vadd.f32 %v3284, %v120
  %v3319 = vadd.f32 %v3285, %v121
  %v3320 = vadd.f32 %v3286, %v122
  %v3321 = vadd.f32 %v3287, %v123
  %v3322 = vadd.f32 %v3288, %v124
  %v3323 = vadd.f32 %v3289, %v125
  %v3324 = vadd.f32 %v3290, %v126
  %v3325 = vadd.f32 %v3291, %v127
  %v3326 = vadd.f32 %v3292, %v128
  %v3327 = vadd.f32 %v3293, %v129
  %v3328 = vadd.f32 %v3294, %v130
  %v3329 = vadd.f32 %v3295, %v131
  %v3330 = vadd.f32 %v3296, %v132
  %v3331 = vadd.f32 %v3297, %v133
  %v3332 = vadd.f32 %v3298, %v134
  %v3333 = vadd.f32 %v3299, %v135
  %v3334 = vadd.f32 %v3300, %v136
  %v3335 = vadd.f32 %v3301, %v137
  %v3336 = vadd.f32 %v3302, %v138
  %v3337 = vadd.f32 %v3303, %v139
  %v3338 = vadd.f32 %v3304, %v140
  %v3339 = vadd.f32 %v3305, %v141
  %v3340 = vadd.f32 %v3306, %v142
  %v3341 = vadd.f32 %v3307, %v143
  %v3342 = vadd.f32 %v3308, %v144
  %v3343 = vadd.f32 %v3309, %v145
  %v3344 = vadd.f32 %v3310, %v146
  %v3345 = vadd.f32 %v3311, %v147
  %v3346 = vadd.f32 %v3312, %v148
  %v3347 = vadd.f32 %v3313, %v149
  %v3348 = vadd.f32 %v3314, %v150
  %v3349 = vadd.f32 %v3315, %v151
  %v3350 = vadd.f32 %v3316, %v152
  %v3351 = vadd.f32 %v3317, %v153
  %v3352 = vsel %vm1169, %v3319, -inf
  %v3353 = vmax.f32 %v3318, %v3352
  %3354 = vmax.xlane.f32.xlu0 %v3353
  %v3355 = vpop.xlane.xlu0 %3354
  %v3356 = vsel %vm1169, %v3321, -inf
  %v3357 = vmax.f32 %v3320, %v3356
  %3358 = vmax.xlane.f32.xlu0 %v3357
  %v3359 = vpop.xlane.xlu0 %3358
  %v3360 = vsel %vm1169, %v3323, -inf
  %v3361 = vmax.f32 %v3322, %v3360
  %3362 = vmax.xlane.f32.xlu0 %v3361
  %v3363 = vpop.xlane.xlu0 %3362
  %v3364 = vsel %vm1169, %v3325, -inf
  %v3365 = vmax.f32 %v3324, %v3364
  %3366 = vmax.xlane.f32.xlu0 %v3365
  %v3367 = vpop.xlane.xlu0 %3366
  %v3368 = vsel %vm1169, %v3327, -inf
  %v3369 = vmax.f32 %v3326, %v3368
  %3370 = vmax.xlane.f32.xlu0 %v3369
  %v3371 = vpop.xlane.xlu0 %3370
  %v3372 = vsel %vm1169, %v3329, -inf
  %v3373 = vmax.f32 %v3328, %v3372
  %3374 = vmax.xlane.f32.xlu0 %v3373
  %v3375 = vpop.xlane.xlu0 %3374
  %v3376 = vsel %vm1169, %v3331, -inf
  %v3377 = vmax.f32 %v3330, %v3376
  %3378 = vmax.xlane.f32.xlu0 %v3377
  %v3379 = vpop.xlane.xlu0 %3378
  %v3380 = vsel %vm1169, %v3333, -inf
  %v3381 = vmax.f32 %v3332, %v3380
  %3382 = vmax.xlane.f32.xlu0 %v3381
  %v3383 = vpop.xlane.xlu0 %3382
  %v3384 = vsel %vm1169, %v3335, -inf
  %v3385 = vmax.f32 %v3334, %v3384
  %3386 = vmax.xlane.f32.xlu0 %v3385
  %v3387 = vpop.xlane.xlu0 %3386
  %v3388 = vsel %vm1169, %v3337, -inf
  %v3389 = vmax.f32 %v3336, %v3388
  %3390 = vmax.xlane.f32.xlu0 %v3389
  %v3391 = vpop.xlane.xlu0 %3390
  %v3392 = vsel %vm1169, %v3339, -inf
  %v3393 = vmax.f32 %v3338, %v3392
  %3394 = vmax.xlane.f32.xlu0 %v3393
  %v3395 = vpop.xlane.xlu0 %3394
  %v3396 = vsel %vm1169, %v3341, -inf
  %v3397 = vmax.f32 %v3340, %v3396
  %3398 = vmax.xlane.f32.xlu0 %v3397
  %v3399 = vpop.xlane.xlu0 %3398
  %v3400 = vsel %vm1169, %v3343, -inf
  %v3401 = vmax.f32 %v3342, %v3400
  %3402 = vmax.xlane.f32.xlu0 %v3401
  %v3403 = vpop.xlane.xlu0 %3402
  %v3404 = vsel %vm1169, %v3345, -inf
  %v3405 = vmax.f32 %v3344, %v3404
  %3406 = vmax.xlane.f32.xlu0 %v3405
  %v3407 = vpop.xlane.xlu0 %3406
  %v3408 = vsel %vm1169, %v3347, -inf
  %v3409 = vmax.f32 %v3346, %v3408
  %3410 = vmax.xlane.f32.xlu0 %v3409
  %v3411 = vpop.xlane.xlu0 %3410
  %v3412 = vsel %vm1169, %v3349, -inf
  %v3413 = vmax.f32 %v3348, %v3412
  %3414 = vmax.xlane.f32.xlu0 %v3413
  %v3415 = vpop.xlane.xlu0 %3414
  %v3416 = vsel %vm1169, %v3351, -inf
  %v3417 = vmax.f32 %v3350, %v3416
  %3418 = vmax.xlane.f32.xlu0 %v3417
  %v3419 = vpop.xlane.xlu0 %3418
  %v3420 = vsub.f32 %v3318, %v3355
  %v3421 = vsub.f32 %v3319, %v3355
  %v3422 = vsub.f32 %v3320, %v3359
  %v3423 = vsub.f32 %v3321, %v3359
  %v3424 = vsub.f32 %v3322, %v3363
  %v3425 = vsub.f32 %v3323, %v3363
  %v3426 = vsub.f32 %v3324, %v3367
  %v3427 = vsub.f32 %v3325, %v3367
  %v3428 = vsub.f32 %v3326, %v3371
  %v3429 = vsub.f32 %v3327, %v3371
  %v3430 = vsub.f32 %v3328, %v3375
  %v3431 = vsub.f32 %v3329, %v3375
  %v3432 = vsub.f32 %v3330, %v3379
  %v3433 = vsub.f32 %v3331, %v3379
  %v3434 = vsub.f32 %v3332, %v3383
  %v3435 = vsub.f32 %v3333, %v3383
  %v3436 = vsub.f32 %v3334, %v3387
  %v3437 = vsub.f32 %v3335, %v3387
  %v3438 = vsub.f32 %v3336, %v3391
  %v3439 = vsub.f32 %v3337, %v3391
  %v3440 = vsub.f32 %v3338, %v3395
  %v3441 = vsub.f32 %v3339, %v3395
  %v3442 = vsub.f32 %v3340, %v3399
  %v3443 = vsub.f32 %v3341, %v3399
  %v3444 = vsub.f32 %v3342, %v3403
  %v3445 = vsub.f32 %v3343, %v3403
  %v3446 = vsub.f32 %v3344, %v3407
  %v3447 = vsub.f32 %v3345, %v3407
  %v3448 = vsub.f32 %v3346, %v3411
  %v3449 = vsub.f32 %v3347, %v3411
  %v3450 = vsub.f32 %v3348, %v3415
  %v3451 = vsub.f32 %v3349, %v3415
  %v3452 = vsub.f32 %v3350, %v3419
  %v3453 = vsub.f32 %v3351, %v3419
  %v3454 = vmul.f32 %v3420, 1.442695
  %v3455 = vpow.pop %v3454
  %v3456 = vmul.f32 %v3421, 1.442695
  %v3457 = vpow.pop %v3456
  %v3458 = vmul.f32 %v3422, 1.442695
  %v3459 = vpow.pop %v3458
  %v3460 = vmul.f32 %v3423, 1.442695
  %v3461 = vpow.pop %v3460
  %v3462 = vmul.f32 %v3424, 1.442695
  %v3463 = vpow.pop %v3462
  %v3464 = vmul.f32 %v3425, 1.442695
  %v3465 = vpow.pop %v3464
  %v3466 = vmul.f32 %v3426, 1.442695
  %v3467 = vpow.pop %v3466
  %v3468 = vmul.f32 %v3427, 1.442695
  %v3469 = vpow.pop %v3468
  %v3470 = vmul.f32 %v3428, 1.442695
  %v3471 = vpow.pop %v3470
  %v3472 = vmul.f32 %v3429, 1.442695
  %v3473 = vpow.pop %v3472
  %v3474 = vmul.f32 %v3430, 1.442695
  %v3475 = vpow.pop %v3474
  %v3476 = vmul.f32 %v3431, 1.442695
  %v3477 = vpow.pop %v3476
  %v3478 = vmul.f32 %v3432, 1.442695
  %v3479 = vpow.pop %v3478
  %v3480 = vmul.f32 %v3433, 1.442695
  %v3481 = vpow.pop %v3480
  %v3482 = vmul.f32 %v3434, 1.442695
  %v3483 = vpow.pop %v3482
  %v3484 = vmul.f32 %v3435, 1.442695
  %v3485 = vpow.pop %v3484
  %v3486 = vmul.f32 %v3436, 1.442695
  %v3487 = vpow.pop %v3486
  %v3488 = vmul.f32 %v3437, 1.442695
  %v3489 = vpow.pop %v3488
  %v3490 = vmul.f32 %v3438, 1.442695
  %v3491 = vpow.pop %v3490
  %v3492 = vmul.f32 %v3439, 1.442695
  %v3493 = vpow.pop %v3492
  %v3494 = vmul.f32 %v3440, 1.442695
  %v3495 = vpow.pop %v3494
  %v3496 = vmul.f32 %v3441, 1.442695
  %v3497 = vpow.pop %v3496
  %v3498 = vmul.f32 %v3442, 1.442695
  %v3499 = vpow.pop %v3498
  %v3500 = vmul.f32 %v3443, 1.442695
  %v3501 = vpow.pop %v3500
  %v3502 = vmul.f32 %v3444, 1.442695
  %v3503 = vpow.pop %v3502
  %v3504 = vmul.f32 %v3445, 1.442695
  %v3505 = vpow.pop %v3504
  %v3506 = vmul.f32 %v3446, 1.442695
  %v3507 = vpow.pop %v3506
  %v3508 = vmul.f32 %v3447, 1.442695
  %v3509 = vpow.pop %v3508
  %v3510 = vmul.f32 %v3448, 1.442695
  %v3511 = vpow.pop %v3510
  %v3512 = vmul.f32 %v3449, 1.442695
  %v3513 = vpow.pop %v3512
  %v3514 = vmul.f32 %v3450, 1.442695
  %v3515 = vpow.pop %v3514
  %v3516 = vmul.f32 %v3451, 1.442695
  %v3517 = vpow.pop %v3516
  %v3518 = vmul.f32 %v3452, 1.442695
  %v3519 = vpow.pop %v3518
  %v3520 = vmul.f32 %v3453, 1.442695
  %v3521 = vpow.pop %v3520
  %v3522 = vsel %vm1169, %v3457, 0.0
  %v3523 = vadd.f32 %v3455, %v3522
  %3524 = vadd.xlane.f32.xlu0 %v3523
  %v3525 = vpop.xlane.xlu0 %3524
  %v3526 = vsel %vm1169, %v3461, 0.0
  %v3527 = vadd.f32 %v3459, %v3526
  %3528 = vadd.xlane.f32.xlu0 %v3527
  %v3529 = vpop.xlane.xlu0 %3528
  %v3530 = vsel %vm1169, %v3465, 0.0
  %v3531 = vadd.f32 %v3463, %v3530
  %3532 = vadd.xlane.f32.xlu0 %v3531
  %v3533 = vpop.xlane.xlu0 %3532
  %v3534 = vsel %vm1169, %v3469, 0.0
  %v3535 = vadd.f32 %v3467, %v3534
  %3536 = vadd.xlane.f32.xlu0 %v3535
  %v3537 = vpop.xlane.xlu0 %3536
  %v3538 = vsel %vm1169, %v3473, 0.0
  %v3539 = vadd.f32 %v3471, %v3538
  %3540 = vadd.xlane.f32.xlu0 %v3539
  %v3541 = vpop.xlane.xlu0 %3540
  %v3542 = vsel %vm1169, %v3477, 0.0
  %v3543 = vadd.f32 %v3475, %v3542
  %3544 = vadd.xlane.f32.xlu0 %v3543
  %v3545 = vpop.xlane.xlu0 %3544
  %v3546 = vsel %vm1169, %v3481, 0.0
  %v3547 = vadd.f32 %v3479, %v3546
  %3548 = vadd.xlane.f32.xlu0 %v3547
  %v3549 = vpop.xlane.xlu0 %3548
  %v3550 = vsel %vm1169, %v3485, 0.0
  %v3551 = vadd.f32 %v3483, %v3550
  %3552 = vadd.xlane.f32.xlu0 %v3551
  %v3553 = vpop.xlane.xlu0 %3552
  %v3554 = vsel %vm1169, %v3489, 0.0
  %v3555 = vadd.f32 %v3487, %v3554
  %3556 = vadd.xlane.f32.xlu0 %v3555
  %v3557 = vpop.xlane.xlu0 %3556
  %v3558 = vsel %vm1169, %v3493, 0.0
  %v3559 = vadd.f32 %v3491, %v3558
  %3560 = vadd.xlane.f32.xlu0 %v3559
  %v3561 = vpop.xlane.xlu0 %3560
  %v3562 = vsel %vm1169, %v3497, 0.0
  %v3563 = vadd.f32 %v3495, %v3562
  %3564 = vadd.xlane.f32.xlu0 %v3563
  %v3565 = vpop.xlane.xlu0 %3564
  %v3566 = vsel %vm1169, %v3501, 0.0
  %v3567 = vadd.f32 %v3499, %v3566
  %3568 = vadd.xlane.f32.xlu0 %v3567
  %v3569 = vpop.xlane.xlu0 %3568
  %v3570 = vsel %vm1169, %v3505, 0.0
  %v3571 = vadd.f32 %v3503, %v3570
  %3572 = vadd.xlane.f32.xlu0 %v3571
  %v3573 = vpop.xlane.xlu0 %3572
  %v3574 = vsel %vm1169, %v3509, 0.0
  %v3575 = vadd.f32 %v3507, %v3574
  %3576 = vadd.xlane.f32.xlu0 %v3575
  %v3577 = vpop.xlane.xlu0 %3576
  %v3578 = vsel %vm1169, %v3513, 0.0
  %v3579 = vadd.f32 %v3511, %v3578
  %3580 = vadd.xlane.f32.xlu0 %v3579
  %v3581 = vpop.xlane.xlu0 %3580
  %v3582 = vsel %vm1169, %v3517, 0.0
  %v3583 = vadd.f32 %v3515, %v3582
  %3584 = vadd.xlane.f32.xlu0 %v3583
  %v3585 = vpop.xlane.xlu0 %3584
  %v3586 = vsel %vm1169, %v3521, 0.0
  %v3587 = vadd.f32 %v3519, %v3586
  %3588 = vadd.xlane.f32.xlu0 %v3587
  %v3589 = vpop.xlane.xlu0 %3588
  %v3590 = vrcp.pop %v3525
  %v3591 = vrcp.pop %v3529
  %v3592 = vrcp.pop %v3533
  %v3593 = vrcp.pop %v3537
  %v3594 = vrcp.pop %v3541
  %v3595 = vrcp.pop %v3545
  %v3596 = vrcp.pop %v3549
  %v3597 = vrcp.pop %v3553
  %v3598 = vrcp.pop %v3557
  %v3599 = vrcp.pop %v3561
  %v3600 = vrcp.pop %v3565
  %v3601 = vrcp.pop %v3569
  %v3602 = vrcp.pop %v3573
  %v3603 = vrcp.pop %v3577
  %v3604 = vrcp.pop %v3581
  %v3605 = vrcp.pop %v3585
  %v3606 = vrcp.pop %v3589
  %v3607 = vmul.f32 %v3455, %v3590
  %v3608 = vmul.f32 %v3457, %v3590
  %v3609 = vmul.f32 %v3459, %v3591
  %v3610 = vmul.f32 %v3461, %v3591
  %v3611 = vmul.f32 %v3463, %v3592
  %v3612 = vmul.f32 %v3465, %v3592
  %v3613 = vmul.f32 %v3467, %v3593
  %v3614 = vmul.f32 %v3469, %v3593
  %v3615 = vmul.f32 %v3471, %v3594
  %v3616 = vmul.f32 %v3473, %v3594
  %v3617 = vmul.f32 %v3475, %v3595
  %v3618 = vmul.f32 %v3477, %v3595
  %v3619 = vmul.f32 %v3479, %v3596
  %v3620 = vmul.f32 %v3481, %v3596
  %v3621 = vmul.f32 %v3483, %v3597
  %v3622 = vmul.f32 %v3485, %v3597
  %v3623 = vmul.f32 %v3487, %v3598
  %v3624 = vmul.f32 %v3489, %v3598
  %v3625 = vmul.f32 %v3491, %v3599
  %v3626 = vmul.f32 %v3493, %v3599
  %v3627 = vmul.f32 %v3495, %v3600
  %v3628 = vmul.f32 %v3497, %v3600
  %v3629 = vmul.f32 %v3499, %v3601
  %v3630 = vmul.f32 %v3501, %v3601
  %v3631 = vmul.f32 %v3503, %v3602
  %v3632 = vmul.f32 %v3505, %v3602
  %v3633 = vmul.f32 %v3507, %v3603
  %v3634 = vmul.f32 %v3509, %v3603
  %v3635 = vmul.f32 %v3511, %v3604
  %v3636 = vmul.f32 %v3513, %v3604
  %v3637 = vmul.f32 %v3515, %v3605
  %v3638 = vmul.f32 %v3517, %v3605
  %v3639 = vmul.f32 %v3519, %v3606
  %v3640 = vmul.f32 %v3521, %v3606
  %v3641 = vpack.c.bf16 %v3609, %v3607
  %v3642 = vpack.c.bf16 %v3610, %v3608
  %v3643 = vpack.c.bf16 %v3613, %v3611
  %v3644 = vpack.c.bf16 %v3614, %v3612
  %v3645 = vpack.c.bf16 %v3617, %v3615
  %v3646 = vpack.c.bf16 %v3618, %v3616
  %v3647 = vpack.c.bf16 %v3621, %v3619
  %v3648 = vpack.c.bf16 %v3622, %v3620
  %v3649 = vpack.c.bf16 %v3625, %v3623
  %v3650 = vpack.c.bf16 %v3626, %v3624
  %v3651 = vpack.c.bf16 %v3629, %v3627
  %v3652 = vpack.c.bf16 %v3630, %v3628
  %v3653 = vpack.c.bf16 %v3633, %v3631
  %v3654 = vpack.c.bf16 %v3634, %v3632
  %v3655 = vpack.c.bf16 %v3637, %v3635
  %v3656 = vpack.c.bf16 %v3638, %v3636
  %v3657 = vpack.c.bf16 %v3639, %v3639
  %v3658 = vpack.c.bf16 %v3640, %v3640
  %3659 = vrot.lane.b32.xlu0 %v904, 80
  %v3660 = vpop.permute.xlu0 %3659
  %3661 = vrot.lane.b32.xlu0 %v905, 80
  %v3662 = vpop.permute.xlu0 %3661
  %3663 = vrot.lane.b32.xlu0 %v906, 80
  %v3664 = vpop.permute.xlu0 %3663
  %3665 = vrot.lane.b32.xlu0 %v907, 80
  %v3666 = vpop.permute.xlu0 %3665
  %3667 = vrot.lane.b32.xlu0 %v908, 80
  %v3668 = vpop.permute.xlu0 %3667
  %3669 = vrot.lane.b32.xlu0 %v909, 80
  %v3670 = vpop.permute.xlu0 %3669
  %3671 = vrot.lane.b32.xlu0 %v910, 80
  %v3672 = vpop.permute.xlu0 %3671
  %3673 = vrot.lane.b32.xlu0 %v911, 80
  %v3674 = vpop.permute.xlu0 %3673
  %3675 = vrot.lane.b32.xlu0 %v912, 80
  %v3676 = vpop.permute.xlu0 %3675
  %v3686 = vsel %vm1169, %v3642, 0
  %v3689 = vsel %vm1169, %v3644, 0
  %v3692 = vsel %vm1169, %v3646, 0
  %v3695 = vsel %vm1169, %v3648, 0
  %v3698 = vsel %vm1169, %v3650, 0
  %v3701 = vsel %vm1169, %v3652, 0
  %v3704 = vsel %vm1169, %v3654, 0
  %v3707 = vsel %vm1169, %v3656, 0
  %v3710 = vsel %vm1169, %v3658, 0
  %v3713 = vsel %vm215, %v3676, 0
  %3715 = vmatpush.bf16.msra.mxu0 %v3674
  %3716 = vmatpush.bf16.msra.mxu0 %v3672
  %3717 = vmatpush.bf16.msra.mxu0 %v3670
  %3718 = vmatpush.bf16.msra.mxu0 %v3668
  %3719 = vmatpush.bf16.msra.mxu0 %v3666
  %3720 = vmatpush.bf16.msra.mxu0 %v3664
  %3721 = vmatpush.bf16.msra.mxu0 %v3662
  %3722 = vmatpush.bf16.msra.mxu0 %v3660
  %3723 = vmatmul.bf16.gmra.mxu0 %v3641
  %v3724 = vpop.f32.mrf.mxu0
  %v3725 = vadd.f32 0.0, %v3724
  %v3726 = vpop.f32.mrf.mxu0
  %v3727 = vadd.f32 0.0, %v3726
  %3728 = vmatmul.bf16.gmra.mxu0 %v3643
  %v3729 = vpop.f32.mrf.mxu0
  %v3730 = vadd.f32 0.0, %v3729
  %v3731 = vpop.f32.mrf.mxu0
  %v3732 = vadd.f32 0.0, %v3731
  %3733 = vmatmul.bf16.gmra.mxu0 %v3645
  %v3734 = vpop.f32.mrf.mxu0
  %v3735 = vadd.f32 0.0, %v3734
  %v3736 = vpop.f32.mrf.mxu0
  %v3737 = vadd.f32 0.0, %v3736
  %3738 = vmatmul.bf16.gmra.mxu0 %v3647
  %v3739 = vpop.f32.mrf.mxu0
  %v3740 = vadd.f32 0.0, %v3739
  %v3741 = vpop.f32.mrf.mxu0
  %v3742 = vadd.f32 0.0, %v3741
  %3743 = vmatmul.bf16.gmra.mxu0 %v3649
  %v3744 = vpop.f32.mrf.mxu0
  %v3745 = vadd.f32 0.0, %v3744
  %v3746 = vpop.f32.mrf.mxu0
  %v3747 = vadd.f32 0.0, %v3746
  %3748 = vmatmul.bf16.gmra.mxu0 %v3651
  %v3749 = vpop.f32.mrf.mxu0
  %v3750 = vadd.f32 0.0, %v3749
  %v3751 = vpop.f32.mrf.mxu0
  %v3752 = vadd.f32 0.0, %v3751
  %3753 = vmatmul.bf16.gmra.mxu0 %v3653
  %v3754 = vpop.f32.mrf.mxu0
  %v3755 = vadd.f32 0.0, %v3754
  %v3756 = vpop.f32.mrf.mxu0
  %v3757 = vadd.f32 0.0, %v3756
  %3758 = vmatmul.bf16.gmra.mxu0 %v3655
  %v3759 = vpop.f32.mrf.mxu0
  %v3760 = vadd.f32 0.0, %v3759
  %v3761 = vpop.f32.mrf.mxu0
  %v3762 = vadd.f32 0.0, %v3761
  %3763 = vmatmul.bf16.gmra.mxu0 %v3657
  %v3764 = vpop.f32.mrf.mxu0
  %v3765 = vadd.f32 0.0, %v3764
  %v3766 = vpop.f32.mrf.mxu0
  %3767 = vdwg.mxu0
  %3768 = vmatpush.bf16.msra.mxu0 0
  %3769 = vmatpush.bf16.msra.mxu0 0
  %3770 = vmatpush.bf16.msra.mxu0 0
  %3771 = vmatpush.bf16.msra.mxu0 0
  %3772 = vmatpush.bf16.msra.mxu0 0
  %3773 = vmatpush.bf16.msra.mxu0 0
  %3774 = vmatpush.bf16.msra.mxu0 0
  %3775 = vmatpush.bf16.msra.mxu0 %v3713
  %3776 = vmatmul.bf16.gmra.mxu0 %v3686
  %v3777 = vpop.f32.mrf.mxu0
  %v3778 = vadd.f32 %v3725, %v3777
  %v3779 = vpop.f32.mrf.mxu0
  %v3780 = vadd.f32 %v3727, %v3779
  %3781 = vmatmul.bf16.gmra.mxu0 %v3689
  %v3782 = vpop.f32.mrf.mxu0
  %v3783 = vadd.f32 %v3730, %v3782
  %v3784 = vpop.f32.mrf.mxu0
  %v3785 = vadd.f32 %v3732, %v3784
  %3786 = vmatmul.bf16.gmra.mxu0 %v3692
  %v3787 = vpop.f32.mrf.mxu0
  %v3788 = vadd.f32 %v3735, %v3787
  %v3789 = vpop.f32.mrf.mxu0
  %v3790 = vadd.f32 %v3737, %v3789
  %3791 = vmatmul.bf16.gmra.mxu0 %v3695
  %v3792 = vpop.f32.mrf.mxu0
  %v3793 = vadd.f32 %v3740, %v3792
  %v3794 = vpop.f32.mrf.mxu0
  %v3795 = vadd.f32 %v3742, %v3794
  %3796 = vmatmul.bf16.gmra.mxu0 %v3698
  %v3797 = vpop.f32.mrf.mxu0
  %v3798 = vadd.f32 %v3745, %v3797
  %v3799 = vpop.f32.mrf.mxu0
  %v3800 = vadd.f32 %v3747, %v3799
  %3801 = vmatmul.bf16.gmra.mxu0 %v3701
  %v3802 = vpop.f32.mrf.mxu0
  %v3803 = vadd.f32 %v3750, %v3802
  %v3804 = vpop.f32.mrf.mxu0
  %v3805 = vadd.f32 %v3752, %v3804
  %3806 = vmatmul.bf16.gmra.mxu0 %v3704
  %v3807 = vpop.f32.mrf.mxu0
  %v3808 = vadd.f32 %v3755, %v3807
  %v3809 = vpop.f32.mrf.mxu0
  %v3810 = vadd.f32 %v3757, %v3809
  %3811 = vmatmul.bf16.gmra.mxu0 %v3707
  %v3812 = vpop.f32.mrf.mxu0
  %v3813 = vadd.f32 %v3760, %v3812
  %v3814 = vpop.f32.mrf.mxu0
  %v3815 = vadd.f32 %v3762, %v3814
  %3816 = vmatmul.bf16.gmra.mxu0 %v3710
  %v3817 = vpop.f32.mrf.mxu0
  %v3818 = vadd.f32 %v3765, %v3817
  %v3819 = vpop.f32.mrf.mxu0
  %3820 = vdwg.mxu0
  %3838 = vrot.lane.b32.xlu0 %v2312, 16
  %v3839 = vpop.permute.xlu0 %3838
  %3840 = vrot.lane.b32.xlu0 %v2314, 16
  %v3841 = vpop.permute.xlu0 %3840
  %3842 = vrot.lane.b32.xlu0 %v2317, 16
  %v3843 = vpop.permute.xlu0 %3842
  %3844 = vrot.lane.b32.xlu0 %v2319, 16
  %v3845 = vpop.permute.xlu0 %3844
  %3846 = vrot.lane.b32.xlu0 %v2322, 16
  %v3847 = vpop.permute.xlu0 %3846
  %3848 = vrot.lane.b32.xlu0 %v2324, 16
  %v3849 = vpop.permute.xlu0 %3848
  %3850 = vrot.lane.b32.xlu0 %v2327, 16
  %v3851 = vpop.permute.xlu0 %3850
  %3852 = vrot.lane.b32.xlu0 %v2329, 16
  %v3853 = vpop.permute.xlu0 %3852
  %3854 = vrot.lane.b32.xlu0 %v2332, 16
  %v3855 = vpop.permute.xlu0 %3854
  %3856 = vrot.lane.b32.xlu0 %v2334, 16
  %v3857 = vpop.permute.xlu0 %3856
  %3858 = vrot.lane.b32.xlu0 %v2337, 16
  %v3859 = vpop.permute.xlu0 %3858
  %3860 = vrot.lane.b32.xlu0 %v2339, 16
  %v3861 = vpop.permute.xlu0 %3860
  %3862 = vrot.lane.b32.xlu0 %v2342, 16
  %v3863 = vpop.permute.xlu0 %3862
  %3864 = vrot.lane.b32.xlu0 %v2344, 16
  %v3865 = vpop.permute.xlu0 %3864
  %3866 = vrot.lane.b32.xlu0 %v2347, 16
  %v3867 = vpop.permute.xlu0 %3866
  %3868 = vrot.lane.b32.xlu0 %v2349, 16
  %v3869 = vpop.permute.xlu0 %3868
  %3870 = vrot.lane.b32.xlu0 %v2352, 16
  %v3871 = vpop.permute.xlu0 %3870
  %3906 = vrot.lane.b32.xlu0 %v3045, 32
  %v3907 = vpop.permute.xlu0 %3906
  %3908 = vrot.lane.b32.xlu0 %v3047, 32
  %v3909 = vpop.permute.xlu0 %3908
  %3910 = vrot.lane.b32.xlu0 %v3050, 32
  %v3911 = vpop.permute.xlu0 %3910
  %3912 = vrot.lane.b32.xlu0 %v3052, 32
  %v3913 = vpop.permute.xlu0 %3912
  %3914 = vrot.lane.b32.xlu0 %v3055, 32
  %v3915 = vpop.permute.xlu0 %3914
  %3916 = vrot.lane.b32.xlu0 %v3057, 32
  %v3917 = vpop.permute.xlu0 %3916
  %3918 = vrot.lane.b32.xlu0 %v3060, 32
  %v3919 = vpop.permute.xlu0 %3918
  %3920 = vrot.lane.b32.xlu0 %v3062, 32
  %v3921 = vpop.permute.xlu0 %3920
  %3922 = vrot.lane.b32.xlu0 %v3065, 32
  %v3923 = vpop.permute.xlu0 %3922
  %3924 = vrot.lane.b32.xlu0 %v3067, 32
  %v3925 = vpop.permute.xlu0 %3924
  %3926 = vrot.lane.b32.xlu0 %v3070, 32
  %v3927 = vpop.permute.xlu0 %3926
  %3928 = vrot.lane.b32.xlu0 %v3072, 32
  %v3929 = vpop.permute.xlu0 %3928
  %3930 = vrot.lane.b32.xlu0 %v3075, 32
  %v3931 = vpop.permute.xlu0 %3930
  %3932 = vrot.lane.b32.xlu0 %v3077, 32
  %v3933 = vpop.permute.xlu0 %3932
  %3934 = vrot.lane.b32.xlu0 %v3080, 32
  %v3935 = vpop.permute.xlu0 %3934
  %3936 = vrot.lane.b32.xlu0 %v3082, 32
  %v3937 = vpop.permute.xlu0 %3936
  %3938 = vrot.lane.b32.xlu0 %v3085, 32
  %v3939 = vpop.permute.xlu0 %3938
  %3974 = vrot.lane.b32.xlu0 %v3778, 48
  %v3975 = vpop.permute.xlu0 %3974
  %3976 = vrot.lane.b32.xlu0 %v3780, 48
  %v3977 = vpop.permute.xlu0 %3976
  %3978 = vrot.lane.b32.xlu0 %v3783, 48
  %v3979 = vpop.permute.xlu0 %3978
  %3980 = vrot.lane.b32.xlu0 %v3785, 48
  %v3981 = vpop.permute.xlu0 %3980
  %3982 = vrot.lane.b32.xlu0 %v3788, 48
  %v3983 = vpop.permute.xlu0 %3982
  %3984 = vrot.lane.b32.xlu0 %v3790, 48
  %v3985 = vpop.permute.xlu0 %3984
  %3986 = vrot.lane.b32.xlu0 %v3793, 48
  %v3987 = vpop.permute.xlu0 %3986
  %3988 = vrot.lane.b32.xlu0 %v3795, 48
  %v3989 = vpop.permute.xlu0 %3988
  %3990 = vrot.lane.b32.xlu0 %v3798, 48
  %v3991 = vpop.permute.xlu0 %3990
  %3992 = vrot.lane.b32.xlu0 %v3800, 48
  %v3993 = vpop.permute.xlu0 %3992
  %3994 = vrot.lane.b32.xlu0 %v3803, 48
  %v3995 = vpop.permute.xlu0 %3994
  %3996 = vrot.lane.b32.xlu0 %v3805, 48
  %v3997 = vpop.permute.xlu0 %3996
  %3998 = vrot.lane.b32.xlu0 %v3808, 48
  %v3999 = vpop.permute.xlu0 %3998
  %4000 = vrot.lane.b32.xlu0 %v3810, 48
  %v4001 = vpop.permute.xlu0 %4000
  %4002 = vrot.lane.b32.xlu0 %v3813, 48
  %v4003 = vpop.permute.xlu0 %4002
  %4004 = vrot.lane.b32.xlu0 %v3815, 48
  %v4005 = vpop.permute.xlu0 %4004
  %4006 = vrot.lane.b32.xlu0 %v3818, 48
  %v4007 = vpop.permute.xlu0 %4006
  %v4025 = vsel %vm940, %v1570, %v3839
  %v4026 = vsel %vm940, %v1572, %v3841
  %v4027 = vsel %vm940, %v1575, %v3843
  %v4028 = vsel %vm940, %v1577, %v3845
  %v4029 = vsel %vm940, %v1580, %v3847
  %v4030 = vsel %vm940, %v1582, %v3849
  %v4031 = vsel %vm940, %v1585, %v3851
  %v4032 = vsel %vm940, %v1587, %v3853
  %v4033 = vsel %vm940, %v1590, %v3855
  %v4034 = vsel %vm940, %v1592, %v3857
  %v4035 = vsel %vm940, %v1595, %v3859
  %v4036 = vsel %vm940, %v1597, %v3861
  %v4037 = vsel %vm940, %v1600, %v3863
  %v4038 = vsel %vm940, %v1602, %v3865
  %v4039 = vsel %vm940, %v1605, %v3867
  %v4040 = vsel %vm940, %v1607, %v3869
  %v4041 = vsel %vm940, %v1610, %v3871
  %vm4042 = vcmask 261120
  %v4043 = vsel %vm4042, %v4025, %v3907
  %v4044 = vsel %vm4042, %v4026, %v3909
  %v4045 = vsel %vm4042, %v4027, %v3911
  %v4046 = vsel %vm4042, %v4028, %v3913
  %v4047 = vsel %vm4042, %v4029, %v3915
  %v4048 = vsel %vm4042, %v4030, %v3917
  %v4049 = vsel %vm4042, %v4031, %v3919
  %v4050 = vsel %vm4042, %v4032, %v3921
  %v4051 = vsel %vm4042, %v4033, %v3923
  %v4052 = vsel %vm4042, %v4034, %v3925
  %v4053 = vsel %vm4042, %v4035, %v3927
  %v4054 = vsel %vm4042, %v4036, %v3929
  %v4055 = vsel %vm4042, %v4037, %v3931
  %v4056 = vsel %vm4042, %v4038, %v3933
  %v4057 = vsel %vm4042, %v4039, %v3935
  %v4058 = vsel %vm4042, %v4040, %v3937
  %v4059 = vsel %vm4042, %v4041, %v3939
  %vm4060 = vcmask 392192
  %v4061 = vsel %vm4060, %v4043, %v3975
  %v4062 = vsel %vm4060, %v4044, %v3977
  %v4063 = vsel %vm4060, %v4045, %v3979
  %v4064 = vsel %vm4060, %v4046, %v3981
  %v4065 = vsel %vm4060, %v4047, %v3983
  %v4066 = vsel %vm4060, %v4048, %v3985
  %v4067 = vsel %vm4060, %v4049, %v3987
  %v4068 = vsel %vm4060, %v4050, %v3989
  %v4069 = vsel %vm4060, %v4051, %v3991
  %v4070 = vsel %vm4060, %v4052, %v3993
  %v4071 = vsel %vm4060, %v4053, %v3995
  %v4072 = vsel %vm4060, %v4054, %v3997
  %v4073 = vsel %vm4060, %v4055, %v3999
  %v4074 = vsel %vm4060, %v4056, %v4001
  %v4075 = vsel %vm4060, %v4057, %v4003
  %v4076 = vsel %vm4060, %v4058, %v4005
  %v4077 = vsel %vm4060, %v4059, %v4007
  %v4078 = vpack.c.bf16 %v4062, %v4061
  %v4079 = vpack.c.bf16 %v4064, %v4063
  %v4080 = vpack.c.bf16 %v4066, %v4065
  %v4081 = vpack.c.bf16 %v4068, %v4067
  %v4082 = vpack.c.bf16 %v4070, %v4069
  %v4083 = vpack.c.bf16 %v4072, %v4071
  %v4084 = vpack.c.bf16 %v4074, %v4073
  %v4085 = vpack.c.bf16 %v4076, %v4075
  %v4086 = vpack.c.bf16 %v4077, %v4077
  %v4087 = vld [vmem:[%s9] sm:$0xf]
  %v4088 = vld [vmem:[%s9 + $0x4] sm:$0xf]
  %v4089 = vld [vmem:[%s9 + $0x8] sm:$0xf]
  %v4090 = vld [vmem:[%s9 + $0xc] sm:$0xf]
  %v4091 = vld [vmem:[%s9 + $0x10] sm:$0xf]
  %v4092 = vld [vmem:[%s9 + $0x14] sm:$0xf]
  %v4093 = vld [vmem:[%s9 + $0x18] sm:$0xf]
  %v4094 = vld [vmem:[%s9 + $0x1c] sm:$0xf]
  %v4103 = vunpack.c.l.b16 %v4087
  %v4104 = vunpack.c.l.b16 %v4088
  %v4105 = vunpack.c.l.b16 %v4089
  %v4106 = vunpack.c.l.b16 %v4090
  %v4107 = vunpack.c.l.b16 %v4091
  %v4108 = vunpack.c.l.b16 %v4092
  %v4109 = vunpack.c.l.b16 %v4093
  %v4110 = vunpack.c.l.b16 %v4094
  %v4111 = vpack.c.b16 %v4104, %v4103
  %v4112 = vpack.c.b16 %v4106, %v4105
  %v4113 = vpack.c.b16 %v4108, %v4107
  %v4114 = vpack.c.b16 %v4110, %v4109
  %v4120 = vsel %vm277, %v4078, 0
  %v4123 = vsel %vm277, %v4079, 0
  %v4126 = vsel %vm277, %v4080, 0
  %v4129 = vsel %vm277, %v4081, 0
  %v4132 = vsel %vm277, %v4082, 0
  %v4135 = vsel %vm277, %v4083, 0
  %v4138 = vsel %vm277, %v4084, 0
  %v4141 = vsel %vm277, %v4085, 0
  %v4144 = vsel %vm277, %v4086, 0
  %4146 = vmatpush.bf16.msra.mxu0 0
  %4147 = vmatpush.bf16.msra.mxu0 0
  %4148 = vmatpush.bf16.msra.mxu0 0
  %4149 = vmatpush.bf16.msra.mxu0 0
  %4150 = vmatpush.bf16.msra.mxu0 %v4114
  %4151 = vmatpush.bf16.msra.mxu0 %v4113
  %4152 = vmatpush.bf16.msra.mxu0 %v4112
  %4153 = vmatpush.bf16.msra.mxu0 %v4111
  %4154 = vmatmul.bf16.gmra.mxu0 %v4120
  %v4155 = vpop.f32.mrf.mxu0
  %v4156 = vadd.f32 0.0, %v4155
  %v4157 = vpop.f32.mrf.mxu0
  %v4158 = vadd.f32 0.0, %v4157
  %4159 = vmatmul.bf16.gmra.mxu0 %v4123
  %v4160 = vpop.f32.mrf.mxu0
  %v4161 = vadd.f32 0.0, %v4160
  %v4162 = vpop.f32.mrf.mxu0
  %v4163 = vadd.f32 0.0, %v4162
  %4164 = vmatmul.bf16.gmra.mxu0 %v4126
  %v4165 = vpop.f32.mrf.mxu0
  %v4166 = vadd.f32 0.0, %v4165
  %v4167 = vpop.f32.mrf.mxu0
  %v4168 = vadd.f32 0.0, %v4167
  %4169 = vmatmul.bf16.gmra.mxu0 %v4129
  %v4170 = vpop.f32.mrf.mxu0
  %v4171 = vadd.f32 0.0, %v4170
  %v4172 = vpop.f32.mrf.mxu0
  %v4173 = vadd.f32 0.0, %v4172
  %4174 = vmatmul.bf16.gmra.mxu0 %v4132
  %v4175 = vpop.f32.mrf.mxu0
  %v4176 = vadd.f32 0.0, %v4175
  %v4177 = vpop.f32.mrf.mxu0
  %v4178 = vadd.f32 0.0, %v4177
  %4179 = vmatmul.bf16.gmra.mxu0 %v4135
  %v4180 = vpop.f32.mrf.mxu0
  %v4181 = vadd.f32 0.0, %v4180
  %v4182 = vpop.f32.mrf.mxu0
  %v4183 = vadd.f32 0.0, %v4182
  %4184 = vmatmul.bf16.gmra.mxu0 %v4138
  %v4185 = vpop.f32.mrf.mxu0
  %v4186 = vadd.f32 0.0, %v4185
  %v4187 = vpop.f32.mrf.mxu0
  %v4188 = vadd.f32 0.0, %v4187
  %4189 = vmatmul.bf16.gmra.mxu0 %v4141
  %v4190 = vpop.f32.mrf.mxu0
  %v4191 = vadd.f32 0.0, %v4190
  %v4192 = vpop.f32.mrf.mxu0
  %v4193 = vadd.f32 0.0, %v4192
  %4194 = vmatmul.bf16.gmra.mxu0 %v4144
  %v4195 = vpop.f32.mrf.mxu0
  %v4196 = vadd.f32 0.0, %v4195
  %v4197 = vpop.f32.mrf.mxu0
  %4198 = vdwg.mxu0
  %v4199 = vadd.f32 %v232, %v4156
  %v4200 = vadd.f32 %v234, %v4158
  %v4201 = vadd.f32 %v237, %v4161
  %v4202 = vadd.f32 %v239, %v4163
  %v4203 = vadd.f32 %v242, %v4166
  %v4204 = vadd.f32 %v244, %v4168
  %v4205 = vadd.f32 %v247, %v4171
  %v4206 = vadd.f32 %v249, %v4173
  %v4207 = vadd.f32 %v252, %v4176
  %v4208 = vadd.f32 %v254, %v4178
  %v4209 = vadd.f32 %v257, %v4181
  %v4210 = vadd.f32 %v259, %v4183
  %v4211 = vadd.f32 %v262, %v4186
  %v4212 = vadd.f32 %v264, %v4188
  %v4213 = vadd.f32 %v267, %v4191
  %v4214 = vadd.f32 %v269, %v4193
  %v4215 = vadd.f32 %v272, %v4196
  %v4216 = vld [vmem:[%s10] sm:$0x1]
  %v4218 = vperm.slane %v4216, 0
  %v4220 = vadd.f32 %v4199, %v4218
  %v4221 = vadd.f32 %v4200, %v4218
  %v4222 = vadd.f32 %v4201, %v4218
  %v4223 = vadd.f32 %v4202, %v4218
  %v4224 = vadd.f32 %v4203, %v4218
  %v4225 = vadd.f32 %v4204, %v4218
  %v4226 = vadd.f32 %v4205, %v4218
  %v4227 = vadd.f32 %v4206, %v4218
  %v4228 = vadd.f32 %v4207, %v4218
  %v4229 = vadd.f32 %v4208, %v4218
  %v4230 = vadd.f32 %v4209, %v4218
  %v4231 = vadd.f32 %v4210, %v4218
  %v4232 = vadd.f32 %v4211, %v4218
  %v4233 = vadd.f32 %v4212, %v4218
  %v4234 = vadd.f32 %v4213, %v4218
  %v4235 = vadd.f32 %v4214, %v4218
  %v4236 = vadd.f32 %v4215, %v4218
  %v4237 = vld [vmem:[%s11] sm:$0x1]
  %v4238 = vld [vmem:[%s12] sm:$0x1]
  %v4239 = vsel %vm277, %v4220, 0.0
  %4240 = vadd.xlane.f32.xlu0 %v4239
  %v4241 = vpop.xlane.xlu0 %4240
  %v4242 = vsel %vm277, %v4221, 0.0
  %4243 = vadd.xlane.f32.xlu0 %v4242
  %v4244 = vpop.xlane.xlu0 %4243
  %v4245 = vsel %vm277, %v4222, 0.0
  %4246 = vadd.xlane.f32.xlu0 %v4245
  %v4247 = vpop.xlane.xlu0 %4246
  %v4248 = vsel %vm277, %v4223, 0.0
  %4249 = vadd.xlane.f32.xlu0 %v4248
  %v4250 = vpop.xlane.xlu0 %4249
  %v4251 = vsel %vm277, %v4224, 0.0
  %4252 = vadd.xlane.f32.xlu0 %v4251
  %v4253 = vpop.xlane.xlu0 %4252
  %v4254 = vsel %vm277, %v4225, 0.0
  %4255 = vadd.xlane.f32.xlu0 %v4254
  %v4256 = vpop.xlane.xlu0 %4255
  %v4257 = vsel %vm277, %v4226, 0.0
  %4258 = vadd.xlane.f32.xlu0 %v4257
  %v4259 = vpop.xlane.xlu0 %4258
  %v4260 = vsel %vm277, %v4227, 0.0
  %4261 = vadd.xlane.f32.xlu0 %v4260
  %v4262 = vpop.xlane.xlu0 %4261
  %v4263 = vsel %vm277, %v4228, 0.0
  %4264 = vadd.xlane.f32.xlu0 %v4263
  %v4265 = vpop.xlane.xlu0 %4264
  %v4266 = vsel %vm277, %v4229, 0.0
  %4267 = vadd.xlane.f32.xlu0 %v4266
  %v4268 = vpop.xlane.xlu0 %4267
  %v4269 = vsel %vm277, %v4230, 0.0
  %4270 = vadd.xlane.f32.xlu0 %v4269
  %v4271 = vpop.xlane.xlu0 %4270
  %v4272 = vsel %vm277, %v4231, 0.0
  %4273 = vadd.xlane.f32.xlu0 %v4272
  %v4274 = vpop.xlane.xlu0 %4273
  %v4275 = vsel %vm277, %v4232, 0.0
  %4276 = vadd.xlane.f32.xlu0 %v4275
  %v4277 = vpop.xlane.xlu0 %4276
  %v4278 = vsel %vm277, %v4233, 0.0
  %4279 = vadd.xlane.f32.xlu0 %v4278
  %v4280 = vpop.xlane.xlu0 %4279
  %v4281 = vsel %vm277, %v4234, 0.0
  %4282 = vadd.xlane.f32.xlu0 %v4281
  %v4283 = vpop.xlane.xlu0 %4282
  %v4284 = vsel %vm277, %v4235, 0.0
  %4285 = vadd.xlane.f32.xlu0 %v4284
  %v4286 = vpop.xlane.xlu0 %4285
  %v4287 = vsel %vm277, %v4236, 0.0
  %4288 = vadd.xlane.f32.xlu0 %v4287
  %v4289 = vpop.xlane.xlu0 %4288
  %v4290 = vmul.f32 %v4241, %v335
  %v4291 = vmul.f32 %v4244, %v335
  %v4292 = vmul.f32 %v4247, %v335
  %v4293 = vmul.f32 %v4250, %v335
  %v4294 = vmul.f32 %v4253, %v335
  %v4295 = vmul.f32 %v4256, %v335
  %v4296 = vmul.f32 %v4259, %v335
  %v4297 = vmul.f32 %v4262, %v335
  %v4298 = vmul.f32 %v4265, %v335
  %v4299 = vmul.f32 %v4268, %v335
  %v4300 = vmul.f32 %v4271, %v335
  %v4301 = vmul.f32 %v4274, %v335
  %v4302 = vmul.f32 %v4277, %v335
  %v4303 = vmul.f32 %v4280, %v335
  %v4304 = vmul.f32 %v4283, %v335
  %v4305 = vmul.f32 %v4286, %v335
  %v4306 = vmul.f32 %v4289, %v335
  %v4307 = vsub.f32 %v4220, %v4290
  %v4308 = vsub.f32 %v4221, %v4291
  %v4309 = vsub.f32 %v4222, %v4292
  %v4310 = vsub.f32 %v4223, %v4293
  %v4311 = vsub.f32 %v4224, %v4294
  %v4312 = vsub.f32 %v4225, %v4295
  %v4313 = vsub.f32 %v4226, %v4296
  %v4314 = vsub.f32 %v4227, %v4297
  %v4315 = vsub.f32 %v4228, %v4298
  %v4316 = vsub.f32 %v4229, %v4299
  %v4317 = vsub.f32 %v4230, %v4300
  %v4318 = vsub.f32 %v4231, %v4301
  %v4319 = vsub.f32 %v4232, %v4302
  %v4320 = vsub.f32 %v4233, %v4303
  %v4321 = vsub.f32 %v4234, %v4304
  %v4322 = vsub.f32 %v4235, %v4305
  %v4323 = vsub.f32 %v4236, %v4306
  %v4324 = vmul.f32 %v4307, %v4307
  %v4325 = vmul.f32 %v4308, %v4308
  %v4326 = vmul.f32 %v4309, %v4309
  %v4327 = vmul.f32 %v4310, %v4310
  %v4328 = vmul.f32 %v4311, %v4311
  %v4329 = vmul.f32 %v4312, %v4312
  %v4330 = vmul.f32 %v4313, %v4313
  %v4331 = vmul.f32 %v4314, %v4314
  %v4332 = vmul.f32 %v4315, %v4315
  %v4333 = vmul.f32 %v4316, %v4316
  %v4334 = vmul.f32 %v4317, %v4317
  %v4335 = vmul.f32 %v4318, %v4318
  %v4336 = vmul.f32 %v4319, %v4319
  %v4337 = vmul.f32 %v4320, %v4320
  %v4338 = vmul.f32 %v4321, %v4321
  %v4339 = vmul.f32 %v4322, %v4322
  %v4340 = vmul.f32 %v4323, %v4323
  %v4341 = vsel %vm277, %v4324, 0.0
  %4342 = vadd.xlane.f32.xlu0 %v4341
  %v4343 = vpop.xlane.xlu0 %4342
  %v4344 = vsel %vm277, %v4325, 0.0
  %4345 = vadd.xlane.f32.xlu0 %v4344
  %v4346 = vpop.xlane.xlu0 %4345
  %v4347 = vsel %vm277, %v4326, 0.0
  %4348 = vadd.xlane.f32.xlu0 %v4347
  %v4349 = vpop.xlane.xlu0 %4348
  %v4350 = vsel %vm277, %v4327, 0.0
  %4351 = vadd.xlane.f32.xlu0 %v4350
  %v4352 = vpop.xlane.xlu0 %4351
  %v4353 = vsel %vm277, %v4328, 0.0
  %4354 = vadd.xlane.f32.xlu0 %v4353
  %v4355 = vpop.xlane.xlu0 %4354
  %v4356 = vsel %vm277, %v4329, 0.0
  %4357 = vadd.xlane.f32.xlu0 %v4356
  %v4358 = vpop.xlane.xlu0 %4357
  %v4359 = vsel %vm277, %v4330, 0.0
  %4360 = vadd.xlane.f32.xlu0 %v4359
  %v4361 = vpop.xlane.xlu0 %4360
  %v4362 = vsel %vm277, %v4331, 0.0
  %4363 = vadd.xlane.f32.xlu0 %v4362
  %v4364 = vpop.xlane.xlu0 %4363
  %v4365 = vsel %vm277, %v4332, 0.0
  %4366 = vadd.xlane.f32.xlu0 %v4365
  %v4367 = vpop.xlane.xlu0 %4366
  %v4368 = vsel %vm277, %v4333, 0.0
  %4369 = vadd.xlane.f32.xlu0 %v4368
  %v4370 = vpop.xlane.xlu0 %4369
  %v4371 = vsel %vm277, %v4334, 0.0
  %4372 = vadd.xlane.f32.xlu0 %v4371
  %v4373 = vpop.xlane.xlu0 %4372
  %v4374 = vsel %vm277, %v4335, 0.0
  %4375 = vadd.xlane.f32.xlu0 %v4374
  %v4376 = vpop.xlane.xlu0 %4375
  %v4377 = vsel %vm277, %v4336, 0.0
  %4378 = vadd.xlane.f32.xlu0 %v4377
  %v4379 = vpop.xlane.xlu0 %4378
  %v4380 = vsel %vm277, %v4337, 0.0
  %4381 = vadd.xlane.f32.xlu0 %v4380
  %v4382 = vpop.xlane.xlu0 %4381
  %v4383 = vsel %vm277, %v4338, 0.0
  %4384 = vadd.xlane.f32.xlu0 %v4383
  %v4385 = vpop.xlane.xlu0 %4384
  %v4386 = vsel %vm277, %v4339, 0.0
  %4387 = vadd.xlane.f32.xlu0 %v4386
  %v4388 = vpop.xlane.xlu0 %4387
  %v4389 = vsel %vm277, %v4340, 0.0
  %4390 = vadd.xlane.f32.xlu0 %v4389
  %v4391 = vpop.xlane.xlu0 %4390
  %v4392 = vmul.f32 %v4343, %v335
  %v4393 = vmul.f32 %v4346, %v335
  %v4394 = vmul.f32 %v4349, %v335
  %v4395 = vmul.f32 %v4352, %v335
  %v4396 = vmul.f32 %v4355, %v335
  %v4397 = vmul.f32 %v4358, %v335
  %v4398 = vmul.f32 %v4361, %v335
  %v4399 = vmul.f32 %v4364, %v335
  %v4400 = vmul.f32 %v4367, %v335
  %v4401 = vmul.f32 %v4370, %v335
  %v4402 = vmul.f32 %v4373, %v335
  %v4403 = vmul.f32 %v4376, %v335
  %v4404 = vmul.f32 %v4379, %v335
  %v4405 = vmul.f32 %v4382, %v335
  %v4406 = vmul.f32 %v4385, %v335
  %v4407 = vmul.f32 %v4388, %v335
  %v4408 = vmul.f32 %v4391, %v335
  %v4409 = vadd.f32 %v4392, 1e-05
  %v4410 = vadd.f32 %v4393, 1e-05
  %v4411 = vadd.f32 %v4394, 1e-05
  %v4412 = vadd.f32 %v4395, 1e-05
  %v4413 = vadd.f32 %v4396, 1e-05
  %v4414 = vadd.f32 %v4397, 1e-05
  %v4415 = vadd.f32 %v4398, 1e-05
  %v4416 = vadd.f32 %v4399, 1e-05
  %v4417 = vadd.f32 %v4400, 1e-05
  %v4418 = vadd.f32 %v4401, 1e-05
  %v4419 = vadd.f32 %v4402, 1e-05
  %v4420 = vadd.f32 %v4403, 1e-05
  %v4421 = vadd.f32 %v4404, 1e-05
  %v4422 = vadd.f32 %v4405, 1e-05
  %v4423 = vadd.f32 %v4406, 1e-05
  %v4424 = vadd.f32 %v4407, 1e-05
  %v4425 = vadd.f32 %v4408, 1e-05
  %v4426 = vrsqrt.pop %v4409
  %v4427 = vmul.f32 %v4426, %v4409
  %v4428 = vmul.f32 %v4427, %v4426
  %v4429 = vmul.f32 0.5, %v4428
  %v4430 = vsub.f32 1.5, %v4429
  %v4431 = vmul.f32 %v4426, %v4430
  %vm4432 = vweird.f32 %v4409
  %vm4433 = vweird.f32 %v4426
  %vm4434 = vmor %vm4432, %vm4433
  %v4435 = vsel %vm4434, %v4426, %v4431
  %v4436 = vrsqrt.pop %v4410
  %v4437 = vmul.f32 %v4436, %v4410
  %v4438 = vmul.f32 %v4437, %v4436
  %v4439 = vmul.f32 0.5, %v4438
  %v4440 = vsub.f32 1.5, %v4439
  %v4441 = vmul.f32 %v4436, %v4440
  %vm4442 = vweird.f32 %v4410
  %vm4443 = vweird.f32 %v4436
  %vm4444 = vmor %vm4442, %vm4443
  %v4445 = vsel %vm4444, %v4436, %v4441
  %v4446 = vrsqrt.pop %v4411
  %v4447 = vmul.f32 %v4446, %v4411
  %v4448 = vmul.f32 %v4447, %v4446
  %v4449 = vmul.f32 0.5, %v4448
  %v4450 = vsub.f32 1.5, %v4449
  %v4451 = vmul.f32 %v4446, %v4450
  %vm4452 = vweird.f32 %v4411
  %vm4453 = vweird.f32 %v4446
  %vm4454 = vmor %vm4452, %vm4453
  %v4455 = vsel %vm4454, %v4446, %v4451
  %v4456 = vrsqrt.pop %v4412
  %v4457 = vmul.f32 %v4456, %v4412
  %v4458 = vmul.f32 %v4457, %v4456
  %v4459 = vmul.f32 0.5, %v4458
  %v4460 = vsub.f32 1.5, %v4459
  %v4461 = vmul.f32 %v4456, %v4460
  %vm4462 = vweird.f32 %v4412
  %vm4463 = vweird.f32 %v4456
  %vm4464 = vmor %vm4462, %vm4463
  %v4465 = vsel %vm4464, %v4456, %v4461
  %v4466 = vrsqrt.pop %v4413
  %v4467 = vmul.f32 %v4466, %v4413
  %v4468 = vmul.f32 %v4467, %v4466
  %v4469 = vmul.f32 0.5, %v4468
  %v4470 = vsub.f32 1.5, %v4469
  %v4471 = vmul.f32 %v4466, %v4470
  %vm4472 = vweird.f32 %v4413
  %vm4473 = vweird.f32 %v4466
  %vm4474 = vmor %vm4472, %vm4473
  %v4475 = vsel %vm4474, %v4466, %v4471
  %v4476 = vrsqrt.pop %v4414
  %v4477 = vmul.f32 %v4476, %v4414
  %v4478 = vmul.f32 %v4477, %v4476
  %v4479 = vmul.f32 0.5, %v4478
  %v4480 = vsub.f32 1.5, %v4479
  %v4481 = vmul.f32 %v4476, %v4480
  %vm4482 = vweird.f32 %v4414
  %vm4483 = vweird.f32 %v4476
  %vm4484 = vmor %vm4482, %vm4483
  %v4485 = vsel %vm4484, %v4476, %v4481
  %v4486 = vrsqrt.pop %v4415
  %v4487 = vmul.f32 %v4486, %v4415
  %v4488 = vmul.f32 %v4487, %v4486
  %v4489 = vmul.f32 0.5, %v4488
  %v4490 = vsub.f32 1.5, %v4489
  %v4491 = vmul.f32 %v4486, %v4490
  %vm4492 = vweird.f32 %v4415
  %vm4493 = vweird.f32 %v4486
  %vm4494 = vmor %vm4492, %vm4493
  %v4495 = vsel %vm4494, %v4486, %v4491
  %v4496 = vrsqrt.pop %v4416
  %v4497 = vmul.f32 %v4496, %v4416
  %v4498 = vmul.f32 %v4497, %v4496
  %v4499 = vmul.f32 0.5, %v4498
  %v4500 = vsub.f32 1.5, %v4499
  %v4501 = vmul.f32 %v4496, %v4500
  %vm4502 = vweird.f32 %v4416
  %vm4503 = vweird.f32 %v4496
  %vm4504 = vmor %vm4502, %vm4503
  %v4505 = vsel %vm4504, %v4496, %v4501
  %v4506 = vrsqrt.pop %v4417
  %v4507 = vmul.f32 %v4506, %v4417
  %v4508 = vmul.f32 %v4507, %v4506
  %v4509 = vmul.f32 0.5, %v4508
  %v4510 = vsub.f32 1.5, %v4509
  %v4511 = vmul.f32 %v4506, %v4510
  %vm4512 = vweird.f32 %v4417
  %vm4513 = vweird.f32 %v4506
  %vm4514 = vmor %vm4512, %vm4513
  %v4515 = vsel %vm4514, %v4506, %v4511
  %v4516 = vrsqrt.pop %v4418
  %v4517 = vmul.f32 %v4516, %v4418
  %v4518 = vmul.f32 %v4517, %v4516
  %v4519 = vmul.f32 0.5, %v4518
  %v4520 = vsub.f32 1.5, %v4519
  %v4521 = vmul.f32 %v4516, %v4520
  %vm4522 = vweird.f32 %v4418
  %vm4523 = vweird.f32 %v4516
  %vm4524 = vmor %vm4522, %vm4523
  %v4525 = vsel %vm4524, %v4516, %v4521
  %v4526 = vrsqrt.pop %v4419
  %v4527 = vmul.f32 %v4526, %v4419
  %v4528 = vmul.f32 %v4527, %v4526
  %v4529 = vmul.f32 0.5, %v4528
  %v4530 = vsub.f32 1.5, %v4529
  %v4531 = vmul.f32 %v4526, %v4530
  %vm4532 = vweird.f32 %v4419
  %vm4533 = vweird.f32 %v4526
  %vm4534 = vmor %vm4532, %vm4533
  %v4535 = vsel %vm4534, %v4526, %v4531
  %v4536 = vrsqrt.pop %v4420
  %v4537 = vmul.f32 %v4536, %v4420
  %v4538 = vmul.f32 %v4537, %v4536
  %v4539 = vmul.f32 0.5, %v4538
  %v4540 = vsub.f32 1.5, %v4539
  %v4541 = vmul.f32 %v4536, %v4540
  %vm4542 = vweird.f32 %v4420
  %vm4543 = vweird.f32 %v4536
  %vm4544 = vmor %vm4542, %vm4543
  %v4545 = vsel %vm4544, %v4536, %v4541
  %v4546 = vrsqrt.pop %v4421
  %v4547 = vmul.f32 %v4546, %v4421
  %v4548 = vmul.f32 %v4547, %v4546
  %v4549 = vmul.f32 0.5, %v4548
  %v4550 = vsub.f32 1.5, %v4549
  %v4551 = vmul.f32 %v4546, %v4550
  %vm4552 = vweird.f32 %v4421
  %vm4553 = vweird.f32 %v4546
  %vm4554 = vmor %vm4552, %vm4553
  %v4555 = vsel %vm4554, %v4546, %v4551
  %v4556 = vrsqrt.pop %v4422
  %v4557 = vmul.f32 %v4556, %v4422
  %v4558 = vmul.f32 %v4557, %v4556
  %v4559 = vmul.f32 0.5, %v4558
  %v4560 = vsub.f32 1.5, %v4559
  %v4561 = vmul.f32 %v4556, %v4560
  %vm4562 = vweird.f32 %v4422
  %vm4563 = vweird.f32 %v4556
  %vm4564 = vmor %vm4562, %vm4563
  %v4565 = vsel %vm4564, %v4556, %v4561
  %v4566 = vrsqrt.pop %v4423
  %v4567 = vmul.f32 %v4566, %v4423
  %v4568 = vmul.f32 %v4567, %v4566
  %v4569 = vmul.f32 0.5, %v4568
  %v4570 = vsub.f32 1.5, %v4569
  %v4571 = vmul.f32 %v4566, %v4570
  %vm4572 = vweird.f32 %v4423
  %vm4573 = vweird.f32 %v4566
  %vm4574 = vmor %vm4572, %vm4573
  %v4575 = vsel %vm4574, %v4566, %v4571
  %v4576 = vrsqrt.pop %v4424
  %v4577 = vmul.f32 %v4576, %v4424
  %v4578 = vmul.f32 %v4577, %v4576
  %v4579 = vmul.f32 0.5, %v4578
  %v4580 = vsub.f32 1.5, %v4579
  %v4581 = vmul.f32 %v4576, %v4580
  %vm4582 = vweird.f32 %v4424
  %vm4583 = vweird.f32 %v4576
  %vm4584 = vmor %vm4582, %vm4583
  %v4585 = vsel %vm4584, %v4576, %v4581
  %v4586 = vrsqrt.pop %v4425
  %v4587 = vmul.f32 %v4586, %v4425
  %v4588 = vmul.f32 %v4587, %v4586
  %v4589 = vmul.f32 0.5, %v4588
  %v4590 = vsub.f32 1.5, %v4589
  %v4591 = vmul.f32 %v4586, %v4590
  %vm4592 = vweird.f32 %v4425
  %vm4593 = vweird.f32 %v4586
  %vm4594 = vmor %vm4592, %vm4593
  %v4595 = vsel %vm4594, %v4586, %v4591
  %v4596 = vmul.f32 %v4307, %v4435
  %v4597 = vmul.f32 %v4308, %v4445
  %v4598 = vmul.f32 %v4309, %v4455
  %v4599 = vmul.f32 %v4310, %v4465
  %v4600 = vmul.f32 %v4311, %v4475
  %v4601 = vmul.f32 %v4312, %v4485
  %v4602 = vmul.f32 %v4313, %v4495
  %v4603 = vmul.f32 %v4314, %v4505
  %v4604 = vmul.f32 %v4315, %v4515
  %v4605 = vmul.f32 %v4316, %v4525
  %v4606 = vmul.f32 %v4317, %v4535
  %v4607 = vmul.f32 %v4318, %v4545
  %v4608 = vmul.f32 %v4319, %v4555
  %v4609 = vmul.f32 %v4320, %v4565
  %v4610 = vmul.f32 %v4321, %v4575
  %v4611 = vmul.f32 %v4322, %v4585
  %v4612 = vmul.f32 %v4323, %v4595
  %v4614 = vperm.slane %v4237, 0
  %v4616 = vmul.f32 %v4596, %v4614
  %v4617 = vmul.f32 %v4597, %v4614
  %v4618 = vmul.f32 %v4598, %v4614
  %v4619 = vmul.f32 %v4599, %v4614
  %v4620 = vmul.f32 %v4600, %v4614
  %v4621 = vmul.f32 %v4601, %v4614
  %v4622 = vmul.f32 %v4602, %v4614
  %v4623 = vmul.f32 %v4603, %v4614
  %v4624 = vmul.f32 %v4604, %v4614
  %v4625 = vmul.f32 %v4605, %v4614
  %v4626 = vmul.f32 %v4606, %v4614
  %v4627 = vmul.f32 %v4607, %v4614
  %v4628 = vmul.f32 %v4608, %v4614
  %v4629 = vmul.f32 %v4609, %v4614
  %v4630 = vmul.f32 %v4610, %v4614
  %v4631 = vmul.f32 %v4611, %v4614
  %v4632 = vmul.f32 %v4612, %v4614
  %v4634 = vperm.slane %v4238, 0
  %v4636 = vadd.f32 %v4616, %v4634
  %v4637 = vadd.f32 %v4617, %v4634
  %v4638 = vadd.f32 %v4618, %v4634
  %v4639 = vadd.f32 %v4619, %v4634
  %v4640 = vadd.f32 %v4620, %v4634
  %v4641 = vadd.f32 %v4621, %v4634
  %v4642 = vadd.f32 %v4622, %v4634
  %v4643 = vadd.f32 %v4623, %v4634
  %v4644 = vadd.f32 %v4624, %v4634
  %v4645 = vadd.f32 %v4625, %v4634
  %v4646 = vadd.f32 %v4626, %v4634
  %v4647 = vadd.f32 %v4627, %v4634
  %v4648 = vadd.f32 %v4628, %v4634
  %v4649 = vadd.f32 %v4629, %v4634
  %v4650 = vadd.f32 %v4630, %v4634
  %v4651 = vadd.f32 %v4631, %v4634
  %v4652 = vadd.f32 %v4632, %v4634
  %v4653 = vpack.c.bf16 %v4637, %v4636
  %v4654 = vpack.c.bf16 %v4639, %v4638
  %v4655 = vpack.c.bf16 %v4641, %v4640
  %v4656 = vpack.c.bf16 %v4643, %v4642
  %v4657 = vpack.c.bf16 %v4645, %v4644
  %v4658 = vpack.c.bf16 %v4647, %v4646
  %v4659 = vpack.c.bf16 %v4649, %v4648
  %v4660 = vpack.c.bf16 %v4651, %v4650
  %v4661 = vpack.c.bf16 %v4652, %v4652
  %v4662 = vld [vmem:[%s13] sm:$0xff]
  %v4663 = vld [vmem:[%s13 + $0x8] sm:$0xff]
  %v4664 = vld [vmem:[%s13 + $0x10] sm:$0xff]
  %v4665 = vld [vmem:[%s13 + $0x18] sm:$0xff]
  %v4666 = vld [vmem:[%s13 + $0x20] sm:$0xff]
  %v4667 = vld [vmem:[%s13 + $0x28] sm:$0xff]
  %v4668 = vld [vmem:[%s13 + $0x30] sm:$0xff]
  %v4669 = vld [vmem:[%s13 + $0x38] sm:$0xff]
  %v4670 = vld [vmem:[%s14] sm:$0x3]
  %v4672 = vperm.slane %v4670, 0
  %v4673 = vperm.slane %v4670, 1
  %v4684 = vunpack.c.l.b16 %v4662
  %v4685 = vunpack.c.h.b16 %v4662
  %v4686 = vunpack.c.l.b16 %v4663
  %v4687 = vunpack.c.h.b16 %v4663
  %v4688 = vunpack.c.l.b16 %v4664
  %v4689 = vunpack.c.h.b16 %v4664
  %v4690 = vunpack.c.l.b16 %v4665
  %v4691 = vunpack.c.h.b16 %v4665
  %v4692 = vunpack.c.l.b16 %v4666
  %v4693 = vunpack.c.h.b16 %v4666
  %v4694 = vunpack.c.l.b16 %v4667
  %v4695 = vunpack.c.h.b16 %v4667
  %v4696 = vunpack.c.l.b16 %v4668
  %v4697 = vunpack.c.h.b16 %v4668
  %v4698 = vunpack.c.l.b16 %v4669
  %v4699 = vunpack.c.h.b16 %v4669
  %v4700 = vpack.c.b16 %v4686, %v4684
  %v4701 = vpack.c.b16 %v4687, %v4685
  %v4702 = vpack.c.b16 %v4690, %v4688
  %v4703 = vpack.c.b16 %v4691, %v4689
  %v4704 = vpack.c.b16 %v4694, %v4692
  %v4705 = vpack.c.b16 %v4695, %v4693
  %v4706 = vpack.c.b16 %v4698, %v4696
  %v4707 = vpack.c.b16 %v4699, %v4697
  %v4717 = vsel %vm277, %v4653, 0
  %v4720 = vsel %vm277, %v4654, 0
  %v4723 = vsel %vm277, %v4655, 0
  %v4726 = vsel %vm277, %v4656, 0
  %v4729 = vsel %vm277, %v4657, 0
  %v4732 = vsel %vm277, %v4658, 0
  %v4735 = vsel %vm277, %v4659, 0
  %v4738 = vsel %vm277, %v4660, 0
  %v4741 = vsel %vm277, %v4661, 0
  %4743 = vmatpush.bf16.msra.mxu0 0
  %4744 = vmatpush.bf16.msra.mxu0 0
  %4745 = vmatpush.bf16.msra.mxu0 0
  %4746 = vmatpush.bf16.msra.mxu0 0
  %4747 = vmatpush.bf16.msra.mxu0 %v4706
  %4748 = vmatpush.bf16.msra.mxu0 %v4704
  %4749 = vmatpush.bf16.msra.mxu0 %v4702
  %4750 = vmatpush.bf16.msra.mxu0 %v4700
  %4751 = vmatmul.bf16.gmra.mxu0 %v4717
  %v4752 = vpop.f32.mrf.mxu0
  %v4753 = vadd.f32 %v4672, %v4752
  %v4754 = vpop.f32.mrf.mxu0
  %v4755 = vadd.f32 %v4672, %v4754
  %4756 = vmatmul.bf16.gmra.mxu0 %v4720
  %v4757 = vpop.f32.mrf.mxu0
  %v4758 = vadd.f32 %v4672, %v4757
  %v4759 = vpop.f32.mrf.mxu0
  %v4760 = vadd.f32 %v4672, %v4759
  %4761 = vmatmul.bf16.gmra.mxu0 %v4723
  %v4762 = vpop.f32.mrf.mxu0
  %v4763 = vadd.f32 %v4672, %v4762
  %v4764 = vpop.f32.mrf.mxu0
  %v4765 = vadd.f32 %v4672, %v4764
  %4766 = vmatmul.bf16.gmra.mxu0 %v4726
  %v4767 = vpop.f32.mrf.mxu0
  %v4768 = vadd.f32 %v4672, %v4767
  %v4769 = vpop.f32.mrf.mxu0
  %v4770 = vadd.f32 %v4672, %v4769
  %4771 = vmatmul.bf16.gmra.mxu0 %v4729
  %v4772 = vpop.f32.mrf.mxu0
  %v4773 = vadd.f32 %v4672, %v4772
  %v4774 = vpop.f32.mrf.mxu0
  %v4775 = vadd.f32 %v4672, %v4774
  %4776 = vmatmul.bf16.gmra.mxu0 %v4732
  %v4777 = vpop.f32.mrf.mxu0
  %v4778 = vadd.f32 %v4672, %v4777
  %v4779 = vpop.f32.mrf.mxu0
  %v4780 = vadd.f32 %v4672, %v4779
  %4781 = vmatmul.bf16.gmra.mxu0 %v4735
  %v4782 = vpop.f32.mrf.mxu0
  %v4783 = vadd.f32 %v4672, %v4782
  %v4784 = vpop.f32.mrf.mxu0
  %v4785 = vadd.f32 %v4672, %v4784
  %4786 = vmatmul.bf16.gmra.mxu0 %v4738
  %v4787 = vpop.f32.mrf.mxu0
  %v4788 = vadd.f32 %v4672, %v4787
  %v4789 = vpop.f32.mrf.mxu0
  %v4790 = vadd.f32 %v4672, %v4789
  %4791 = vmatmul.bf16.gmra.mxu0 %v4741
  %v4792 = vpop.f32.mrf.mxu0
  %v4793 = vadd.f32 %v4672, %v4792
  %v4794 = vpop.f32.mrf.mxu0
  %4795 = vdwg.mxu0
  %4796 = vmatpush.bf16.msra.mxu0 0
  %4797 = vmatpush.bf16.msra.mxu0 0
  %4798 = vmatpush.bf16.msra.mxu0 0
  %4799 = vmatpush.bf16.msra.mxu0 0
  %4800 = vmatpush.bf16.msra.mxu0 %v4707
  %4801 = vmatpush.bf16.msra.mxu0 %v4705
  %4802 = vmatpush.bf16.msra.mxu0 %v4703
  %4803 = vmatpush.bf16.msra.mxu0 %v4701
  %4804 = vmatmul.bf16.gmra.mxu0 %v4717
  %v4805 = vpop.f32.mrf.mxu0
  %v4806 = vadd.f32 %v4673, %v4805
  %v4807 = vpop.f32.mrf.mxu0
  %v4808 = vadd.f32 %v4673, %v4807
  %4809 = vmatmul.bf16.gmra.mxu0 %v4720
  %v4810 = vpop.f32.mrf.mxu0
  %v4811 = vadd.f32 %v4673, %v4810
  %v4812 = vpop.f32.mrf.mxu0
  %v4813 = vadd.f32 %v4673, %v4812
  %4814 = vmatmul.bf16.gmra.mxu0 %v4723
  %v4815 = vpop.f32.mrf.mxu0
  %v4816 = vadd.f32 %v4673, %v4815
  %v4817 = vpop.f32.mrf.mxu0
  %v4818 = vadd.f32 %v4673, %v4817
  %4819 = vmatmul.bf16.gmra.mxu0 %v4726
  %v4820 = vpop.f32.mrf.mxu0
  %v4821 = vadd.f32 %v4673, %v4820
  %v4822 = vpop.f32.mrf.mxu0
  %v4823 = vadd.f32 %v4673, %v4822
  %4824 = vmatmul.bf16.gmra.mxu0 %v4729
  %v4825 = vpop.f32.mrf.mxu0
  %v4826 = vadd.f32 %v4673, %v4825
  %v4827 = vpop.f32.mrf.mxu0
  %v4828 = vadd.f32 %v4673, %v4827
  %4829 = vmatmul.bf16.gmra.mxu0 %v4732
  %v4830 = vpop.f32.mrf.mxu0
  %v4831 = vadd.f32 %v4673, %v4830
  %v4832 = vpop.f32.mrf.mxu0
  %v4833 = vadd.f32 %v4673, %v4832
  %4834 = vmatmul.bf16.gmra.mxu0 %v4735
  %v4835 = vpop.f32.mrf.mxu0
  %v4836 = vadd.f32 %v4673, %v4835
  %v4837 = vpop.f32.mrf.mxu0
  %v4838 = vadd.f32 %v4673, %v4837
  %4839 = vmatmul.bf16.gmra.mxu0 %v4738
  %v4840 = vpop.f32.mrf.mxu0
  %v4841 = vadd.f32 %v4673, %v4840
  %v4842 = vpop.f32.mrf.mxu0
  %v4843 = vadd.f32 %v4673, %v4842
  %4844 = vmatmul.bf16.gmra.mxu0 %v4741
  %v4845 = vpop.f32.mrf.mxu0
  %v4846 = vadd.f32 %v4673, %v4845
  %v4847 = vpop.f32.mrf.mxu0
  %4848 = vdwg.mxu0
  %v4849 = vmul.f32 %v4753, %v4753
  %v4850 = vmul.f32 %v4806, %v4806
  %v4851 = vmul.f32 %v4755, %v4755
  %v4852 = vmul.f32 %v4808, %v4808
  %v4853 = vmul.f32 %v4758, %v4758
  %v4854 = vmul.f32 %v4811, %v4811
  %v4855 = vmul.f32 %v4760, %v4760
  %v4856 = vmul.f32 %v4813, %v4813
  %v4857 = vmul.f32 %v4763, %v4763
  %v4858 = vmul.f32 %v4816, %v4816
  %v4859 = vmul.f32 %v4765, %v4765
  %v4860 = vmul.f32 %v4818, %v4818
  %v4861 = vmul.f32 %v4768, %v4768
  %v4862 = vmul.f32 %v4821, %v4821
  %v4863 = vmul.f32 %v4770, %v4770
  %v4864 = vmul.f32 %v4823, %v4823
  %v4865 = vmul.f32 %v4773, %v4773
  %v4866 = vmul.f32 %v4826, %v4826
  %v4867 = vmul.f32 %v4775, %v4775
  %v4868 = vmul.f32 %v4828, %v4828
  %v4869 = vmul.f32 %v4778, %v4778
  %v4870 = vmul.f32 %v4831, %v4831
  %v4871 = vmul.f32 %v4780, %v4780
  %v4872 = vmul.f32 %v4833, %v4833
  %v4873 = vmul.f32 %v4783, %v4783
  %v4874 = vmul.f32 %v4836, %v4836
  %v4875 = vmul.f32 %v4785, %v4785
  %v4876 = vmul.f32 %v4838, %v4838
  %v4877 = vmul.f32 %v4788, %v4788
  %v4878 = vmul.f32 %v4841, %v4841
  %v4879 = vmul.f32 %v4790, %v4790
  %v4880 = vmul.f32 %v4843, %v4843
  %v4881 = vmul.f32 %v4793, %v4793
  %v4882 = vmul.f32 %v4846, %v4846
  %v4883 = vmul.f32 %v4753, %v4849
  %v4884 = vmul.f32 %v4806, %v4850
  %v4885 = vmul.f32 %v4755, %v4851
  %v4886 = vmul.f32 %v4808, %v4852
  %v4887 = vmul.f32 %v4758, %v4853
  %v4888 = vmul.f32 %v4811, %v4854
  %v4889 = vmul.f32 %v4760, %v4855
  %v4890 = vmul.f32 %v4813, %v4856
  %v4891 = vmul.f32 %v4763, %v4857
  %v4892 = vmul.f32 %v4816, %v4858
  %v4893 = vmul.f32 %v4765, %v4859
  %v4894 = vmul.f32 %v4818, %v4860
  %v4895 = vmul.f32 %v4768, %v4861
  %v4896 = vmul.f32 %v4821, %v4862
  %v4897 = vmul.f32 %v4770, %v4863
  %v4898 = vmul.f32 %v4823, %v4864
  %v4899 = vmul.f32 %v4773, %v4865
  %v4900 = vmul.f32 %v4826, %v4866
  %v4901 = vmul.f32 %v4775, %v4867
  %v4902 = vmul.f32 %v4828, %v4868
  %v4903 = vmul.f32 %v4778, %v4869
  %v4904 = vmul.f32 %v4831, %v4870
  %v4905 = vmul.f32 %v4780, %v4871
  %v4906 = vmul.f32 %v4833, %v4872
  %v4907 = vmul.f32 %v4783, %v4873
  %v4908 = vmul.f32 %v4836, %v4874
  %v4909 = vmul.f32 %v4785, %v4875
  %v4910 = vmul.f32 %v4838, %v4876
  %v4911 = vmul.f32 %v4788, %v4877
  %v4912 = vmul.f32 %v4841, %v4878
  %v4913 = vmul.f32 %v4790, %v4879
  %v4914 = vmul.f32 %v4843, %v4880
  %v4915 = vmul.f32 %v4793, %v4881
  %v4916 = vmul.f32 %v4846, %v4882
  %v4917 = vmul.f32 %v4883, 0.044715
  %v4918 = vmul.f32 %v4884, 0.044715
  %v4919 = vmul.f32 %v4885, 0.044715
  %v4920 = vmul.f32 %v4886, 0.044715
  %v4921 = vmul.f32 %v4887, 0.044715
  %v4922 = vmul.f32 %v4888, 0.044715
  %v4923 = vmul.f32 %v4889, 0.044715
  %v4924 = vmul.f32 %v4890, 0.044715
  %v4925 = vmul.f32 %v4891, 0.044715
  %v4926 = vmul.f32 %v4892, 0.044715
  %v4927 = vmul.f32 %v4893, 0.044715
  %v4928 = vmul.f32 %v4894, 0.044715
  %v4929 = vmul.f32 %v4895, 0.044715
  %v4930 = vmul.f32 %v4896, 0.044715
  %v4931 = vmul.f32 %v4897, 0.044715
  %v4932 = vmul.f32 %v4898, 0.044715
  %v4933 = vmul.f32 %v4899, 0.044715
  %v4934 = vmul.f32 %v4900, 0.044715
  %v4935 = vmul.f32 %v4901, 0.044715
  %v4936 = vmul.f32 %v4902, 0.044715
  %v4937 = vmul.f32 %v4903, 0.044715
  %v4938 = vmul.f32 %v4904, 0.044715
  %v4939 = vmul.f32 %v4905, 0.044715
  %v4940 = vmul.f32 %v4906, 0.044715
  %v4941 = vmul.f32 %v4907, 0.044715
  %v4942 = vmul.f32 %v4908, 0.044715
  %v4943 = vmul.f32 %v4909, 0.044715
  %v4944 = vmul.f32 %v4910, 0.044715
  %v4945 = vmul.f32 %v4911, 0.044715
  %v4946 = vmul.f32 %v4912, 0.044715
  %v4947 = vmul.f32 %v4913, 0.044715
  %v4948 = vmul.f32 %v4914, 0.044715
  %v4949 = vmul.f32 %v4915, 0.044715
  %v4950 = vmul.f32 %v4916, 0.044715
  %v4951 = vadd.f32 %v4753, %v4917
  %v4952 = vadd.f32 %v4806, %v4918
  %v4953 = vadd.f32 %v4755, %v4919
  %v4954 = vadd.f32 %v4808, %v4920
  %v4955 = vadd.f32 %v4758, %v4921
  %v4956 = vadd.f32 %v4811, %v4922
  %v4957 = vadd.f32 %v4760, %v4923
  %v4958 = vadd.f32 %v4813, %v4924
  %v4959 = vadd.f32 %v4763, %v4925
  %v4960 = vadd.f32 %v4816, %v4926
  %v4961 = vadd.f32 %v4765, %v4927
  %v4962 = vadd.f32 %v4818, %v4928
  %v4963 = vadd.f32 %v4768, %v4929
  %v4964 = vadd.f32 %v4821, %v4930
  %v4965 = vadd.f32 %v4770, %v4931
  %v4966 = vadd.f32 %v4823, %v4932
  %v4967 = vadd.f32 %v4773, %v4933
  %v4968 = vadd.f32 %v4826, %v4934
  %v4969 = vadd.f32 %v4775, %v4935
  %v4970 = vadd.f32 %v4828, %v4936
  %v4971 = vadd.f32 %v4778, %v4937
  %v4972 = vadd.f32 %v4831, %v4938
  %v4973 = vadd.f32 %v4780, %v4939
  %v4974 = vadd.f32 %v4833, %v4940
  %v4975 = vadd.f32 %v4783, %v4941
  %v4976 = vadd.f32 %v4836, %v4942
  %v4977 = vadd.f32 %v4785, %v4943
  %v4978 = vadd.f32 %v4838, %v4944
  %v4979 = vadd.f32 %v4788, %v4945
  %v4980 = vadd.f32 %v4841, %v4946
  %v4981 = vadd.f32 %v4790, %v4947
  %v4982 = vadd.f32 %v4843, %v4948
  %v4983 = vadd.f32 %v4793, %v4949
  %v4984 = vadd.f32 %v4846, %v4950
  %v4985 = vmul.f32 %v4951, 0.7978846
  %v4986 = vmul.f32 %v4952, 0.7978846
  %v4987 = vmul.f32 %v4953, 0.7978846
  %v4988 = vmul.f32 %v4954, 0.7978846
  %v4989 = vmul.f32 %v4955, 0.7978846
  %v4990 = vmul.f32 %v4956, 0.7978846
  %v4991 = vmul.f32 %v4957, 0.7978846
  %v4992 = vmul.f32 %v4958, 0.7978846
  %v4993 = vmul.f32 %v4959, 0.7978846
  %v4994 = vmul.f32 %v4960, 0.7978846
  %v4995 = vmul.f32 %v4961, 0.7978846
  %v4996 = vmul.f32 %v4962, 0.7978846
  %v4997 = vmul.f32 %v4963, 0.7978846
  %v4998 = vmul.f32 %v4964, 0.7978846
  %v4999 = vmul.f32 %v4965, 0.7978846
  %v5000 = vmul.f32 %v4966, 0.7978846
  %v5001 = vmul.f32 %v4967, 0.7978846
  %v5002 = vmul.f32 %v4968, 0.7978846
  %v5003 = vmul.f32 %v4969, 0.7978846
  %v5004 = vmul.f32 %v4970, 0.7978846
  %v5005 = vmul.f32 %v4971, 0.7978846
  %v5006 = vmul.f32 %v4972, 0.7978846
  %v5007 = vmul.f32 %v4973, 0.7978846
  %v5008 = vmul.f32 %v4974, 0.7978846
  %v5009 = vmul.f32 %v4975, 0.7978846
  %v5010 = vmul.f32 %v4976, 0.7978846
  %v5011 = vmul.f32 %v4977, 0.7978846
  %v5012 = vmul.f32 %v4978, 0.7978846
  %v5013 = vmul.f32 %v4979, 0.7978846
  %v5014 = vmul.f32 %v4980, 0.7978846
  %v5015 = vmul.f32 %v4981, 0.7978846
  %v5016 = vmul.f32 %v4982, 0.7978846
  %v5017 = vmul.f32 %v4983, 0.7978846
  %v5018 = vmul.f32 %v4984, 0.7978846
  %v5019 = vtanh.pop %v4985
  %v5020 = vtanh.pop %v4986
  %v5021 = vtanh.pop %v4987
  %v5022 = vtanh.pop %v4988
  %v5023 = vtanh.pop %v4989
  %v5024 = vtanh.pop %v4990
  %v5025 = vtanh.pop %v4991
  %v5026 = vtanh.pop %v4992
  %v5027 = vtanh.pop %v4993
  %v5028 = vtanh.pop %v4994
  %v5029 = vtanh.pop %v4995
  %v5030 = vtanh.pop %v4996
  %v5031 = vtanh.pop %v4997
  %v5032 = vtanh.pop %v4998
  %v5033 = vtanh.pop %v4999
  %v5034 = vtanh.pop %v5000
  %v5035 = vtanh.pop %v5001
  %v5036 = vtanh.pop %v5002
  %v5037 = vtanh.pop %v5003
  %v5038 = vtanh.pop %v5004
  %v5039 = vtanh.pop %v5005
  %v5040 = vtanh.pop %v5006
  %v5041 = vtanh.pop %v5007
  %v5042 = vtanh.pop %v5008
  %v5043 = vtanh.pop %v5009
  %v5044 = vtanh.pop %v5010
  %v5045 = vtanh.pop %v5011
  %v5046 = vtanh.pop %v5012
  %v5047 = vtanh.pop %v5013
  %v5048 = vtanh.pop %v5014
  %v5049 = vtanh.pop %v5015
  %v5050 = vtanh.pop %v5016
  %v5051 = vtanh.pop %v5017
  %v5052 = vtanh.pop %v5018
  %v5053 = vadd.f32 %v5019, 1.0
  %v5054 = vadd.f32 %v5020, 1.0
  %v5055 = vadd.f32 %v5021, 1.0
  %v5056 = vadd.f32 %v5022, 1.0
  %v5057 = vadd.f32 %v5023, 1.0
  %v5058 = vadd.f32 %v5024, 1.0
  %v5059 = vadd.f32 %v5025, 1.0
  %v5060 = vadd.f32 %v5026, 1.0
  %v5061 = vadd.f32 %v5027, 1.0
  %v5062 = vadd.f32 %v5028, 1.0
  %v5063 = vadd.f32 %v5029, 1.0
  %v5064 = vadd.f32 %v5030, 1.0
  %v5065 = vadd.f32 %v5031, 1.0
  %v5066 = vadd.f32 %v5032, 1.0
  %v5067 = vadd.f32 %v5033, 1.0
  %v5068 = vadd.f32 %v5034, 1.0
  %v5069 = vadd.f32 %v5035, 1.0
  %v5070 = vadd.f32 %v5036, 1.0
  %v5071 = vadd.f32 %v5037, 1.0
  %v5072 = vadd.f32 %v5038, 1.0
  %v5073 = vadd.f32 %v5039, 1.0
  %v5074 = vadd.f32 %v5040, 1.0
  %v5075 = vadd.f32 %v5041, 1.0
  %v5076 = vadd.f32 %v5042, 1.0
  %v5077 = vadd.f32 %v5043, 1.0
  %v5078 = vadd.f32 %v5044, 1.0
  %v5079 = vadd.f32 %v5045, 1.0
  %v5080 = vadd.f32 %v5046, 1.0
  %v5081 = vadd.f32 %v5047, 1.0
  %v5082 = vadd.f32 %v5048, 1.0
  %v5083 = vadd.f32 %v5049, 1.0
  %v5084 = vadd.f32 %v5050, 1.0
  %v5085 = vadd.f32 %v5051, 1.0
  %v5086 = vadd.f32 %v5052, 1.0
  %v5087 = vmul.f32 %v5053, 0.5
  %v5088 = vmul.f32 %v5054, 0.5
  %v5089 = vmul.f32 %v5055, 0.5
  %v5090 = vmul.f32 %v5056, 0.5
  %v5091 = vmul.f32 %v5057, 0.5
  %v5092 = vmul.f32 %v5058, 0.5
  %v5093 = vmul.f32 %v5059, 0.5
  %v5094 = vmul.f32 %v5060, 0.5
  %v5095 = vmul.f32 %v5061, 0.5
  %v5096 = vmul.f32 %v5062, 0.5
  %v5097 = vmul.f32 %v5063, 0.5
  %v5098 = vmul.f32 %v5064, 0.5
  %v5099 = vmul.f32 %v5065, 0.5
  %v5100 = vmul.f32 %v5066, 0.5
  %v5101 = vmul.f32 %v5067, 0.5
  %v5102 = vmul.f32 %v5068, 0.5
  %v5103 = vmul.f32 %v5069, 0.5
  %v5104 = vmul.f32 %v5070, 0.5
  %v5105 = vmul.f32 %v5071, 0.5
  %v5106 = vmul.f32 %v5072, 0.5
  %v5107 = vmul.f32 %v5073, 0.5
  %v5108 = vmul.f32 %v5074, 0.5
  %v5109 = vmul.f32 %v5075, 0.5
  %v5110 = vmul.f32 %v5076, 0.5
  %v5111 = vmul.f32 %v5077, 0.5
  %v5112 = vmul.f32 %v5078, 0.5
  %v5113 = vmul.f32 %v5079, 0.5
  %v5114 = vmul.f32 %v5080, 0.5
  %v5115 = vmul.f32 %v5081, 0.5
  %v5116 = vmul.f32 %v5082, 0.5
  %v5117 = vmul.f32 %v5083, 0.5
  %v5118 = vmul.f32 %v5084, 0.5
  %v5119 = vmul.f32 %v5085, 0.5
  %v5120 = vmul.f32 %v5086, 0.5
  %v5121 = vmul.f32 %v4753, %v5087
  %v5122 = vmul.f32 %v4806, %v5088
  %v5123 = vmul.f32 %v4755, %v5089
  %v5124 = vmul.f32 %v4808, %v5090
  %v5125 = vmul.f32 %v4758, %v5091
  %v5126 = vmul.f32 %v4811, %v5092
  %v5127 = vmul.f32 %v4760, %v5093
  %v5128 = vmul.f32 %v4813, %v5094
  %v5129 = vmul.f32 %v4763, %v5095
  %v5130 = vmul.f32 %v4816, %v5096
  %v5131 = vmul.f32 %v4765, %v5097
  %v5132 = vmul.f32 %v4818, %v5098
  %v5133 = vmul.f32 %v4768, %v5099
  %v5134 = vmul.f32 %v4821, %v5100
  %v5135 = vmul.f32 %v4770, %v5101
  %v5136 = vmul.f32 %v4823, %v5102
  %v5137 = vmul.f32 %v4773, %v5103
  %v5138 = vmul.f32 %v4826, %v5104
  %v5139 = vmul.f32 %v4775, %v5105
  %v5140 = vmul.f32 %v4828, %v5106
  %v5141 = vmul.f32 %v4778, %v5107
  %v5142 = vmul.f32 %v4831, %v5108
  %v5143 = vmul.f32 %v4780, %v5109
  %v5144 = vmul.f32 %v4833, %v5110
  %v5145 = vmul.f32 %v4783, %v5111
  %v5146 = vmul.f32 %v4836, %v5112
  %v5147 = vmul.f32 %v4785, %v5113
  %v5148 = vmul.f32 %v4838, %v5114
  %v5149 = vmul.f32 %v4788, %v5115
  %v5150 = vmul.f32 %v4841, %v5116
  %v5151 = vmul.f32 %v4790, %v5117
  %v5152 = vmul.f32 %v4843, %v5118
  %v5153 = vmul.f32 %v4793, %v5119
  %v5154 = vmul.f32 %v4846, %v5120
  %v5155 = vpack.c.bf16 %v5123, %v5121
  %v5156 = vpack.c.bf16 %v5124, %v5122
  %v5157 = vpack.c.bf16 %v5127, %v5125
  %v5158 = vpack.c.bf16 %v5128, %v5126
  %v5159 = vpack.c.bf16 %v5131, %v5129
  %v5160 = vpack.c.bf16 %v5132, %v5130
  %v5161 = vpack.c.bf16 %v5135, %v5133
  %v5162 = vpack.c.bf16 %v5136, %v5134
  %v5163 = vpack.c.bf16 %v5139, %v5137
  %v5164 = vpack.c.bf16 %v5140, %v5138
  %v5165 = vpack.c.bf16 %v5143, %v5141
  %v5166 = vpack.c.bf16 %v5144, %v5142
  %v5167 = vpack.c.bf16 %v5147, %v5145
  %v5168 = vpack.c.bf16 %v5148, %v5146
  %v5169 = vpack.c.bf16 %v5151, %v5149
  %v5170 = vpack.c.bf16 %v5152, %v5150
  %v5171 = vpack.c.bf16 %v5153, %v5153
  %v5172 = vpack.c.bf16 %v5154, %v5154
  %v5173 = vld [vmem:[%s15] sm:$0xf]
  %v5174 = vld [vmem:[%s15 + $0x4] sm:$0xf]
  %v5175 = vld [vmem:[%s15 + $0x8] sm:$0xf]
  %v5176 = vld [vmem:[%s15 + $0xc] sm:$0xf]
  %v5177 = vld [vmem:[%s15 + $0x10] sm:$0xf]
  %v5178 = vld [vmem:[%s15 + $0x14] sm:$0xf]
  %v5179 = vld [vmem:[%s15 + $0x18] sm:$0xf]
  %v5180 = vld [vmem:[%s15 + $0x1c] sm:$0xf]
  %v5181 = vld [vmem:[%s15 + $0x20] sm:$0xf]
  %v5182 = vld [vmem:[%s15 + $0x24] sm:$0xf]
  %v5183 = vld [vmem:[%s15 + $0x28] sm:$0xf]
  %v5184 = vld [vmem:[%s15 + $0x2c] sm:$0xf]
  %v5185 = vld [vmem:[%s15 + $0x30] sm:$0xf]
  %v5186 = vld [vmem:[%s15 + $0x34] sm:$0xf]
  %v5187 = vld [vmem:[%s15 + $0x38] sm:$0xf]
  %v5188 = vld [vmem:[%s15 + $0x3c] sm:$0xf]
  %v5189 = vld [vmem:[%s15 + $0x40] sm:$0xf]
  %v5190 = vld [vmem:[%s15 + $0x44] sm:$0xf]
  %v5191 = vld [vmem:[%s15 + $0x48] sm:$0xf]
  %v5192 = vld [vmem:[%s15 + $0x4c] sm:$0xf]
  %v5193 = vld [vmem:[%s15 + $0x50] sm:$0xf]
  %v5194 = vld [vmem:[%s15 + $0x54] sm:$0xf]
  %v5195 = vld [vmem:[%s15 + $0x58] sm:$0xf]
  %v5196 = vld [vmem:[%s15 + $0x5c] sm:$0xf]
  %v5197 = vld [vmem:[%s15 + $0x60] sm:$0xf]
  %v5198 = vld [vmem:[%s15 + $0x64] sm:$0xf]
  %v5199 = vld [vmem:[%s15 + $0x68] sm:$0xf]
  %v5200 = vld [vmem:[%s15 + $0x6c] sm:$0xf]
  %v5201 = vld [vmem:[%s15 + $0x70] sm:$0xf]
  %v5202 = vld [vmem:[%s15 + $0x74] sm:$0xf]
  %v5203 = vld [vmem:[%s15 + $0x78] sm:$0xf]
  %v5204 = vld [vmem:[%s15 + $0x7c] sm:$0xf]
  %v5205 = vld [vmem:[%s16] sm:$0x1]
  %v5207 = vperm.slane %v5205, 0
  %v5241 = vunpack.c.l.b16 %v5173
  %v5242 = vunpack.c.l.b16 %v5174
  %v5243 = vunpack.c.l.b16 %v5175
  %v5244 = vunpack.c.l.b16 %v5176
  %v5245 = vunpack.c.l.b16 %v5177
  %v5246 = vunpack.c.l.b16 %v5178
  %v5247 = vunpack.c.l.b16 %v5179
  %v5248 = vunpack.c.l.b16 %v5180
  %v5249 = vunpack.c.l.b16 %v5181
  %v5250 = vunpack.c.l.b16 %v5182
  %v5251 = vunpack.c.l.b16 %v5183
  %v5252 = vunpack.c.l.b16 %v5184
  %v5253 = vunpack.c.l.b16 %v5185
  %v5254 = vunpack.c.l.b16 %v5186
  %v5255 = vunpack.c.l.b16 %v5187
  %v5256 = vunpack.c.l.b16 %v5188
  %v5257 = vunpack.c.l.b16 %v5189
  %v5258 = vunpack.c.l.b16 %v5190
  %v5259 = vunpack.c.l.b16 %v5191
  %v5260 = vunpack.c.l.b16 %v5192
  %v5261 = vunpack.c.l.b16 %v5193
  %v5262 = vunpack.c.l.b16 %v5194
  %v5263 = vunpack.c.l.b16 %v5195
  %v5264 = vunpack.c.l.b16 %v5196
  %v5265 = vunpack.c.l.b16 %v5197
  %v5266 = vunpack.c.l.b16 %v5198
  %v5267 = vunpack.c.l.b16 %v5199
  %v5268 = vunpack.c.l.b16 %v5200
  %v5269 = vunpack.c.l.b16 %v5201
  %v5270 = vunpack.c.l.b16 %v5202
  %v5271 = vunpack.c.l.b16 %v5203
  %v5272 = vunpack.c.l.b16 %v5204
  %v5273 = vpack.c.b16 %v5242, %v5241
  %v5274 = vpack.c.b16 %v5244, %v5243
  %v5275 = vpack.c.b16 %v5246, %v5245
  %v5276 = vpack.c.b16 %v5248, %v5247
  %v5277 = vpack.c.b16 %v5250, %v5249
  %v5278 = vpack.c.b16 %v5252, %v5251
  %v5279 = vpack.c.b16 %v5254, %v5253
  %v5280 = vpack.c.b16 %v5256, %v5255
  %v5281 = vpack.c.b16 %v5258, %v5257
  %v5282 = vpack.c.b16 %v5260, %v5259
  %v5283 = vpack.c.b16 %v5262, %v5261
  %v5284 = vpack.c.b16 %v5264, %v5263
  %v5285 = vpack.c.b16 %v5266, %v5265
  %v5286 = vpack.c.b16 %v5268, %v5267
  %v5287 = vpack.c.b16 %v5270, %v5269
  %v5288 = vpack.c.b16 %v5272, %v5271
  %5305 = vmatpush.bf16.msra.mxu0 %v5280
  %5306 = vmatpush.bf16.msra.mxu0 %v5279
  %5307 = vmatpush.bf16.msra.mxu0 %v5278
  %5308 = vmatpush.bf16.msra.mxu0 %v5277
  %5309 = vmatpush.bf16.msra.mxu0 %v5276
  %5310 = vmatpush.bf16.msra.mxu0 %v5275
  %5311 = vmatpush.bf16.msra.mxu0 %v5274
  %5312 = vmatpush.bf16.msra.mxu0 %v5273
  %5313 = vmatmul.bf16.gmra.mxu0 %v5155
  %v5314 = vpop.f32.mrf.mxu0
  %v5315 = vadd.f32 %v5207, %v5314
  %v5316 = vpop.f32.mrf.mxu0
  %v5317 = vadd.f32 %v5207, %v5316
  %5318 = vmatmul.bf16.gmra.mxu0 %v5157
  %v5319 = vpop.f32.mrf.mxu0
  %v5320 = vadd.f32 %v5207, %v5319
  %v5321 = vpop.f32.mrf.mxu0
  %v5322 = vadd.f32 %v5207, %v5321
  %5323 = vmatmul.bf16.gmra.mxu0 %v5159
  %v5324 = vpop.f32.mrf.mxu0
  %v5325 = vadd.f32 %v5207, %v5324
  %v5326 = vpop.f32.mrf.mxu0
  %v5327 = vadd.f32 %v5207, %v5326
  %5328 = vmatmul.bf16.gmra.mxu0 %v5161
  %v5329 = vpop.f32.mrf.mxu0
  %v5330 = vadd.f32 %v5207, %v5329
  %v5331 = vpop.f32.mrf.mxu0
  %v5332 = vadd.f32 %v5207, %v5331
  %5333 = vmatmul.bf16.gmra.mxu0 %v5163
  %v5334 = vpop.f32.mrf.mxu0
  %v5335 = vadd.f32 %v5207, %v5334
  %v5336 = vpop.f32.mrf.mxu0
  %v5337 = vadd.f32 %v5207, %v5336
  %5338 = vmatmul.bf16.gmra.mxu0 %v5165
  %v5339 = vpop.f32.mrf.mxu0
  %v5340 = vadd.f32 %v5207, %v5339
  %v5341 = vpop.f32.mrf.mxu0
  %v5342 = vadd.f32 %v5207, %v5341
  %5343 = vmatmul.bf16.gmra.mxu0 %v5167
  %v5344 = vpop.f32.mrf.mxu0
  %v5345 = vadd.f32 %v5207, %v5344
  %v5346 = vpop.f32.mrf.mxu0
  %v5347 = vadd.f32 %v5207, %v5346
  %5348 = vmatmul.bf16.gmra.mxu0 %v5169
  %v5349 = vpop.f32.mrf.mxu0
  %v5350 = vadd.f32 %v5207, %v5349
  %v5351 = vpop.f32.mrf.mxu0
  %v5352 = vadd.f32 %v5207, %v5351
  %5353 = vmatmul.bf16.gmra.mxu0 %v5171
  %v5354 = vpop.f32.mrf.mxu0
  %v5355 = vadd.f32 %v5207, %v5354
  %v5356 = vpop.f32.mrf.mxu0
  %5357 = vdwg.mxu0
  %5358 = vmatpush.bf16.msra.mxu0 %v5288
  %5359 = vmatpush.bf16.msra.mxu0 %v5287
  %5360 = vmatpush.bf16.msra.mxu0 %v5286
  %5361 = vmatpush.bf16.msra.mxu0 %v5285
  %5362 = vmatpush.bf16.msra.mxu0 %v5284
  %5363 = vmatpush.bf16.msra.mxu0 %v5283
  %5364 = vmatpush.bf16.msra.mxu0 %v5282
  %5365 = vmatpush.bf16.msra.mxu0 %v5281
  %5366 = vmatmul.bf16.gmra.mxu0 %v5156
  %v5367 = vpop.f32.mrf.mxu0
  %v5368 = vadd.f32 %v5315, %v5367
  %v5369 = vpop.f32.mrf.mxu0
  %v5370 = vadd.f32 %v5317, %v5369
  %5371 = vmatmul.bf16.gmra.mxu0 %v5158
  %v5372 = vpop.f32.mrf.mxu0
  %v5373 = vadd.f32 %v5320, %v5372
  %v5374 = vpop.f32.mrf.mxu0
  %v5375 = vadd.f32 %v5322, %v5374
  %5376 = vmatmul.bf16.gmra.mxu0 %v5160
  %v5377 = vpop.f32.mrf.mxu0
  %v5378 = vadd.f32 %v5325, %v5377
  %v5379 = vpop.f32.mrf.mxu0
  %v5380 = vadd.f32 %v5327, %v5379
  %5381 = vmatmul.bf16.gmra.mxu0 %v5162
  %v5382 = vpop.f32.mrf.mxu0
  %v5383 = vadd.f32 %v5330, %v5382
  %v5384 = vpop.f32.mrf.mxu0
  %v5385 = vadd.f32 %v5332, %v5384
  %5386 = vmatmul.bf16.gmra.mxu0 %v5164
  %v5387 = vpop.f32.mrf.mxu0
  %v5388 = vadd.f32 %v5335, %v5387
  %v5389 = vpop.f32.mrf.mxu0
  %v5390 = vadd.f32 %v5337, %v5389
  %5391 = vmatmul.bf16.gmra.mxu0 %v5166
  %v5392 = vpop.f32.mrf.mxu0
  %v5393 = vadd.f32 %v5340, %v5392
  %v5394 = vpop.f32.mrf.mxu0
  %v5395 = vadd.f32 %v5342, %v5394
  %5396 = vmatmul.bf16.gmra.mxu0 %v5168
  %v5397 = vpop.f32.mrf.mxu0
  %v5398 = vadd.f32 %v5345, %v5397
  %v5399 = vpop.f32.mrf.mxu0
  %v5400 = vadd.f32 %v5347, %v5399
  %5401 = vmatmul.bf16.gmra.mxu0 %v5170
  %v5402 = vpop.f32.mrf.mxu0
  %v5403 = vadd.f32 %v5350, %v5402
  %v5404 = vpop.f32.mrf.mxu0
  %v5405 = vadd.f32 %v5352, %v5404
  %5406 = vmatmul.bf16.gmra.mxu0 %v5172
  %v5407 = vpop.f32.mrf.mxu0
  %v5408 = vadd.f32 %v5355, %v5407
  %v5409 = vpop.f32.mrf.mxu0
  %5410 = vdwg.mxu0
  %v5411 = vadd.f32 %v4220, %v5368
  %v5412 = vadd.f32 %v4221, %v5370
  %v5413 = vadd.f32 %v4222, %v5373
  %v5414 = vadd.f32 %v4223, %v5375
  %v5415 = vadd.f32 %v4224, %v5378
  %v5416 = vadd.f32 %v4225, %v5380
  %v5417 = vadd.f32 %v4226, %v5383
  %v5418 = vadd.f32 %v4227, %v5385
  %v5419 = vadd.f32 %v4228, %v5388
  %v5420 = vadd.f32 %v4229, %v5390
  %v5421 = vadd.f32 %v4230, %v5393
  %v5422 = vadd.f32 %v4231, %v5395
  %v5423 = vadd.f32 %v4232, %v5398
  %v5424 = vadd.f32 %v4233, %v5400
  %v5425 = vadd.f32 %v4234, %v5403
  %v5426 = vadd.f32 %v4235, %v5405
  %v5427 = vadd.f32 %v4236, %v5408
  %s5428 = scalar_lea.vmem %s5, 1
  %v5429 = vld [vmem:[%s5428] sm:$0x1]
  %s5430 = scalar_lea.vmem %s6, 1
  %v5431 = vld [vmem:[%s5430] sm:$0x1]
  %v5432 = vsel %vm277, %v5411, 0.0
  %5433 = vadd.xlane.f32.xlu0 %v5432
  %v5434 = vpop.xlane.xlu0 %5433
  %v5435 = vsel %vm277, %v5412, 0.0
  %5436 = vadd.xlane.f32.xlu0 %v5435
  %v5437 = vpop.xlane.xlu0 %5436
  %v5438 = vsel %vm277, %v5413, 0.0
  %5439 = vadd.xlane.f32.xlu0 %v5438
  %v5440 = vpop.xlane.xlu0 %5439
  %v5441 = vsel %vm277, %v5414, 0.0
  %5442 = vadd.xlane.f32.xlu0 %v5441
  %v5443 = vpop.xlane.xlu0 %5442
  %v5444 = vsel %vm277, %v5415, 0.0
  %5445 = vadd.xlane.f32.xlu0 %v5444
  %v5446 = vpop.xlane.xlu0 %5445
  %v5447 = vsel %vm277, %v5416, 0.0
  %5448 = vadd.xlane.f32.xlu0 %v5447
  %v5449 = vpop.xlane.xlu0 %5448
  %v5450 = vsel %vm277, %v5417, 0.0
  %5451 = vadd.xlane.f32.xlu0 %v5450
  %v5452 = vpop.xlane.xlu0 %5451
  %v5453 = vsel %vm277, %v5418, 0.0
  %5454 = vadd.xlane.f32.xlu0 %v5453
  %v5455 = vpop.xlane.xlu0 %5454
  %v5456 = vsel %vm277, %v5419, 0.0
  %5457 = vadd.xlane.f32.xlu0 %v5456
  %v5458 = vpop.xlane.xlu0 %5457
  %v5459 = vsel %vm277, %v5420, 0.0
  %5460 = vadd.xlane.f32.xlu0 %v5459
  %v5461 = vpop.xlane.xlu0 %5460
  %v5462 = vsel %vm277, %v5421, 0.0
  %5463 = vadd.xlane.f32.xlu0 %v5462
  %v5464 = vpop.xlane.xlu0 %5463
  %v5465 = vsel %vm277, %v5422, 0.0
  %5466 = vadd.xlane.f32.xlu0 %v5465
  %v5467 = vpop.xlane.xlu0 %5466
  %v5468 = vsel %vm277, %v5423, 0.0
  %5469 = vadd.xlane.f32.xlu0 %v5468
  %v5470 = vpop.xlane.xlu0 %5469
  %v5471 = vsel %vm277, %v5424, 0.0
  %5472 = vadd.xlane.f32.xlu0 %v5471
  %v5473 = vpop.xlane.xlu0 %5472
  %v5474 = vsel %vm277, %v5425, 0.0
  %5475 = vadd.xlane.f32.xlu0 %v5474
  %v5476 = vpop.xlane.xlu0 %5475
  %v5477 = vsel %vm277, %v5426, 0.0
  %5478 = vadd.xlane.f32.xlu0 %v5477
  %v5479 = vpop.xlane.xlu0 %5478
  %v5480 = vsel %vm277, %v5427, 0.0
  %5481 = vadd.xlane.f32.xlu0 %v5480
  %v5482 = vpop.xlane.xlu0 %5481
  %v5483 = vmul.f32 %v5434, %v335
  %v5484 = vmul.f32 %v5437, %v335
  %v5485 = vmul.f32 %v5440, %v335
  %v5486 = vmul.f32 %v5443, %v335
  %v5487 = vmul.f32 %v5446, %v335
  %v5488 = vmul.f32 %v5449, %v335
  %v5489 = vmul.f32 %v5452, %v335
  %v5490 = vmul.f32 %v5455, %v335
  %v5491 = vmul.f32 %v5458, %v335
  %v5492 = vmul.f32 %v5461, %v335
  %v5493 = vmul.f32 %v5464, %v335
  %v5494 = vmul.f32 %v5467, %v335
  %v5495 = vmul.f32 %v5470, %v335
  %v5496 = vmul.f32 %v5473, %v335
  %v5497 = vmul.f32 %v5476, %v335
  %v5498 = vmul.f32 %v5479, %v335
  %v5499 = vmul.f32 %v5482, %v335
  %v5500 = vsub.f32 %v5411, %v5483
  %v5501 = vsub.f32 %v5412, %v5484
  %v5502 = vsub.f32 %v5413, %v5485
  %v5503 = vsub.f32 %v5414, %v5486
  %v5504 = vsub.f32 %v5415, %v5487
  %v5505 = vsub.f32 %v5416, %v5488
  %v5506 = vsub.f32 %v5417, %v5489
  %v5507 = vsub.f32 %v5418, %v5490
  %v5508 = vsub.f32 %v5419, %v5491
  %v5509 = vsub.f32 %v5420, %v5492
  %v5510 = vsub.f32 %v5421, %v5493
  %v5511 = vsub.f32 %v5422, %v5494
  %v5512 = vsub.f32 %v5423, %v5495
  %v5513 = vsub.f32 %v5424, %v5496
  %v5514 = vsub.f32 %v5425, %v5497
  %v5515 = vsub.f32 %v5426, %v5498
  %v5516 = vsub.f32 %v5427, %v5499
  %v5517 = vmul.f32 %v5500, %v5500
  %v5518 = vmul.f32 %v5501, %v5501
  %v5519 = vmul.f32 %v5502, %v5502
  %v5520 = vmul.f32 %v5503, %v5503
  %v5521 = vmul.f32 %v5504, %v5504
  %v5522 = vmul.f32 %v5505, %v5505
  %v5523 = vmul.f32 %v5506, %v5506
  %v5524 = vmul.f32 %v5507, %v5507
  %v5525 = vmul.f32 %v5508, %v5508
  %v5526 = vmul.f32 %v5509, %v5509
  %v5527 = vmul.f32 %v5510, %v5510
  %v5528 = vmul.f32 %v5511, %v5511
  %v5529 = vmul.f32 %v5512, %v5512
  %v5530 = vmul.f32 %v5513, %v5513
  %v5531 = vmul.f32 %v5514, %v5514
  %v5532 = vmul.f32 %v5515, %v5515
  %v5533 = vmul.f32 %v5516, %v5516
  %v5534 = vsel %vm277, %v5517, 0.0
  %5535 = vadd.xlane.f32.xlu0 %v5534
  %v5536 = vpop.xlane.xlu0 %5535
  %v5537 = vsel %vm277, %v5518, 0.0
  %5538 = vadd.xlane.f32.xlu0 %v5537
  %v5539 = vpop.xlane.xlu0 %5538
  %v5540 = vsel %vm277, %v5519, 0.0
  %5541 = vadd.xlane.f32.xlu0 %v5540
  %v5542 = vpop.xlane.xlu0 %5541
  %v5543 = vsel %vm277, %v5520, 0.0
  %5544 = vadd.xlane.f32.xlu0 %v5543
  %v5545 = vpop.xlane.xlu0 %5544
  %v5546 = vsel %vm277, %v5521, 0.0
  %5547 = vadd.xlane.f32.xlu0 %v5546
  %v5548 = vpop.xlane.xlu0 %5547
  %v5549 = vsel %vm277, %v5522, 0.0
  %5550 = vadd.xlane.f32.xlu0 %v5549
  %v5551 = vpop.xlane.xlu0 %5550
  %v5552 = vsel %vm277, %v5523, 0.0
  %5553 = vadd.xlane.f32.xlu0 %v5552
  %v5554 = vpop.xlane.xlu0 %5553
  %v5555 = vsel %vm277, %v5524, 0.0
  %5556 = vadd.xlane.f32.xlu0 %v5555
  %v5557 = vpop.xlane.xlu0 %5556
  %v5558 = vsel %vm277, %v5525, 0.0
  %5559 = vadd.xlane.f32.xlu0 %v5558
  %v5560 = vpop.xlane.xlu0 %5559
  %v5561 = vsel %vm277, %v5526, 0.0
  %5562 = vadd.xlane.f32.xlu0 %v5561
  %v5563 = vpop.xlane.xlu0 %5562
  %v5564 = vsel %vm277, %v5527, 0.0
  %5565 = vadd.xlane.f32.xlu0 %v5564
  %v5566 = vpop.xlane.xlu0 %5565
  %v5567 = vsel %vm277, %v5528, 0.0
  %5568 = vadd.xlane.f32.xlu0 %v5567
  %v5569 = vpop.xlane.xlu0 %5568
  %v5570 = vsel %vm277, %v5529, 0.0
  %5571 = vadd.xlane.f32.xlu0 %v5570
  %v5572 = vpop.xlane.xlu0 %5571
  %v5573 = vsel %vm277, %v5530, 0.0
  %5574 = vadd.xlane.f32.xlu0 %v5573
  %v5575 = vpop.xlane.xlu0 %5574
  %v5576 = vsel %vm277, %v5531, 0.0
  %5577 = vadd.xlane.f32.xlu0 %v5576
  %v5578 = vpop.xlane.xlu0 %5577
  %v5579 = vsel %vm277, %v5532, 0.0
  %5580 = vadd.xlane.f32.xlu0 %v5579
  %v5581 = vpop.xlane.xlu0 %5580
  %v5582 = vsel %vm277, %v5533, 0.0
  %5583 = vadd.xlane.f32.xlu0 %v5582
  %v5584 = vpop.xlane.xlu0 %5583
  %v5585 = vmul.f32 %v5536, %v335
  %v5586 = vmul.f32 %v5539, %v335
  %v5587 = vmul.f32 %v5542, %v335
  %v5588 = vmul.f32 %v5545, %v335
  %v5589 = vmul.f32 %v5548, %v335
  %v5590 = vmul.f32 %v5551, %v335
  %v5591 = vmul.f32 %v5554, %v335
  %v5592 = vmul.f32 %v5557, %v335
  %v5593 = vmul.f32 %v5560, %v335
  %v5594 = vmul.f32 %v5563, %v335
  %v5595 = vmul.f32 %v5566, %v335
  %v5596 = vmul.f32 %v5569, %v335
  %v5597 = vmul.f32 %v5572, %v335
  %v5598 = vmul.f32 %v5575, %v335
  %v5599 = vmul.f32 %v5578, %v335
  %v5600 = vmul.f32 %v5581, %v335
  %v5601 = vmul.f32 %v5584, %v335
  %v5602 = vadd.f32 %v5585, 1e-05
  %v5603 = vadd.f32 %v5586, 1e-05
  %v5604 = vadd.f32 %v5587, 1e-05
  %v5605 = vadd.f32 %v5588, 1e-05
  %v5606 = vadd.f32 %v5589, 1e-05
  %v5607 = vadd.f32 %v5590, 1e-05
  %v5608 = vadd.f32 %v5591, 1e-05
  %v5609 = vadd.f32 %v5592, 1e-05
  %v5610 = vadd.f32 %v5593, 1e-05
  %v5611 = vadd.f32 %v5594, 1e-05
  %v5612 = vadd.f32 %v5595, 1e-05
  %v5613 = vadd.f32 %v5596, 1e-05
  %v5614 = vadd.f32 %v5597, 1e-05
  %v5615 = vadd.f32 %v5598, 1e-05
  %v5616 = vadd.f32 %v5599, 1e-05
  %v5617 = vadd.f32 %v5600, 1e-05
  %v5618 = vadd.f32 %v5601, 1e-05
  %v5619 = vrsqrt.pop %v5602
  %v5620 = vmul.f32 %v5619, %v5602
  %v5621 = vmul.f32 %v5620, %v5619
  %v5622 = vmul.f32 0.5, %v5621
  %v5623 = vsub.f32 1.5, %v5622
  %v5624 = vmul.f32 %v5619, %v5623
  %vm5625 = vweird.f32 %v5602
  %vm5626 = vweird.f32 %v5619
  %vm5627 = vmor %vm5625, %vm5626
  %v5628 = vsel %vm5627, %v5619, %v5624
  %v5629 = vrsqrt.pop %v5603
  %v5630 = vmul.f32 %v5629, %v5603
  %v5631 = vmul.f32 %v5630, %v5629
  %v5632 = vmul.f32 0.5, %v5631
  %v5633 = vsub.f32 1.5, %v5632
  %v5634 = vmul.f32 %v5629, %v5633
  %vm5635 = vweird.f32 %v5603
  %vm5636 = vweird.f32 %v5629
  %vm5637 = vmor %vm5635, %vm5636
  %v5638 = vsel %vm5637, %v5629, %v5634
  %v5639 = vrsqrt.pop %v5604
  %v5640 = vmul.f32 %v5639, %v5604
  %v5641 = vmul.f32 %v5640, %v5639
  %v5642 = vmul.f32 0.5, %v5641
  %v5643 = vsub.f32 1.5, %v5642
  %v5644 = vmul.f32 %v5639, %v5643
  %vm5645 = vweird.f32 %v5604
  %vm5646 = vweird.f32 %v5639
  %vm5647 = vmor %vm5645, %vm5646
  %v5648 = vsel %vm5647, %v5639, %v5644
  %v5649 = vrsqrt.pop %v5605
  %v5650 = vmul.f32 %v5649, %v5605
  %v5651 = vmul.f32 %v5650, %v5649
  %v5652 = vmul.f32 0.5, %v5651
  %v5653 = vsub.f32 1.5, %v5652
  %v5654 = vmul.f32 %v5649, %v5653
  %vm5655 = vweird.f32 %v5605
  %vm5656 = vweird.f32 %v5649
  %vm5657 = vmor %vm5655, %vm5656
  %v5658 = vsel %vm5657, %v5649, %v5654
  %v5659 = vrsqrt.pop %v5606
  %v5660 = vmul.f32 %v5659, %v5606
  %v5661 = vmul.f32 %v5660, %v5659
  %v5662 = vmul.f32 0.5, %v5661
  %v5663 = vsub.f32 1.5, %v5662
  %v5664 = vmul.f32 %v5659, %v5663
  %vm5665 = vweird.f32 %v5606
  %vm5666 = vweird.f32 %v5659
  %vm5667 = vmor %vm5665, %vm5666
  %v5668 = vsel %vm5667, %v5659, %v5664
  %v5669 = vrsqrt.pop %v5607
  %v5670 = vmul.f32 %v5669, %v5607
  %v5671 = vmul.f32 %v5670, %v5669
  %v5672 = vmul.f32 0.5, %v5671
  %v5673 = vsub.f32 1.5, %v5672
  %v5674 = vmul.f32 %v5669, %v5673
  %vm5675 = vweird.f32 %v5607
  %vm5676 = vweird.f32 %v5669
  %vm5677 = vmor %vm5675, %vm5676
  %v5678 = vsel %vm5677, %v5669, %v5674
  %v5679 = vrsqrt.pop %v5608
  %v5680 = vmul.f32 %v5679, %v5608
  %v5681 = vmul.f32 %v5680, %v5679
  %v5682 = vmul.f32 0.5, %v5681
  %v5683 = vsub.f32 1.5, %v5682
  %v5684 = vmul.f32 %v5679, %v5683
  %vm5685 = vweird.f32 %v5608
  %vm5686 = vweird.f32 %v5679
  %vm5687 = vmor %vm5685, %vm5686
  %v5688 = vsel %vm5687, %v5679, %v5684
  %v5689 = vrsqrt.pop %v5609
  %v5690 = vmul.f32 %v5689, %v5609
  %v5691 = vmul.f32 %v5690, %v5689
  %v5692 = vmul.f32 0.5, %v5691
  %v5693 = vsub.f32 1.5, %v5692
  %v5694 = vmul.f32 %v5689, %v5693
  %vm5695 = vweird.f32 %v5609
  %vm5696 = vweird.f32 %v5689
  %vm5697 = vmor %vm5695, %vm5696
  %v5698 = vsel %vm5697, %v5689, %v5694
  %v5699 = vrsqrt.pop %v5610
  %v5700 = vmul.f32 %v5699, %v5610
  %v5701 = vmul.f32 %v5700, %v5699
  %v5702 = vmul.f32 0.5, %v5701
  %v5703 = vsub.f32 1.5, %v5702
  %v5704 = vmul.f32 %v5699, %v5703
  %vm5705 = vweird.f32 %v5610
  %vm5706 = vweird.f32 %v5699
  %vm5707 = vmor %vm5705, %vm5706
  %v5708 = vsel %vm5707, %v5699, %v5704
  %v5709 = vrsqrt.pop %v5611
  %v5710 = vmul.f32 %v5709, %v5611
  %v5711 = vmul.f32 %v5710, %v5709
  %v5712 = vmul.f32 0.5, %v5711
  %v5713 = vsub.f32 1.5, %v5712
  %v5714 = vmul.f32 %v5709, %v5713
  %vm5715 = vweird.f32 %v5611
  %vm5716 = vweird.f32 %v5709
  %vm5717 = vmor %vm5715, %vm5716
  %v5718 = vsel %vm5717, %v5709, %v5714
  %v5719 = vrsqrt.pop %v5612
  %v5720 = vmul.f32 %v5719, %v5612
  %v5721 = vmul.f32 %v5720, %v5719
  %v5722 = vmul.f32 0.5, %v5721
  %v5723 = vsub.f32 1.5, %v5722
  %v5724 = vmul.f32 %v5719, %v5723
  %vm5725 = vweird.f32 %v5612
  %vm5726 = vweird.f32 %v5719
  %vm5727 = vmor %vm5725, %vm5726
  %v5728 = vsel %vm5727, %v5719, %v5724
  %v5729 = vrsqrt.pop %v5613
  %v5730 = vmul.f32 %v5729, %v5613
  %v5731 = vmul.f32 %v5730, %v5729
  %v5732 = vmul.f32 0.5, %v5731
  %v5733 = vsub.f32 1.5, %v5732
  %v5734 = vmul.f32 %v5729, %v5733
  %vm5735 = vweird.f32 %v5613
  %vm5736 = vweird.f32 %v5729
  %vm5737 = vmor %vm5735, %vm5736
  %v5738 = vsel %vm5737, %v5729, %v5734
  %v5739 = vrsqrt.pop %v5614
  %v5740 = vmul.f32 %v5739, %v5614
  %v5741 = vmul.f32 %v5740, %v5739
  %v5742 = vmul.f32 0.5, %v5741
  %v5743 = vsub.f32 1.5, %v5742
  %v5744 = vmul.f32 %v5739, %v5743
  %vm5745 = vweird.f32 %v5614
  %vm5746 = vweird.f32 %v5739
  %vm5747 = vmor %vm5745, %vm5746
  %v5748 = vsel %vm5747, %v5739, %v5744
  %v5749 = vrsqrt.pop %v5615
  %v5750 = vmul.f32 %v5749, %v5615
  %v5751 = vmul.f32 %v5750, %v5749
  %v5752 = vmul.f32 0.5, %v5751
  %v5753 = vsub.f32 1.5, %v5752
  %v5754 = vmul.f32 %v5749, %v5753
  %vm5755 = vweird.f32 %v5615
  %vm5756 = vweird.f32 %v5749
  %vm5757 = vmor %vm5755, %vm5756
  %v5758 = vsel %vm5757, %v5749, %v5754
  %v5759 = vrsqrt.pop %v5616
  %v5760 = vmul.f32 %v5759, %v5616
  %v5761 = vmul.f32 %v5760, %v5759
  %v5762 = vmul.f32 0.5, %v5761
  %v5763 = vsub.f32 1.5, %v5762
  %v5764 = vmul.f32 %v5759, %v5763
  %vm5765 = vweird.f32 %v5616
  %vm5766 = vweird.f32 %v5759
  %vm5767 = vmor %vm5765, %vm5766
  %v5768 = vsel %vm5767, %v5759, %v5764
  %v5769 = vrsqrt.pop %v5617
  %v5770 = vmul.f32 %v5769, %v5617
  %v5771 = vmul.f32 %v5770, %v5769
  %v5772 = vmul.f32 0.5, %v5771
  %v5773 = vsub.f32 1.5, %v5772
  %v5774 = vmul.f32 %v5769, %v5773
  %vm5775 = vweird.f32 %v5617
  %vm5776 = vweird.f32 %v5769
  %vm5777 = vmor %vm5775, %vm5776
  %v5778 = vsel %vm5777, %v5769, %v5774
  %v5779 = vrsqrt.pop %v5618
  %v5780 = vmul.f32 %v5779, %v5618
  %v5781 = vmul.f32 %v5780, %v5779
  %v5782 = vmul.f32 0.5, %v5781
  %v5783 = vsub.f32 1.5, %v5782
  %v5784 = vmul.f32 %v5779, %v5783
  %vm5785 = vweird.f32 %v5618
  %vm5786 = vweird.f32 %v5779
  %vm5787 = vmor %vm5785, %vm5786
  %v5788 = vsel %vm5787, %v5779, %v5784
  %v5789 = vmul.f32 %v5500, %v5628
  %v5790 = vmul.f32 %v5501, %v5638
  %v5791 = vmul.f32 %v5502, %v5648
  %v5792 = vmul.f32 %v5503, %v5658
  %v5793 = vmul.f32 %v5504, %v5668
  %v5794 = vmul.f32 %v5505, %v5678
  %v5795 = vmul.f32 %v5506, %v5688
  %v5796 = vmul.f32 %v5507, %v5698
  %v5797 = vmul.f32 %v5508, %v5708
  %v5798 = vmul.f32 %v5509, %v5718
  %v5799 = vmul.f32 %v5510, %v5728
  %v5800 = vmul.f32 %v5511, %v5738
  %v5801 = vmul.f32 %v5512, %v5748
  %v5802 = vmul.f32 %v5513, %v5758
  %v5803 = vmul.f32 %v5514, %v5768
  %v5804 = vmul.f32 %v5515, %v5778
  %v5805 = vmul.f32 %v5516, %v5788
  %v5807 = vperm.slane %v5429, 0
  %v5809 = vmul.f32 %v5789, %v5807
  %v5810 = vmul.f32 %v5790, %v5807
  %v5811 = vmul.f32 %v5791, %v5807
  %v5812 = vmul.f32 %v5792, %v5807
  %v5813 = vmul.f32 %v5793, %v5807
  %v5814 = vmul.f32 %v5794, %v5807
  %v5815 = vmul.f32 %v5795, %v5807
  %v5816 = vmul.f32 %v5796, %v5807
  %v5817 = vmul.f32 %v5797, %v5807
  %v5818 = vmul.f32 %v5798, %v5807
  %v5819 = vmul.f32 %v5799, %v5807
  %v5820 = vmul.f32 %v5800, %v5807
  %v5821 = vmul.f32 %v5801, %v5807
  %v5822 = vmul.f32 %v5802, %v5807
  %v5823 = vmul.f32 %v5803, %v5807
  %v5824 = vmul.f32 %v5804, %v5807
  %v5825 = vmul.f32 %v5805, %v5807
  %v5827 = vperm.slane %v5431, 0
  %v5829 = vadd.f32 %v5809, %v5827
  %v5830 = vadd.f32 %v5810, %v5827
  %v5831 = vadd.f32 %v5811, %v5827
  %v5832 = vadd.f32 %v5812, %v5827
  %v5833 = vadd.f32 %v5813, %v5827
  %v5834 = vadd.f32 %v5814, %v5827
  %v5835 = vadd.f32 %v5815, %v5827
  %v5836 = vadd.f32 %v5816, %v5827
  %v5837 = vadd.f32 %v5817, %v5827
  %v5838 = vadd.f32 %v5818, %v5827
  %v5839 = vadd.f32 %v5819, %v5827
  %v5840 = vadd.f32 %v5820, %v5827
  %v5841 = vadd.f32 %v5821, %v5827
  %v5842 = vadd.f32 %v5822, %v5827
  %v5843 = vadd.f32 %v5823, %v5827
  %v5844 = vadd.f32 %v5824, %v5827
  %v5845 = vadd.f32 %v5825, %v5827
  %v5846 = vpack.c.bf16 %v5830, %v5829
  %v5847 = vpack.c.bf16 %v5832, %v5831
  %v5848 = vpack.c.bf16 %v5834, %v5833
  %v5849 = vpack.c.bf16 %v5836, %v5835
  %v5850 = vpack.c.bf16 %v5838, %v5837
  %v5851 = vpack.c.bf16 %v5840, %v5839
  %v5852 = vpack.c.bf16 %v5842, %v5841
  %v5853 = vpack.c.bf16 %v5844, %v5843
  %v5854 = vpack.c.bf16 %v5845, %v5845
  %s5855 = scalar_lea.vmem %s7, 64
  %v5856 = vld [vmem:[%s5855] sm:$0xff]
  %v5857 = vld [vmem:[%s5855 + $0x8] sm:$0xff]
  %v5858 = vld [vmem:[%s5855 + $0x10] sm:$0xff]
  %v5859 = vld [vmem:[%s5855 + $0x18] sm:$0xff]
  %v5860 = vld [vmem:[%s5855 + $0x20] sm:$0xff]
  %v5861 = vld [vmem:[%s5855 + $0x28] sm:$0xff]
  %v5862 = vld [vmem:[%s5855 + $0x30] sm:$0xff]
  %v5863 = vld [vmem:[%s5855 + $0x38] sm:$0xff]
  %s5864 = scalar_lea.vmem %s8, 2
  %v5865 = vld [vmem:[%s5864] sm:$0x3]
  %v5867 = vperm.slane %v5865, 0
  %v5868 = vperm.slane %v5865, 1
  %v5879 = vunpack.c.l.b16 %v5856
  %v5880 = vunpack.c.h.b16 %v5856
  %v5881 = vunpack.c.l.b16 %v5857
  %v5882 = vunpack.c.h.b16 %v5857
  %v5883 = vunpack.c.l.b16 %v5858
  %v5884 = vunpack.c.h.b16 %v5858
  %v5885 = vunpack.c.l.b16 %v5859
  %v5886 = vunpack.c.h.b16 %v5859
  %v5887 = vunpack.c.l.b16 %v5860
  %v5888 = vunpack.c.h.b16 %v5860
  %v5889 = vunpack.c.l.b16 %v5861
  %v5890 = vunpack.c.h.b16 %v5861
  %v5891 = vunpack.c.l.b16 %v5862
  %v5892 = vunpack.c.h.b16 %v5862
  %v5893 = vunpack.c.l.b16 %v5863
  %v5894 = vunpack.c.h.b16 %v5863
  %v5895 = vpack.c.b16 %v5881, %v5879
  %v5896 = vpack.c.b16 %v5882, %v5880
  %v5897 = vpack.c.b16 %v5885, %v5883
  %v5898 = vpack.c.b16 %v5886, %v5884
  %v5899 = vpack.c.b16 %v5889, %v5887
  %v5900 = vpack.c.b16 %v5890, %v5888
  %v5901 = vpack.c.b16 %v5893, %v5891
  %v5902 = vpack.c.b16 %v5894, %v5892
  %v5912 = vsel %vm277, %v5846, 0
  %v5915 = vsel %vm277, %v5847, 0
  %v5918 = vsel %vm277, %v5848, 0
  %v5921 = vsel %vm277, %v5849, 0
  %v5924 = vsel %vm277, %v5850, 0
  %v5927 = vsel %vm277, %v5851, 0
  %v5930 = vsel %vm277, %v5852, 0
  %v5933 = vsel %vm277, %v5853, 0
  %v5936 = vsel %vm277, %v5854, 0
  %5938 = vmatpush.bf16.msra.mxu0 0
  %5939 = vmatpush.bf16.msra.mxu0 0
  %5940 = vmatpush.bf16.msra.mxu0 0
  %5941 = vmatpush.bf16.msra.mxu0 0
  %5942 = vmatpush.bf16.msra.mxu0 %v5901
  %5943 = vmatpush.bf16.msra.mxu0 %v5899
  %5944 = vmatpush.bf16.msra.mxu0 %v5897
  %5945 = vmatpush.bf16.msra.mxu0 %v5895
  %5946 = vmatmul.bf16.gmra.mxu0 %v5912
  %v5947 = vpop.f32.mrf.mxu0
  %v5948 = vadd.f32 %v5867, %v5947
  %v5949 = vpop.f32.mrf.mxu0
  %v5950 = vadd.f32 %v5867, %v5949
  %5951 = vmatmul.bf16.gmra.mxu0 %v5915
  %v5952 = vpop.f32.mrf.mxu0
  %v5953 = vadd.f32 %v5867, %v5952
  %v5954 = vpop.f32.mrf.mxu0
  %v5955 = vadd.f32 %v5867, %v5954
  %5956 = vmatmul.bf16.gmra.mxu0 %v5918
  %v5957 = vpop.f32.mrf.mxu0
  %v5958 = vadd.f32 %v5867, %v5957
  %v5959 = vpop.f32.mrf.mxu0
  %v5960 = vadd.f32 %v5867, %v5959
  %5961 = vmatmul.bf16.gmra.mxu0 %v5921
  %v5962 = vpop.f32.mrf.mxu0
  %v5963 = vadd.f32 %v5867, %v5962
  %v5964 = vpop.f32.mrf.mxu0
  %v5965 = vadd.f32 %v5867, %v5964
  %5966 = vmatmul.bf16.gmra.mxu0 %v5924
  %v5967 = vpop.f32.mrf.mxu0
  %v5968 = vadd.f32 %v5867, %v5967
  %v5969 = vpop.f32.mrf.mxu0
  %v5970 = vadd.f32 %v5867, %v5969
  %5971 = vmatmul.bf16.gmra.mxu0 %v5927
  %v5972 = vpop.f32.mrf.mxu0
  %v5973 = vadd.f32 %v5867, %v5972
  %v5974 = vpop.f32.mrf.mxu0
  %v5975 = vadd.f32 %v5867, %v5974
  %5976 = vmatmul.bf16.gmra.mxu0 %v5930
  %v5977 = vpop.f32.mrf.mxu0
  %v5978 = vadd.f32 %v5867, %v5977
  %v5979 = vpop.f32.mrf.mxu0
  %v5980 = vadd.f32 %v5867, %v5979
  %5981 = vmatmul.bf16.gmra.mxu0 %v5933
  %v5982 = vpop.f32.mrf.mxu0
  %v5983 = vadd.f32 %v5867, %v5982
  %v5984 = vpop.f32.mrf.mxu0
  %v5985 = vadd.f32 %v5867, %v5984
  %5986 = vmatmul.bf16.gmra.mxu0 %v5936
  %v5987 = vpop.f32.mrf.mxu0
  %v5988 = vadd.f32 %v5867, %v5987
  %v5989 = vpop.f32.mrf.mxu0
  %5990 = vdwg.mxu0
  %5991 = vmatpush.bf16.msra.mxu0 0
  %5992 = vmatpush.bf16.msra.mxu0 0
  %5993 = vmatpush.bf16.msra.mxu0 0
  %5994 = vmatpush.bf16.msra.mxu0 0
  %5995 = vmatpush.bf16.msra.mxu0 %v5902
  %5996 = vmatpush.bf16.msra.mxu0 %v5900
  %5997 = vmatpush.bf16.msra.mxu0 %v5898
  %5998 = vmatpush.bf16.msra.mxu0 %v5896
  %5999 = vmatmul.bf16.gmra.mxu0 %v5912
  %v6000 = vpop.f32.mrf.mxu0
  %v6001 = vadd.f32 %v5868, %v6000
  %v6002 = vpop.f32.mrf.mxu0
  %v6003 = vadd.f32 %v5868, %v6002
  %6004 = vmatmul.bf16.gmra.mxu0 %v5915
  %v6005 = vpop.f32.mrf.mxu0
  %v6006 = vadd.f32 %v5868, %v6005
  %v6007 = vpop.f32.mrf.mxu0
  %v6008 = vadd.f32 %v5868, %v6007
  %6009 = vmatmul.bf16.gmra.mxu0 %v5918
  %v6010 = vpop.f32.mrf.mxu0
  %v6011 = vadd.f32 %v5868, %v6010
  %v6012 = vpop.f32.mrf.mxu0
  %v6013 = vadd.f32 %v5868, %v6012
  %6014 = vmatmul.bf16.gmra.mxu0 %v5921
  %v6015 = vpop.f32.mrf.mxu0
  %v6016 = vadd.f32 %v5868, %v6015
  %v6017 = vpop.f32.mrf.mxu0
  %v6018 = vadd.f32 %v5868, %v6017
  %6019 = vmatmul.bf16.gmra.mxu0 %v5924
  %v6020 = vpop.f32.mrf.mxu0
  %v6021 = vadd.f32 %v5868, %v6020
  %v6022 = vpop.f32.mrf.mxu0
  %v6023 = vadd.f32 %v5868, %v6022
  %6024 = vmatmul.bf16.gmra.mxu0 %v5927
  %v6025 = vpop.f32.mrf.mxu0
  %v6026 = vadd.f32 %v5868, %v6025
  %v6027 = vpop.f32.mrf.mxu0
  %v6028 = vadd.f32 %v5868, %v6027
  %6029 = vmatmul.bf16.gmra.mxu0 %v5930
  %v6030 = vpop.f32.mrf.mxu0
  %v6031 = vadd.f32 %v5868, %v6030
  %v6032 = vpop.f32.mrf.mxu0
  %v6033 = vadd.f32 %v5868, %v6032
  %6034 = vmatmul.bf16.gmra.mxu0 %v5933
  %v6035 = vpop.f32.mrf.mxu0
  %v6036 = vadd.f32 %v5868, %v6035
  %v6037 = vpop.f32.mrf.mxu0
  %v6038 = vadd.f32 %v5868, %v6037
  %6039 = vmatmul.bf16.gmra.mxu0 %v5936
  %v6040 = vpop.f32.mrf.mxu0
  %v6041 = vadd.f32 %v5868, %v6040
  %v6042 = vpop.f32.mrf.mxu0
  %6043 = vdwg.mxu0
  %v6044 = vpack.c.bf16 %v5950, %v5948
  %v6045 = vpack.c.bf16 %v5955, %v5953
  %v6046 = vpack.c.bf16 %v5960, %v5958
  %v6047 = vpack.c.bf16 %v5965, %v5963
  %v6048 = vpack.c.bf16 %v5970, %v5968
  %v6049 = vpack.c.bf16 %v5975, %v5973
  %v6050 = vpack.c.bf16 %v5980, %v5978
  %v6051 = vpack.c.bf16 %v5985, %v5983
  %v6052 = vpack.c.bf16 %v5988, %v5988
  %v6053 = vpack.c.bf16 %v6003, %v6001
  %v6054 = vpack.c.bf16 %v6008, %v6006
  %v6055 = vpack.c.bf16 %v6013, %v6011
  %v6056 = vpack.c.bf16 %v6018, %v6016
  %v6057 = vpack.c.bf16 %v6023, %v6021
  %v6058 = vpack.c.bf16 %v6028, %v6026
  %v6059 = vpack.c.bf16 %v6033, %v6031
  %v6060 = vpack.c.bf16 %v6038, %v6036
  %v6061 = vpack.c.bf16 %v6041, %v6041
  %6071 = vrot.lane.b32.xlu0 %v6044, 64
  %v6072 = vpop.permute.xlu0 %6071
  %6073 = vrot.lane.b32.xlu0 %v6045, 64
  %v6074 = vpop.permute.xlu0 %6073
  %6075 = vrot.lane.b32.xlu0 %v6046, 64
  %v6076 = vpop.permute.xlu0 %6075
  %6077 = vrot.lane.b32.xlu0 %v6047, 64
  %v6078 = vpop.permute.xlu0 %6077
  %6079 = vrot.lane.b32.xlu0 %v6048, 64
  %v6080 = vpop.permute.xlu0 %6079
  %6081 = vrot.lane.b32.xlu0 %v6049, 64
  %v6082 = vpop.permute.xlu0 %6081
  %6083 = vrot.lane.b32.xlu0 %v6050, 64
  %v6084 = vpop.permute.xlu0 %6083
  %6085 = vrot.lane.b32.xlu0 %v6051, 64
  %v6086 = vpop.permute.xlu0 %6085
  %6087 = vrot.lane.b32.xlu0 %v6052, 64
  %v6088 = vpop.permute.xlu0 %6087
  %v6090 = vsel %vm940, %v6044, 0
  %v6093 = vsel %vm940, %v6045, 0
  %v6096 = vsel %vm940, %v6046, 0
  %v6099 = vsel %vm940, %v6047, 0
  %v6102 = vsel %vm940, %v6048, 0
  %v6105 = vsel %vm940, %v6049, 0
  %v6108 = vsel %vm940, %v6050, 0
  %v6111 = vsel %vm940, %v6051, 0
  %v6114 = vsel %vm940, %v6052, 0
  %v6117 = vsel %vm940, %v6072, 0
  %v6120 = vsel %vm940, %v6074, 0
  %v6123 = vsel %vm940, %v6076, 0
  %v6126 = vsel %vm940, %v6078, 0
  %v6129 = vsel %vm940, %v6080, 0
  %v6132 = vsel %vm940, %v6082, 0
  %v6135 = vsel %vm940, %v6084, 0
  %v6138 = vsel %vm940, %v6086, 0
  %v6141 = vsel %vm940, %v6088, 0
  %6143 = vmatpush.bf16.xpose.msra.mxu0 %v6138
  %6144 = vmatpush.bf16.xpose.msra.mxu0 %v6135
  %6145 = vmatpush.bf16.xpose.msra.mxu0 %v6132
  %6146 = vmatpush.bf16.xpose.msra.mxu0 %v6129
  %6147 = vmatpush.bf16.xpose.msra.mxu0 %v6126
  %6148 = vmatpush.bf16.xpose.msra.mxu0 %v6123
  %6149 = vmatpush.bf16.xpose.msra.mxu0 %v6120
  %6150 = vmatpush.bf16.xpose.msra.mxu0 %v6117
  %6151 = vmatmul.bf16.gmra.mxu0 %v6090
  %v6152 = vpop.f32.mrf.mxu0
  %v6153 = vadd.f32 0.0, %v6152
  %v6154 = vpop.f32.mrf.mxu0
  %v6155 = vadd.f32 0.0, %v6154
  %6156 = vmatmul.bf16.gmra.mxu0 %v6093
  %v6157 = vpop.f32.mrf.mxu0
  %v6158 = vadd.f32 0.0, %v6157
  %v6159 = vpop.f32.mrf.mxu0
  %v6160 = vadd.f32 0.0, %v6159
  %6161 = vmatmul.bf16.gmra.mxu0 %v6096
  %v6162 = vpop.f32.mrf.mxu0
  %v6163 = vadd.f32 0.0, %v6162
  %v6164 = vpop.f32.mrf.mxu0
  %v6165 = vadd.f32 0.0, %v6164
  %6166 = vmatmul.bf16.gmra.mxu0 %v6099
  %v6167 = vpop.f32.mrf.mxu0
  %v6168 = vadd.f32 0.0, %v6167
  %v6169 = vpop.f32.mrf.mxu0
  %v6170 = vadd.f32 0.0, %v6169
  %6171 = vmatmul.bf16.gmra.mxu0 %v6102
  %v6172 = vpop.f32.mrf.mxu0
  %v6173 = vadd.f32 0.0, %v6172
  %v6174 = vpop.f32.mrf.mxu0
  %v6175 = vadd.f32 0.0, %v6174
  %6176 = vmatmul.bf16.gmra.mxu0 %v6105
  %v6177 = vpop.f32.mrf.mxu0
  %v6178 = vadd.f32 0.0, %v6177
  %v6179 = vpop.f32.mrf.mxu0
  %v6180 = vadd.f32 0.0, %v6179
  %6181 = vmatmul.bf16.gmra.mxu0 %v6108
  %v6182 = vpop.f32.mrf.mxu0
  %v6183 = vadd.f32 0.0, %v6182
  %v6184 = vpop.f32.mrf.mxu0
  %v6185 = vadd.f32 0.0, %v6184
  %6186 = vmatmul.bf16.gmra.mxu0 %v6111
  %v6187 = vpop.f32.mrf.mxu0
  %v6188 = vadd.f32 0.0, %v6187
  %v6189 = vpop.f32.mrf.mxu0
  %v6190 = vadd.f32 0.0, %v6189
  %6191 = vmatmul.bf16.gmra.mxu0 %v6114
  %v6192 = vpop.f32.mrf.mxu0
  %v6193 = vadd.f32 0.0, %v6192
  %v6194 = vpop.f32.mrf.mxu0
  %6195 = vdwg.mxu0
  %6196 = vmatpush.bf16.xpose.msra.mxu0 0
  %6197 = vmatpush.bf16.xpose.msra.mxu0 0
  %6198 = vmatpush.bf16.xpose.msra.mxu0 0
  %6199 = vmatpush.bf16.xpose.msra.mxu0 0
  %6200 = vmatpush.bf16.xpose.msra.mxu0 0
  %6201 = vmatpush.bf16.xpose.msra.mxu0 0
  %6202 = vmatpush.bf16.xpose.msra.mxu0 0
  %6203 = vmatpush.bf16.xpose.msra.mxu0 %v6141
  %6204 = vmatmul.bf16.gmra.mxu0 %v6090
  %v6205 = vpop.f32.mrf.mxu0
  %v6206 = vadd.f32 0.0, %v6205
  %v6207 = vpop.f32.mrf.mxu0
  %v6208 = vadd.f32 0.0, %v6207
  %6209 = vmatmul.bf16.gmra.mxu0 %v6093
  %v6210 = vpop.f32.mrf.mxu0
  %v6211 = vadd.f32 0.0, %v6210
  %v6212 = vpop.f32.mrf.mxu0
  %v6213 = vadd.f32 0.0, %v6212
  %6214 = vmatmul.bf16.gmra.mxu0 %v6096
  %v6215 = vpop.f32.mrf.mxu0
  %v6216 = vadd.f32 0.0, %v6215
  %v6217 = vpop.f32.mrf.mxu0
  %v6218 = vadd.f32 0.0, %v6217
  %6219 = vmatmul.bf16.gmra.mxu0 %v6099
  %v6220 = vpop.f32.mrf.mxu0
  %v6221 = vadd.f32 0.0, %v6220
  %v6222 = vpop.f32.mrf.mxu0
  %v6223 = vadd.f32 0.0, %v6222
  %6224 = vmatmul.bf16.gmra.mxu0 %v6102
  %v6225 = vpop.f32.mrf.mxu0
  %v6226 = vadd.f32 0.0, %v6225
  %v6227 = vpop.f32.mrf.mxu0
  %v6228 = vadd.f32 0.0, %v6227
  %6229 = vmatmul.bf16.gmra.mxu0 %v6105
  %v6230 = vpop.f32.mrf.mxu0
  %v6231 = vadd.f32 0.0, %v6230
  %v6232 = vpop.f32.mrf.mxu0
  %v6233 = vadd.f32 0.0, %v6232
  %6234 = vmatmul.bf16.gmra.mxu0 %v6108
  %v6235 = vpop.f32.mrf.mxu0
  %v6236 = vadd.f32 0.0, %v6235
  %v6237 = vpop.f32.mrf.mxu0
  %v6238 = vadd.f32 0.0, %v6237
  %6239 = vmatmul.bf16.gmra.mxu0 %v6111
  %v6240 = vpop.f32.mrf.mxu0
  %v6241 = vadd.f32 0.0, %v6240
  %v6242 = vpop.f32.mrf.mxu0
  %v6243 = vadd.f32 0.0, %v6242
  %6244 = vmatmul.bf16.gmra.mxu0 %v6114
  %v6245 = vpop.f32.mrf.mxu0
  %v6246 = vadd.f32 0.0, %v6245
  %v6247 = vpop.f32.mrf.mxu0
  %6248 = vdwg.mxu0
  %v6249 = vmul.f32 %v6153, 0.25
  %v6250 = vmul.f32 %v6206, 0.25
  %v6251 = vmul.f32 %v6155, 0.25
  %v6252 = vmul.f32 %v6208, 0.25
  %v6253 = vmul.f32 %v6158, 0.25
  %v6254 = vmul.f32 %v6211, 0.25
  %v6255 = vmul.f32 %v6160, 0.25
  %v6256 = vmul.f32 %v6213, 0.25
  %v6257 = vmul.f32 %v6163, 0.25
  %v6258 = vmul.f32 %v6216, 0.25
  %v6259 = vmul.f32 %v6165, 0.25
  %v6260 = vmul.f32 %v6218, 0.25
  %v6261 = vmul.f32 %v6168, 0.25
  %v6262 = vmul.f32 %v6221, 0.25
  %v6263 = vmul.f32 %v6170, 0.25
  %v6264 = vmul.f32 %v6223, 0.25
  %v6265 = vmul.f32 %v6173, 0.25
  %v6266 = vmul.f32 %v6226, 0.25
  %v6267 = vmul.f32 %v6175, 0.25
  %v6268 = vmul.f32 %v6228, 0.25
  %v6269 = vmul.f32 %v6178, 0.25
  %v6270 = vmul.f32 %v6231, 0.25
  %v6271 = vmul.f32 %v6180, 0.25
  %v6272 = vmul.f32 %v6233, 0.25
  %v6273 = vmul.f32 %v6183, 0.25
  %v6274 = vmul.f32 %v6236, 0.25
  %v6275 = vmul.f32 %v6185, 0.25
  %v6276 = vmul.f32 %v6238, 0.25
  %v6277 = vmul.f32 %v6188, 0.25
  %v6278 = vmul.f32 %v6241, 0.25
  %v6279 = vmul.f32 %v6190, 0.25
  %v6280 = vmul.f32 %v6243, 0.25
  %v6281 = vmul.f32 %v6193, 0.25
  %v6282 = vmul.f32 %v6246, 0.25
  %v6283 = vadd.f32 %v6249, %v120
  %v6284 = vadd.f32 %v6250, %v121
  %v6285 = vadd.f32 %v6251, %v122
  %v6286 = vadd.f32 %v6252, %v123
  %v6287 = vadd.f32 %v6253, %v124
  %v6288 = vadd.f32 %v6254, %v125
  %v6289 = vadd.f32 %v6255, %v126
  %v6290 = vadd.f32 %v6256, %v127
  %v6291 = vadd.f32 %v6257, %v128
  %v6292 = vadd.f32 %v6258, %v129
  %v6293 = vadd.f32 %v6259, %v130
  %v6294 = vadd.f32 %v6260, %v131
  %v6295 = vadd.f32 %v6261, %v132
  %v6296 = vadd.f32 %v6262, %v133
  %v6297 = vadd.f32 %v6263, %v134
  %v6298 = vadd.f32 %v6264, %v135
  %v6299 = vadd.f32 %v6265, %v136
  %v6300 = vadd.f32 %v6266, %v137
  %v6301 = vadd.f32 %v6267, %v138
  %v6302 = vadd.f32 %v6268, %v139
  %v6303 = vadd.f32 %v6269, %v140
  %v6304 = vadd.f32 %v6270, %v141
  %v6305 = vadd.f32 %v6271, %v142
  %v6306 = vadd.f32 %v6272, %v143
  %v6307 = vadd.f32 %v6273, %v144
  %v6308 = vadd.f32 %v6274, %v145
  %v6309 = vadd.f32 %v6275, %v146
  %v6310 = vadd.f32 %v6276, %v147
  %v6311 = vadd.f32 %v6277, %v148
  %v6312 = vadd.f32 %v6278, %v149
  %v6313 = vadd.f32 %v6279, %v150
  %v6314 = vadd.f32 %v6280, %v151
  %v6315 = vadd.f32 %v6281, %v152
  %v6316 = vadd.f32 %v6282, %v153
  %v6317 = vsel %vm1169, %v6284, -inf
  %v6318 = vmax.f32 %v6283, %v6317
  %6319 = vmax.xlane.f32.xlu0 %v6318
  %v6320 = vpop.xlane.xlu0 %6319
  %v6321 = vsel %vm1169, %v6286, -inf
  %v6322 = vmax.f32 %v6285, %v6321
  %6323 = vmax.xlane.f32.xlu0 %v6322
  %v6324 = vpop.xlane.xlu0 %6323
  %v6325 = vsel %vm1169, %v6288, -inf
  %v6326 = vmax.f32 %v6287, %v6325
  %6327 = vmax.xlane.f32.xlu0 %v6326
  %v6328 = vpop.xlane.xlu0 %6327
  %v6329 = vsel %vm1169, %v6290, -inf
  %v6330 = vmax.f32 %v6289, %v6329
  %6331 = vmax.xlane.f32.xlu0 %v6330
  %v6332 = vpop.xlane.xlu0 %6331
  %v6333 = vsel %vm1169, %v6292, -inf
  %v6334 = vmax.f32 %v6291, %v6333
  %6335 = vmax.xlane.f32.xlu0 %v6334
  %v6336 = vpop.xlane.xlu0 %6335
  %v6337 = vsel %vm1169, %v6294, -inf
  %v6338 = vmax.f32 %v6293, %v6337
  %6339 = vmax.xlane.f32.xlu0 %v6338
  %v6340 = vpop.xlane.xlu0 %6339
  %v6341 = vsel %vm1169, %v6296, -inf
  %v6342 = vmax.f32 %v6295, %v6341
  %6343 = vmax.xlane.f32.xlu0 %v6342
  %v6344 = vpop.xlane.xlu0 %6343
  %v6345 = vsel %vm1169, %v6298, -inf
  %v6346 = vmax.f32 %v6297, %v6345
  %6347 = vmax.xlane.f32.xlu0 %v6346
  %v6348 = vpop.xlane.xlu0 %6347
  %v6349 = vsel %vm1169, %v6300, -inf
  %v6350 = vmax.f32 %v6299, %v6349
  %6351 = vmax.xlane.f32.xlu0 %v6350
  %v6352 = vpop.xlane.xlu0 %6351
  %v6353 = vsel %vm1169, %v6302, -inf
  %v6354 = vmax.f32 %v6301, %v6353
  %6355 = vmax.xlane.f32.xlu0 %v6354
  %v6356 = vpop.xlane.xlu0 %6355
  %v6357 = vsel %vm1169, %v6304, -inf
  %v6358 = vmax.f32 %v6303, %v6357
  %6359 = vmax.xlane.f32.xlu0 %v6358
  %v6360 = vpop.xlane.xlu0 %6359
  %v6361 = vsel %vm1169, %v6306, -inf
  %v6362 = vmax.f32 %v6305, %v6361
  %6363 = vmax.xlane.f32.xlu0 %v6362
  %v6364 = vpop.xlane.xlu0 %6363
  %v6365 = vsel %vm1169, %v6308, -inf
  %v6366 = vmax.f32 %v6307, %v6365
  %6367 = vmax.xlane.f32.xlu0 %v6366
  %v6368 = vpop.xlane.xlu0 %6367
  %v6369 = vsel %vm1169, %v6310, -inf
  %v6370 = vmax.f32 %v6309, %v6369
  %6371 = vmax.xlane.f32.xlu0 %v6370
  %v6372 = vpop.xlane.xlu0 %6371
  %v6373 = vsel %vm1169, %v6312, -inf
  %v6374 = vmax.f32 %v6311, %v6373
  %6375 = vmax.xlane.f32.xlu0 %v6374
  %v6376 = vpop.xlane.xlu0 %6375
  %v6377 = vsel %vm1169, %v6314, -inf
  %v6378 = vmax.f32 %v6313, %v6377
  %6379 = vmax.xlane.f32.xlu0 %v6378
  %v6380 = vpop.xlane.xlu0 %6379
  %v6381 = vsel %vm1169, %v6316, -inf
  %v6382 = vmax.f32 %v6315, %v6381
  %6383 = vmax.xlane.f32.xlu0 %v6382
  %v6384 = vpop.xlane.xlu0 %6383
  %v6385 = vsub.f32 %v6283, %v6320
  %v6386 = vsub.f32 %v6284, %v6320
  %v6387 = vsub.f32 %v6285, %v6324
  %v6388 = vsub.f32 %v6286, %v6324
  %v6389 = vsub.f32 %v6287, %v6328
  %v6390 = vsub.f32 %v6288, %v6328
  %v6391 = vsub.f32 %v6289, %v6332
  %v6392 = vsub.f32 %v6290, %v6332
  %v6393 = vsub.f32 %v6291, %v6336
  %v6394 = vsub.f32 %v6292, %v6336
  %v6395 = vsub.f32 %v6293, %v6340
  %v6396 = vsub.f32 %v6294, %v6340
  %v6397 = vsub.f32 %v6295, %v6344
  %v6398 = vsub.f32 %v6296, %v6344
  %v6399 = vsub.f32 %v6297, %v6348
  %v6400 = vsub.f32 %v6298, %v6348
  %v6401 = vsub.f32 %v6299, %v6352
  %v6402 = vsub.f32 %v6300, %v6352
  %v6403 = vsub.f32 %v6301, %v6356
  %v6404 = vsub.f32 %v6302, %v6356
  %v6405 = vsub.f32 %v6303, %v6360
  %v6406 = vsub.f32 %v6304, %v6360
  %v6407 = vsub.f32 %v6305, %v6364
  %v6408 = vsub.f32 %v6306, %v6364
  %v6409 = vsub.f32 %v6307, %v6368
  %v6410 = vsub.f32 %v6308, %v6368
  %v6411 = vsub.f32 %v6309, %v6372
  %v6412 = vsub.f32 %v6310, %v6372
  %v6413 = vsub.f32 %v6311, %v6376
  %v6414 = vsub.f32 %v6312, %v6376
  %v6415 = vsub.f32 %v6313, %v6380
  %v6416 = vsub.f32 %v6314, %v6380
  %v6417 = vsub.f32 %v6315, %v6384
  %v6418 = vsub.f32 %v6316, %v6384
  %v6419 = vmul.f32 %v6385, 1.442695
  %v6420 = vpow.pop %v6419
  %v6421 = vmul.f32 %v6386, 1.442695
  %v6422 = vpow.pop %v6421
  %v6423 = vmul.f32 %v6387, 1.442695
  %v6424 = vpow.pop %v6423
  %v6425 = vmul.f32 %v6388, 1.442695
  %v6426 = vpow.pop %v6425
  %v6427 = vmul.f32 %v6389, 1.442695
  %v6428 = vpow.pop %v6427
  %v6429 = vmul.f32 %v6390, 1.442695
  %v6430 = vpow.pop %v6429
  %v6431 = vmul.f32 %v6391, 1.442695
  %v6432 = vpow.pop %v6431
  %v6433 = vmul.f32 %v6392, 1.442695
  %v6434 = vpow.pop %v6433
  %v6435 = vmul.f32 %v6393, 1.442695
  %v6436 = vpow.pop %v6435
  %v6437 = vmul.f32 %v6394, 1.442695
  %v6438 = vpow.pop %v6437
  %v6439 = vmul.f32 %v6395, 1.442695
  %v6440 = vpow.pop %v6439
  %v6441 = vmul.f32 %v6396, 1.442695
  %v6442 = vpow.pop %v6441
  %v6443 = vmul.f32 %v6397, 1.442695
  %v6444 = vpow.pop %v6443
  %v6445 = vmul.f32 %v6398, 1.442695
  %v6446 = vpow.pop %v6445
  %v6447 = vmul.f32 %v6399, 1.442695
  %v6448 = vpow.pop %v6447
  %v6449 = vmul.f32 %v6400, 1.442695
  %v6450 = vpow.pop %v6449
  %v6451 = vmul.f32 %v6401, 1.442695
  %v6452 = vpow.pop %v6451
  %v6453 = vmul.f32 %v6402, 1.442695
  %v6454 = vpow.pop %v6453
  %v6455 = vmul.f32 %v6403, 1.442695
  %v6456 = vpow.pop %v6455
  %v6457 = vmul.f32 %v6404, 1.442695
  %v6458 = vpow.pop %v6457
  %v6459 = vmul.f32 %v6405, 1.442695
  %v6460 = vpow.pop %v6459
  %v6461 = vmul.f32 %v6406, 1.442695
  %v6462 = vpow.pop %v6461
  %v6463 = vmul.f32 %v6407, 1.442695
  %v6464 = vpow.pop %v6463
  %v6465 = vmul.f32 %v6408, 1.442695
  %v6466 = vpow.pop %v6465
  %v6467 = vmul.f32 %v6409, 1.442695
  %v6468 = vpow.pop %v6467
  %v6469 = vmul.f32 %v6410, 1.442695
  %v6470 = vpow.pop %v6469
  %v6471 = vmul.f32 %v6411, 1.442695
  %v6472 = vpow.pop %v6471
  %v6473 = vmul.f32 %v6412, 1.442695
  %v6474 = vpow.pop %v6473
  %v6475 = vmul.f32 %v6413, 1.442695
  %v6476 = vpow.pop %v6475
  %v6477 = vmul.f32 %v6414, 1.442695
  %v6478 = vpow.pop %v6477
  %v6479 = vmul.f32 %v6415, 1.442695
  %v6480 = vpow.pop %v6479
  %v6481 = vmul.f32 %v6416, 1.442695
  %v6482 = vpow.pop %v6481
  %v6483 = vmul.f32 %v6417, 1.442695
  %v6484 = vpow.pop %v6483
  %v6485 = vmul.f32 %v6418, 1.442695
  %v6486 = vpow.pop %v6485
  %v6487 = vsel %vm1169, %v6422, 0.0
  %v6488 = vadd.f32 %v6420, %v6487
  %6489 = vadd.xlane.f32.xlu0 %v6488
  %v6490 = vpop.xlane.xlu0 %6489
  %v6491 = vsel %vm1169, %v6426, 0.0
  %v6492 = vadd.f32 %v6424, %v6491
  %6493 = vadd.xlane.f32.xlu0 %v6492
  %v6494 = vpop.xlane.xlu0 %6493
  %v6495 = vsel %vm1169, %v6430, 0.0
  %v6496 = vadd.f32 %v6428, %v6495
  %6497 = vadd.xlane.f32.xlu0 %v6496
  %v6498 = vpop.xlane.xlu0 %6497
  %v6499 = vsel %vm1169, %v6434, 0.0
  %v6500 = vadd.f32 %v6432, %v6499
  %6501 = vadd.xlane.f32.xlu0 %v6500
  %v6502 = vpop.xlane.xlu0 %6501
  %v6503 = vsel %vm1169, %v6438, 0.0
  %v6504 = vadd.f32 %v6436, %v6503
  %6505 = vadd.xlane.f32.xlu0 %v6504
  %v6506 = vpop.xlane.xlu0 %6505
  %v6507 = vsel %vm1169, %v6442, 0.0
  %v6508 = vadd.f32 %v6440, %v6507
  %6509 = vadd.xlane.f32.xlu0 %v6508
  %v6510 = vpop.xlane.xlu0 %6509
  %v6511 = vsel %vm1169, %v6446, 0.0
  %v6512 = vadd.f32 %v6444, %v6511
  %6513 = vadd.xlane.f32.xlu0 %v6512
  %v6514 = vpop.xlane.xlu0 %6513
  %v6515 = vsel %vm1169, %v6450, 0.0
  %v6516 = vadd.f32 %v6448, %v6515
  %6517 = vadd.xlane.f32.xlu0 %v6516
  %v6518 = vpop.xlane.xlu0 %6517
  %v6519 = vsel %vm1169, %v6454, 0.0
  %v6520 = vadd.f32 %v6452, %v6519
  %6521 = vadd.xlane.f32.xlu0 %v6520
  %v6522 = vpop.xlane.xlu0 %6521
  %v6523 = vsel %vm1169, %v6458, 0.0
  %v6524 = vadd.f32 %v6456, %v6523
  %6525 = vadd.xlane.f32.xlu0 %v6524
  %v6526 = vpop.xlane.xlu0 %6525
  %v6527 = vsel %vm1169, %v6462, 0.0
  %v6528 = vadd.f32 %v6460, %v6527
  %6529 = vadd.xlane.f32.xlu0 %v6528
  %v6530 = vpop.xlane.xlu0 %6529
  %v6531 = vsel %vm1169, %v6466, 0.0
  %v6532 = vadd.f32 %v6464, %v6531
  %6533 = vadd.xlane.f32.xlu0 %v6532
  %v6534 = vpop.xlane.xlu0 %6533
  %v6535 = vsel %vm1169, %v6470, 0.0
  %v6536 = vadd.f32 %v6468, %v6535
  %6537 = vadd.xlane.f32.xlu0 %v6536
  %v6538 = vpop.xlane.xlu0 %6537
  %v6539 = vsel %vm1169, %v6474, 0.0
  %v6540 = vadd.f32 %v6472, %v6539
  %6541 = vadd.xlane.f32.xlu0 %v6540
  %v6542 = vpop.xlane.xlu0 %6541
  %v6543 = vsel %vm1169, %v6478, 0.0
  %v6544 = vadd.f32 %v6476, %v6543
  %6545 = vadd.xlane.f32.xlu0 %v6544
  %v6546 = vpop.xlane.xlu0 %6545
  %v6547 = vsel %vm1169, %v6482, 0.0
  %v6548 = vadd.f32 %v6480, %v6547
  %6549 = vadd.xlane.f32.xlu0 %v6548
  %v6550 = vpop.xlane.xlu0 %6549
  %v6551 = vsel %vm1169, %v6486, 0.0
  %v6552 = vadd.f32 %v6484, %v6551
  %6553 = vadd.xlane.f32.xlu0 %v6552
  %v6554 = vpop.xlane.xlu0 %6553
  %v6555 = vrcp.pop %v6490
  %v6556 = vrcp.pop %v6494
  %v6557 = vrcp.pop %v6498
  %v6558 = vrcp.pop %v6502
  %v6559 = vrcp.pop %v6506
  %v6560 = vrcp.pop %v6510
  %v6561 = vrcp.pop %v6514
  %v6562 = vrcp.pop %v6518
  %v6563 = vrcp.pop %v6522
  %v6564 = vrcp.pop %v6526
  %v6565 = vrcp.pop %v6530
  %v6566 = vrcp.pop %v6534
  %v6567 = vrcp.pop %v6538
  %v6568 = vrcp.pop %v6542
  %v6569 = vrcp.pop %v6546
  %v6570 = vrcp.pop %v6550
  %v6571 = vrcp.pop %v6554
  %v6572 = vmul.f32 %v6420, %v6555
  %v6573 = vmul.f32 %v6422, %v6555
  %v6574 = vmul.f32 %v6424, %v6556
  %v6575 = vmul.f32 %v6426, %v6556
  %v6576 = vmul.f32 %v6428, %v6557
  %v6577 = vmul.f32 %v6430, %v6557
  %v6578 = vmul.f32 %v6432, %v6558
  %v6579 = vmul.f32 %v6434, %v6558
  %v6580 = vmul.f32 %v6436, %v6559
  %v6581 = vmul.f32 %v6438, %v6559
  %v6582 = vmul.f32 %v6440, %v6560
  %v6583 = vmul.f32 %v6442, %v6560
  %v6584 = vmul.f32 %v6444, %v6561
  %v6585 = vmul.f32 %v6446, %v6561
  %v6586 = vmul.f32 %v6448, %v6562
  %v6587 = vmul.f32 %v6450, %v6562
  %v6588 = vmul.f32 %v6452, %v6563
  %v6589 = vmul.f32 %v6454, %v6563
  %v6590 = vmul.f32 %v6456, %v6564
  %v6591 = vmul.f32 %v6458, %v6564
  %v6592 = vmul.f32 %v6460, %v6565
  %v6593 = vmul.f32 %v6462, %v6565
  %v6594 = vmul.f32 %v6464, %v6566
  %v6595 = vmul.f32 %v6466, %v6566
  %v6596 = vmul.f32 %v6468, %v6567
  %v6597 = vmul.f32 %v6470, %v6567
  %v6598 = vmul.f32 %v6472, %v6568
  %v6599 = vmul.f32 %v6474, %v6568
  %v6600 = vmul.f32 %v6476, %v6569
  %v6601 = vmul.f32 %v6478, %v6569
  %v6602 = vmul.f32 %v6480, %v6570
  %v6603 = vmul.f32 %v6482, %v6570
  %v6604 = vmul.f32 %v6484, %v6571
  %v6605 = vmul.f32 %v6486, %v6571
  %v6606 = vpack.c.bf16 %v6574, %v6572
  %v6607 = vpack.c.bf16 %v6575, %v6573
  %v6608 = vpack.c.bf16 %v6578, %v6576
  %v6609 = vpack.c.bf16 %v6579, %v6577
  %v6610 = vpack.c.bf16 %v6582, %v6580
  %v6611 = vpack.c.bf16 %v6583, %v6581
  %v6612 = vpack.c.bf16 %v6586, %v6584
  %v6613 = vpack.c.bf16 %v6587, %v6585
  %v6614 = vpack.c.bf16 %v6590, %v6588
  %v6615 = vpack.c.bf16 %v6591, %v6589
  %v6616 = vpack.c.bf16 %v6594, %v6592
  %v6617 = vpack.c.bf16 %v6595, %v6593
  %v6618 = vpack.c.bf16 %v6598, %v6596
  %v6619 = vpack.c.bf16 %v6599, %v6597
  %v6620 = vpack.c.bf16 %v6602, %v6600
  %v6621 = vpack.c.bf16 %v6603, %v6601
  %v6622 = vpack.c.bf16 %v6604, %v6604
  %v6623 = vpack.c.bf16 %v6605, %v6605
  %v6625 = vsel %vm1169, %v6607, 0
  %v6628 = vsel %vm1169, %v6609, 0
  %v6631 = vsel %vm1169, %v6611, 0
  %v6634 = vsel %vm1169, %v6613, 0
  %v6637 = vsel %vm1169, %v6615, 0
  %v6640 = vsel %vm1169, %v6617, 0
  %v6643 = vsel %vm1169, %v6619, 0
  %v6646 = vsel %vm1169, %v6621, 0
  %v6649 = vsel %vm1169, %v6623, 0
  %v6652 = vsel %vm215, %v6061, 0
  %6654 = vmatpush.bf16.msra.mxu0 %v6060
  %6655 = vmatpush.bf16.msra.mxu0 %v6059
  %6656 = vmatpush.bf16.msra.mxu0 %v6058
  %6657 = vmatpush.bf16.msra.mxu0 %v6057
  %6658 = vmatpush.bf16.msra.mxu0 %v6056
  %6659 = vmatpush.bf16.msra.mxu0 %v6055
  %6660 = vmatpush.bf16.msra.mxu0 %v6054
  %6661 = vmatpush.bf16.msra.mxu0 %v6053
  %6662 = vmatmul.bf16.gmra.mxu0 %v6606
  %v6663 = vpop.f32.mrf.mxu0
  %v6664 = vadd.f32 0.0, %v6663
  %v6665 = vpop.f32.mrf.mxu0
  %v6666 = vadd.f32 0.0, %v6665
  %6667 = vmatmul.bf16.gmra.mxu0 %v6608
  %v6668 = vpop.f32.mrf.mxu0
  %v6669 = vadd.f32 0.0, %v6668
  %v6670 = vpop.f32.mrf.mxu0
  %v6671 = vadd.f32 0.0, %v6670
  %6672 = vmatmul.bf16.gmra.mxu0 %v6610
  %v6673 = vpop.f32.mrf.mxu0
  %v6674 = vadd.f32 0.0, %v6673
  %v6675 = vpop.f32.mrf.mxu0
  %v6676 = vadd.f32 0.0, %v6675
  %6677 = vmatmul.bf16.gmra.mxu0 %v6612
  %v6678 = vpop.f32.mrf.mxu0
  %v6679 = vadd.f32 0.0, %v6678
  %v6680 = vpop.f32.mrf.mxu0
  %v6681 = vadd.f32 0.0, %v6680
  %6682 = vmatmul.bf16.gmra.mxu0 %v6614
  %v6683 = vpop.f32.mrf.mxu0
  %v6684 = vadd.f32 0.0, %v6683
  %v6685 = vpop.f32.mrf.mxu0
  %v6686 = vadd.f32 0.0, %v6685
  %6687 = vmatmul.bf16.gmra.mxu0 %v6616
  %v6688 = vpop.f32.mrf.mxu0
  %v6689 = vadd.f32 0.0, %v6688
  %v6690 = vpop.f32.mrf.mxu0
  %v6691 = vadd.f32 0.0, %v6690
  %6692 = vmatmul.bf16.gmra.mxu0 %v6618
  %v6693 = vpop.f32.mrf.mxu0
  %v6694 = vadd.f32 0.0, %v6693
  %v6695 = vpop.f32.mrf.mxu0
  %v6696 = vadd.f32 0.0, %v6695
  %6697 = vmatmul.bf16.gmra.mxu0 %v6620
  %v6698 = vpop.f32.mrf.mxu0
  %v6699 = vadd.f32 0.0, %v6698
  %v6700 = vpop.f32.mrf.mxu0
  %v6701 = vadd.f32 0.0, %v6700
  %6702 = vmatmul.bf16.gmra.mxu0 %v6622
  %v6703 = vpop.f32.mrf.mxu0
  %v6704 = vadd.f32 0.0, %v6703
  %v6705 = vpop.f32.mrf.mxu0
  %6706 = vdwg.mxu0
  %6707 = vmatpush.bf16.msra.mxu0 0
  %6708 = vmatpush.bf16.msra.mxu0 0
  %6709 = vmatpush.bf16.msra.mxu0 0
  %6710 = vmatpush.bf16.msra.mxu0 0
  %6711 = vmatpush.bf16.msra.mxu0 0
  %6712 = vmatpush.bf16.msra.mxu0 0
  %6713 = vmatpush.bf16.msra.mxu0 0
  %6714 = vmatpush.bf16.msra.mxu0 %v6652
  %6715 = vmatmul.bf16.gmra.mxu0 %v6625
  %v6716 = vpop.f32.mrf.mxu0
  %v6717 = vadd.f32 %v6664, %v6716
  %v6718 = vpop.f32.mrf.mxu0
  %v6719 = vadd.f32 %v6666, %v6718
  %6720 = vmatmul.bf16.gmra.mxu0 %v6628
  %v6721 = vpop.f32.mrf.mxu0
  %v6722 = vadd.f32 %v6669, %v6721
  %v6723 = vpop.f32.mrf.mxu0
  %v6724 = vadd.f32 %v6671, %v6723
  %6725 = vmatmul.bf16.gmra.mxu0 %v6631
  %v6726 = vpop.f32.mrf.mxu0
  %v6727 = vadd.f32 %v6674, %v6726
  %v6728 = vpop.f32.mrf.mxu0
  %v6729 = vadd.f32 %v6676, %v6728
  %6730 = vmatmul.bf16.gmra.mxu0 %v6634
  %v6731 = vpop.f32.mrf.mxu0
  %v6732 = vadd.f32 %v6679, %v6731
  %v6733 = vpop.f32.mrf.mxu0
  %v6734 = vadd.f32 %v6681, %v6733
  %6735 = vmatmul.bf16.gmra.mxu0 %v6637
  %v6736 = vpop.f32.mrf.mxu0
  %v6737 = vadd.f32 %v6684, %v6736
  %v6738 = vpop.f32.mrf.mxu0
  %v6739 = vadd.f32 %v6686, %v6738
  %6740 = vmatmul.bf16.gmra.mxu0 %v6640
  %v6741 = vpop.f32.mrf.mxu0
  %v6742 = vadd.f32 %v6689, %v6741
  %v6743 = vpop.f32.mrf.mxu0
  %v6744 = vadd.f32 %v6691, %v6743
  %6745 = vmatmul.bf16.gmra.mxu0 %v6643
  %v6746 = vpop.f32.mrf.mxu0
  %v6747 = vadd.f32 %v6694, %v6746
  %v6748 = vpop.f32.mrf.mxu0
  %v6749 = vadd.f32 %v6696, %v6748
  %6750 = vmatmul.bf16.gmra.mxu0 %v6646
  %v6751 = vpop.f32.mrf.mxu0
  %v6752 = vadd.f32 %v6699, %v6751
  %v6753 = vpop.f32.mrf.mxu0
  %v6754 = vadd.f32 %v6701, %v6753
  %6755 = vmatmul.bf16.gmra.mxu0 %v6649
  %v6756 = vpop.f32.mrf.mxu0
  %v6757 = vadd.f32 %v6704, %v6756
  %v6758 = vpop.f32.mrf.mxu0
  %6759 = vdwg.mxu0
  %6760 = vrot.lane.b32.xlu0 %v6044, 112
  %v6761 = vpop.permute.xlu0 %6760
  %6762 = vrot.lane.b32.xlu0 %v6045, 112
  %v6763 = vpop.permute.xlu0 %6762
  %6764 = vrot.lane.b32.xlu0 %v6046, 112
  %v6765 = vpop.permute.xlu0 %6764
  %6766 = vrot.lane.b32.xlu0 %v6047, 112
  %v6767 = vpop.permute.xlu0 %6766
  %6768 = vrot.lane.b32.xlu0 %v6048, 112
  %v6769 = vpop.permute.xlu0 %6768
  %6770 = vrot.lane.b32.xlu0 %v6049, 112
  %v6771 = vpop.permute.xlu0 %6770
  %6772 = vrot.lane.b32.xlu0 %v6050, 112
  %v6773 = vpop.permute.xlu0 %6772
  %6774 = vrot.lane.b32.xlu0 %v6051, 112
  %v6775 = vpop.permute.xlu0 %6774
  %6776 = vrot.lane.b32.xlu0 %v6052, 112
  %v6777 = vpop.permute.xlu0 %6776
  %6778 = vrot.lane.b32.xlu0 %v6044, 48
  %v6779 = vpop.permute.xlu0 %6778
  %6780 = vrot.lane.b32.xlu0 %v6045, 48
  %v6781 = vpop.permute.xlu0 %6780
  %6782 = vrot.lane.b32.xlu0 %v6046, 48
  %v6783 = vpop.permute.xlu0 %6782
  %6784 = vrot.lane.b32.xlu0 %v6047, 48
  %v6785 = vpop.permute.xlu0 %6784
  %6786 = vrot.lane.b32.xlu0 %v6048, 48
  %v6787 = vpop.permute.xlu0 %6786
  %6788 = vrot.lane.b32.xlu0 %v6049, 48
  %v6789 = vpop.permute.xlu0 %6788
  %6790 = vrot.lane.b32.xlu0 %v6050, 48
  %v6791 = vpop.permute.xlu0 %6790
  %6792 = vrot.lane.b32.xlu0 %v6051, 48
  %v6793 = vpop.permute.xlu0 %6792
  %6794 = vrot.lane.b32.xlu0 %v6052, 48
  %v6795 = vpop.permute.xlu0 %6794
  %v6797 = vsel %vm940, %v6761, 0
  %v6800 = vsel %vm940, %v6763, 0
  %v6803 = vsel %vm940, %v6765, 0
  %v6806 = vsel %vm940, %v6767, 0
  %v6809 = vsel %vm940, %v6769, 0
  %v6812 = vsel %vm940, %v6771, 0
  %v6815 = vsel %vm940, %v6773, 0
  %v6818 = vsel %vm940, %v6775, 0
  %v6821 = vsel %vm940, %v6777, 0
  %v6824 = vsel %vm940, %v6779, 0
  %v6827 = vsel %vm940, %v6781, 0
  %v6830 = vsel %vm940, %v6783, 0
  %v6833 = vsel %vm940, %v6785, 0
  %v6836 = vsel %vm940, %v6787, 0
  %v6839 = vsel %vm940, %v6789, 0
  %v6842 = vsel %vm940, %v6791, 0
  %v6845 = vsel %vm940, %v6793, 0
  %v6848 = vsel %vm940, %v6795, 0
  %6850 = vmatpush.bf16.xpose.msra.mxu0 %v6845
  %6851 = vmatpush.bf16.xpose.msra.mxu0 %v6842
  %6852 = vmatpush.bf16.xpose.msra.mxu0 %v6839
  %6853 = vmatpush.bf16.xpose.msra.mxu0 %v6836
  %6854 = vmatpush.bf16.xpose.msra.mxu0 %v6833
  %6855 = vmatpush.bf16.xpose.msra.mxu0 %v6830
  %6856 = vmatpush.bf16.xpose.msra.mxu0 %v6827
  %6857 = vmatpush.bf16.xpose.msra.mxu0 %v6824
  %6858 = vmatmul.bf16.gmra.mxu0 %v6797
  %v6859 = vpop.f32.mrf.mxu0
  %v6860 = vadd.f32 0.0, %v6859
  %v6861 = vpop.f32.mrf.mxu0
  %v6862 = vadd.f32 0.0, %v6861
  %6863 = vmatmul.bf16.gmra.mxu0 %v6800
  %v6864 = vpop.f32.mrf.mxu0
  %v6865 = vadd.f32 0.0, %v6864
  %v6866 = vpop.f32.mrf.mxu0
  %v6867 = vadd.f32 0.0, %v6866
  %6868 = vmatmul.bf16.gmra.mxu0 %v6803
  %v6869 = vpop.f32.mrf.mxu0
  %v6870 = vadd.f32 0.0, %v6869
  %v6871 = vpop.f32.mrf.mxu0
  %v6872 = vadd.f32 0.0, %v6871
  %6873 = vmatmul.bf16.gmra.mxu0 %v6806
  %v6874 = vpop.f32.mrf.mxu0
  %v6875 = vadd.f32 0.0, %v6874
  %v6876 = vpop.f32.mrf.mxu0
  %v6877 = vadd.f32 0.0, %v6876
  %6878 = vmatmul.bf16.gmra.mxu0 %v6809
  %v6879 = vpop.f32.mrf.mxu0
  %v6880 = vadd.f32 0.0, %v6879
  %v6881 = vpop.f32.mrf.mxu0
  %v6882 = vadd.f32 0.0, %v6881
  %6883 = vmatmul.bf16.gmra.mxu0 %v6812
  %v6884 = vpop.f32.mrf.mxu0
  %v6885 = vadd.f32 0.0, %v6884
  %v6886 = vpop.f32.mrf.mxu0
  %v6887 = vadd.f32 0.0, %v6886
  %6888 = vmatmul.bf16.gmra.mxu0 %v6815
  %v6889 = vpop.f32.mrf.mxu0
  %v6890 = vadd.f32 0.0, %v6889
  %v6891 = vpop.f32.mrf.mxu0
  %v6892 = vadd.f32 0.0, %v6891
  %6893 = vmatmul.bf16.gmra.mxu0 %v6818
  %v6894 = vpop.f32.mrf.mxu0
  %v6895 = vadd.f32 0.0, %v6894
  %v6896 = vpop.f32.mrf.mxu0
  %v6897 = vadd.f32 0.0, %v6896
  %6898 = vmatmul.bf16.gmra.mxu0 %v6821
  %v6899 = vpop.f32.mrf.mxu0
  %v6900 = vadd.f32 0.0, %v6899
  %v6901 = vpop.f32.mrf.mxu0
  %6902 = vdwg.mxu0
  %6903 = vmatpush.bf16.xpose.msra.mxu0 0
  %6904 = vmatpush.bf16.xpose.msra.mxu0 0
  %6905 = vmatpush.bf16.xpose.msra.mxu0 0
  %6906 = vmatpush.bf16.xpose.msra.mxu0 0
  %6907 = vmatpush.bf16.xpose.msra.mxu0 0
  %6908 = vmatpush.bf16.xpose.msra.mxu0 0
  %6909 = vmatpush.bf16.xpose.msra.mxu0 0
  %6910 = vmatpush.bf16.xpose.msra.mxu0 %v6848
  %6911 = vmatmul.bf16.gmra.mxu0 %v6797
  %v6912 = vpop.f32.mrf.mxu0
  %v6913 = vadd.f32 0.0, %v6912
  %v6914 = vpop.f32.mrf.mxu0
  %v6915 = vadd.f32 0.0, %v6914
  %6916 = vmatmul.bf16.gmra.mxu0 %v6800
  %v6917 = vpop.f32.mrf.mxu0
  %v6918 = vadd.f32 0.0, %v6917
  %v6919 = vpop.f32.mrf.mxu0
  %v6920 = vadd.f32 0.0, %v6919
  %6921 = vmatmul.bf16.gmra.mxu0 %v6803
  %v6922 = vpop.f32.mrf.mxu0
  %v6923 = vadd.f32 0.0, %v6922
  %v6924 = vpop.f32.mrf.mxu0
  %v6925 = vadd.f32 0.0, %v6924
  %6926 = vmatmul.bf16.gmra.mxu0 %v6806
  %v6927 = vpop.f32.mrf.mxu0
  %v6928 = vadd.f32 0.0, %v6927
  %v6929 = vpop.f32.mrf.mxu0
  %v6930 = vadd.f32 0.0, %v6929
  %6931 = vmatmul.bf16.gmra.mxu0 %v6809
  %v6932 = vpop.f32.mrf.mxu0
  %v6933 = vadd.f32 0.0, %v6932
  %v6934 = vpop.f32.mrf.mxu0
  %v6935 = vadd.f32 0.0, %v6934
  %6936 = vmatmul.bf16.gmra.mxu0 %v6812
  %v6937 = vpop.f32.mrf.mxu0
  %v6938 = vadd.f32 0.0, %v6937
  %v6939 = vpop.f32.mrf.mxu0
  %v6940 = vadd.f32 0.0, %v6939
  %6941 = vmatmul.bf16.gmra.mxu0 %v6815
  %v6942 = vpop.f32.mrf.mxu0
  %v6943 = vadd.f32 0.0, %v6942
  %v6944 = vpop.f32.mrf.mxu0
  %v6945 = vadd.f32 0.0, %v6944
  %6946 = vmatmul.bf16.gmra.mxu0 %v6818
  %v6947 = vpop.f32.mrf.mxu0
  %v6948 = vadd.f32 0.0, %v6947
  %v6949 = vpop.f32.mrf.mxu0
  %v6950 = vadd.f32 0.0, %v6949
  %6951 = vmatmul.bf16.gmra.mxu0 %v6821
  %v6952 = vpop.f32.mrf.mxu0
  %v6953 = vadd.f32 0.0, %v6952
  %v6954 = vpop.f32.mrf.mxu0
  %6955 = vdwg.mxu0
  %v6956 = vmul.f32 %v6860, 0.25
  %v6957 = vmul.f32 %v6913, 0.25
  %v6958 = vmul.f32 %v6862, 0.25
  %v6959 = vmul.f32 %v6915, 0.25
  %v6960 = vmul.f32 %v6865, 0.25
  %v6961 = vmul.f32 %v6918, 0.25
  %v6962 = vmul.f32 %v6867, 0.25
  %v6963 = vmul.f32 %v6920, 0.25
  %v6964 = vmul.f32 %v6870, 0.25
  %v6965 = vmul.f32 %v6923, 0.25
  %v6966 = vmul.f32 %v6872, 0.25
  %v6967 = vmul.f32 %v6925, 0.25
  %v6968 = vmul.f32 %v6875, 0.25
  %v6969 = vmul.f32 %v6928, 0.25
  %v6970 = vmul.f32 %v6877, 0.25
  %v6971 = vmul.f32 %v6930, 0.25
  %v6972 = vmul.f32 %v6880, 0.25
  %v6973 = vmul.f32 %v6933, 0.25
  %v6974 = vmul.f32 %v6882, 0.25
  %v6975 = vmul.f32 %v6935, 0.25
  %v6976 = vmul.f32 %v6885, 0.25
  %v6977 = vmul.f32 %v6938, 0.25
  %v6978 = vmul.f32 %v6887, 0.25
  %v6979 = vmul.f32 %v6940, 0.25
  %v6980 = vmul.f32 %v6890, 0.25
  %v6981 = vmul.f32 %v6943, 0.25
  %v6982 = vmul.f32 %v6892, 0.25
  %v6983 = vmul.f32 %v6945, 0.25
  %v6984 = vmul.f32 %v6895, 0.25
  %v6985 = vmul.f32 %v6948, 0.25
  %v6986 = vmul.f32 %v6897, 0.25
  %v6987 = vmul.f32 %v6950, 0.25
  %v6988 = vmul.f32 %v6900, 0.25
  %v6989 = vmul.f32 %v6953, 0.25
  %v6990 = vadd.f32 %v6956, %v120
  %v6991 = vadd.f32 %v6957, %v121
  %v6992 = vadd.f32 %v6958, %v122
  %v6993 = vadd.f32 %v6959, %v123
  %v6994 = vadd.f32 %v6960, %v124
  %v6995 = vadd.f32 %v6961, %v125
  %v6996 = vadd.f32 %v6962, %v126
  %v6997 = vadd.f32 %v6963, %v127
  %v6998 = vadd.f32 %v6964, %v128
  %v6999 = vadd.f32 %v6965, %v129
  %v7000 = vadd.f32 %v6966, %v130
  %v7001 = vadd.f32 %v6967, %v131
  %v7002 = vadd.f32 %v6968, %v132
  %v7003 = vadd.f32 %v6969, %v133
  %v7004 = vadd.f32 %v6970, %v134
  %v7005 = vadd.f32 %v6971, %v135
  %v7006 = vadd.f32 %v6972, %v136
  %v7007 = vadd.f32 %v6973, %v137
  %v7008 = vadd.f32 %v6974, %v138
  %v7009 = vadd.f32 %v6975, %v139
  %v7010 = vadd.f32 %v6976, %v140
  %v7011 = vadd.f32 %v6977, %v141
  %v7012 = vadd.f32 %v6978, %v142
  %v7013 = vadd.f32 %v6979, %v143
  %v7014 = vadd.f32 %v6980, %v144
  %v7015 = vadd.f32 %v6981, %v145
  %v7016 = vadd.f32 %v6982, %v146
  %v7017 = vadd.f32 %v6983, %v147
  %v7018 = vadd.f32 %v6984, %v148
  %v7019 = vadd.f32 %v6985, %v149
  %v7020 = vadd.f32 %v6986, %v150
  %v7021 = vadd.f32 %v6987, %v151
  %v7022 = vadd.f32 %v6988, %v152
  %v7023 = vadd.f32 %v6989, %v153
  %v7024 = vsel %vm1169, %v6991, -inf
  %v7025 = vmax.f32 %v6990, %v7024
  %7026 = vmax.xlane.f32.xlu0 %v7025
  %v7027 = vpop.xlane.xlu0 %7026
  %v7028 = vsel %vm1169, %v6993, -inf
  %v7029 = vmax.f32 %v6992, %v7028
  %7030 = vmax.xlane.f32.xlu0 %v7029
  %v7031 = vpop.xlane.xlu0 %7030
  %v7032 = vsel %vm1169, %v6995, -inf
  %v7033 = vmax.f32 %v6994, %v7032
  %7034 = vmax.xlane.f32.xlu0 %v7033
  %v7035 = vpop.xlane.xlu0 %7034
  %v7036 = vsel %vm1169, %v6997, -inf
  %v7037 = vmax.f32 %v6996, %v7036
  %7038 = vmax.xlane.f32.xlu0 %v7037
  %v7039 = vpop.xlane.xlu0 %7038
  %v7040 = vsel %vm1169, %v6999, -inf
  %v7041 = vmax.f32 %v6998, %v7040
  %7042 = vmax.xlane.f32.xlu0 %v7041
  %v7043 = vpop.xlane.xlu0 %7042
  %v7044 = vsel %vm1169, %v7001, -inf
  %v7045 = vmax.f32 %v7000, %v7044
  %7046 = vmax.xlane.f32.xlu0 %v7045
  %v7047 = vpop.xlane.xlu0 %7046
  %v7048 = vsel %vm1169, %v7003, -inf
  %v7049 = vmax.f32 %v7002, %v7048
  %7050 = vmax.xlane.f32.xlu0 %v7049
  %v7051 = vpop.xlane.xlu0 %7050
  %v7052 = vsel %vm1169, %v7005, -inf
  %v7053 = vmax.f32 %v7004, %v7052
  %7054 = vmax.xlane.f32.xlu0 %v7053
  %v7055 = vpop.xlane.xlu0 %7054
  %v7056 = vsel %vm1169, %v7007, -inf
  %v7057 = vmax.f32 %v7006, %v7056
  %7058 = vmax.xlane.f32.xlu0 %v7057
  %v7059 = vpop.xlane.xlu0 %7058
  %v7060 = vsel %vm1169, %v7009, -inf
  %v7061 = vmax.f32 %v7008, %v7060
  %7062 = vmax.xlane.f32.xlu0 %v7061
  %v7063 = vpop.xlane.xlu0 %7062
  %v7064 = vsel %vm1169, %v7011, -inf
  %v7065 = vmax.f32 %v7010, %v7064
  %7066 = vmax.xlane.f32.xlu0 %v7065
  %v7067 = vpop.xlane.xlu0 %7066
  %v7068 = vsel %vm1169, %v7013, -inf
  %v7069 = vmax.f32 %v7012, %v7068
  %7070 = vmax.xlane.f32.xlu0 %v7069
  %v7071 = vpop.xlane.xlu0 %7070
  %v7072 = vsel %vm1169, %v7015, -inf
  %v7073 = vmax.f32 %v7014, %v7072
  %7074 = vmax.xlane.f32.xlu0 %v7073
  %v7075 = vpop.xlane.xlu0 %7074
  %v7076 = vsel %vm1169, %v7017, -inf
  %v7077 = vmax.f32 %v7016, %v7076
  %7078 = vmax.xlane.f32.xlu0 %v7077
  %v7079 = vpop.xlane.xlu0 %7078
  %v7080 = vsel %vm1169, %v7019, -inf
  %v7081 = vmax.f32 %v7018, %v7080
  %7082 = vmax.xlane.f32.xlu0 %v7081
  %v7083 = vpop.xlane.xlu0 %7082
  %v7084 = vsel %vm1169, %v7021, -inf
  %v7085 = vmax.f32 %v7020, %v7084
  %7086 = vmax.xlane.f32.xlu0 %v7085
  %v7087 = vpop.xlane.xlu0 %7086
  %v7088 = vsel %vm1169, %v7023, -inf
  %v7089 = vmax.f32 %v7022, %v7088
  %7090 = vmax.xlane.f32.xlu0 %v7089
  %v7091 = vpop.xlane.xlu0 %7090
  %v7092 = vsub.f32 %v6990, %v7027
  %v7093 = vsub.f32 %v6991, %v7027
  %v7094 = vsub.f32 %v6992, %v7031
  %v7095 = vsub.f32 %v6993, %v7031
  %v7096 = vsub.f32 %v6994, %v7035
  %v7097 = vsub.f32 %v6995, %v7035
  %v7098 = vsub.f32 %v6996, %v7039
  %v7099 = vsub.f32 %v6997, %v7039
  %v7100 = vsub.f32 %v6998, %v7043
  %v7101 = vsub.f32 %v6999, %v7043
  %v7102 = vsub.f32 %v7000, %v7047
  %v7103 = vsub.f32 %v7001, %v7047
  %v7104 = vsub.f32 %v7002, %v7051
  %v7105 = vsub.f32 %v7003, %v7051
  %v7106 = vsub.f32 %v7004, %v7055
  %v7107 = vsub.f32 %v7005, %v7055
  %v7108 = vsub.f32 %v7006, %v7059
  %v7109 = vsub.f32 %v7007, %v7059
  %v7110 = vsub.f32 %v7008, %v7063
  %v7111 = vsub.f32 %v7009, %v7063
  %v7112 = vsub.f32 %v7010, %v7067
  %v7113 = vsub.f32 %v7011, %v7067
  %v7114 = vsub.f32 %v7012, %v7071
  %v7115 = vsub.f32 %v7013, %v7071
  %v7116 = vsub.f32 %v7014, %v7075
  %v7117 = vsub.f32 %v7015, %v7075
  %v7118 = vsub.f32 %v7016, %v7079
  %v7119 = vsub.f32 %v7017, %v7079
  %v7120 = vsub.f32 %v7018, %v7083
  %v7121 = vsub.f32 %v7019, %v7083
  %v7122 = vsub.f32 %v7020, %v7087
  %v7123 = vsub.f32 %v7021, %v7087
  %v7124 = vsub.f32 %v7022, %v7091
  %v7125 = vsub.f32 %v7023, %v7091
  %v7126 = vmul.f32 %v7092, 1.442695
  %v7127 = vpow.pop %v7126
  %v7128 = vmul.f32 %v7093, 1.442695
  %v7129 = vpow.pop %v7128
  %v7130 = vmul.f32 %v7094, 1.442695
  %v7131 = vpow.pop %v7130
  %v7132 = vmul.f32 %v7095, 1.442695
  %v7133 = vpow.pop %v7132
  %v7134 = vmul.f32 %v7096, 1.442695
  %v7135 = vpow.pop %v7134
  %v7136 = vmul.f32 %v7097, 1.442695
  %v7137 = vpow.pop %v7136
  %v7138 = vmul.f32 %v7098, 1.442695
  %v7139 = vpow.pop %v7138
  %v7140 = vmul.f32 %v7099, 1.442695
  %v7141 = vpow.pop %v7140
  %v7142 = vmul.f32 %v7100, 1.442695
  %v7143 = vpow.pop %v7142
  %v7144 = vmul.f32 %v7101, 1.442695
  %v7145 = vpow.pop %v7144
  %v7146 = vmul.f32 %v7102, 1.442695
  %v7147 = vpow.pop %v7146
  %v7148 = vmul.f32 %v7103, 1.442695
  %v7149 = vpow.pop %v7148
  %v7150 = vmul.f32 %v7104, 1.442695
  %v7151 = vpow.pop %v7150
  %v7152 = vmul.f32 %v7105, 1.442695
  %v7153 = vpow.pop %v7152
  %v7154 = vmul.f32 %v7106, 1.442695
  %v7155 = vpow.pop %v7154
  %v7156 = vmul.f32 %v7107, 1.442695
  %v7157 = vpow.pop %v7156
  %v7158 = vmul.f32 %v7108, 1.442695
  %v7159 = vpow.pop %v7158
  %v7160 = vmul.f32 %v7109, 1.442695
  %v7161 = vpow.pop %v7160
  %v7162 = vmul.f32 %v7110, 1.442695
  %v7163 = vpow.pop %v7162
  %v7164 = vmul.f32 %v7111, 1.442695
  %v7165 = vpow.pop %v7164
  %v7166 = vmul.f32 %v7112, 1.442695
  %v7167 = vpow.pop %v7166
  %v7168 = vmul.f32 %v7113, 1.442695
  %v7169 = vpow.pop %v7168
  %v7170 = vmul.f32 %v7114, 1.442695
  %v7171 = vpow.pop %v7170
  %v7172 = vmul.f32 %v7115, 1.442695
  %v7173 = vpow.pop %v7172
  %v7174 = vmul.f32 %v7116, 1.442695
  %v7175 = vpow.pop %v7174
  %v7176 = vmul.f32 %v7117, 1.442695
  %v7177 = vpow.pop %v7176
  %v7178 = vmul.f32 %v7118, 1.442695
  %v7179 = vpow.pop %v7178
  %v7180 = vmul.f32 %v7119, 1.442695
  %v7181 = vpow.pop %v7180
  %v7182 = vmul.f32 %v7120, 1.442695
  %v7183 = vpow.pop %v7182
  %v7184 = vmul.f32 %v7121, 1.442695
  %v7185 = vpow.pop %v7184
  %v7186 = vmul.f32 %v7122, 1.442695
  %v7187 = vpow.pop %v7186
  %v7188 = vmul.f32 %v7123, 1.442695
  %v7189 = vpow.pop %v7188
  %v7190 = vmul.f32 %v7124, 1.442695
  %v7191 = vpow.pop %v7190
  %v7192 = vmul.f32 %v7125, 1.442695
  %v7193 = vpow.pop %v7192
  %v7194 = vsel %vm1169, %v7129, 0.0
  %v7195 = vadd.f32 %v7127, %v7194
  %7196 = vadd.xlane.f32.xlu0 %v7195
  %v7197 = vpop.xlane.xlu0 %7196
  %v7198 = vsel %vm1169, %v7133, 0.0
  %v7199 = vadd.f32 %v7131, %v7198
  %7200 = vadd.xlane.f32.xlu0 %v7199
  %v7201 = vpop.xlane.xlu0 %7200
  %v7202 = vsel %vm1169, %v7137, 0.0
  %v7203 = vadd.f32 %v7135, %v7202
  %7204 = vadd.xlane.f32.xlu0 %v7203
  %v7205 = vpop.xlane.xlu0 %7204
  %v7206 = vsel %vm1169, %v7141, 0.0
  %v7207 = vadd.f32 %v7139, %v7206
  %7208 = vadd.xlane.f32.xlu0 %v7207
  %v7209 = vpop.xlane.xlu0 %7208
  %v7210 = vsel %vm1169, %v7145, 0.0
  %v7211 = vadd.f32 %v7143, %v7210
  %7212 = vadd.xlane.f32.xlu0 %v7211
  %v7213 = vpop.xlane.xlu0 %7212
  %v7214 = vsel %vm1169, %v7149, 0.0
  %v7215 = vadd.f32 %v7147, %v7214
  %7216 = vadd.xlane.f32.xlu0 %v7215
  %v7217 = vpop.xlane.xlu0 %7216
  %v7218 = vsel %vm1169, %v7153, 0.0
  %v7219 = vadd.f32 %v7151, %v7218
  %7220 = vadd.xlane.f32.xlu0 %v7219
  %v7221 = vpop.xlane.xlu0 %7220
  %v7222 = vsel %vm1169, %v7157, 0.0
  %v7223 = vadd.f32 %v7155, %v7222
  %7224 = vadd.xlane.f32.xlu0 %v7223
  %v7225 = vpop.xlane.xlu0 %7224
  %v7226 = vsel %vm1169, %v7161, 0.0
  %v7227 = vadd.f32 %v7159, %v7226
  %7228 = vadd.xlane.f32.xlu0 %v7227
  %v7229 = vpop.xlane.xlu0 %7228
  %v7230 = vsel %vm1169, %v7165, 0.0
  %v7231 = vadd.f32 %v7163, %v7230
  %7232 = vadd.xlane.f32.xlu0 %v7231
  %v7233 = vpop.xlane.xlu0 %7232
  %v7234 = vsel %vm1169, %v7169, 0.0
  %v7235 = vadd.f32 %v7167, %v7234
  %7236 = vadd.xlane.f32.xlu0 %v7235
  %v7237 = vpop.xlane.xlu0 %7236
  %v7238 = vsel %vm1169, %v7173, 0.0
  %v7239 = vadd.f32 %v7171, %v7238
  %7240 = vadd.xlane.f32.xlu0 %v7239
  %v7241 = vpop.xlane.xlu0 %7240
  %v7242 = vsel %vm1169, %v7177, 0.0
  %v7243 = vadd.f32 %v7175, %v7242
  %7244 = vadd.xlane.f32.xlu0 %v7243
  %v7245 = vpop.xlane.xlu0 %7244
  %v7246 = vsel %vm1169, %v7181, 0.0
  %v7247 = vadd.f32 %v7179, %v7246
  %7248 = vadd.xlane.f32.xlu0 %v7247
  %v7249 = vpop.xlane.xlu0 %7248
  %v7250 = vsel %vm1169, %v7185, 0.0
  %v7251 = vadd.f32 %v7183, %v7250
  %7252 = vadd.xlane.f32.xlu0 %v7251
  %v7253 = vpop.xlane.xlu0 %7252
  %v7254 = vsel %vm1169, %v7189, 0.0
  %v7255 = vadd.f32 %v7187, %v7254
  %7256 = vadd.xlane.f32.xlu0 %v7255
  %v7257 = vpop.xlane.xlu0 %7256
  %v7258 = vsel %vm1169, %v7193, 0.0
  %v7259 = vadd.f32 %v7191, %v7258
  %7260 = vadd.xlane.f32.xlu0 %v7259
  %v7261 = vpop.xlane.xlu0 %7260
  %v7262 = vrcp.pop %v7197
  %v7263 = vrcp.pop %v7201
  %v7264 = vrcp.pop %v7205
  %v7265 = vrcp.pop %v7209
  %v7266 = vrcp.pop %v7213
  %v7267 = vrcp.pop %v7217
  %v7268 = vrcp.pop %v7221
  %v7269 = vrcp.pop %v7225
  %v7270 = vrcp.pop %v7229
  %v7271 = vrcp.pop %v7233
  %v7272 = vrcp.pop %v7237
  %v7273 = vrcp.pop %v7241
  %v7274 = vrcp.pop %v7245
  %v7275 = vrcp.pop %v7249
  %v7276 = vrcp.pop %v7253
  %v7277 = vrcp.pop %v7257
  %v7278 = vrcp.pop %v7261
  %v7279 = vmul.f32 %v7127, %v7262
  %v7280 = vmul.f32 %v7129, %v7262
  %v7281 = vmul.f32 %v7131, %v7263
  %v7282 = vmul.f32 %v7133, %v7263
  %v7283 = vmul.f32 %v7135, %v7264
  %v7284 = vmul.f32 %v7137, %v7264
  %v7285 = vmul.f32 %v7139, %v7265
  %v7286 = vmul.f32 %v7141, %v7265
  %v7287 = vmul.f32 %v7143, %v7266
  %v7288 = vmul.f32 %v7145, %v7266
  %v7289 = vmul.f32 %v7147, %v7267
  %v7290 = vmul.f32 %v7149, %v7267
  %v7291 = vmul.f32 %v7151, %v7268
  %v7292 = vmul.f32 %v7153, %v7268
  %v7293 = vmul.f32 %v7155, %v7269
  %v7294 = vmul.f32 %v7157, %v7269
  %v7295 = vmul.f32 %v7159, %v7270
  %v7296 = vmul.f32 %v7161, %v7270
  %v7297 = vmul.f32 %v7163, %v7271
  %v7298 = vmul.f32 %v7165, %v7271
  %v7299 = vmul.f32 %v7167, %v7272
  %v7300 = vmul.f32 %v7169, %v7272
  %v7301 = vmul.f32 %v7171, %v7273
  %v7302 = vmul.f32 %v7173, %v7273
  %v7303 = vmul.f32 %v7175, %v7274
  %v7304 = vmul.f32 %v7177, %v7274
  %v7305 = vmul.f32 %v7179, %v7275
  %v7306 = vmul.f32 %v7181, %v7275
  %v7307 = vmul.f32 %v7183, %v7276
  %v7308 = vmul.f32 %v7185, %v7276
  %v7309 = vmul.f32 %v7187, %v7277
  %v7310 = vmul.f32 %v7189, %v7277
  %v7311 = vmul.f32 %v7191, %v7278
  %v7312 = vmul.f32 %v7193, %v7278
  %v7313 = vpack.c.bf16 %v7281, %v7279
  %v7314 = vpack.c.bf16 %v7282, %v7280
  %v7315 = vpack.c.bf16 %v7285, %v7283
  %v7316 = vpack.c.bf16 %v7286, %v7284
  %v7317 = vpack.c.bf16 %v7289, %v7287
  %v7318 = vpack.c.bf16 %v7290, %v7288
  %v7319 = vpack.c.bf16 %v7293, %v7291
  %v7320 = vpack.c.bf16 %v7294, %v7292
  %v7321 = vpack.c.bf16 %v7297, %v7295
  %v7322 = vpack.c.bf16 %v7298, %v7296
  %v7323 = vpack.c.bf16 %v7301, %v7299
  %v7324 = vpack.c.bf16 %v7302, %v7300
  %v7325 = vpack.c.bf16 %v7305, %v7303
  %v7326 = vpack.c.bf16 %v7306, %v7304
  %v7327 = vpack.c.bf16 %v7309, %v7307
  %v7328 = vpack.c.bf16 %v7310, %v7308
  %v7329 = vpack.c.bf16 %v7311, %v7311
  %v7330 = vpack.c.bf16 %v7312, %v7312
  %7340 = vrot.lane.b32.xlu0 %v6053, 112
  %v7341 = vpop.permute.xlu0 %7340
  %7342 = vrot.lane.b32.xlu0 %v6054, 112
  %v7343 = vpop.permute.xlu0 %7342
  %7344 = vrot.lane.b32.xlu0 %v6055, 112
  %v7345 = vpop.permute.xlu0 %7344
  %7346 = vrot.lane.b32.xlu0 %v6056, 112
  %v7347 = vpop.permute.xlu0 %7346
  %7348 = vrot.lane.b32.xlu0 %v6057, 112
  %v7349 = vpop.permute.xlu0 %7348
  %7350 = vrot.lane.b32.xlu0 %v6058, 112
  %v7351 = vpop.permute.xlu0 %7350
  %7352 = vrot.lane.b32.xlu0 %v6059, 112
  %v7353 = vpop.permute.xlu0 %7352
  %7354 = vrot.lane.b32.xlu0 %v6060, 112
  %v7355 = vpop.permute.xlu0 %7354
  %7356 = vrot.lane.b32.xlu0 %v6061, 112
  %v7357 = vpop.permute.xlu0 %7356
  %v7367 = vsel %vm1169, %v7314, 0
  %v7370 = vsel %vm1169, %v7316, 0
  %v7373 = vsel %vm1169, %v7318, 0
  %v7376 = vsel %vm1169, %v7320, 0
  %v7379 = vsel %vm1169, %v7322, 0
  %v7382 = vsel %vm1169, %v7324, 0
  %v7385 = vsel %vm1169, %v7326, 0
  %v7388 = vsel %vm1169, %v7328, 0
  %v7391 = vsel %vm1169, %v7330, 0
  %v7394 = vsel %vm215, %v7357, 0
  %7396 = vmatpush.bf16.msra.mxu0 %v7355
  %7397 = vmatpush.bf16.msra.mxu0 %v7353
  %7398 = vmatpush.bf16.msra.mxu0 %v7351
  %7399 = vmatpush.bf16.msra.mxu0 %v7349
  %7400 = vmatpush.bf16.msra.mxu0 %v7347
  %7401 = vmatpush.bf16.msra.mxu0 %v7345
  %7402 = vmatpush.bf16.msra.mxu0 %v7343
  %7403 = vmatpush.bf16.msra.mxu0 %v7341
  %7404 = vmatmul.bf16.gmra.mxu0 %v7313
  %v7405 = vpop.f32.mrf.mxu0
  %v7406 = vadd.f32 0.0, %v7405
  %v7407 = vpop.f32.mrf.mxu0
  %v7408 = vadd.f32 0.0, %v7407
  %7409 = vmatmul.bf16.gmra.mxu0 %v7315
  %v7410 = vpop.f32.mrf.mxu0
  %v7411 = vadd.f32 0.0, %v7410
  %v7412 = vpop.f32.mrf.mxu0
  %v7413 = vadd.f32 0.0, %v7412
  %7414 = vmatmul.bf16.gmra.mxu0 %v7317
  %v7415 = vpop.f32.mrf.mxu0
  %v7416 = vadd.f32 0.0, %v7415
  %v7417 = vpop.f32.mrf.mxu0
  %v7418 = vadd.f32 0.0, %v7417
  %7419 = vmatmul.bf16.gmra.mxu0 %v7319
  %v7420 = vpop.f32.mrf.mxu0
  %v7421 = vadd.f32 0.0, %v7420
  %v7422 = vpop.f32.mrf.mxu0
  %v7423 = vadd.f32 0.0, %v7422
  %7424 = vmatmul.bf16.gmra.mxu0 %v7321
  %v7425 = vpop.f32.mrf.mxu0
  %v7426 = vadd.f32 0.0, %v7425
  %v7427 = vpop.f32.mrf.mxu0
  %v7428 = vadd.f32 0.0, %v7427
  %7429 = vmatmul.bf16.gmra.mxu0 %v7323
  %v7430 = vpop.f32.mrf.mxu0
  %v7431 = vadd.f32 0.0, %v7430
  %v7432 = vpop.f32.mrf.mxu0
  %v7433 = vadd.f32 0.0, %v7432
  %7434 = vmatmul.bf16.gmra.mxu0 %v7325
  %v7435 = vpop.f32.mrf.mxu0
  %v7436 = vadd.f32 0.0, %v7435
  %v7437 = vpop.f32.mrf.mxu0
  %v7438 = vadd.f32 0.0, %v7437
  %7439 = vmatmul.bf16.gmra.mxu0 %v7327
  %v7440 = vpop.f32.mrf.mxu0
  %v7441 = vadd.f32 0.0, %v7440
  %v7442 = vpop.f32.mrf.mxu0
  %v7443 = vadd.f32 0.0, %v7442
  %7444 = vmatmul.bf16.gmra.mxu0 %v7329
  %v7445 = vpop.f32.mrf.mxu0
  %v7446 = vadd.f32 0.0, %v7445
  %v7447 = vpop.f32.mrf.mxu0
  %7448 = vdwg.mxu0
  %7449 = vmatpush.bf16.msra.mxu0 0
  %7450 = vmatpush.bf16.msra.mxu0 0
  %7451 = vmatpush.bf16.msra.mxu0 0
  %7452 = vmatpush.bf16.msra.mxu0 0
  %7453 = vmatpush.bf16.msra.mxu0 0
  %7454 = vmatpush.bf16.msra.mxu0 0
  %7455 = vmatpush.bf16.msra.mxu0 0
  %7456 = vmatpush.bf16.msra.mxu0 %v7394
  %7457 = vmatmul.bf16.gmra.mxu0 %v7367
  %v7458 = vpop.f32.mrf.mxu0
  %v7459 = vadd.f32 %v7406, %v7458
  %v7460 = vpop.f32.mrf.mxu0
  %v7461 = vadd.f32 %v7408, %v7460
  %7462 = vmatmul.bf16.gmra.mxu0 %v7370
  %v7463 = vpop.f32.mrf.mxu0
  %v7464 = vadd.f32 %v7411, %v7463
  %v7465 = vpop.f32.mrf.mxu0
  %v7466 = vadd.f32 %v7413, %v7465
  %7467 = vmatmul.bf16.gmra.mxu0 %v7373
  %v7468 = vpop.f32.mrf.mxu0
  %v7469 = vadd.f32 %v7416, %v7468
  %v7470 = vpop.f32.mrf.mxu0
  %v7471 = vadd.f32 %v7418, %v7470
  %7472 = vmatmul.bf16.gmra.mxu0 %v7376
  %v7473 = vpop.f32.mrf.mxu0
  %v7474 = vadd.f32 %v7421, %v7473
  %v7475 = vpop.f32.mrf.mxu0
  %v7476 = vadd.f32 %v7423, %v7475
  %7477 = vmatmul.bf16.gmra.mxu0 %v7379
  %v7478 = vpop.f32.mrf.mxu0
  %v7479 = vadd.f32 %v7426, %v7478
  %v7480 = vpop.f32.mrf.mxu0
  %v7481 = vadd.f32 %v7428, %v7480
  %7482 = vmatmul.bf16.gmra.mxu0 %v7382
  %v7483 = vpop.f32.mrf.mxu0
  %v7484 = vadd.f32 %v7431, %v7483
  %v7485 = vpop.f32.mrf.mxu0
  %v7486 = vadd.f32 %v7433, %v7485
  %7487 = vmatmul.bf16.gmra.mxu0 %v7385
  %v7488 = vpop.f32.mrf.mxu0
  %v7489 = vadd.f32 %v7436, %v7488
  %v7490 = vpop.f32.mrf.mxu0
  %v7491 = vadd.f32 %v7438, %v7490
  %7492 = vmatmul.bf16.gmra.mxu0 %v7388
  %v7493 = vpop.f32.mrf.mxu0
  %v7494 = vadd.f32 %v7441, %v7493
  %v7495 = vpop.f32.mrf.mxu0
  %v7496 = vadd.f32 %v7443, %v7495
  %7497 = vmatmul.bf16.gmra.mxu0 %v7391
  %v7498 = vpop.f32.mrf.mxu0
  %v7499 = vadd.f32 %v7446, %v7498
  %v7500 = vpop.f32.mrf.mxu0
  %7501 = vdwg.mxu0
  %7502 = vrot.lane.b32.xlu0 %v6044, 96
  %v7503 = vpop.permute.xlu0 %7502
  %7504 = vrot.lane.b32.xlu0 %v6045, 96
  %v7505 = vpop.permute.xlu0 %7504
  %7506 = vrot.lane.b32.xlu0 %v6046, 96
  %v7507 = vpop.permute.xlu0 %7506
  %7508 = vrot.lane.b32.xlu0 %v6047, 96
  %v7509 = vpop.permute.xlu0 %7508
  %7510 = vrot.lane.b32.xlu0 %v6048, 96
  %v7511 = vpop.permute.xlu0 %7510
  %7512 = vrot.lane.b32.xlu0 %v6049, 96
  %v7513 = vpop.permute.xlu0 %7512
  %7514 = vrot.lane.b32.xlu0 %v6050, 96
  %v7515 = vpop.permute.xlu0 %7514
  %7516 = vrot.lane.b32.xlu0 %v6051, 96
  %v7517 = vpop.permute.xlu0 %7516
  %7518 = vrot.lane.b32.xlu0 %v6052, 96
  %v7519 = vpop.permute.xlu0 %7518
  %7520 = vrot.lane.b32.xlu0 %v6044, 32
  %v7521 = vpop.permute.xlu0 %7520
  %7522 = vrot.lane.b32.xlu0 %v6045, 32
  %v7523 = vpop.permute.xlu0 %7522
  %7524 = vrot.lane.b32.xlu0 %v6046, 32
  %v7525 = vpop.permute.xlu0 %7524
  %7526 = vrot.lane.b32.xlu0 %v6047, 32
  %v7527 = vpop.permute.xlu0 %7526
  %7528 = vrot.lane.b32.xlu0 %v6048, 32
  %v7529 = vpop.permute.xlu0 %7528
  %7530 = vrot.lane.b32.xlu0 %v6049, 32
  %v7531 = vpop.permute.xlu0 %7530
  %7532 = vrot.lane.b32.xlu0 %v6050, 32
  %v7533 = vpop.permute.xlu0 %7532
  %7534 = vrot.lane.b32.xlu0 %v6051, 32
  %v7535 = vpop.permute.xlu0 %7534
  %7536 = vrot.lane.b32.xlu0 %v6052, 32
  %v7537 = vpop.permute.xlu0 %7536
  %v7539 = vsel %vm940, %v7503, 0
  %v7542 = vsel %vm940, %v7505, 0
  %v7545 = vsel %vm940, %v7507, 0
  %v7548 = vsel %vm940, %v7509, 0
  %v7551 = vsel %vm940, %v7511, 0
  %v7554 = vsel %vm940, %v7513, 0
  %v7557 = vsel %vm940, %v7515, 0
  %v7560 = vsel %vm940, %v7517, 0
  %v7563 = vsel %vm940, %v7519, 0
  %v7566 = vsel %vm940, %v7521, 0
  %v7569 = vsel %vm940, %v7523, 0
  %v7572 = vsel %vm940, %v7525, 0
  %v7575 = vsel %vm940, %v7527, 0
  %v7578 = vsel %vm940, %v7529, 0
  %v7581 = vsel %vm940, %v7531, 0
  %v7584 = vsel %vm940, %v7533, 0
  %v7587 = vsel %vm940, %v7535, 0
  %v7590 = vsel %vm940, %v7537, 0
  %7592 = vmatpush.bf16.xpose.msra.mxu0 %v7587
  %7593 = vmatpush.bf16.xpose.msra.mxu0 %v7584
  %7594 = vmatpush.bf16.xpose.msra.mxu0 %v7581
  %7595 = vmatpush.bf16.xpose.msra.mxu0 %v7578
  %7596 = vmatpush.bf16.xpose.msra.mxu0 %v7575
  %7597 = vmatpush.bf16.xpose.msra.mxu0 %v7572
  %7598 = vmatpush.bf16.xpose.msra.mxu0 %v7569
  %7599 = vmatpush.bf16.xpose.msra.mxu0 %v7566
  %7600 = vmatmul.bf16.gmra.mxu0 %v7539
  %v7601 = vpop.f32.mrf.mxu0
  %v7602 = vadd.f32 0.0, %v7601
  %v7603 = vpop.f32.mrf.mxu0
  %v7604 = vadd.f32 0.0, %v7603
  %7605 = vmatmul.bf16.gmra.mxu0 %v7542
  %v7606 = vpop.f32.mrf.mxu0
  %v7607 = vadd.f32 0.0, %v7606
  %v7608 = vpop.f32.mrf.mxu0
  %v7609 = vadd.f32 0.0, %v7608
  %7610 = vmatmul.bf16.gmra.mxu0 %v7545
  %v7611 = vpop.f32.mrf.mxu0
  %v7612 = vadd.f32 0.0, %v7611
  %v7613 = vpop.f32.mrf.mxu0
  %v7614 = vadd.f32 0.0, %v7613
  %7615 = vmatmul.bf16.gmra.mxu0 %v7548
  %v7616 = vpop.f32.mrf.mxu0
  %v7617 = vadd.f32 0.0, %v7616
  %v7618 = vpop.f32.mrf.mxu0
  %v7619 = vadd.f32 0.0, %v7618
  %7620 = vmatmul.bf16.gmra.mxu0 %v7551
  %v7621 = vpop.f32.mrf.mxu0
  %v7622 = vadd.f32 0.0, %v7621
  %v7623 = vpop.f32.mrf.mxu0
  %v7624 = vadd.f32 0.0, %v7623
  %7625 = vmatmul.bf16.gmra.mxu0 %v7554
  %v7626 = vpop.f32.mrf.mxu0
  %v7627 = vadd.f32 0.0, %v7626
  %v7628 = vpop.f32.mrf.mxu0
  %v7629 = vadd.f32 0.0, %v7628
  %7630 = vmatmul.bf16.gmra.mxu0 %v7557
  %v7631 = vpop.f32.mrf.mxu0
  %v7632 = vadd.f32 0.0, %v7631
  %v7633 = vpop.f32.mrf.mxu0
  %v7634 = vadd.f32 0.0, %v7633
  %7635 = vmatmul.bf16.gmra.mxu0 %v7560
  %v7636 = vpop.f32.mrf.mxu0
  %v7637 = vadd.f32 0.0, %v7636
  %v7638 = vpop.f32.mrf.mxu0
  %v7639 = vadd.f32 0.0, %v7638
  %7640 = vmatmul.bf16.gmra.mxu0 %v7563
  %v7641 = vpop.f32.mrf.mxu0
  %v7642 = vadd.f32 0.0, %v7641
  %v7643 = vpop.f32.mrf.mxu0
  %7644 = vdwg.mxu0
  %7645 = vmatpush.bf16.xpose.msra.mxu0 0
  %7646 = vmatpush.bf16.xpose.msra.mxu0 0
  %7647 = vmatpush.bf16.xpose.msra.mxu0 0
  %7648 = vmatpush.bf16.xpose.msra.mxu0 0
  %7649 = vmatpush.bf16.xpose.msra.mxu0 0
  %7650 = vmatpush.bf16.xpose.msra.mxu0 0
  %7651 = vmatpush.bf16.xpose.msra.mxu0 0
  %7652 = vmatpush.bf16.xpose.msra.mxu0 %v7590
  %7653 = vmatmul.bf16.gmra.mxu0 %v7539
  %v7654 = vpop.f32.mrf.mxu0
  %v7655 = vadd.f32 0.0, %v7654
  %v7656 = vpop.f32.mrf.mxu0
  %v7657 = vadd.f32 0.0, %v7656
  %7658 = vmatmul.bf16.gmra.mxu0 %v7542
  %v7659 = vpop.f32.mrf.mxu0
  %v7660 = vadd.f32 0.0, %v7659
  %v7661 = vpop.f32.mrf.mxu0
  %v7662 = vadd.f32 0.0, %v7661
  %7663 = vmatmul.bf16.gmra.mxu0 %v7545
  %v7664 = vpop.f32.mrf.mxu0
  %v7665 = vadd.f32 0.0, %v7664
  %v7666 = vpop.f32.mrf.mxu0
  %v7667 = vadd.f32 0.0, %v7666
  %7668 = vmatmul.bf16.gmra.mxu0 %v7548
  %v7669 = vpop.f32.mrf.mxu0
  %v7670 = vadd.f32 0.0, %v7669
  %v7671 = vpop.f32.mrf.mxu0
  %v7672 = vadd.f32 0.0, %v7671
  %7673 = vmatmul.bf16.gmra.mxu0 %v7551
  %v7674 = vpop.f32.mrf.mxu0
  %v7675 = vadd.f32 0.0, %v7674
  %v7676 = vpop.f32.mrf.mxu0
  %v7677 = vadd.f32 0.0, %v7676
  %7678 = vmatmul.bf16.gmra.mxu0 %v7554
  %v7679 = vpop.f32.mrf.mxu0
  %v7680 = vadd.f32 0.0, %v7679
  %v7681 = vpop.f32.mrf.mxu0
  %v7682 = vadd.f32 0.0, %v7681
  %7683 = vmatmul.bf16.gmra.mxu0 %v7557
  %v7684 = vpop.f32.mrf.mxu0
  %v7685 = vadd.f32 0.0, %v7684
  %v7686 = vpop.f32.mrf.mxu0
  %v7687 = vadd.f32 0.0, %v7686
  %7688 = vmatmul.bf16.gmra.mxu0 %v7560
  %v7689 = vpop.f32.mrf.mxu0
  %v7690 = vadd.f32 0.0, %v7689
  %v7691 = vpop.f32.mrf.mxu0
  %v7692 = vadd.f32 0.0, %v7691
  %7693 = vmatmul.bf16.gmra.mxu0 %v7563
  %v7694 = vpop.f32.mrf.mxu0
  %v7695 = vadd.f32 0.0, %v7694
  %v7696 = vpop.f32.mrf.mxu0
  %7697 = vdwg.mxu0
  %v7698 = vmul.f32 %v7602, 0.25
  %v7699 = vmul.f32 %v7655, 0.25
  %v7700 = vmul.f32 %v7604, 0.25
  %v7701 = vmul.f32 %v7657, 0.25
  %v7702 = vmul.f32 %v7607, 0.25
  %v7703 = vmul.f32 %v7660, 0.25
  %v7704 = vmul.f32 %v7609, 0.25
  %v7705 = vmul.f32 %v7662, 0.25
  %v7706 = vmul.f32 %v7612, 0.25
  %v7707 = vmul.f32 %v7665, 0.25
  %v7708 = vmul.f32 %v7614, 0.25
  %v7709 = vmul.f32 %v7667, 0.25
  %v7710 = vmul.f32 %v7617, 0.25
  %v7711 = vmul.f32 %v7670, 0.25
  %v7712 = vmul.f32 %v7619, 0.25
  %v7713 = vmul.f32 %v7672, 0.25
  %v7714 = vmul.f32 %v7622, 0.25
  %v7715 = vmul.f32 %v7675, 0.25
  %v7716 = vmul.f32 %v7624, 0.25
  %v7717 = vmul.f32 %v7677, 0.25
  %v7718 = vmul.f32 %v7627, 0.25
  %v7719 = vmul.f32 %v7680, 0.25
  %v7720 = vmul.f32 %v7629, 0.25
  %v7721 = vmul.f32 %v7682, 0.25
  %v7722 = vmul.f32 %v7632, 0.25
  %v7723 = vmul.f32 %v7685, 0.25
  %v7724 = vmul.f32 %v7634, 0.25
  %v7725 = vmul.f32 %v7687, 0.25
  %v7726 = vmul.f32 %v7637, 0.25
  %v7727 = vmul.f32 %v7690, 0.25
  %v7728 = vmul.f32 %v7639, 0.25
  %v7729 = vmul.f32 %v7692, 0.25
  %v7730 = vmul.f32 %v7642, 0.25
  %v7731 = vmul.f32 %v7695, 0.25
  %v7732 = vadd.f32 %v7698, %v120
  %v7733 = vadd.f32 %v7699, %v121
  %v7734 = vadd.f32 %v7700, %v122
  %v7735 = vadd.f32 %v7701, %v123
  %v7736 = vadd.f32 %v7702, %v124
  %v7737 = vadd.f32 %v7703, %v125
  %v7738 = vadd.f32 %v7704, %v126
  %v7739 = vadd.f32 %v7705, %v127
  %v7740 = vadd.f32 %v7706, %v128
  %v7741 = vadd.f32 %v7707, %v129
  %v7742 = vadd.f32 %v7708, %v130
  %v7743 = vadd.f32 %v7709, %v131
  %v7744 = vadd.f32 %v7710, %v132
  %v7745 = vadd.f32 %v7711, %v133
  %v7746 = vadd.f32 %v7712, %v134
  %v7747 = vadd.f32 %v7713, %v135
  %v7748 = vadd.f32 %v7714, %v136
  %v7749 = vadd.f32 %v7715, %v137
  %v7750 = vadd.f32 %v7716, %v138
  %v7751 = vadd.f32 %v7717, %v139
  %v7752 = vadd.f32 %v7718, %v140
  %v7753 = vadd.f32 %v7719, %v141
  %v7754 = vadd.f32 %v7720, %v142
  %v7755 = vadd.f32 %v7721, %v143
  %v7756 = vadd.f32 %v7722, %v144
  %v7757 = vadd.f32 %v7723, %v145
  %v7758 = vadd.f32 %v7724, %v146
  %v7759 = vadd.f32 %v7725, %v147
  %v7760 = vadd.f32 %v7726, %v148
  %v7761 = vadd.f32 %v7727, %v149
  %v7762 = vadd.f32 %v7728, %v150
  %v7763 = vadd.f32 %v7729, %v151
  %v7764 = vadd.f32 %v7730, %v152
  %v7765 = vadd.f32 %v7731, %v153
  %v7766 = vsel %vm1169, %v7733, -inf
  %v7767 = vmax.f32 %v7732, %v7766
  %7768 = vmax.xlane.f32.xlu0 %v7767
  %v7769 = vpop.xlane.xlu0 %7768
  %v7770 = vsel %vm1169, %v7735, -inf
  %v7771 = vmax.f32 %v7734, %v7770
  %7772 = vmax.xlane.f32.xlu0 %v7771
  %v7773 = vpop.xlane.xlu0 %7772
  %v7774 = vsel %vm1169, %v7737, -inf
  %v7775 = vmax.f32 %v7736, %v7774
  %7776 = vmax.xlane.f32.xlu0 %v7775
  %v7777 = vpop.xlane.xlu0 %7776
  %v7778 = vsel %vm1169, %v7739, -inf
  %v7779 = vmax.f32 %v7738, %v7778
  %7780 = vmax.xlane.f32.xlu0 %v7779
  %v7781 = vpop.xlane.xlu0 %7780
  %v7782 = vsel %vm1169, %v7741, -inf
  %v7783 = vmax.f32 %v7740, %v7782
  %7784 = vmax.xlane.f32.xlu0 %v7783
  %v7785 = vpop.xlane.xlu0 %7784
  %v7786 = vsel %vm1169, %v7743, -inf
  %v7787 = vmax.f32 %v7742, %v7786
  %7788 = vmax.xlane.f32.xlu0 %v7787
  %v7789 = vpop.xlane.xlu0 %7788
  %v7790 = vsel %vm1169, %v7745, -inf
  %v7791 = vmax.f32 %v7744, %v7790
  %7792 = vmax.xlane.f32.xlu0 %v7791
  %v7793 = vpop.xlane.xlu0 %7792
  %v7794 = vsel %vm1169, %v7747, -inf
  %v7795 = vmax.f32 %v7746, %v7794
  %7796 = vmax.xlane.f32.xlu0 %v7795
  %v7797 = vpop.xlane.xlu0 %7796
  %v7798 = vsel %vm1169, %v7749, -inf
  %v7799 = vmax.f32 %v7748, %v7798
  %7800 = vmax.xlane.f32.xlu0 %v7799
  %v7801 = vpop.xlane.xlu0 %7800
  %v7802 = vsel %vm1169, %v7751, -inf
  %v7803 = vmax.f32 %v7750, %v7802
  %7804 = vmax.xlane.f32.xlu0 %v7803
  %v7805 = vpop.xlane.xlu0 %7804
  %v7806 = vsel %vm1169, %v7753, -inf
  %v7807 = vmax.f32 %v7752, %v7806
  %7808 = vmax.xlane.f32.xlu0 %v7807
  %v7809 = vpop.xlane.xlu0 %7808
  %v7810 = vsel %vm1169, %v7755, -inf
  %v7811 = vmax.f32 %v7754, %v7810
  %7812 = vmax.xlane.f32.xlu0 %v7811
  %v7813 = vpop.xlane.xlu0 %7812
  %v7814 = vsel %vm1169, %v7757, -inf
  %v7815 = vmax.f32 %v7756, %v7814
  %7816 = vmax.xlane.f32.xlu0 %v7815
  %v7817 = vpop.xlane.xlu0 %7816
  %v7818 = vsel %vm1169, %v7759, -inf
  %v7819 = vmax.f32 %v7758, %v7818
  %7820 = vmax.xlane.f32.xlu0 %v7819
  %v7821 = vpop.xlane.xlu0 %7820
  %v7822 = vsel %vm1169, %v7761, -inf
  %v7823 = vmax.f32 %v7760, %v7822
  %7824 = vmax.xlane.f32.xlu0 %v7823
  %v7825 = vpop.xlane.xlu0 %7824
  %v7826 = vsel %vm1169, %v7763, -inf
  %v7827 = vmax.f32 %v7762, %v7826
  %7828 = vmax.xlane.f32.xlu0 %v7827
  %v7829 = vpop.xlane.xlu0 %7828
  %v7830 = vsel %vm1169, %v7765, -inf
  %v7831 = vmax.f32 %v7764, %v7830
  %7832 = vmax.xlane.f32.xlu0 %v7831
  %v7833 = vpop.xlane.xlu0 %7832
  %v7834 = vsub.f32 %v7732, %v7769
  %v7835 = vsub.f32 %v7733, %v7769
  %v7836 = vsub.f32 %v7734, %v7773
  %v7837 = vsub.f32 %v7735, %v7773
  %v7838 = vsub.f32 %v7736, %v7777
  %v7839 = vsub.f32 %v7737, %v7777
  %v7840 = vsub.f32 %v7738, %v7781
  %v7841 = vsub.f32 %v7739, %v7781
  %v7842 = vsub.f32 %v7740, %v7785
  %v7843 = vsub.f32 %v7741, %v7785
  %v7844 = vsub.f32 %v7742, %v7789
  %v7845 = vsub.f32 %v7743, %v7789
  %v7846 = vsub.f32 %v7744, %v7793
  %v7847 = vsub.f32 %v7745, %v7793
  %v7848 = vsub.f32 %v7746, %v7797
  %v7849 = vsub.f32 %v7747, %v7797
  %v7850 = vsub.f32 %v7748, %v7801
  %v7851 = vsub.f32 %v7749, %v7801
  %v7852 = vsub.f32 %v7750, %v7805
  %v7853 = vsub.f32 %v7751, %v7805
  %v7854 = vsub.f32 %v7752, %v7809
  %v7855 = vsub.f32 %v7753, %v7809
  %v7856 = vsub.f32 %v7754, %v7813
  %v7857 = vsub.f32 %v7755, %v7813
  %v7858 = vsub.f32 %v7756, %v7817
  %v7859 = vsub.f32 %v7757, %v7817
  %v7860 = vsub.f32 %v7758, %v7821
  %v7861 = vsub.f32 %v7759, %v7821
  %v7862 = vsub.f32 %v7760, %v7825
  %v7863 = vsub.f32 %v7761, %v7825
  %v7864 = vsub.f32 %v7762, %v7829
  %v7865 = vsub.f32 %v7763, %v7829
  %v7866 = vsub.f32 %v7764, %v7833
  %v7867 = vsub.f32 %v7765, %v7833
  %v7868 = vmul.f32 %v7834, 1.442695
  %v7869 = vpow.pop %v7868
  %v7870 = vmul.f32 %v7835, 1.442695
  %v7871 = vpow.pop %v7870
  %v7872 = vmul.f32 %v7836, 1.442695
  %v7873 = vpow.pop %v7872
  %v7874 = vmul.f32 %v7837, 1.442695
  %v7875 = vpow.pop %v7874
  %v7876 = vmul.f32 %v7838, 1.442695
  %v7877 = vpow.pop %v7876
  %v7878 = vmul.f32 %v7839, 1.442695
  %v7879 = vpow.pop %v7878
  %v7880 = vmul.f32 %v7840, 1.442695
  %v7881 = vpow.pop %v7880
  %v7882 = vmul.f32 %v7841, 1.442695
  %v7883 = vpow.pop %v7882
  %v7884 = vmul.f32 %v7842, 1.442695
  %v7885 = vpow.pop %v7884
  %v7886 = vmul.f32 %v7843, 1.442695
  %v7887 = vpow.pop %v7886
  %v7888 = vmul.f32 %v7844, 1.442695
  %v7889 = vpow.pop %v7888
  %v7890 = vmul.f32 %v7845, 1.442695
  %v7891 = vpow.pop %v7890
  %v7892 = vmul.f32 %v7846, 1.442695
  %v7893 = vpow.pop %v7892
  %v7894 = vmul.f32 %v7847, 1.442695
  %v7895 = vpow.pop %v7894
  %v7896 = vmul.f32 %v7848, 1.442695
  %v7897 = vpow.pop %v7896
  %v7898 = vmul.f32 %v7849, 1.442695
  %v7899 = vpow.pop %v7898
  %v7900 = vmul.f32 %v7850, 1.442695
  %v7901 = vpow.pop %v7900
  %v7902 = vmul.f32 %v7851, 1.442695
  %v7903 = vpow.pop %v7902
  %v7904 = vmul.f32 %v7852, 1.442695
  %v7905 = vpow.pop %v7904
  %v7906 = vmul.f32 %v7853, 1.442695
  %v7907 = vpow.pop %v7906
  %v7908 = vmul.f32 %v7854, 1.442695
  %v7909 = vpow.pop %v7908
  %v7910 = vmul.f32 %v7855, 1.442695
  %v7911 = vpow.pop %v7910
  %v7912 = vmul.f32 %v7856, 1.442695
  %v7913 = vpow.pop %v7912
  %v7914 = vmul.f32 %v7857, 1.442695
  %v7915 = vpow.pop %v7914
  %v7916 = vmul.f32 %v7858, 1.442695
  %v7917 = vpow.pop %v7916
  %v7918 = vmul.f32 %v7859, 1.442695
  %v7919 = vpow.pop %v7918
  %v7920 = vmul.f32 %v7860, 1.442695
  %v7921 = vpow.pop %v7920
  %v7922 = vmul.f32 %v7861, 1.442695
  %v7923 = vpow.pop %v7922
  %v7924 = vmul.f32 %v7862, 1.442695
  %v7925 = vpow.pop %v7924
  %v7926 = vmul.f32 %v7863, 1.442695
  %v7927 = vpow.pop %v7926
  %v7928 = vmul.f32 %v7864, 1.442695
  %v7929 = vpow.pop %v7928
  %v7930 = vmul.f32 %v7865, 1.442695
  %v7931 = vpow.pop %v7930
  %v7932 = vmul.f32 %v7866, 1.442695
  %v7933 = vpow.pop %v7932
  %v7934 = vmul.f32 %v7867, 1.442695
  %v7935 = vpow.pop %v7934
  %v7936 = vsel %vm1169, %v7871, 0.0
  %v7937 = vadd.f32 %v7869, %v7936
  %7938 = vadd.xlane.f32.xlu0 %v7937
  %v7939 = vpop.xlane.xlu0 %7938
  %v7940 = vsel %vm1169, %v7875, 0.0
  %v7941 = vadd.f32 %v7873, %v7940
  %7942 = vadd.xlane.f32.xlu0 %v7941
  %v7943 = vpop.xlane.xlu0 %7942
  %v7944 = vsel %vm1169, %v7879, 0.0
  %v7945 = vadd.f32 %v7877, %v7944
  %7946 = vadd.xlane.f32.xlu0 %v7945
  %v7947 = vpop.xlane.xlu0 %7946
  %v7948 = vsel %vm1169, %v7883, 0.0
  %v7949 = vadd.f32 %v7881, %v7948
  %7950 = vadd.xlane.f32.xlu0 %v7949
  %v7951 = vpop.xlane.xlu0 %7950
  %v7952 = vsel %vm1169, %v7887, 0.0
  %v7953 = vadd.f32 %v7885, %v7952
  %7954 = vadd.xlane.f32.xlu0 %v7953
  %v7955 = vpop.xlane.xlu0 %7954
  %v7956 = vsel %vm1169, %v7891, 0.0
  %v7957 = vadd.f32 %v7889, %v7956
  %7958 = vadd.xlane.f32.xlu0 %v7957
  %v7959 = vpop.xlane.xlu0 %7958
  %v7960 = vsel %vm1169, %v7895, 0.0
  %v7961 = vadd.f32 %v7893, %v7960
  %7962 = vadd.xlane.f32.xlu0 %v7961
  %v7963 = vpop.xlane.xlu0 %7962
  %v7964 = vsel %vm1169, %v7899, 0.0
  %v7965 = vadd.f32 %v7897, %v7964
  %7966 = vadd.xlane.f32.xlu0 %v7965
  %v7967 = vpop.xlane.xlu0 %7966
  %v7968 = vsel %vm1169, %v7903, 0.0
  %v7969 = vadd.f32 %v7901, %v7968
  %7970 = vadd.xlane.f32.xlu0 %v7969
  %v7971 = vpop.xlane.xlu0 %7970
  %v7972 = vsel %vm1169, %v7907, 0.0
  %v7973 = vadd.f32 %v7905, %v7972
  %7974 = vadd.xlane.f32.xlu0 %v7973
  %v7975 = vpop.xlane.xlu0 %7974
  %v7976 = vsel %vm1169, %v7911, 0.0
  %v7977 = vadd.f32 %v7909, %v7976
  %7978 = vadd.xlane.f32.xlu0 %v7977
  %v7979 = vpop.xlane.xlu0 %7978
  %v7980 = vsel %vm1169, %v7915, 0.0
  %v7981 = vadd.f32 %v7913, %v7980
  %7982 = vadd.xlane.f32.xlu0 %v7981
  %v7983 = vpop.xlane.xlu0 %7982
  %v7984 = vsel %vm1169, %v7919, 0.0
  %v7985 = vadd.f32 %v7917, %v7984
  %7986 = vadd.xlane.f32.xlu0 %v7985
  %v7987 = vpop.xlane.xlu0 %7986
  %v7988 = vsel %vm1169, %v7923, 0.0
  %v7989 = vadd.f32 %v7921, %v7988
  %7990 = vadd.xlane.f32.xlu0 %v7989
  %v7991 = vpop.xlane.xlu0 %7990
  %v7992 = vsel %vm1169, %v7927, 0.0
  %v7993 = vadd.f32 %v7925, %v7992
  %7994 = vadd.xlane.f32.xlu0 %v7993
  %v7995 = vpop.xlane.xlu0 %7994
  %v7996 = vsel %vm1169, %v7931, 0.0
  %v7997 = vadd.f32 %v7929, %v7996
  %7998 = vadd.xlane.f32.xlu0 %v7997
  %v7999 = vpop.xlane.xlu0 %7998
  %v8000 = vsel %vm1169, %v7935, 0.0
  %v8001 = vadd.f32 %v7933, %v8000
  %8002 = vadd.xlane.f32.xlu0 %v8001
  %v8003 = vpop.xlane.xlu0 %8002
  %v8004 = vrcp.pop %v7939
  %v8005 = vrcp.pop %v7943
  %v8006 = vrcp.pop %v7947
  %v8007 = vrcp.pop %v7951
  %v8008 = vrcp.pop %v7955
  %v8009 = vrcp.pop %v7959
  %v8010 = vrcp.pop %v7963
  %v8011 = vrcp.pop %v7967
  %v8012 = vrcp.pop %v7971
  %v8013 = vrcp.pop %v7975
  %v8014 = vrcp.pop %v7979
  %v8015 = vrcp.pop %v7983
  %v8016 = vrcp.pop %v7987
  %v8017 = vrcp.pop %v7991
  %v8018 = vrcp.pop %v7995
  %v8019 = vrcp.pop %v7999
  %v8020 = vrcp.pop %v8003
  %v8021 = vmul.f32 %v7869, %v8004
  %v8022 = vmul.f32 %v7871, %v8004
  %v8023 = vmul.f32 %v7873, %v8005
  %v8024 = vmul.f32 %v7875, %v8005
  %v8025 = vmul.f32 %v7877, %v8006
  %v8026 = vmul.f32 %v7879, %v8006
  %v8027 = vmul.f32 %v7881, %v8007
  %v8028 = vmul.f32 %v7883, %v8007
  %v8029 = vmul.f32 %v7885, %v8008
  %v8030 = vmul.f32 %v7887, %v8008
  %v8031 = vmul.f32 %v7889, %v8009
  %v8032 = vmul.f32 %v7891, %v8009
  %v8033 = vmul.f32 %v7893, %v8010
  %v8034 = vmul.f32 %v7895, %v8010
  %v8035 = vmul.f32 %v7897, %v8011
  %v8036 = vmul.f32 %v7899, %v8011
  %v8037 = vmul.f32 %v7901, %v8012
  %v8038 = vmul.f32 %v7903, %v8012
  %v8039 = vmul.f32 %v7905, %v8013
  %v8040 = vmul.f32 %v7907, %v8013
  %v8041 = vmul.f32 %v7909, %v8014
  %v8042 = vmul.f32 %v7911, %v8014
  %v8043 = vmul.f32 %v7913, %v8015
  %v8044 = vmul.f32 %v7915, %v8015
  %v8045 = vmul.f32 %v7917, %v8016
  %v8046 = vmul.f32 %v7919, %v8016
  %v8047 = vmul.f32 %v7921, %v8017
  %v8048 = vmul.f32 %v7923, %v8017
  %v8049 = vmul.f32 %v7925, %v8018
  %v8050 = vmul.f32 %v7927, %v8018
  %v8051 = vmul.f32 %v7929, %v8019
  %v8052 = vmul.f32 %v7931, %v8019
  %v8053 = vmul.f32 %v7933, %v8020
  %v8054 = vmul.f32 %v7935, %v8020
  %v8055 = vpack.c.bf16 %v8023, %v8021
  %v8056 = vpack.c.bf16 %v8024, %v8022
  %v8057 = vpack.c.bf16 %v8027, %v8025
  %v8058 = vpack.c.bf16 %v8028, %v8026
  %v8059 = vpack.c.bf16 %v8031, %v8029
  %v8060 = vpack.c.bf16 %v8032, %v8030
  %v8061 = vpack.c.bf16 %v8035, %v8033
  %v8062 = vpack.c.bf16 %v8036, %v8034
  %v8063 = vpack.c.bf16 %v8039, %v8037
  %v8064 = vpack.c.bf16 %v8040, %v8038
  %v8065 = vpack.c.bf16 %v8043, %v8041
  %v8066 = vpack.c.bf16 %v8044, %v8042
  %v8067 = vpack.c.bf16 %v8047, %v8045
  %v8068 = vpack.c.bf16 %v8048, %v8046
  %v8069 = vpack.c.bf16 %v8051, %v8049
  %v8070 = vpack.c.bf16 %v8052, %v8050
  %v8071 = vpack.c.bf16 %v8053, %v8053
  %v8072 = vpack.c.bf16 %v8054, %v8054
  %8073 = vrot.lane.b32.xlu0 %v6053, 96
  %v8074 = vpop.permute.xlu0 %8073
  %8075 = vrot.lane.b32.xlu0 %v6054, 96
  %v8076 = vpop.permute.xlu0 %8075
  %8077 = vrot.lane.b32.xlu0 %v6055, 96
  %v8078 = vpop.permute.xlu0 %8077
  %8079 = vrot.lane.b32.xlu0 %v6056, 96
  %v8080 = vpop.permute.xlu0 %8079
  %8081 = vrot.lane.b32.xlu0 %v6057, 96
  %v8082 = vpop.permute.xlu0 %8081
  %8083 = vrot.lane.b32.xlu0 %v6058, 96
  %v8084 = vpop.permute.xlu0 %8083
  %8085 = vrot.lane.b32.xlu0 %v6059, 96
  %v8086 = vpop.permute.xlu0 %8085
  %8087 = vrot.lane.b32.xlu0 %v6060, 96
  %v8088 = vpop.permute.xlu0 %8087
  %8089 = vrot.lane.b32.xlu0 %v6061, 96
  %v8090 = vpop.permute.xlu0 %8089
  %v8100 = vsel %vm1169, %v8056, 0
  %v8103 = vsel %vm1169, %v8058, 0
  %v8106 = vsel %vm1169, %v8060, 0
  %v8109 = vsel %vm1169, %v8062, 0
  %v8112 = vsel %vm1169, %v8064, 0
  %v8115 = vsel %vm1169, %v8066, 0
  %v8118 = vsel %vm1169, %v8068, 0
  %v8121 = vsel %vm1169, %v8070, 0
  %v8124 = vsel %vm1169, %v8072, 0
  %v8127 = vsel %vm215, %v8090, 0
  %8129 = vmatpush.bf16.msra.mxu0 %v8088
  %8130 = vmatpush.bf16.msra.mxu0 %v8086
  %8131 = vmatpush.bf16.msra.mxu0 %v8084
  %8132 = vmatpush.bf16.msra.mxu0 %v8082
  %8133 = vmatpush.bf16.msra.mxu0 %v8080
  %8134 = vmatpush.bf16.msra.mxu0 %v8078
  %8135 = vmatpush.bf16.msra.mxu0 %v8076
  %8136 = vmatpush.bf16.msra.mxu0 %v8074
  %8137 = vmatmul.bf16.gmra.mxu0 %v8055
  %v8138 = vpop.f32.mrf.mxu0
  %v8139 = vadd.f32 0.0, %v8138
  %v8140 = vpop.f32.mrf.mxu0
  %v8141 = vadd.f32 0.0, %v8140
  %8142 = vmatmul.bf16.gmra.mxu0 %v8057
  %v8143 = vpop.f32.mrf.mxu0
  %v8144 = vadd.f32 0.0, %v8143
  %v8145 = vpop.f32.mrf.mxu0
  %v8146 = vadd.f32 0.0, %v8145
  %8147 = vmatmul.bf16.gmra.mxu0 %v8059
  %v8148 = vpop.f32.mrf.mxu0
  %v8149 = vadd.f32 0.0, %v8148
  %v8150 = vpop.f32.mrf.mxu0
  %v8151 = vadd.f32 0.0, %v8150
  %8152 = vmatmul.bf16.gmra.mxu0 %v8061
  %v8153 = vpop.f32.mrf.mxu0
  %v8154 = vadd.f32 0.0, %v8153
  %v8155 = vpop.f32.mrf.mxu0
  %v8156 = vadd.f32 0.0, %v8155
  %8157 = vmatmul.bf16.gmra.mxu0 %v8063
  %v8158 = vpop.f32.mrf.mxu0
  %v8159 = vadd.f32 0.0, %v8158
  %v8160 = vpop.f32.mrf.mxu0
  %v8161 = vadd.f32 0.0, %v8160
  %8162 = vmatmul.bf16.gmra.mxu0 %v8065
  %v8163 = vpop.f32.mrf.mxu0
  %v8164 = vadd.f32 0.0, %v8163
  %v8165 = vpop.f32.mrf.mxu0
  %v8166 = vadd.f32 0.0, %v8165
  %8167 = vmatmul.bf16.gmra.mxu0 %v8067
  %v8168 = vpop.f32.mrf.mxu0
  %v8169 = vadd.f32 0.0, %v8168
  %v8170 = vpop.f32.mrf.mxu0
  %v8171 = vadd.f32 0.0, %v8170
  %8172 = vmatmul.bf16.gmra.mxu0 %v8069
  %v8173 = vpop.f32.mrf.mxu0
  %v8174 = vadd.f32 0.0, %v8173
  %v8175 = vpop.f32.mrf.mxu0
  %v8176 = vadd.f32 0.0, %v8175
  %8177 = vmatmul.bf16.gmra.mxu0 %v8071
  %v8178 = vpop.f32.mrf.mxu0
  %v8179 = vadd.f32 0.0, %v8178
  %v8180 = vpop.f32.mrf.mxu0
  %8181 = vdwg.mxu0
  %8182 = vmatpush.bf16.msra.mxu0 0
  %8183 = vmatpush.bf16.msra.mxu0 0
  %8184 = vmatpush.bf16.msra.mxu0 0
  %8185 = vmatpush.bf16.msra.mxu0 0
  %8186 = vmatpush.bf16.msra.mxu0 0
  %8187 = vmatpush.bf16.msra.mxu0 0
  %8188 = vmatpush.bf16.msra.mxu0 0
  %8189 = vmatpush.bf16.msra.mxu0 %v8127
  %8190 = vmatmul.bf16.gmra.mxu0 %v8100
  %v8191 = vpop.f32.mrf.mxu0
  %v8192 = vadd.f32 %v8139, %v8191
  %v8193 = vpop.f32.mrf.mxu0
  %v8194 = vadd.f32 %v8141, %v8193
  %8195 = vmatmul.bf16.gmra.mxu0 %v8103
  %v8196 = vpop.f32.mrf.mxu0
  %v8197 = vadd.f32 %v8144, %v8196
  %v8198 = vpop.f32.mrf.mxu0
  %v8199 = vadd.f32 %v8146, %v8198
  %8200 = vmatmul.bf16.gmra.mxu0 %v8106
  %v8201 = vpop.f32.mrf.mxu0
  %v8202 = vadd.f32 %v8149, %v8201
  %v8203 = vpop.f32.mrf.mxu0
  %v8204 = vadd.f32 %v8151, %v8203
  %8205 = vmatmul.bf16.gmra.mxu0 %v8109
  %v8206 = vpop.f32.mrf.mxu0
  %v8207 = vadd.f32 %v8154, %v8206
  %v8208 = vpop.f32.mrf.mxu0
  %v8209 = vadd.f32 %v8156, %v8208
  %8210 = vmatmul.bf16.gmra.mxu0 %v8112
  %v8211 = vpop.f32.mrf.mxu0
  %v8212 = vadd.f32 %v8159, %v8211
  %v8213 = vpop.f32.mrf.mxu0
  %v8214 = vadd.f32 %v8161, %v8213
  %8215 = vmatmul.bf16.gmra.mxu0 %v8115
  %v8216 = vpop.f32.mrf.mxu0
  %v8217 = vadd.f32 %v8164, %v8216
  %v8218 = vpop.f32.mrf.mxu0
  %v8219 = vadd.f32 %v8166, %v8218
  %8220 = vmatmul.bf16.gmra.mxu0 %v8118
  %v8221 = vpop.f32.mrf.mxu0
  %v8222 = vadd.f32 %v8169, %v8221
  %v8223 = vpop.f32.mrf.mxu0
  %v8224 = vadd.f32 %v8171, %v8223
  %8225 = vmatmul.bf16.gmra.mxu0 %v8121
  %v8226 = vpop.f32.mrf.mxu0
  %v8227 = vadd.f32 %v8174, %v8226
  %v8228 = vpop.f32.mrf.mxu0
  %v8229 = vadd.f32 %v8176, %v8228
  %8230 = vmatmul.bf16.gmra.mxu0 %v8124
  %v8231 = vpop.f32.mrf.mxu0
  %v8232 = vadd.f32 %v8179, %v8231
  %v8233 = vpop.f32.mrf.mxu0
  %8234 = vdwg.mxu0
  %8235 = vrot.lane.b32.xlu0 %v6044, 80
  %v8236 = vpop.permute.xlu0 %8235
  %8237 = vrot.lane.b32.xlu0 %v6045, 80
  %v8238 = vpop.permute.xlu0 %8237
  %8239 = vrot.lane.b32.xlu0 %v6046, 80
  %v8240 = vpop.permute.xlu0 %8239
  %8241 = vrot.lane.b32.xlu0 %v6047, 80
  %v8242 = vpop.permute.xlu0 %8241
  %8243 = vrot.lane.b32.xlu0 %v6048, 80
  %v8244 = vpop.permute.xlu0 %8243
  %8245 = vrot.lane.b32.xlu0 %v6049, 80
  %v8246 = vpop.permute.xlu0 %8245
  %8247 = vrot.lane.b32.xlu0 %v6050, 80
  %v8248 = vpop.permute.xlu0 %8247
  %8249 = vrot.lane.b32.xlu0 %v6051, 80
  %v8250 = vpop.permute.xlu0 %8249
  %8251 = vrot.lane.b32.xlu0 %v6052, 80
  %v8252 = vpop.permute.xlu0 %8251
  %8253 = vrot.lane.b32.xlu0 %v6044, 16
  %v8254 = vpop.permute.xlu0 %8253
  %8255 = vrot.lane.b32.xlu0 %v6045, 16
  %v8256 = vpop.permute.xlu0 %8255
  %8257 = vrot.lane.b32.xlu0 %v6046, 16
  %v8258 = vpop.permute.xlu0 %8257
  %8259 = vrot.lane.b32.xlu0 %v6047, 16
  %v8260 = vpop.permute.xlu0 %8259
  %8261 = vrot.lane.b32.xlu0 %v6048, 16
  %v8262 = vpop.permute.xlu0 %8261
  %8263 = vrot.lane.b32.xlu0 %v6049, 16
  %v8264 = vpop.permute.xlu0 %8263
  %8265 = vrot.lane.b32.xlu0 %v6050, 16
  %v8266 = vpop.permute.xlu0 %8265
  %8267 = vrot.lane.b32.xlu0 %v6051, 16
  %v8268 = vpop.permute.xlu0 %8267
  %8269 = vrot.lane.b32.xlu0 %v6052, 16
  %v8270 = vpop.permute.xlu0 %8269
  %v8272 = vsel %vm940, %v8236, 0
  %v8275 = vsel %vm940, %v8238, 0
  %v8278 = vsel %vm940, %v8240, 0
  %v8281 = vsel %vm940, %v8242, 0
  %v8284 = vsel %vm940, %v8244, 0
  %v8287 = vsel %vm940, %v8246, 0
  %v8290 = vsel %vm940, %v8248, 0
  %v8293 = vsel %vm940, %v8250, 0
  %v8296 = vsel %vm940, %v8252, 0
  %v8299 = vsel %vm940, %v8254, 0
  %v8302 = vsel %vm940, %v8256, 0
  %v8305 = vsel %vm940, %v8258, 0
  %v8308 = vsel %vm940, %v8260, 0
  %v8311 = vsel %vm940, %v8262, 0
  %v8314 = vsel %vm940, %v8264, 0
  %v8317 = vsel %vm940, %v8266, 0
  %v8320 = vsel %vm940, %v8268, 0
  %v8323 = vsel %vm940, %v8270, 0
  %8325 = vmatpush.bf16.xpose.msra.mxu0 %v8320
  %8326 = vmatpush.bf16.xpose.msra.mxu0 %v8317
  %8327 = vmatpush.bf16.xpose.msra.mxu0 %v8314
  %8328 = vmatpush.bf16.xpose.msra.mxu0 %v8311
  %8329 = vmatpush.bf16.xpose.msra.mxu0 %v8308
  %8330 = vmatpush.bf16.xpose.msra.mxu0 %v8305
  %8331 = vmatpush.bf16.xpose.msra.mxu0 %v8302
  %8332 = vmatpush.bf16.xpose.msra.mxu0 %v8299
  %8333 = vmatmul.bf16.gmra.mxu0 %v8272
  %v8334 = vpop.f32.mrf.mxu0
  %v8335 = vadd.f32 0.0, %v8334
  %v8336 = vpop.f32.mrf.mxu0
  %v8337 = vadd.f32 0.0, %v8336
  %8338 = vmatmul.bf16.gmra.mxu0 %v8275
  %v8339 = vpop.f32.mrf.mxu0
  %v8340 = vadd.f32 0.0, %v8339
  %v8341 = vpop.f32.mrf.mxu0
  %v8342 = vadd.f32 0.0, %v8341
  %8343 = vmatmul.bf16.gmra.mxu0 %v8278
  %v8344 = vpop.f32.mrf.mxu0
  %v8345 = vadd.f32 0.0, %v8344
  %v8346 = vpop.f32.mrf.mxu0
  %v8347 = vadd.f32 0.0, %v8346
  %8348 = vmatmul.bf16.gmra.mxu0 %v8281
  %v8349 = vpop.f32.mrf.mxu0
  %v8350 = vadd.f32 0.0, %v8349
  %v8351 = vpop.f32.mrf.mxu0
  %v8352 = vadd.f32 0.0, %v8351
  %8353 = vmatmul.bf16.gmra.mxu0 %v8284
  %v8354 = vpop.f32.mrf.mxu0
  %v8355 = vadd.f32 0.0, %v8354
  %v8356 = vpop.f32.mrf.mxu0
  %v8357 = vadd.f32 0.0, %v8356
  %8358 = vmatmul.bf16.gmra.mxu0 %v8287
  %v8359 = vpop.f32.mrf.mxu0
  %v8360 = vadd.f32 0.0, %v8359
  %v8361 = vpop.f32.mrf.mxu0
  %v8362 = vadd.f32 0.0, %v8361
  %8363 = vmatmul.bf16.gmra.mxu0 %v8290
  %v8364 = vpop.f32.mrf.mxu0
  %v8365 = vadd.f32 0.0, %v8364
  %v8366 = vpop.f32.mrf.mxu0
  %v8367 = vadd.f32 0.0, %v8366
  %8368 = vmatmul.bf16.gmra.mxu0 %v8293
  %v8369 = vpop.f32.mrf.mxu0
  %v8370 = vadd.f32 0.0, %v8369
  %v8371 = vpop.f32.mrf.mxu0
  %v8372 = vadd.f32 0.0, %v8371
  %8373 = vmatmul.bf16.gmra.mxu0 %v8296
  %v8374 = vpop.f32.mrf.mxu0
  %v8375 = vadd.f32 0.0, %v8374
  %v8376 = vpop.f32.mrf.mxu0
  %8377 = vdwg.mxu0
  %8378 = vmatpush.bf16.xpose.msra.mxu0 0
  %8379 = vmatpush.bf16.xpose.msra.mxu0 0
  %8380 = vmatpush.bf16.xpose.msra.mxu0 0
  %8381 = vmatpush.bf16.xpose.msra.mxu0 0
  %8382 = vmatpush.bf16.xpose.msra.mxu0 0
  %8383 = vmatpush.bf16.xpose.msra.mxu0 0
  %8384 = vmatpush.bf16.xpose.msra.mxu0 0
  %8385 = vmatpush.bf16.xpose.msra.mxu0 %v8323
  %8386 = vmatmul.bf16.gmra.mxu0 %v8272
  %v8387 = vpop.f32.mrf.mxu0
  %v8388 = vadd.f32 0.0, %v8387
  %v8389 = vpop.f32.mrf.mxu0
  %v8390 = vadd.f32 0.0, %v8389
  %8391 = vmatmul.bf16.gmra.mxu0 %v8275
  %v8392 = vpop.f32.mrf.mxu0
  %v8393 = vadd.f32 0.0, %v8392
  %v8394 = vpop.f32.mrf.mxu0
  %v8395 = vadd.f32 0.0, %v8394
  %8396 = vmatmul.bf16.gmra.mxu0 %v8278
  %v8397 = vpop.f32.mrf.mxu0
  %v8398 = vadd.f32 0.0, %v8397
  %v8399 = vpop.f32.mrf.mxu0
  %v8400 = vadd.f32 0.0, %v8399
  %8401 = vmatmul.bf16.gmra.mxu0 %v8281
  %v8402 = vpop.f32.mrf.mxu0
  %v8403 = vadd.f32 0.0, %v8402
  %v8404 = vpop.f32.mrf.mxu0
  %v8405 = vadd.f32 0.0, %v8404
  %8406 = vmatmul.bf16.gmra.mxu0 %v8284
  %v8407 = vpop.f32.mrf.mxu0
  %v8408 = vadd.f32 0.0, %v8407
  %v8409 = vpop.f32.mrf.mxu0
  %v8410 = vadd.f32 0.0, %v8409
  %8411 = vmatmul.bf16.gmra.mxu0 %v8287
  %v8412 = vpop.f32.mrf.mxu0
  %v8413 = vadd.f32 0.0, %v8412
  %v8414 = vpop.f32.mrf.mxu0
  %v8415 = vadd.f32 0.0, %v8414
  %8416 = vmatmul.bf16.gmra.mxu0 %v8290
  %v8417 = vpop.f32.mrf.mxu0
  %v8418 = vadd.f32 0.0, %v8417
  %v8419 = vpop.f32.mrf.mxu0
  %v8420 = vadd.f32 0.0, %v8419
  %8421 = vmatmul.bf16.gmra.mxu0 %v8293
  %v8422 = vpop.f32.mrf.mxu0
  %v8423 = vadd.f32 0.0, %v8422
  %v8424 = vpop.f32.mrf.mxu0
  %v8425 = vadd.f32 0.0, %v8424
  %8426 = vmatmul.bf16.gmra.mxu0 %v8296
  %v8427 = vpop.f32.mrf.mxu0
  %v8428 = vadd.f32 0.0, %v8427
  %v8429 = vpop.f32.mrf.mxu0
  %8430 = vdwg.mxu0
  %v8431 = vmul.f32 %v8335, 0.25
  %v8432 = vmul.f32 %v8388, 0.25
  %v8433 = vmul.f32 %v8337, 0.25
  %v8434 = vmul.f32 %v8390, 0.25
  %v8435 = vmul.f32 %v8340, 0.25
  %v8436 = vmul.f32 %v8393, 0.25
  %v8437 = vmul.f32 %v8342, 0.25
  %v8438 = vmul.f32 %v8395, 0.25
  %v8439 = vmul.f32 %v8345, 0.25
  %v8440 = vmul.f32 %v8398, 0.25
  %v8441 = vmul.f32 %v8347, 0.25
  %v8442 = vmul.f32 %v8400, 0.25
  %v8443 = vmul.f32 %v8350, 0.25
  %v8444 = vmul.f32 %v8403, 0.25
  %v8445 = vmul.f32 %v8352, 0.25
  %v8446 = vmul.f32 %v8405, 0.25
  %v8447 = vmul.f32 %v8355, 0.25
  %v8448 = vmul.f32 %v8408, 0.25
  %v8449 = vmul.f32 %v8357, 0.25
  %v8450 = vmul.f32 %v8410, 0.25
  %v8451 = vmul.f32 %v8360, 0.25
  %v8452 = vmul.f32 %v8413, 0.25
  %v8453 = vmul.f32 %v8362, 0.25
  %v8454 = vmul.f32 %v8415, 0.25
  %v8455 = vmul.f32 %v8365, 0.25
  %v8456 = vmul.f32 %v8418, 0.25
  %v8457 = vmul.f32 %v8367, 0.25
  %v8458 = vmul.f32 %v8420, 0.25
  %v8459 = vmul.f32 %v8370, 0.25
  %v8460 = vmul.f32 %v8423, 0.25
  %v8461 = vmul.f32 %v8372, 0.25
  %v8462 = vmul.f32 %v8425, 0.25
  %v8463 = vmul.f32 %v8375, 0.25
  %v8464 = vmul.f32 %v8428, 0.25
  %v8465 = vadd.f32 %v8431, %v120
  %v8466 = vadd.f32 %v8432, %v121
  %v8467 = vadd.f32 %v8433, %v122
  %v8468 = vadd.f32 %v8434, %v123
  %v8469 = vadd.f32 %v8435, %v124
  %v8470 = vadd.f32 %v8436, %v125
  %v8471 = vadd.f32 %v8437, %v126
  %v8472 = vadd.f32 %v8438, %v127
  %v8473 = vadd.f32 %v8439, %v128
  %v8474 = vadd.f32 %v8440, %v129
  %v8475 = vadd.f32 %v8441, %v130
  %v8476 = vadd.f32 %v8442, %v131
  %v8477 = vadd.f32 %v8443, %v132
  %v8478 = vadd.f32 %v8444, %v133
  %v8479 = vadd.f32 %v8445, %v134
  %v8480 = vadd.f32 %v8446, %v135
  %v8481 = vadd.f32 %v8447, %v136
  %v8482 = vadd.f32 %v8448, %v137
  %v8483 = vadd.f32 %v8449, %v138
  %v8484 = vadd.f32 %v8450, %v139
  %v8485 = vadd.f32 %v8451, %v140
  %v8486 = vadd.f32 %v8452, %v141
  %v8487 = vadd.f32 %v8453, %v142
  %v8488 = vadd.f32 %v8454, %v143
  %v8489 = vadd.f32 %v8455, %v144
  %v8490 = vadd.f32 %v8456, %v145
  %v8491 = vadd.f32 %v8457, %v146
  %v8492 = vadd.f32 %v8458, %v147
  %v8493 = vadd.f32 %v8459, %v148
  %v8494 = vadd.f32 %v8460, %v149
  %v8495 = vadd.f32 %v8461, %v150
  %v8496 = vadd.f32 %v8462, %v151
  %v8497 = vadd.f32 %v8463, %v152
  %v8498 = vadd.f32 %v8464, %v153
  %v8499 = vsel %vm1169, %v8466, -inf
  %v8500 = vmax.f32 %v8465, %v8499
  %8501 = vmax.xlane.f32.xlu0 %v8500
  %v8502 = vpop.xlane.xlu0 %8501
  %v8503 = vsel %vm1169, %v8468, -inf
  %v8504 = vmax.f32 %v8467, %v8503
  %8505 = vmax.xlane.f32.xlu0 %v8504
  %v8506 = vpop.xlane.xlu0 %8505
  %v8507 = vsel %vm1169, %v8470, -inf
  %v8508 = vmax.f32 %v8469, %v8507
  %8509 = vmax.xlane.f32.xlu0 %v8508
  %v8510 = vpop.xlane.xlu0 %8509
  %v8511 = vsel %vm1169, %v8472, -inf
  %v8512 = vmax.f32 %v8471, %v8511
  %8513 = vmax.xlane.f32.xlu0 %v8512
  %v8514 = vpop.xlane.xlu0 %8513
  %v8515 = vsel %vm1169, %v8474, -inf
  %v8516 = vmax.f32 %v8473, %v8515
  %8517 = vmax.xlane.f32.xlu0 %v8516
  %v8518 = vpop.xlane.xlu0 %8517
  %v8519 = vsel %vm1169, %v8476, -inf
  %v8520 = vmax.f32 %v8475, %v8519
  %8521 = vmax.xlane.f32.xlu0 %v8520
  %v8522 = vpop.xlane.xlu0 %8521
  %v8523 = vsel %vm1169, %v8478, -inf
  %v8524 = vmax.f32 %v8477, %v8523
  %8525 = vmax.xlane.f32.xlu0 %v8524
  %v8526 = vpop.xlane.xlu0 %8525
  %v8527 = vsel %vm1169, %v8480, -inf
  %v8528 = vmax.f32 %v8479, %v8527
  %8529 = vmax.xlane.f32.xlu0 %v8528
  %v8530 = vpop.xlane.xlu0 %8529
  %v8531 = vsel %vm1169, %v8482, -inf
  %v8532 = vmax.f32 %v8481, %v8531
  %8533 = vmax.xlane.f32.xlu0 %v8532
  %v8534 = vpop.xlane.xlu0 %8533
  %v8535 = vsel %vm1169, %v8484, -inf
  %v8536 = vmax.f32 %v8483, %v8535
  %8537 = vmax.xlane.f32.xlu0 %v8536
  %v8538 = vpop.xlane.xlu0 %8537
  %v8539 = vsel %vm1169, %v8486, -inf
  %v8540 = vmax.f32 %v8485, %v8539
  %8541 = vmax.xlane.f32.xlu0 %v8540
  %v8542 = vpop.xlane.xlu0 %8541
  %v8543 = vsel %vm1169, %v8488, -inf
  %v8544 = vmax.f32 %v8487, %v8543
  %8545 = vmax.xlane.f32.xlu0 %v8544
  %v8546 = vpop.xlane.xlu0 %8545
  %v8547 = vsel %vm1169, %v8490, -inf
  %v8548 = vmax.f32 %v8489, %v8547
  %8549 = vmax.xlane.f32.xlu0 %v8548
  %v8550 = vpop.xlane.xlu0 %8549
  %v8551 = vsel %vm1169, %v8492, -inf
  %v8552 = vmax.f32 %v8491, %v8551
  %8553 = vmax.xlane.f32.xlu0 %v8552
  %v8554 = vpop.xlane.xlu0 %8553
  %v8555 = vsel %vm1169, %v8494, -inf
  %v8556 = vmax.f32 %v8493, %v8555
  %8557 = vmax.xlane.f32.xlu0 %v8556
  %v8558 = vpop.xlane.xlu0 %8557
  %v8559 = vsel %vm1169, %v8496, -inf
  %v8560 = vmax.f32 %v8495, %v8559
  %8561 = vmax.xlane.f32.xlu0 %v8560
  %v8562 = vpop.xlane.xlu0 %8561
  %v8563 = vsel %vm1169, %v8498, -inf
  %v8564 = vmax.f32 %v8497, %v8563
  %8565 = vmax.xlane.f32.xlu0 %v8564
  %v8566 = vpop.xlane.xlu0 %8565
  %v8567 = vsub.f32 %v8465, %v8502
  %v8568 = vsub.f32 %v8466, %v8502
  %v8569 = vsub.f32 %v8467, %v8506
  %v8570 = vsub.f32 %v8468, %v8506
  %v8571 = vsub.f32 %v8469, %v8510
  %v8572 = vsub.f32 %v8470, %v8510
  %v8573 = vsub.f32 %v8471, %v8514
  %v8574 = vsub.f32 %v8472, %v8514
  %v8575 = vsub.f32 %v8473, %v8518
  %v8576 = vsub.f32 %v8474, %v8518
  %v8577 = vsub.f32 %v8475, %v8522
  %v8578 = vsub.f32 %v8476, %v8522
  %v8579 = vsub.f32 %v8477, %v8526
  %v8580 = vsub.f32 %v8478, %v8526
  %v8581 = vsub.f32 %v8479, %v8530
  %v8582 = vsub.f32 %v8480, %v8530
  %v8583 = vsub.f32 %v8481, %v8534
  %v8584 = vsub.f32 %v8482, %v8534
  %v8585 = vsub.f32 %v8483, %v8538
  %v8586 = vsub.f32 %v8484, %v8538
  %v8587 = vsub.f32 %v8485, %v8542
  %v8588 = vsub.f32 %v8486, %v8542
  %v8589 = vsub.f32 %v8487, %v8546
  %v8590 = vsub.f32 %v8488, %v8546
  %v8591 = vsub.f32 %v8489, %v8550
  %v8592 = vsub.f32 %v8490, %v8550
  %v8593 = vsub.f32 %v8491, %v8554
  %v8594 = vsub.f32 %v8492, %v8554
  %v8595 = vsub.f32 %v8493, %v8558
  %v8596 = vsub.f32 %v8494, %v8558
  %v8597 = vsub.f32 %v8495, %v8562
  %v8598 = vsub.f32 %v8496, %v8562
  %v8599 = vsub.f32 %v8497, %v8566
  %v8600 = vsub.f32 %v8498, %v8566
  %v8601 = vmul.f32 %v8567, 1.442695
  %v8602 = vpow.pop %v8601
  %v8603 = vmul.f32 %v8568, 1.442695
  %v8604 = vpow.pop %v8603
  %v8605 = vmul.f32 %v8569, 1.442695
  %v8606 = vpow.pop %v8605
  %v8607 = vmul.f32 %v8570, 1.442695
  %v8608 = vpow.pop %v8607
  %v8609 = vmul.f32 %v8571, 1.442695
  %v8610 = vpow.pop %v8609
  %v8611 = vmul.f32 %v8572, 1.442695
  %v8612 = vpow.pop %v8611
  %v8613 = vmul.f32 %v8573, 1.442695
  %v8614 = vpow.pop %v8613
  %v8615 = vmul.f32 %v8574, 1.442695
  %v8616 = vpow.pop %v8615
  %v8617 = vmul.f32 %v8575, 1.442695
  %v8618 = vpow.pop %v8617
  %v8619 = vmul.f32 %v8576, 1.442695
  %v8620 = vpow.pop %v8619
  %v8621 = vmul.f32 %v8577, 1.442695
  %v8622 = vpow.pop %v8621
  %v8623 = vmul.f32 %v8578, 1.442695
  %v8624 = vpow.pop %v8623
  %v8625 = vmul.f32 %v8579, 1.442695
  %v8626 = vpow.pop %v8625
  %v8627 = vmul.f32 %v8580, 1.442695
  %v8628 = vpow.pop %v8627
  %v8629 = vmul.f32 %v8581, 1.442695
  %v8630 = vpow.pop %v8629
  %v8631 = vmul.f32 %v8582, 1.442695
  %v8632 = vpow.pop %v8631
  %v8633 = vmul.f32 %v8583, 1.442695
  %v8634 = vpow.pop %v8633
  %v8635 = vmul.f32 %v8584, 1.442695
  %v8636 = vpow.pop %v8635
  %v8637 = vmul.f32 %v8585, 1.442695
  %v8638 = vpow.pop %v8637
  %v8639 = vmul.f32 %v8586, 1.442695
  %v8640 = vpow.pop %v8639
  %v8641 = vmul.f32 %v8587, 1.442695
  %v8642 = vpow.pop %v8641
  %v8643 = vmul.f32 %v8588, 1.442695
  %v8644 = vpow.pop %v8643
  %v8645 = vmul.f32 %v8589, 1.442695
  %v8646 = vpow.pop %v8645
  %v8647 = vmul.f32 %v8590, 1.442695
  %v8648 = vpow.pop %v8647
  %v8649 = vmul.f32 %v8591, 1.442695
  %v8650 = vpow.pop %v8649
  %v8651 = vmul.f32 %v8592, 1.442695
  %v8652 = vpow.pop %v8651
  %v8653 = vmul.f32 %v8593, 1.442695
  %v8654 = vpow.pop %v8653
  %v8655 = vmul.f32 %v8594, 1.442695
  %v8656 = vpow.pop %v8655
  %v8657 = vmul.f32 %v8595, 1.442695
  %v8658 = vpow.pop %v8657
  %v8659 = vmul.f32 %v8596, 1.442695
  %v8660 = vpow.pop %v8659
  %v8661 = vmul.f32 %v8597, 1.442695
  %v8662 = vpow.pop %v8661
  %v8663 = vmul.f32 %v8598, 1.442695
  %v8664 = vpow.pop %v8663
  %v8665 = vmul.f32 %v8599, 1.442695
  %v8666 = vpow.pop %v8665
  %v8667 = vmul.f32 %v8600, 1.442695
  %v8668 = vpow.pop %v8667
  %v8669 = vsel %vm1169, %v8604, 0.0
  %v8670 = vadd.f32 %v8602, %v8669
  %8671 = vadd.xlane.f32.xlu0 %v8670
  %v8672 = vpop.xlane.xlu0 %8671
  %v8673 = vsel %vm1169, %v8608, 0.0
  %v8674 = vadd.f32 %v8606, %v8673
  %8675 = vadd.xlane.f32.xlu0 %v8674
  %v8676 = vpop.xlane.xlu0 %8675
  %v8677 = vsel %vm1169, %v8612, 0.0
  %v8678 = vadd.f32 %v8610, %v8677
  %8679 = vadd.xlane.f32.xlu0 %v8678
  %v8680 = vpop.xlane.xlu0 %8679
  %v8681 = vsel %vm1169, %v8616, 0.0
  %v8682 = vadd.f32 %v8614, %v8681
  %8683 = vadd.xlane.f32.xlu0 %v8682
  %v8684 = vpop.xlane.xlu0 %8683
  %v8685 = vsel %vm1169, %v8620, 0.0
  %v8686 = vadd.f32 %v8618, %v8685
  %8687 = vadd.xlane.f32.xlu0 %v8686
  %v8688 = vpop.xlane.xlu0 %8687
  %v8689 = vsel %vm1169, %v8624, 0.0
  %v8690 = vadd.f32 %v8622, %v8689
  %8691 = vadd.xlane.f32.xlu0 %v8690
  %v8692 = vpop.xlane.xlu0 %8691
  %v8693 = vsel %vm1169, %v8628, 0.0
  %v8694 = vadd.f32 %v8626, %v8693
  %8695 = vadd.xlane.f32.xlu0 %v8694
  %v8696 = vpop.xlane.xlu0 %8695
  %v8697 = vsel %vm1169, %v8632, 0.0
  %v8698 = vadd.f32 %v8630, %v8697
  %8699 = vadd.xlane.f32.xlu0 %v8698
  %v8700 = vpop.xlane.xlu0 %8699
  %v8701 = vsel %vm1169, %v8636, 0.0
  %v8702 = vadd.f32 %v8634, %v8701
  %8703 = vadd.xlane.f32.xlu0 %v8702
  %v8704 = vpop.xlane.xlu0 %8703
  %v8705 = vsel %vm1169, %v8640, 0.0
  %v8706 = vadd.f32 %v8638, %v8705
  %8707 = vadd.xlane.f32.xlu0 %v8706
  %v8708 = vpop.xlane.xlu0 %8707
  %v8709 = vsel %vm1169, %v8644, 0.0
  %v8710 = vadd.f32 %v8642, %v8709
  %8711 = vadd.xlane.f32.xlu0 %v8710
  %v8712 = vpop.xlane.xlu0 %8711
  %v8713 = vsel %vm1169, %v8648, 0.0
  %v8714 = vadd.f32 %v8646, %v8713
  %8715 = vadd.xlane.f32.xlu0 %v8714
  %v8716 = vpop.xlane.xlu0 %8715
  %v8717 = vsel %vm1169, %v8652, 0.0
  %v8718 = vadd.f32 %v8650, %v8717
  %8719 = vadd.xlane.f32.xlu0 %v8718
  %v8720 = vpop.xlane.xlu0 %8719
  %v8721 = vsel %vm1169, %v8656, 0.0
  %v8722 = vadd.f32 %v8654, %v8721
  %8723 = vadd.xlane.f32.xlu0 %v8722
  %v8724 = vpop.xlane.xlu0 %8723
  %v8725 = vsel %vm1169, %v8660, 0.0
  %v8726 = vadd.f32 %v8658, %v8725
  %8727 = vadd.xlane.f32.xlu0 %v8726
  %v8728 = vpop.xlane.xlu0 %8727
  %v8729 = vsel %vm1169, %v8664, 0.0
  %v8730 = vadd.f32 %v8662, %v8729
  %8731 = vadd.xlane.f32.xlu0 %v8730
  %v8732 = vpop.xlane.xlu0 %8731
  %v8733 = vsel %vm1169, %v8668, 0.0
  %v8734 = vadd.f32 %v8666, %v8733
  %8735 = vadd.xlane.f32.xlu0 %v8734
  %v8736 = vpop.xlane.xlu0 %8735
  %v8737 = vrcp.pop %v8672
  %v8738 = vrcp.pop %v8676
  %v8739 = vrcp.pop %v8680
  %v8740 = vrcp.pop %v8684
  %v8741 = vrcp.pop %v8688
  %v8742 = vrcp.pop %v8692
  %v8743 = vrcp.pop %v8696
  %v8744 = vrcp.pop %v8700
  %v8745 = vrcp.pop %v8704
  %v8746 = vrcp.pop %v8708
  %v8747 = vrcp.pop %v8712
  %v8748 = vrcp.pop %v8716
  %v8749 = vrcp.pop %v8720
  %v8750 = vrcp.pop %v8724
  %v8751 = vrcp.pop %v8728
  %v8752 = vrcp.pop %v8732
  %v8753 = vrcp.pop %v8736
  %v8754 = vmul.f32 %v8602, %v8737
  %v8755 = vmul.f32 %v8604, %v8737
  %v8756 = vmul.f32 %v8606, %v8738
  %v8757 = vmul.f32 %v8608, %v8738
  %v8758 = vmul.f32 %v8610, %v8739
  %v8759 = vmul.f32 %v8612, %v8739
  %v8760 = vmul.f32 %v8614, %v8740
  %v8761 = vmul.f32 %v8616, %v8740
  %v8762 = vmul.f32 %v8618, %v8741
  %v8763 = vmul.f32 %v8620, %v8741
  %v8764 = vmul.f32 %v8622, %v8742
  %v8765 = vmul.f32 %v8624, %v8742
  %v8766 = vmul.f32 %v8626, %v8743
  %v8767 = vmul.f32 %v8628, %v8743
  %v8768 = vmul.f32 %v8630, %v8744
  %v8769 = vmul.f32 %v8632, %v8744
  %v8770 = vmul.f32 %v8634, %v8745
  %v8771 = vmul.f32 %v8636, %v8745
  %v8772 = vmul.f32 %v8638, %v8746
  %v8773 = vmul.f32 %v8640, %v8746
  %v8774 = vmul.f32 %v8642, %v8747
  %v8775 = vmul.f32 %v8644, %v8747
  %v8776 = vmul.f32 %v8646, %v8748
  %v8777 = vmul.f32 %v8648, %v8748
  %v8778 = vmul.f32 %v8650, %v8749
  %v8779 = vmul.f32 %v8652, %v8749
  %v8780 = vmul.f32 %v8654, %v8750
  %v8781 = vmul.f32 %v8656, %v8750
  %v8782 = vmul.f32 %v8658, %v8751
  %v8783 = vmul.f32 %v8660, %v8751
  %v8784 = vmul.f32 %v8662, %v8752
  %v8785 = vmul.f32 %v8664, %v8752
  %v8786 = vmul.f32 %v8666, %v8753
  %v8787 = vmul.f32 %v8668, %v8753
  %v8788 = vpack.c.bf16 %v8756, %v8754
  %v8789 = vpack.c.bf16 %v8757, %v8755
  %v8790 = vpack.c.bf16 %v8760, %v8758
  %v8791 = vpack.c.bf16 %v8761, %v8759
  %v8792 = vpack.c.bf16 %v8764, %v8762
  %v8793 = vpack.c.bf16 %v8765, %v8763
  %v8794 = vpack.c.bf16 %v8768, %v8766
  %v8795 = vpack.c.bf16 %v8769, %v8767
  %v8796 = vpack.c.bf16 %v8772, %v8770
  %v8797 = vpack.c.bf16 %v8773, %v8771
  %v8798 = vpack.c.bf16 %v8776, %v8774
  %v8799 = vpack.c.bf16 %v8777, %v8775
  %v8800 = vpack.c.bf16 %v8780, %v8778
  %v8801 = vpack.c.bf16 %v8781, %v8779
  %v8802 = vpack.c.bf16 %v8784, %v8782
  %v8803 = vpack.c.bf16 %v8785, %v8783
  %v8804 = vpack.c.bf16 %v8786, %v8786
  %v8805 = vpack.c.bf16 %v8787, %v8787
  %8806 = vrot.lane.b32.xlu0 %v6053, 80
  %v8807 = vpop.permute.xlu0 %8806
  %8808 = vrot.lane.b32.xlu0 %v6054, 80
  %v8809 = vpop.permute.xlu0 %8808
  %8810 = vrot.lane.b32.xlu0 %v6055, 80
  %v8811 = vpop.permute.xlu0 %8810
  %8812 = vrot.lane.b32.xlu0 %v6056, 80
  %v8813 = vpop.permute.xlu0 %8812
  %8814 = vrot.lane.b32.xlu0 %v6057, 80
  %v8815 = vpop.permute.xlu0 %8814
  %8816 = vrot.lane.b32.xlu0 %v6058, 80
  %v8817 = vpop.permute.xlu0 %8816
  %8818 = vrot.lane.b32.xlu0 %v6059, 80
  %v8819 = vpop.permute.xlu0 %8818
  %8820 = vrot.lane.b32.xlu0 %v6060, 80
  %v8821 = vpop.permute.xlu0 %8820
  %8822 = vrot.lane.b32.xlu0 %v6061, 80
  %v8823 = vpop.permute.xlu0 %8822
  %v8833 = vsel %vm1169, %v8789, 0
  %v8836 = vsel %vm1169, %v8791, 0
  %v8839 = vsel %vm1169, %v8793, 0
  %v8842 = vsel %vm1169, %v8795, 0
  %v8845 = vsel %vm1169, %v8797, 0
  %v8848 = vsel %vm1169, %v8799, 0
  %v8851 = vsel %vm1169, %v8801, 0
  %v8854 = vsel %vm1169, %v8803, 0
  %v8857 = vsel %vm1169, %v8805, 0
  %v8860 = vsel %vm215, %v8823, 0
  %8862 = vmatpush.bf16.msra.mxu0 %v8821
  %8863 = vmatpush.bf16.msra.mxu0 %v8819
  %8864 = vmatpush.bf16.msra.mxu0 %v8817
  %8865 = vmatpush.bf16.msra.mxu0 %v8815
  %8866 = vmatpush.bf16.msra.mxu0 %v8813
  %8867 = vmatpush.bf16.msra.mxu0 %v8811
  %8868 = vmatpush.bf16.msra.mxu0 %v8809
  %8869 = vmatpush.bf16.msra.mxu0 %v8807
  %8870 = vmatmul.bf16.gmra.mxu0 %v8788
  %v8871 = vpop.f32.mrf.mxu0
  %v8872 = vadd.f32 0.0, %v8871
  %v8873 = vpop.f32.mrf.mxu0
  %v8874 = vadd.f32 0.0, %v8873
  %8875 = vmatmul.bf16.gmra.mxu0 %v8790
  %v8876 = vpop.f32.mrf.mxu0
  %v8877 = vadd.f32 0.0, %v8876
  %v8878 = vpop.f32.mrf.mxu0
  %v8879 = vadd.f32 0.0, %v8878
  %8880 = vmatmul.bf16.gmra.mxu0 %v8792
  %v8881 = vpop.f32.mrf.mxu0
  %v8882 = vadd.f32 0.0, %v8881
  %v8883 = vpop.f32.mrf.mxu0
  %v8884 = vadd.f32 0.0, %v8883
  %8885 = vmatmul.bf16.gmra.mxu0 %v8794
  %v8886 = vpop.f32.mrf.mxu0
  %v8887 = vadd.f32 0.0, %v8886
  %v8888 = vpop.f32.mrf.mxu0
  %v8889 = vadd.f32 0.0, %v8888
  %8890 = vmatmul.bf16.gmra.mxu0 %v8796
  %v8891 = vpop.f32.mrf.mxu0
  %v8892 = vadd.f32 0.0, %v8891
  %v8893 = vpop.f32.mrf.mxu0
  %v8894 = vadd.f32 0.0, %v8893
  %8895 = vmatmul.bf16.gmra.mxu0 %v8798
  %v8896 = vpop.f32.mrf.mxu0
  %v8897 = vadd.f32 0.0, %v8896
  %v8898 = vpop.f32.mrf.mxu0
  %v8899 = vadd.f32 0.0, %v8898
  %8900 = vmatmul.bf16.gmra.mxu0 %v8800
  %v8901 = vpop.f32.mrf.mxu0
  %v8902 = vadd.f32 0.0, %v8901
  %v8903 = vpop.f32.mrf.mxu0
  %v8904 = vadd.f32 0.0, %v8903
  %8905 = vmatmul.bf16.gmra.mxu0 %v8802
  %v8906 = vpop.f32.mrf.mxu0
  %v8907 = vadd.f32 0.0, %v8906
  %v8908 = vpop.f32.mrf.mxu0
  %v8909 = vadd.f32 0.0, %v8908
  %8910 = vmatmul.bf16.gmra.mxu0 %v8804
  %v8911 = vpop.f32.mrf.mxu0
  %v8912 = vadd.f32 0.0, %v8911
  %v8913 = vpop.f32.mrf.mxu0
  %8914 = vdwg.mxu0
  %8915 = vmatpush.bf16.msra.mxu0 0
  %8916 = vmatpush.bf16.msra.mxu0 0
  %8917 = vmatpush.bf16.msra.mxu0 0
  %8918 = vmatpush.bf16.msra.mxu0 0
  %8919 = vmatpush.bf16.msra.mxu0 0
  %8920 = vmatpush.bf16.msra.mxu0 0
  %8921 = vmatpush.bf16.msra.mxu0 0
  %8922 = vmatpush.bf16.msra.mxu0 %v8860
  %8923 = vmatmul.bf16.gmra.mxu0 %v8833
  %v8924 = vpop.f32.mrf.mxu0
  %v8925 = vadd.f32 %v8872, %v8924
  %v8926 = vpop.f32.mrf.mxu0
  %v8927 = vadd.f32 %v8874, %v8926
  %8928 = vmatmul.bf16.gmra.mxu0 %v8836
  %v8929 = vpop.f32.mrf.mxu0
  %v8930 = vadd.f32 %v8877, %v8929
  %v8931 = vpop.f32.mrf.mxu0
  %v8932 = vadd.f32 %v8879, %v8931
  %8933 = vmatmul.bf16.gmra.mxu0 %v8839
  %v8934 = vpop.f32.mrf.mxu0
  %v8935 = vadd.f32 %v8882, %v8934
  %v8936 = vpop.f32.mrf.mxu0
  %v8937 = vadd.f32 %v8884, %v8936
  %8938 = vmatmul.bf16.gmra.mxu0 %v8842
  %v8939 = vpop.f32.mrf.mxu0
  %v8940 = vadd.f32 %v8887, %v8939
  %v8941 = vpop.f32.mrf.mxu0
  %v8942 = vadd.f32 %v8889, %v8941
  %8943 = vmatmul.bf16.gmra.mxu0 %v8845
  %v8944 = vpop.f32.mrf.mxu0
  %v8945 = vadd.f32 %v8892, %v8944
  %v8946 = vpop.f32.mrf.mxu0
  %v8947 = vadd.f32 %v8894, %v8946
  %8948 = vmatmul.bf16.gmra.mxu0 %v8848
  %v8949 = vpop.f32.mrf.mxu0
  %v8950 = vadd.f32 %v8897, %v8949
  %v8951 = vpop.f32.mrf.mxu0
  %v8952 = vadd.f32 %v8899, %v8951
  %8953 = vmatmul.bf16.gmra.mxu0 %v8851
  %v8954 = vpop.f32.mrf.mxu0
  %v8955 = vadd.f32 %v8902, %v8954
  %v8956 = vpop.f32.mrf.mxu0
  %v8957 = vadd.f32 %v8904, %v8956
  %8958 = vmatmul.bf16.gmra.mxu0 %v8854
  %v8959 = vpop.f32.mrf.mxu0
  %v8960 = vadd.f32 %v8907, %v8959
  %v8961 = vpop.f32.mrf.mxu0
  %v8962 = vadd.f32 %v8909, %v8961
  %8963 = vmatmul.bf16.gmra.mxu0 %v8857
  %v8964 = vpop.f32.mrf.mxu0
  %v8965 = vadd.f32 %v8912, %v8964
  %v8966 = vpop.f32.mrf.mxu0
  %8967 = vdwg.mxu0
  %8985 = vrot.lane.b32.xlu0 %v7459, 16
  %v8986 = vpop.permute.xlu0 %8985
  %8987 = vrot.lane.b32.xlu0 %v7461, 16
  %v8988 = vpop.permute.xlu0 %8987
  %8989 = vrot.lane.b32.xlu0 %v7464, 16
  %v8990 = vpop.permute.xlu0 %8989
  %8991 = vrot.lane.b32.xlu0 %v7466, 16
  %v8992 = vpop.permute.xlu0 %8991
  %8993 = vrot.lane.b32.xlu0 %v7469, 16
  %v8994 = vpop.permute.xlu0 %8993
  %8995 = vrot.lane.b32.xlu0 %v7471, 16
  %v8996 = vpop.permute.xlu0 %8995
  %8997 = vrot.lane.b32.xlu0 %v7474, 16
  %v8998 = vpop.permute.xlu0 %8997
  %8999 = vrot.lane.b32.xlu0 %v7476, 16
  %v9000 = vpop.permute.xlu0 %8999
  %9001 = vrot.lane.b32.xlu0 %v7479, 16
  %v9002 = vpop.permute.xlu0 %9001
  %9003 = vrot.lane.b32.xlu0 %v7481, 16
  %v9004 = vpop.permute.xlu0 %9003
  %9005 = vrot.lane.b32.xlu0 %v7484, 16
  %v9006 = vpop.permute.xlu0 %9005
  %9007 = vrot.lane.b32.xlu0 %v7486, 16
  %v9008 = vpop.permute.xlu0 %9007
  %9009 = vrot.lane.b32.xlu0 %v7489, 16
  %v9010 = vpop.permute.xlu0 %9009
  %9011 = vrot.lane.b32.xlu0 %v7491, 16
  %v9012 = vpop.permute.xlu0 %9011
  %9013 = vrot.lane.b32.xlu0 %v7494, 16
  %v9014 = vpop.permute.xlu0 %9013
  %9015 = vrot.lane.b32.xlu0 %v7496, 16
  %v9016 = vpop.permute.xlu0 %9015
  %9017 = vrot.lane.b32.xlu0 %v7499, 16
  %v9018 = vpop.permute.xlu0 %9017
  %9053 = vrot.lane.b32.xlu0 %v8192, 32
  %v9054 = vpop.permute.xlu0 %9053
  %9055 = vrot.lane.b32.xlu0 %v8194, 32
  %v9056 = vpop.permute.xlu0 %9055
  %9057 = vrot.lane.b32.xlu0 %v8197, 32
  %v9058 = vpop.permute.xlu0 %9057
  %9059 = vrot.lane.b32.xlu0 %v8199, 32
  %v9060 = vpop.permute.xlu0 %9059
  %9061 = vrot.lane.b32.xlu0 %v8202, 32
  %v9062 = vpop.permute.xlu0 %9061
  %9063 = vrot.lane.b32.xlu0 %v8204, 32
  %v9064 = vpop.permute.xlu0 %9063
  %9065 = vrot.lane.b32.xlu0 %v8207, 32
  %v9066 = vpop.permute.xlu0 %9065
  %9067 = vrot.lane.b32.xlu0 %v8209, 32
  %v9068 = vpop.permute.xlu0 %9067
  %9069 = vrot.lane.b32.xlu0 %v8212, 32
  %v9070 = vpop.permute.xlu0 %9069
  %9071 = vrot.lane.b32.xlu0 %v8214, 32
  %v9072 = vpop.permute.xlu0 %9071
  %9073 = vrot.lane.b32.xlu0 %v8217, 32
  %v9074 = vpop.permute.xlu0 %9073
  %9075 = vrot.lane.b32.xlu0 %v8219, 32
  %v9076 = vpop.permute.xlu0 %9075
  %9077 = vrot.lane.b32.xlu0 %v8222, 32
  %v9078 = vpop.permute.xlu0 %9077
  %9079 = vrot.lane.b32.xlu0 %v8224, 32
  %v9080 = vpop.permute.xlu0 %9079
  %9081 = vrot.lane.b32.xlu0 %v8227, 32
  %v9082 = vpop.permute.xlu0 %9081
  %9083 = vrot.lane.b32.xlu0 %v8229, 32
  %v9084 = vpop.permute.xlu0 %9083
  %9085 = vrot.lane.b32.xlu0 %v8232, 32
  %v9086 = vpop.permute.xlu0 %9085
  %9121 = vrot.lane.b32.xlu0 %v8925, 48
  %v9122 = vpop.permute.xlu0 %9121
  %9123 = vrot.lane.b32.xlu0 %v8927, 48
  %v9124 = vpop.permute.xlu0 %9123
  %9125 = vrot.lane.b32.xlu0 %v8930, 48
  %v9126 = vpop.permute.xlu0 %9125
  %9127 = vrot.lane.b32.xlu0 %v8932, 48
  %v9128 = vpop.permute.xlu0 %9127
  %9129 = vrot.lane.b32.xlu0 %v8935, 48
  %v9130 = vpop.permute.xlu0 %9129
  %9131 = vrot.lane.b32.xlu0 %v8937, 48
  %v9132 = vpop.permute.xlu0 %9131
  %9133 = vrot.lane.b32.xlu0 %v8940, 48
  %v9134 = vpop.permute.xlu0 %9133
  %9135 = vrot.lane.b32.xlu0 %v8942, 48
  %v9136 = vpop.permute.xlu0 %9135
  %9137 = vrot.lane.b32.xlu0 %v8945, 48
  %v9138 = vpop.permute.xlu0 %9137
  %9139 = vrot.lane.b32.xlu0 %v8947, 48
  %v9140 = vpop.permute.xlu0 %9139
  %9141 = vrot.lane.b32.xlu0 %v8950, 48
  %v9142 = vpop.permute.xlu0 %9141
  %9143 = vrot.lane.b32.xlu0 %v8952, 48
  %v9144 = vpop.permute.xlu0 %9143
  %9145 = vrot.lane.b32.xlu0 %v8955, 48
  %v9146 = vpop.permute.xlu0 %9145
  %9147 = vrot.lane.b32.xlu0 %v8957, 48
  %v9148 = vpop.permute.xlu0 %9147
  %9149 = vrot.lane.b32.xlu0 %v8960, 48
  %v9150 = vpop.permute.xlu0 %9149
  %9151 = vrot.lane.b32.xlu0 %v8962, 48
  %v9152 = vpop.permute.xlu0 %9151
  %9153 = vrot.lane.b32.xlu0 %v8965, 48
  %v9154 = vpop.permute.xlu0 %9153
  %v9172 = vsel %vm940, %v6717, %v8986
  %v9173 = vsel %vm940, %v6719, %v8988
  %v9174 = vsel %vm940, %v6722, %v8990
  %v9175 = vsel %vm940, %v6724, %v8992
  %v9176 = vsel %vm940, %v6727, %v8994
  %v9177 = vsel %vm940, %v6729, %v8996
  %v9178 = vsel %vm940, %v6732, %v8998
  %v9179 = vsel %vm940, %v6734, %v9000
  %v9180 = vsel %vm940, %v6737, %v9002
  %v9181 = vsel %vm940, %v6739, %v9004
  %v9182 = vsel %vm940, %v6742, %v9006
  %v9183 = vsel %vm940, %v6744, %v9008
  %v9184 = vsel %vm940, %v6747, %v9010
  %v9185 = vsel %vm940, %v6749, %v9012
  %v9186 = vsel %vm940, %v6752, %v9014
  %v9187 = vsel %vm940, %v6754, %v9016
  %v9188 = vsel %vm940, %v6757, %v9018
  %v9189 = vsel %vm4042, %v9172, %v9054
  %v9190 = vsel %vm4042, %v9173, %v9056
  %v9191 = vsel %vm4042, %v9174, %v9058
  %v9192 = vsel %vm4042, %v9175, %v9060
  %v9193 = vsel %vm4042, %v9176, %v9062
  %v9194 = vsel %vm4042, %v9177, %v9064
  %v9195 = vsel %vm4042, %v9178, %v9066
  %v9196 = vsel %vm4042, %v9179, %v9068
  %v9197 = vsel %vm4042, %v9180, %v9070
  %v9198 = vsel %vm4042, %v9181, %v9072
  %v9199 = vsel %vm4042, %v9182, %v9074
  %v9200 = vsel %vm4042, %v9183, %v9076
  %v9201 = vsel %vm4042, %v9184, %v9078
  %v9202 = vsel %vm4042, %v9185, %v9080
  %v9203 = vsel %vm4042, %v9186, %v9082
  %v9204 = vsel %vm4042, %v9187, %v9084
  %v9205 = vsel %vm4042, %v9188, %v9086
  %v9206 = vsel %vm4060, %v9189, %v9122
  %v9207 = vsel %vm4060, %v9190, %v9124
  %v9208 = vsel %vm4060, %v9191, %v9126
  %v9209 = vsel %vm4060, %v9192, %v9128
  %v9210 = vsel %vm4060, %v9193, %v9130
  %v9211 = vsel %vm4060, %v9194, %v9132
  %v9212 = vsel %vm4060, %v9195, %v9134
  %v9213 = vsel %vm4060, %v9196, %v9136
  %v9214 = vsel %vm4060, %v9197, %v9138
  %v9215 = vsel %vm4060, %v9198, %v9140
  %v9216 = vsel %vm4060, %v9199, %v9142
  %v9217 = vsel %vm4060, %v9200, %v9144
  %v9218 = vsel %vm4060, %v9201, %v9146
  %v9219 = vsel %vm4060, %v9202, %v9148
  %v9220 = vsel %vm4060, %v9203, %v9150
  %v9221 = vsel %vm4060, %v9204, %v9152
  %v9222 = vsel %vm4060, %v9205, %v9154
  %v9223 = vpack.c.bf16 %v9207, %v9206
  %v9224 = vpack.c.bf16 %v9209, %v9208
  %v9225 = vpack.c.bf16 %v9211, %v9210
  %v9226 = vpack.c.bf16 %v9213, %v9212
  %v9227 = vpack.c.bf16 %v9215, %v9214
  %v9228 = vpack.c.bf16 %v9217, %v9216
  %v9229 = vpack.c.bf16 %v9219, %v9218
  %v9230 = vpack.c.bf16 %v9221, %v9220
  %v9231 = vpack.c.bf16 %v9222, %v9222
  %s9232 = scalar_lea.vmem %s9, 32
  %v9233 = vld [vmem:[%s9232] sm:$0xf]
  %v9234 = vld [vmem:[%s9232 + $0x4] sm:$0xf]
  %v9235 = vld [vmem:[%s9232 + $0x8] sm:$0xf]
  %v9236 = vld [vmem:[%s9232 + $0xc] sm:$0xf]
  %v9237 = vld [vmem:[%s9232 + $0x10] sm:$0xf]
  %v9238 = vld [vmem:[%s9232 + $0x14] sm:$0xf]
  %v9239 = vld [vmem:[%s9232 + $0x18] sm:$0xf]
  %v9240 = vld [vmem:[%s9232 + $0x1c] sm:$0xf]
  %v9249 = vunpack.c.l.b16 %v9233
  %v9250 = vunpack.c.l.b16 %v9234
  %v9251 = vunpack.c.l.b16 %v9235
  %v9252 = vunpack.c.l.b16 %v9236
  %v9253 = vunpack.c.l.b16 %v9237
  %v9254 = vunpack.c.l.b16 %v9238
  %v9255 = vunpack.c.l.b16 %v9239
  %v9256 = vunpack.c.l.b16 %v9240
  %v9257 = vpack.c.b16 %v9250, %v9249
  %v9258 = vpack.c.b16 %v9252, %v9251
  %v9259 = vpack.c.b16 %v9254, %v9253
  %v9260 = vpack.c.b16 %v9256, %v9255
  %v9266 = vsel %vm277, %v9223, 0
  %v9269 = vsel %vm277, %v9224, 0
  %v9272 = vsel %vm277, %v9225, 0
  %v9275 = vsel %vm277, %v9226, 0
  %v9278 = vsel %vm277, %v9227, 0
  %v9281 = vsel %vm277, %v9228, 0
  %v9284 = vsel %vm277, %v9229, 0
  %v9287 = vsel %vm277, %v9230, 0
  %v9290 = vsel %vm277, %v9231, 0
  %9292 = vmatpush.bf16.msra.mxu0 0
  %9293 = vmatpush.bf16.msra.mxu0 0
  %9294 = vmatpush.bf16.msra.mxu0 0
  %9295 = vmatpush.bf16.msra.mxu0 0
  %9296 = vmatpush.bf16.msra.mxu0 %v9260
  %9297 = vmatpush.bf16.msra.mxu0 %v9259
  %9298 = vmatpush.bf16.msra.mxu0 %v9258
  %9299 = vmatpush.bf16.msra.mxu0 %v9257
  %9300 = vmatmul.bf16.gmra.mxu0 %v9266
  %v9301 = vpop.f32.mrf.mxu0
  %v9302 = vadd.f32 0.0, %v9301
  %v9303 = vpop.f32.mrf.mxu0
  %v9304 = vadd.f32 0.0, %v9303
  %9305 = vmatmul.bf16.gmra.mxu0 %v9269
  %v9306 = vpop.f32.mrf.mxu0
  %v9307 = vadd.f32 0.0, %v9306
  %v9308 = vpop.f32.mrf.mxu0
  %v9309 = vadd.f32 0.0, %v9308
  %9310 = vmatmul.bf16.gmra.mxu0 %v9272
  %v9311 = vpop.f32.mrf.mxu0
  %v9312 = vadd.f32 0.0, %v9311
  %v9313 = vpop.f32.mrf.mxu0
  %v9314 = vadd.f32 0.0, %v9313
  %9315 = vmatmul.bf16.gmra.mxu0 %v9275
  %v9316 = vpop.f32.mrf.mxu0
  %v9317 = vadd.f32 0.0, %v9316
  %v9318 = vpop.f32.mrf.mxu0
  %v9319 = vadd.f32 0.0, %v9318
  %9320 = vmatmul.bf16.gmra.mxu0 %v9278
  %v9321 = vpop.f32.mrf.mxu0
  %v9322 = vadd.f32 0.0, %v9321
  %v9323 = vpop.f32.mrf.mxu0
  %v9324 = vadd.f32 0.0, %v9323
  %9325 = vmatmul.bf16.gmra.mxu0 %v9281
  %v9326 = vpop.f32.mrf.mxu0
  %v9327 = vadd.f32 0.0, %v9326
  %v9328 = vpop.f32.mrf.mxu0
  %v9329 = vadd.f32 0.0, %v9328
  %9330 = vmatmul.bf16.gmra.mxu0 %v9284
  %v9331 = vpop.f32.mrf.mxu0
  %v9332 = vadd.f32 0.0, %v9331
  %v9333 = vpop.f32.mrf.mxu0
  %v9334 = vadd.f32 0.0, %v9333
  %9335 = vmatmul.bf16.gmra.mxu0 %v9287
  %v9336 = vpop.f32.mrf.mxu0
  %v9337 = vadd.f32 0.0, %v9336
  %v9338 = vpop.f32.mrf.mxu0
  %v9339 = vadd.f32 0.0, %v9338
  %9340 = vmatmul.bf16.gmra.mxu0 %v9290
  %v9341 = vpop.f32.mrf.mxu0
  %v9342 = vadd.f32 0.0, %v9341
  %v9343 = vpop.f32.mrf.mxu0
  %9344 = vdwg.mxu0
  %v9345 = vadd.f32 %v5411, %v9302
  %v9346 = vadd.f32 %v5412, %v9304
  %v9347 = vadd.f32 %v5413, %v9307
  %v9348 = vadd.f32 %v5414, %v9309
  %v9349 = vadd.f32 %v5415, %v9312
  %v9350 = vadd.f32 %v5416, %v9314
  %v9351 = vadd.f32 %v5417, %v9317
  %v9352 = vadd.f32 %v5418, %v9319
  %v9353 = vadd.f32 %v5419, %v9322
  %v9354 = vadd.f32 %v5420, %v9324
  %v9355 = vadd.f32 %v5421, %v9327
  %v9356 = vadd.f32 %v5422, %v9329
  %v9357 = vadd.f32 %v5423, %v9332
  %v9358 = vadd.f32 %v5424, %v9334
  %v9359 = vadd.f32 %v5425, %v9337
  %v9360 = vadd.f32 %v5426, %v9339
  %v9361 = vadd.f32 %v5427, %v9342
  %s9362 = scalar_lea.vmem %s10, 1
  %v9363 = vld [vmem:[%s9362] sm:$0x1]
  %v9365 = vperm.slane %v9363, 0
  %v9367 = vadd.f32 %v9345, %v9365
  %v9368 = vadd.f32 %v9346, %v9365
  %v9369 = vadd.f32 %v9347, %v9365
  %v9370 = vadd.f32 %v9348, %v9365
  %v9371 = vadd.f32 %v9349, %v9365
  %v9372 = vadd.f32 %v9350, %v9365
  %v9373 = vadd.f32 %v9351, %v9365
  %v9374 = vadd.f32 %v9352, %v9365
  %v9375 = vadd.f32 %v9353, %v9365
  %v9376 = vadd.f32 %v9354, %v9365
  %v9377 = vadd.f32 %v9355, %v9365
  %v9378 = vadd.f32 %v9356, %v9365
  %v9379 = vadd.f32 %v9357, %v9365
  %v9380 = vadd.f32 %v9358, %v9365
  %v9381 = vadd.f32 %v9359, %v9365
  %v9382 = vadd.f32 %v9360, %v9365
  %v9383 = vadd.f32 %v9361, %v9365
  %s9384 = scalar_lea.vmem %s11, 1
  %v9385 = vld [vmem:[%s9384] sm:$0x1]
  %s9386 = scalar_lea.vmem %s12, 1
  %v9387 = vld [vmem:[%s9386] sm:$0x1]
  %v9388 = vsel %vm277, %v9367, 0.0
  %9389 = vadd.xlane.f32.xlu0 %v9388
  %v9390 = vpop.xlane.xlu0 %9389
  %v9391 = vsel %vm277, %v9368, 0.0
  %9392 = vadd.xlane.f32.xlu0 %v9391
  %v9393 = vpop.xlane.xlu0 %9392
  %v9394 = vsel %vm277, %v9369, 0.0
  %9395 = vadd.xlane.f32.xlu0 %v9394
  %v9396 = vpop.xlane.xlu0 %9395
  %v9397 = vsel %vm277, %v9370, 0.0
  %9398 = vadd.xlane.f32.xlu0 %v9397
  %v9399 = vpop.xlane.xlu0 %9398
  %v9400 = vsel %vm277, %v9371, 0.0
  %9401 = vadd.xlane.f32.xlu0 %v9400
  %v9402 = vpop.xlane.xlu0 %9401
  %v9403 = vsel %vm277, %v9372, 0.0
  %9404 = vadd.xlane.f32.xlu0 %v9403
  %v9405 = vpop.xlane.xlu0 %9404
  %v9406 = vsel %vm277, %v9373, 0.0
  %9407 = vadd.xlane.f32.xlu0 %v9406
  %v9408 = vpop.xlane.xlu0 %9407
  %v9409 = vsel %vm277, %v9374, 0.0
  %9410 = vadd.xlane.f32.xlu0 %v9409
  %v9411 = vpop.xlane.xlu0 %9410
  %v9412 = vsel %vm277, %v9375, 0.0
  %9413 = vadd.xlane.f32.xlu0 %v9412
  %v9414 = vpop.xlane.xlu0 %9413
  %v9415 = vsel %vm277, %v9376, 0.0
  %9416 = vadd.xlane.f32.xlu0 %v9415
  %v9417 = vpop.xlane.xlu0 %9416
  %v9418 = vsel %vm277, %v9377, 0.0
  %9419 = vadd.xlane.f32.xlu0 %v9418
  %v9420 = vpop.xlane.xlu0 %9419
  %v9421 = vsel %vm277, %v9378, 0.0
  %9422 = vadd.xlane.f32.xlu0 %v9421
  %v9423 = vpop.xlane.xlu0 %9422
  %v9424 = vsel %vm277, %v9379, 0.0
  %9425 = vadd.xlane.f32.xlu0 %v9424
  %v9426 = vpop.xlane.xlu0 %9425
  %v9427 = vsel %vm277, %v9380, 0.0
  %9428 = vadd.xlane.f32.xlu0 %v9427
  %v9429 = vpop.xlane.xlu0 %9428
  %v9430 = vsel %vm277, %v9381, 0.0
  %9431 = vadd.xlane.f32.xlu0 %v9430
  %v9432 = vpop.xlane.xlu0 %9431
  %v9433 = vsel %vm277, %v9382, 0.0
  %9434 = vadd.xlane.f32.xlu0 %v9433
  %v9435 = vpop.xlane.xlu0 %9434
  %v9436 = vsel %vm277, %v9383, 0.0
  %9437 = vadd.xlane.f32.xlu0 %v9436
  %v9438 = vpop.xlane.xlu0 %9437
  %v9439 = vmul.f32 %v9390, %v335
  %v9440 = vmul.f32 %v9393, %v335
  %v9441 = vmul.f32 %v9396, %v335
  %v9442 = vmul.f32 %v9399, %v335
  %v9443 = vmul.f32 %v9402, %v335
  %v9444 = vmul.f32 %v9405, %v335
  %v9445 = vmul.f32 %v9408, %v335
  %v9446 = vmul.f32 %v9411, %v335
  %v9447 = vmul.f32 %v9414, %v335
  %v9448 = vmul.f32 %v9417, %v335
  %v9449 = vmul.f32 %v9420, %v335
  %v9450 = vmul.f32 %v9423, %v335
  %v9451 = vmul.f32 %v9426, %v335
  %v9452 = vmul.f32 %v9429, %v335
  %v9453 = vmul.f32 %v9432, %v335
  %v9454 = vmul.f32 %v9435, %v335
  %v9455 = vmul.f32 %v9438, %v335
  %v9456 = vsub.f32 %v9367, %v9439
  %v9457 = vsub.f32 %v9368, %v9440
  %v9458 = vsub.f32 %v9369, %v9441
  %v9459 = vsub.f32 %v9370, %v9442
  %v9460 = vsub.f32 %v9371, %v9443
  %v9461 = vsub.f32 %v9372, %v9444
  %v9462 = vsub.f32 %v9373, %v9445
  %v9463 = vsub.f32 %v9374, %v9446
  %v9464 = vsub.f32 %v9375, %v9447
  %v9465 = vsub.f32 %v9376, %v9448
  %v9466 = vsub.f32 %v9377, %v9449
  %v9467 = vsub.f32 %v9378, %v9450
  %v9468 = vsub.f32 %v9379, %v9451
  %v9469 = vsub.f32 %v9380, %v9452
  %v9470 = vsub.f32 %v9381, %v9453
  %v9471 = vsub.f32 %v9382, %v9454
  %v9472 = vsub.f32 %v9383, %v9455
  %v9473 = vmul.f32 %v9456, %v9456
  %v9474 = vmul.f32 %v9457, %v9457
  %v9475 = vmul.f32 %v9458, %v9458
  %v9476 = vmul.f32 %v9459, %v9459
  %v9477 = vmul.f32 %v9460, %v9460
  %v9478 = vmul.f32 %v9461, %v9461
  %v9479 = vmul.f32 %v9462, %v9462
  %v9480 = vmul.f32 %v9463, %v9463
  %v9481 = vmul.f32 %v9464, %v9464
  %v9482 = vmul.f32 %v9465, %v9465
  %v9483 = vmul.f32 %v9466, %v9466
  %v9484 = vmul.f32 %v9467, %v9467
  %v9485 = vmul.f32 %v9468, %v9468
  %v9486 = vmul.f32 %v9469, %v9469
  %v9487 = vmul.f32 %v9470, %v9470
  %v9488 = vmul.f32 %v9471, %v9471
  %v9489 = vmul.f32 %v9472, %v9472
  %v9490 = vsel %vm277, %v9473, 0.0
  %9491 = vadd.xlane.f32.xlu0 %v9490
  %v9492 = vpop.xlane.xlu0 %9491
  %v9493 = vsel %vm277, %v9474, 0.0
  %9494 = vadd.xlane.f32.xlu0 %v9493
  %v9495 = vpop.xlane.xlu0 %9494
  %v9496 = vsel %vm277, %v9475, 0.0
  %9497 = vadd.xlane.f32.xlu0 %v9496
  %v9498 = vpop.xlane.xlu0 %9497
  %v9499 = vsel %vm277, %v9476, 0.0
  %9500 = vadd.xlane.f32.xlu0 %v9499
  %v9501 = vpop.xlane.xlu0 %9500
  %v9502 = vsel %vm277, %v9477, 0.0
  %9503 = vadd.xlane.f32.xlu0 %v9502
  %v9504 = vpop.xlane.xlu0 %9503
  %v9505 = vsel %vm277, %v9478, 0.0
  %9506 = vadd.xlane.f32.xlu0 %v9505
  %v9507 = vpop.xlane.xlu0 %9506
  %v9508 = vsel %vm277, %v9479, 0.0
  %9509 = vadd.xlane.f32.xlu0 %v9508
  %v9510 = vpop.xlane.xlu0 %9509
  %v9511 = vsel %vm277, %v9480, 0.0
  %9512 = vadd.xlane.f32.xlu0 %v9511
  %v9513 = vpop.xlane.xlu0 %9512
  %v9514 = vsel %vm277, %v9481, 0.0
  %9515 = vadd.xlane.f32.xlu0 %v9514
  %v9516 = vpop.xlane.xlu0 %9515
  %v9517 = vsel %vm277, %v9482, 0.0
  %9518 = vadd.xlane.f32.xlu0 %v9517
  %v9519 = vpop.xlane.xlu0 %9518
  %v9520 = vsel %vm277, %v9483, 0.0
  %9521 = vadd.xlane.f32.xlu0 %v9520
  %v9522 = vpop.xlane.xlu0 %9521
  %v9523 = vsel %vm277, %v9484, 0.0
  %9524 = vadd.xlane.f32.xlu0 %v9523
  %v9525 = vpop.xlane.xlu0 %9524
  %v9526 = vsel %vm277, %v9485, 0.0
  %9527 = vadd.xlane.f32.xlu0 %v9526
  %v9528 = vpop.xlane.xlu0 %9527
  %v9529 = vsel %vm277, %v9486, 0.0
  %9530 = vadd.xlane.f32.xlu0 %v9529
  %v9531 = vpop.xlane.xlu0 %9530
  %v9532 = vsel %vm277, %v9487, 0.0
  %9533 = vadd.xlane.f32.xlu0 %v9532
  %v9534 = vpop.xlane.xlu0 %9533
  %v9535 = vsel %vm277, %v9488, 0.0
  %9536 = vadd.xlane.f32.xlu0 %v9535
  %v9537 = vpop.xlane.xlu0 %9536
  %v9538 = vsel %vm277, %v9489, 0.0
  %9539 = vadd.xlane.f32.xlu0 %v9538
  %v9540 = vpop.xlane.xlu0 %9539
  %v9541 = vmul.f32 %v9492, %v335
  %v9542 = vmul.f32 %v9495, %v335
  %v9543 = vmul.f32 %v9498, %v335
  %v9544 = vmul.f32 %v9501, %v335
  %v9545 = vmul.f32 %v9504, %v335
  %v9546 = vmul.f32 %v9507, %v335
  %v9547 = vmul.f32 %v9510, %v335
  %v9548 = vmul.f32 %v9513, %v335
  %v9549 = vmul.f32 %v9516, %v335
  %v9550 = vmul.f32 %v9519, %v335
  %v9551 = vmul.f32 %v9522, %v335
  %v9552 = vmul.f32 %v9525, %v335
  %v9553 = vmul.f32 %v9528, %v335
  %v9554 = vmul.f32 %v9531, %v335
  %v9555 = vmul.f32 %v9534, %v335
  %v9556 = vmul.f32 %v9537, %v335
  %v9557 = vmul.f32 %v9540, %v335
  %v9558 = vadd.f32 %v9541, 1e-05
  %v9559 = vadd.f32 %v9542, 1e-05
  %v9560 = vadd.f32 %v9543, 1e-05
  %v9561 = vadd.f32 %v9544, 1e-05
  %v9562 = vadd.f32 %v9545, 1e-05
  %v9563 = vadd.f32 %v9546, 1e-05
  %v9564 = vadd.f32 %v9547, 1e-05
  %v9565 = vadd.f32 %v9548, 1e-05
  %v9566 = vadd.f32 %v9549, 1e-05
  %v9567 = vadd.f32 %v9550, 1e-05
  %v9568 = vadd.f32 %v9551, 1e-05
  %v9569 = vadd.f32 %v9552, 1e-05
  %v9570 = vadd.f32 %v9553, 1e-05
  %v9571 = vadd.f32 %v9554, 1e-05
  %v9572 = vadd.f32 %v9555, 1e-05
  %v9573 = vadd.f32 %v9556, 1e-05
  %v9574 = vadd.f32 %v9557, 1e-05
  %v9575 = vrsqrt.pop %v9558
  %v9576 = vmul.f32 %v9575, %v9558
  %v9577 = vmul.f32 %v9576, %v9575
  %v9578 = vmul.f32 0.5, %v9577
  %v9579 = vsub.f32 1.5, %v9578
  %v9580 = vmul.f32 %v9575, %v9579
  %vm9581 = vweird.f32 %v9558
  %vm9582 = vweird.f32 %v9575
  %vm9583 = vmor %vm9581, %vm9582
  %v9584 = vsel %vm9583, %v9575, %v9580
  %v9585 = vrsqrt.pop %v9559
  %v9586 = vmul.f32 %v9585, %v9559
  %v9587 = vmul.f32 %v9586, %v9585
  %v9588 = vmul.f32 0.5, %v9587
  %v9589 = vsub.f32 1.5, %v9588
  %v9590 = vmul.f32 %v9585, %v9589
  %vm9591 = vweird.f32 %v9559
  %vm9592 = vweird.f32 %v9585
  %vm9593 = vmor %vm9591, %vm9592
  %v9594 = vsel %vm9593, %v9585, %v9590
  %v9595 = vrsqrt.pop %v9560
  %v9596 = vmul.f32 %v9595, %v9560
  %v9597 = vmul.f32 %v9596, %v9595
  %v9598 = vmul.f32 0.5, %v9597
  %v9599 = vsub.f32 1.5, %v9598
  %v9600 = vmul.f32 %v9595, %v9599
  %vm9601 = vweird.f32 %v9560
  %vm9602 = vweird.f32 %v9595
  %vm9603 = vmor %vm9601, %vm9602
  %v9604 = vsel %vm9603, %v9595, %v9600
  %v9605 = vrsqrt.pop %v9561
  %v9606 = vmul.f32 %v9605, %v9561
  %v9607 = vmul.f32 %v9606, %v9605
  %v9608 = vmul.f32 0.5, %v9607
  %v9609 = vsub.f32 1.5, %v9608
  %v9610 = vmul.f32 %v9605, %v9609
  %vm9611 = vweird.f32 %v9561
  %vm9612 = vweird.f32 %v9605
  %vm9613 = vmor %vm9611, %vm9612
  %v9614 = vsel %vm9613, %v9605, %v9610
  %v9615 = vrsqrt.pop %v9562
  %v9616 = vmul.f32 %v9615, %v9562
  %v9617 = vmul.f32 %v9616, %v9615
  %v9618 = vmul.f32 0.5, %v9617
  %v9619 = vsub.f32 1.5, %v9618
  %v9620 = vmul.f32 %v9615, %v9619
  %vm9621 = vweird.f32 %v9562
  %vm9622 = vweird.f32 %v9615
  %vm9623 = vmor %vm9621, %vm9622
  %v9624 = vsel %vm9623, %v9615, %v9620
  %v9625 = vrsqrt.pop %v9563
  %v9626 = vmul.f32 %v9625, %v9563
  %v9627 = vmul.f32 %v9626, %v9625
  %v9628 = vmul.f32 0.5, %v9627
  %v9629 = vsub.f32 1.5, %v9628
  %v9630 = vmul.f32 %v9625, %v9629
  %vm9631 = vweird.f32 %v9563
  %vm9632 = vweird.f32 %v9625
  %vm9633 = vmor %vm9631, %vm9632
  %v9634 = vsel %vm9633, %v9625, %v9630
  %v9635 = vrsqrt.pop %v9564
  %v9636 = vmul.f32 %v9635, %v9564
  %v9637 = vmul.f32 %v9636, %v9635
  %v9638 = vmul.f32 0.5, %v9637
  %v9639 = vsub.f32 1.5, %v9638
  %v9640 = vmul.f32 %v9635, %v9639
  %vm9641 = vweird.f32 %v9564
  %vm9642 = vweird.f32 %v9635
  %vm9643 = vmor %vm9641, %vm9642
  %v9644 = vsel %vm9643, %v9635, %v9640
  %v9645 = vrsqrt.pop %v9565
  %v9646 = vmul.f32 %v9645, %v9565
  %v9647 = vmul.f32 %v9646, %v9645
  %v9648 = vmul.f32 0.5, %v9647
  %v9649 = vsub.f32 1.5, %v9648
  %v9650 = vmul.f32 %v9645, %v9649
  %vm9651 = vweird.f32 %v9565
  %vm9652 = vweird.f32 %v9645
  %vm9653 = vmor %vm9651, %vm9652
  %v9654 = vsel %vm9653, %v9645, %v9650
  %v9655 = vrsqrt.pop %v9566
  %v9656 = vmul.f32 %v9655, %v9566
  %v9657 = vmul.f32 %v9656, %v9655
  %v9658 = vmul.f32 0.5, %v9657
  %v9659 = vsub.f32 1.5, %v9658
  %v9660 = vmul.f32 %v9655, %v9659
  %vm9661 = vweird.f32 %v9566
  %vm9662 = vweird.f32 %v9655
  %vm9663 = vmor %vm9661, %vm9662
  %v9664 = vsel %vm9663, %v9655, %v9660
  %v9665 = vrsqrt.pop %v9567
  %v9666 = vmul.f32 %v9665, %v9567
  %v9667 = vmul.f32 %v9666, %v9665
  %v9668 = vmul.f32 0.5, %v9667
  %v9669 = vsub.f32 1.5, %v9668
  %v9670 = vmul.f32 %v9665, %v9669
  %vm9671 = vweird.f32 %v9567
  %vm9672 = vweird.f32 %v9665
  %vm9673 = vmor %vm9671, %vm9672
  %v9674 = vsel %vm9673, %v9665, %v9670
  %v9675 = vrsqrt.pop %v9568
  %v9676 = vmul.f32 %v9675, %v9568
  %v9677 = vmul.f32 %v9676, %v9675
  %v9678 = vmul.f32 0.5, %v9677
  %v9679 = vsub.f32 1.5, %v9678
  %v9680 = vmul.f32 %v9675, %v9679
  %vm9681 = vweird.f32 %v9568
  %vm9682 = vweird.f32 %v9675
  %vm9683 = vmor %vm9681, %vm9682
  %v9684 = vsel %vm9683, %v9675, %v9680
  %v9685 = vrsqrt.pop %v9569
  %v9686 = vmul.f32 %v9685, %v9569
  %v9687 = vmul.f32 %v9686, %v9685
  %v9688 = vmul.f32 0.5, %v9687
  %v9689 = vsub.f32 1.5, %v9688
  %v9690 = vmul.f32 %v9685, %v9689
  %vm9691 = vweird.f32 %v9569
  %vm9692 = vweird.f32 %v9685
  %vm9693 = vmor %vm9691, %vm9692
  %v9694 = vsel %vm9693, %v9685, %v9690
  %v9695 = vrsqrt.pop %v9570
  %v9696 = vmul.f32 %v9695, %v9570
  %v9697 = vmul.f32 %v9696, %v9695
  %v9698 = vmul.f32 0.5, %v9697
  %v9699 = vsub.f32 1.5, %v9698
  %v9700 = vmul.f32 %v9695, %v9699
  %vm9701 = vweird.f32 %v9570
  %vm9702 = vweird.f32 %v9695
  %vm9703 = vmor %vm9701, %vm9702
  %v9704 = vsel %vm9703, %v9695, %v9700
  %v9705 = vrsqrt.pop %v9571
  %v9706 = vmul.f32 %v9705, %v9571
  %v9707 = vmul.f32 %v9706, %v9705
  %v9708 = vmul.f32 0.5, %v9707
  %v9709 = vsub.f32 1.5, %v9708
  %v9710 = vmul.f32 %v9705, %v9709
  %vm9711 = vweird.f32 %v9571
  %vm9712 = vweird.f32 %v9705
  %vm9713 = vmor %vm9711, %vm9712
  %v9714 = vsel %vm9713, %v9705, %v9710
  %v9715 = vrsqrt.pop %v9572
  %v9716 = vmul.f32 %v9715, %v9572
  %v9717 = vmul.f32 %v9716, %v9715
  %v9718 = vmul.f32 0.5, %v9717
  %v9719 = vsub.f32 1.5, %v9718
  %v9720 = vmul.f32 %v9715, %v9719
  %vm9721 = vweird.f32 %v9572
  %vm9722 = vweird.f32 %v9715
  %vm9723 = vmor %vm9721, %vm9722
  %v9724 = vsel %vm9723, %v9715, %v9720
  %v9725 = vrsqrt.pop %v9573
  %v9726 = vmul.f32 %v9725, %v9573
  %v9727 = vmul.f32 %v9726, %v9725
  %v9728 = vmul.f32 0.5, %v9727
  %v9729 = vsub.f32 1.5, %v9728
  %v9730 = vmul.f32 %v9725, %v9729
  %vm9731 = vweird.f32 %v9573
  %vm9732 = vweird.f32 %v9725
  %vm9733 = vmor %vm9731, %vm9732
  %v9734 = vsel %vm9733, %v9725, %v9730
  %v9735 = vrsqrt.pop %v9574
  %v9736 = vmul.f32 %v9735, %v9574
  %v9737 = vmul.f32 %v9736, %v9735
  %v9738 = vmul.f32 0.5, %v9737
  %v9739 = vsub.f32 1.5, %v9738
  %v9740 = vmul.f32 %v9735, %v9739
  %vm9741 = vweird.f32 %v9574
  %vm9742 = vweird.f32 %v9735
  %vm9743 = vmor %vm9741, %vm9742
  %v9744 = vsel %vm9743, %v9735, %v9740
  %v9745 = vmul.f32 %v9456, %v9584
  %v9746 = vmul.f32 %v9457, %v9594
  %v9747 = vmul.f32 %v9458, %v9604
  %v9748 = vmul.f32 %v9459, %v9614
  %v9749 = vmul.f32 %v9460, %v9624
  %v9750 = vmul.f32 %v9461, %v9634
  %v9751 = vmul.f32 %v9462, %v9644
  %v9752 = vmul.f32 %v9463, %v9654
  %v9753 = vmul.f32 %v9464, %v9664
  %v9754 = vmul.f32 %v9465, %v9674
  %v9755 = vmul.f32 %v9466, %v9684
  %v9756 = vmul.f32 %v9467, %v9694
  %v9757 = vmul.f32 %v9468, %v9704
  %v9758 = vmul.f32 %v9469, %v9714
  %v9759 = vmul.f32 %v9470, %v9724
  %v9760 = vmul.f32 %v9471, %v9734
  %v9761 = vmul.f32 %v9472, %v9744
  %v9763 = vperm.slane %v9385, 0
  %v9765 = vmul.f32 %v9745, %v9763
  %v9766 = vmul.f32 %v9746, %v9763
  %v9767 = vmul.f32 %v9747, %v9763
  %v9768 = vmul.f32 %v9748, %v9763
  %v9769 = vmul.f32 %v9749, %v9763
  %v9770 = vmul.f32 %v9750, %v9763
  %v9771 = vmul.f32 %v9751, %v9763
  %v9772 = vmul.f32 %v9752, %v9763
  %v9773 = vmul.f32 %v9753, %v9763
  %v9774 = vmul.f32 %v9754, %v9763
  %v9775 = vmul.f32 %v9755, %v9763
  %v9776 = vmul.f32 %v9756, %v9763
  %v9777 = vmul.f32 %v9757, %v9763
  %v9778 = vmul.f32 %v9758, %v9763
  %v9779 = vmul.f32 %v9759, %v9763
  %v9780 = vmul.f32 %v9760, %v9763
  %v9781 = vmul.f32 %v9761, %v9763
  %v9783 = vperm.slane %v9387, 0
  %v9785 = vadd.f32 %v9765, %v9783
  %v9786 = vadd.f32 %v9766, %v9783
  %v9787 = vadd.f32 %v9767, %v9783
  %v9788 = vadd.f32 %v9768, %v9783
  %v9789 = vadd.f32 %v9769, %v9783
  %v9790 = vadd.f32 %v9770, %v9783
  %v9791 = vadd.f32 %v9771, %v9783
  %v9792 = vadd.f32 %v9772, %v9783
  %v9793 = vadd.f32 %v9773, %v9783
  %v9794 = vadd.f32 %v9774, %v9783
  %v9795 = vadd.f32 %v9775, %v9783
  %v9796 = vadd.f32 %v9776, %v9783
  %v9797 = vadd.f32 %v9777, %v9783
  %v9798 = vadd.f32 %v9778, %v9783
  %v9799 = vadd.f32 %v9779, %v9783
  %v9800 = vadd.f32 %v9780, %v9783
  %v9801 = vadd.f32 %v9781, %v9783
  %v9802 = vpack.c.bf16 %v9786, %v9785
  %v9803 = vpack.c.bf16 %v9788, %v9787
  %v9804 = vpack.c.bf16 %v9790, %v9789
  %v9805 = vpack.c.bf16 %v9792, %v9791
  %v9806 = vpack.c.bf16 %v9794, %v9793
  %v9807 = vpack.c.bf16 %v9796, %v9795
  %v9808 = vpack.c.bf16 %v9798, %v9797
  %v9809 = vpack.c.bf16 %v9800, %v9799
  %v9810 = vpack.c.bf16 %v9801, %v9801
  %s9811 = scalar_lea.vmem %s13, 64
  %v9812 = vld [vmem:[%s9811] sm:$0xff]
  %v9813 = vld [vmem:[%s9811 + $0x8] sm:$0xff]
  %v9814 = vld [vmem:[%s9811 + $0x10] sm:$0xff]
  %v9815 = vld [vmem:[%s9811 + $0x18] sm:$0xff]
  %v9816 = vld [vmem:[%s9811 + $0x20] sm:$0xff]
  %v9817 = vld [vmem:[%s9811 + $0x28] sm:$0xff]
  %v9818 = vld [vmem:[%s9811 + $0x30] sm:$0xff]
  %v9819 = vld [vmem:[%s9811 + $0x38] sm:$0xff]
  %s9820 = scalar_lea.vmem %s14, 2
  %v9821 = vld [vmem:[%s9820] sm:$0x3]
  %v9823 = vperm.slane %v9821, 0
  %v9824 = vperm.slane %v9821, 1
  %v9835 = vunpack.c.l.b16 %v9812
  %v9836 = vunpack.c.h.b16 %v9812
  %v9837 = vunpack.c.l.b16 %v9813
  %v9838 = vunpack.c.h.b16 %v9813
  %v9839 = vunpack.c.l.b16 %v9814
  %v9840 = vunpack.c.h.b16 %v9814
  %v9841 = vunpack.c.l.b16 %v9815
  %v9842 = vunpack.c.h.b16 %v9815
  %v9843 = vunpack.c.l.b16 %v9816
  %v9844 = vunpack.c.h.b16 %v9816
  %v9845 = vunpack.c.l.b16 %v9817
  %v9846 = vunpack.c.h.b16 %v9817
  %v9847 = vunpack.c.l.b16 %v9818
  %v9848 = vunpack.c.h.b16 %v9818
  %v9849 = vunpack.c.l.b16 %v9819
  %v9850 = vunpack.c.h.b16 %v9819
  %v9851 = vpack.c.b16 %v9837, %v9835
  %v9852 = vpack.c.b16 %v9838, %v9836
  %v9853 = vpack.c.b16 %v9841, %v9839
  %v9854 = vpack.c.b16 %v9842, %v9840
  %v9855 = vpack.c.b16 %v9845, %v9843
  %v9856 = vpack.c.b16 %v9846, %v9844
  %v9857 = vpack.c.b16 %v9849, %v9847
  %v9858 = vpack.c.b16 %v9850, %v9848
  %v9868 = vsel %vm277, %v9802, 0
  %v9871 = vsel %vm277, %v9803, 0
  %v9874 = vsel %vm277, %v9804, 0
  %v9877 = vsel %vm277, %v9805, 0
  %v9880 = vsel %vm277, %v9806, 0
  %v9883 = vsel %vm277, %v9807, 0
  %v9886 = vsel %vm277, %v9808, 0
  %v9889 = vsel %vm277, %v9809, 0
  %v9892 = vsel %vm277, %v9810, 0
  %9894 = vmatpush.bf16.msra.mxu0 0
  %9895 = vmatpush.bf16.msra.mxu0 0
  %9896 = vmatpush.bf16.msra.mxu0 0
  %9897 = vmatpush.bf16.msra.mxu0 0
  %9898 = vmatpush.bf16.msra.mxu0 %v9857
  %9899 = vmatpush.bf16.msra.mxu0 %v9855
  %9900 = vmatpush.bf16.msra.mxu0 %v9853
  %9901 = vmatpush.bf16.msra.mxu0 %v9851
  %9902 = vmatmul.bf16.gmra.mxu0 %v9868
  %v9903 = vpop.f32.mrf.mxu0
  %v9904 = vadd.f32 %v9823, %v9903
  %v9905 = vpop.f32.mrf.mxu0
  %v9906 = vadd.f32 %v9823, %v9905
  %9907 = vmatmul.bf16.gmra.mxu0 %v9871
  %v9908 = vpop.f32.mrf.mxu0
  %v9909 = vadd.f32 %v9823, %v9908
  %v9910 = vpop.f32.mrf.mxu0
  %v9911 = vadd.f32 %v9823, %v9910
  %9912 = vmatmul.bf16.gmra.mxu0 %v9874
  %v9913 = vpop.f32.mrf.mxu0
  %v9914 = vadd.f32 %v9823, %v9913
  %v9915 = vpop.f32.mrf.mxu0
  %v9916 = vadd.f32 %v9823, %v9915
  %9917 = vmatmul.bf16.gmra.mxu0 %v9877
  %v9918 = vpop.f32.mrf.mxu0
  %v9919 = vadd.f32 %v9823, %v9918
  %v9920 = vpop.f32.mrf.mxu0
  %v9921 = vadd.f32 %v9823, %v9920
  %9922 = vmatmul.bf16.gmra.mxu0 %v9880
  %v9923 = vpop.f32.mrf.mxu0
  %v9924 = vadd.f32 %v9823, %v9923
  %v9925 = vpop.f32.mrf.mxu0
  %v9926 = vadd.f32 %v9823, %v9925
  %9927 = vmatmul.bf16.gmra.mxu0 %v9883
  %v9928 = vpop.f32.mrf.mxu0
  %v9929 = vadd.f32 %v9823, %v9928
  %v9930 = vpop.f32.mrf.mxu0
  %v9931 = vadd.f32 %v9823, %v9930
  %9932 = vmatmul.bf16.gmra.mxu0 %v9886
  %v9933 = vpop.f32.mrf.mxu0
  %v9934 = vadd.f32 %v9823, %v9933
  %v9935 = vpop.f32.mrf.mxu0
  %v9936 = vadd.f32 %v9823, %v9935
  %9937 = vmatmul.bf16.gmra.mxu0 %v9889
  %v9938 = vpop.f32.mrf.mxu0
  %v9939 = vadd.f32 %v9823, %v9938
  %v9940 = vpop.f32.mrf.mxu0
  %v9941 = vadd.f32 %v9823, %v9940
  %9942 = vmatmul.bf16.gmra.mxu0 %v9892
  %v9943 = vpop.f32.mrf.mxu0
  %v9944 = vadd.f32 %v9823, %v9943
  %v9945 = vpop.f32.mrf.mxu0
  %9946 = vdwg.mxu0
  %9947 = vmatpush.bf16.msra.mxu0 0
  %9948 = vmatpush.bf16.msra.mxu0 0
  %9949 = vmatpush.bf16.msra.mxu0 0
  %9950 = vmatpush.bf16.msra.mxu0 0
  %9951 = vmatpush.bf16.msra.mxu0 %v9858
  %9952 = vmatpush.bf16.msra.mxu0 %v9856
  %9953 = vmatpush.bf16.msra.mxu0 %v9854
  %9954 = vmatpush.bf16.msra.mxu0 %v9852
  %9955 = vmatmul.bf16.gmra.mxu0 %v9868
  %v9956 = vpop.f32.mrf.mxu0
  %v9957 = vadd.f32 %v9824, %v9956
  %v9958 = vpop.f32.mrf.mxu0
  %v9959 = vadd.f32 %v9824, %v9958
  %9960 = vmatmul.bf16.gmra.mxu0 %v9871
  %v9961 = vpop.f32.mrf.mxu0
  %v9962 = vadd.f32 %v9824, %v9961
  %v9963 = vpop.f32.mrf.mxu0
  %v9964 = vadd.f32 %v9824, %v9963
  %9965 = vmatmul.bf16.gmra.mxu0 %v9874
  %v9966 = vpop.f32.mrf.mxu0
  %v9967 = vadd.f32 %v9824, %v9966
  %v9968 = vpop.f32.mrf.mxu0
  %v9969 = vadd.f32 %v9824, %v9968
  %9970 = vmatmul.bf16.gmra.mxu0 %v9877
  %v9971 = vpop.f32.mrf.mxu0
  %v9972 = vadd.f32 %v9824, %v9971
  %v9973 = vpop.f32.mrf.mxu0
  %v9974 = vadd.f32 %v9824, %v9973
  %9975 = vmatmul.bf16.gmra.mxu0 %v9880
  %v9976 = vpop.f32.mrf.mxu0
  %v9977 = vadd.f32 %v9824, %v9976
  %v9978 = vpop.f32.mrf.mxu0
  %v9979 = vadd.f32 %v9824, %v9978
  %9980 = vmatmul.bf16.gmra.mxu0 %v9883
  %v9981 = vpop.f32.mrf.mxu0
  %v9982 = vadd.f32 %v9824, %v9981
  %v9983 = vpop.f32.mrf.mxu0
  %v9984 = vadd.f32 %v9824, %v9983
  %9985 = vmatmul.bf16.gmra.mxu0 %v9886
  %v9986 = vpop.f32.mrf.mxu0
  %v9987 = vadd.f32 %v9824, %v9986
  %v9988 = vpop.f32.mrf.mxu0
  %v9989 = vadd.f32 %v9824, %v9988
  %9990 = vmatmul.bf16.gmra.mxu0 %v9889
  %v9991 = vpop.f32.mrf.mxu0
  %v9992 = vadd.f32 %v9824, %v9991
  %v9993 = vpop.f32.mrf.mxu0
  %v9994 = vadd.f32 %v9824, %v9993
  %9995 = vmatmul.bf16.gmra.mxu0 %v9892
  %v9996 = vpop.f32.mrf.mxu0
  %v9997 = vadd.f32 %v9824, %v9996
  %v9998 = vpop.f32.mrf.mxu0
  %9999 = vdwg.mxu0
  %v10000 = vmul.f32 %v9904, %v9904
  %v10001 = vmul.f32 %v9957, %v9957
  %v10002 = vmul.f32 %v9906, %v9906
  %v10003 = vmul.f32 %v9959, %v9959
  %v10004 = vmul.f32 %v9909, %v9909
  %v10005 = vmul.f32 %v9962, %v9962
  %v10006 = vmul.f32 %v9911, %v9911
  %v10007 = vmul.f32 %v9964, %v9964
  %v10008 = vmul.f32 %v9914, %v9914
  %v10009 = vmul.f32 %v9967, %v9967
  %v10010 = vmul.f32 %v9916, %v9916
  %v10011 = vmul.f32 %v9969, %v9969
  %v10012 = vmul.f32 %v9919, %v9919
  %v10013 = vmul.f32 %v9972, %v9972
  %v10014 = vmul.f32 %v9921, %v9921
  %v10015 = vmul.f32 %v9974, %v9974
  %v10016 = vmul.f32 %v9924, %v9924
  %v10017 = vmul.f32 %v9977, %v9977
  %v10018 = vmul.f32 %v9926, %v9926
  %v10019 = vmul.f32 %v9979, %v9979
  %v10020 = vmul.f32 %v9929, %v9929
  %v10021 = vmul.f32 %v9982, %v9982
  %v10022 = vmul.f32 %v9931, %v9931
  %v10023 = vmul.f32 %v9984, %v9984
  %v10024 = vmul.f32 %v9934, %v9934
  %v10025 = vmul.f32 %v9987, %v9987
  %v10026 = vmul.f32 %v9936, %v9936
  %v10027 = vmul.f32 %v9989, %v9989
  %v10028 = vmul.f32 %v9939, %v9939
  %v10029 = vmul.f32 %v9992, %v9992
  %v10030 = vmul.f32 %v9941, %v9941
  %v10031 = vmul.f32 %v9994, %v9994
  %v10032 = vmul.f32 %v9944, %v9944
  %v10033 = vmul.f32 %v9997, %v9997
  %v10034 = vmul.f32 %v9904, %v10000
  %v10035 = vmul.f32 %v9957, %v10001
  %v10036 = vmul.f32 %v9906, %v10002
  %v10037 = vmul.f32 %v9959, %v10003
  %v10038 = vmul.f32 %v9909, %v10004
  %v10039 = vmul.f32 %v9962, %v10005
  %v10040 = vmul.f32 %v9911, %v10006
  %v10041 = vmul.f32 %v9964, %v10007
  %v10042 = vmul.f32 %v9914, %v10008
  %v10043 = vmul.f32 %v9967, %v10009
  %v10044 = vmul.f32 %v9916, %v10010
  %v10045 = vmul.f32 %v9969, %v10011
  %v10046 = vmul.f32 %v9919, %v10012
  %v10047 = vmul.f32 %v9972, %v10013
  %v10048 = vmul.f32 %v9921, %v10014
  %v10049 = vmul.f32 %v9974, %v10015
  %v10050 = vmul.f32 %v9924, %v10016
  %v10051 = vmul.f32 %v9977, %v10017
  %v10052 = vmul.f32 %v9926, %v10018
  %v10053 = vmul.f32 %v9979, %v10019
  %v10054 = vmul.f32 %v9929, %v10020
  %v10055 = vmul.f32 %v9982, %v10021
  %v10056 = vmul.f32 %v9931, %v10022
  %v10057 = vmul.f32 %v9984, %v10023
  %v10058 = vmul.f32 %v9934, %v10024
  %v10059 = vmul.f32 %v9987, %v10025
  %v10060 = vmul.f32 %v9936, %v10026
  %v10061 = vmul.f32 %v9989, %v10027
  %v10062 = vmul.f32 %v9939, %v10028
  %v10063 = vmul.f32 %v9992, %v10029
  %v10064 = vmul.f32 %v9941, %v10030
  %v10065 = vmul.f32 %v9994, %v10031
  %v10066 = vmul.f32 %v9944, %v10032
  %v10067 = vmul.f32 %v9997, %v10033
  %v10068 = vmul.f32 %v10034, 0.044715
  %v10069 = vmul.f32 %v10035, 0.044715
  %v10070 = vmul.f32 %v10036, 0.044715
  %v10071 = vmul.f32 %v10037, 0.044715
  %v10072 = vmul.f32 %v10038, 0.044715
  %v10073 = vmul.f32 %v10039, 0.044715
  %v10074 = vmul.f32 %v10040, 0.044715
  %v10075 = vmul.f32 %v10041, 0.044715
  %v10076 = vmul.f32 %v10042, 0.044715
  %v10077 = vmul.f32 %v10043, 0.044715
  %v10078 = vmul.f32 %v10044, 0.044715
  %v10079 = vmul.f32 %v10045, 0.044715
  %v10080 = vmul.f32 %v10046, 0.044715
  %v10081 = vmul.f32 %v10047, 0.044715
  %v10082 = vmul.f32 %v10048, 0.044715
  %v10083 = vmul.f32 %v10049, 0.044715
  %v10084 = vmul.f32 %v10050, 0.044715
  %v10085 = vmul.f32 %v10051, 0.044715
  %v10086 = vmul.f32 %v10052, 0.044715
  %v10087 = vmul.f32 %v10053, 0.044715
  %v10088 = vmul.f32 %v10054, 0.044715
  %v10089 = vmul.f32 %v10055, 0.044715
  %v10090 = vmul.f32 %v10056, 0.044715
  %v10091 = vmul.f32 %v10057, 0.044715
  %v10092 = vmul.f32 %v10058, 0.044715
  %v10093 = vmul.f32 %v10059, 0.044715
  %v10094 = vmul.f32 %v10060, 0.044715
  %v10095 = vmul.f32 %v10061, 0.044715
  %v10096 = vmul.f32 %v10062, 0.044715
  %v10097 = vmul.f32 %v10063, 0.044715
  %v10098 = vmul.f32 %v10064, 0.044715
  %v10099 = vmul.f32 %v10065, 0.044715
  %v10100 = vmul.f32 %v10066, 0.044715
  %v10101 = vmul.f32 %v10067, 0.044715
  %v10102 = vadd.f32 %v9904, %v10068
  %v10103 = vadd.f32 %v9957, %v10069
  %v10104 = vadd.f32 %v9906, %v10070
  %v10105 = vadd.f32 %v9959, %v10071
  %v10106 = vadd.f32 %v9909, %v10072
  %v10107 = vadd.f32 %v9962, %v10073
  %v10108 = vadd.f32 %v9911, %v10074
  %v10109 = vadd.f32 %v9964, %v10075
  %v10110 = vadd.f32 %v9914, %v10076
  %v10111 = vadd.f32 %v9967, %v10077
  %v10112 = vadd.f32 %v9916, %v10078
  %v10113 = vadd.f32 %v9969, %v10079
  %v10114 = vadd.f32 %v9919, %v10080
  %v10115 = vadd.f32 %v9972, %v10081
  %v10116 = vadd.f32 %v9921, %v10082
  %v10117 = vadd.f32 %v9974, %v10083
  %v10118 = vadd.f32 %v9924, %v10084
  %v10119 = vadd.f32 %v9977, %v10085
  %v10120 = vadd.f32 %v9926, %v10086
  %v10121 = vadd.f32 %v9979, %v10087
  %v10122 = vadd.f32 %v9929, %v10088
  %v10123 = vadd.f32 %v9982, %v10089
  %v10124 = vadd.f32 %v9931, %v10090
  %v10125 = vadd.f32 %v9984, %v10091
  %v10126 = vadd.f32 %v9934, %v10092
  %v10127 = vadd.f32 %v9987, %v10093
  %v10128 = vadd.f32 %v9936, %v10094
  %v10129 = vadd.f32 %v9989, %v10095
  %v10130 = vadd.f32 %v9939, %v10096
  %v10131 = vadd.f32 %v9992, %v10097
  %v10132 = vadd.f32 %v9941, %v10098
  %v10133 = vadd.f32 %v9994, %v10099
  %v10134 = vadd.f32 %v9944, %v10100
  %v10135 = vadd.f32 %v9997, %v10101
  %v10136 = vmul.f32 %v10102, 0.7978846
  %v10137 = vmul.f32 %v10103, 0.7978846
  %v10138 = vmul.f32 %v10104, 0.7978846
  %v10139 = vmul.f32 %v10105, 0.7978846
  %v10140 = vmul.f32 %v10106, 0.7978846
  %v10141 = vmul.f32 %v10107, 0.7978846
  %v10142 = vmul.f32 %v10108, 0.7978846
  %v10143 = vmul.f32 %v10109, 0.7978846
  %v10144 = vmul.f32 %v10110, 0.7978846
  %v10145 = vmul.f32 %v10111, 0.7978846
  %v10146 = vmul.f32 %v10112, 0.7978846
  %v10147 = vmul.f32 %v10113, 0.7978846
  %v10148 = vmul.f32 %v10114, 0.7978846
  %v10149 = vmul.f32 %v10115, 0.7978846
  %v10150 = vmul.f32 %v10116, 0.7978846
  %v10151 = vmul.f32 %v10117, 0.7978846
  %v10152 = vmul.f32 %v10118, 0.7978846
  %v10153 = vmul.f32 %v10119, 0.7978846
  %v10154 = vmul.f32 %v10120, 0.7978846
  %v10155 = vmul.f32 %v10121, 0.7978846
  %v10156 = vmul.f32 %v10122, 0.7978846
  %v10157 = vmul.f32 %v10123, 0.7978846
  %v10158 = vmul.f32 %v10124, 0.7978846
  %v10159 = vmul.f32 %v10125, 0.7978846
  %v10160 = vmul.f32 %v10126, 0.7978846
  %v10161 = vmul.f32 %v10127, 0.7978846
  %v10162 = vmul.f32 %v10128, 0.7978846
  %v10163 = vmul.f32 %v10129, 0.7978846
  %v10164 = vmul.f32 %v10130, 0.7978846
  %v10165 = vmul.f32 %v10131, 0.7978846
  %v10166 = vmul.f32 %v10132, 0.7978846
  %v10167 = vmul.f32 %v10133, 0.7978846
  %v10168 = vmul.f32 %v10134, 0.7978846
  %v10169 = vmul.f32 %v10135, 0.7978846
  %v10170 = vtanh.pop %v10136
  %v10171 = vtanh.pop %v10137
  %v10172 = vtanh.pop %v10138
  %v10173 = vtanh.pop %v10139
  %v10174 = vtanh.pop %v10140
  %v10175 = vtanh.pop %v10141
  %v10176 = vtanh.pop %v10142
  %v10177 = vtanh.pop %v10143
  %v10178 = vtanh.pop %v10144
  %v10179 = vtanh.pop %v10145
  %v10180 = vtanh.pop %v10146
  %v10181 = vtanh.pop %v10147
  %v10182 = vtanh.pop %v10148
  %v10183 = vtanh.pop %v10149
  %v10184 = vtanh.pop %v10150
  %v10185 = vtanh.pop %v10151
  %v10186 = vtanh.pop %v10152
  %v10187 = vtanh.pop %v10153
  %v10188 = vtanh.pop %v10154
  %v10189 = vtanh.pop %v10155
  %v10190 = vtanh.pop %v10156
  %v10191 = vtanh.pop %v10157
  %v10192 = vtanh.pop %v10158
  %v10193 = vtanh.pop %v10159
  %v10194 = vtanh.pop %v10160
  %v10195 = vtanh.pop %v10161
  %v10196 = vtanh.pop %v10162
  %v10197 = vtanh.pop %v10163
  %v10198 = vtanh.pop %v10164
  %v10199 = vtanh.pop %v10165
  %v10200 = vtanh.pop %v10166
  %v10201 = vtanh.pop %v10167
  %v10202 = vtanh.pop %v10168
  %v10203 = vtanh.pop %v10169
  %v10204 = vadd.f32 %v10170, 1.0
  %v10205 = vadd.f32 %v10171, 1.0
  %v10206 = vadd.f32 %v10172, 1.0
  %v10207 = vadd.f32 %v10173, 1.0
  %v10208 = vadd.f32 %v10174, 1.0
  %v10209 = vadd.f32 %v10175, 1.0
  %v10210 = vadd.f32 %v10176, 1.0
  %v10211 = vadd.f32 %v10177, 1.0
  %v10212 = vadd.f32 %v10178, 1.0
  %v10213 = vadd.f32 %v10179, 1.0
  %v10214 = vadd.f32 %v10180, 1.0
  %v10215 = vadd.f32 %v10181, 1.0
  %v10216 = vadd.f32 %v10182, 1.0
  %v10217 = vadd.f32 %v10183, 1.0
  %v10218 = vadd.f32 %v10184, 1.0
  %v10219 = vadd.f32 %v10185, 1.0
  %v10220 = vadd.f32 %v10186, 1.0
  %v10221 = vadd.f32 %v10187, 1.0
  %v10222 = vadd.f32 %v10188, 1.0
  %v10223 = vadd.f32 %v10189, 1.0
  %v10224 = vadd.f32 %v10190, 1.0
  %v10225 = vadd.f32 %v10191, 1.0
  %v10226 = vadd.f32 %v10192, 1.0
  %v10227 = vadd.f32 %v10193, 1.0
  %v10228 = vadd.f32 %v10194, 1.0
  %v10229 = vadd.f32 %v10195, 1.0
  %v10230 = vadd.f32 %v10196, 1.0
  %v10231 = vadd.f32 %v10197, 1.0
  %v10232 = vadd.f32 %v10198, 1.0
  %v10233 = vadd.f32 %v10199, 1.0
  %v10234 = vadd.f32 %v10200, 1.0
  %v10235 = vadd.f32 %v10201, 1.0
  %v10236 = vadd.f32 %v10202, 1.0
  %v10237 = vadd.f32 %v10203, 1.0
  %v10238 = vmul.f32 %v10204, 0.5
  %v10239 = vmul.f32 %v10205, 0.5
  %v10240 = vmul.f32 %v10206, 0.5
  %v10241 = vmul.f32 %v10207, 0.5
  %v10242 = vmul.f32 %v10208, 0.5
  %v10243 = vmul.f32 %v10209, 0.5
  %v10244 = vmul.f32 %v10210, 0.5
  %v10245 = vmul.f32 %v10211, 0.5
  %v10246 = vmul.f32 %v10212, 0.5
  %v10247 = vmul.f32 %v10213, 0.5
  %v10248 = vmul.f32 %v10214, 0.5
  %v10249 = vmul.f32 %v10215, 0.5
  %v10250 = vmul.f32 %v10216, 0.5
  %v10251 = vmul.f32 %v10217, 0.5
  %v10252 = vmul.f32 %v10218, 0.5
  %v10253 = vmul.f32 %v10219, 0.5
  %v10254 = vmul.f32 %v10220, 0.5
  %v10255 = vmul.f32 %v10221, 0.5
  %v10256 = vmul.f32 %v10222, 0.5
  %v10257 = vmul.f32 %v10223, 0.5
  %v10258 = vmul.f32 %v10224, 0.5
  %v10259 = vmul.f32 %v10225, 0.5
  %v10260 = vmul.f32 %v10226, 0.5
  %v10261 = vmul.f32 %v10227, 0.5
  %v10262 = vmul.f32 %v10228, 0.5
  %v10263 = vmul.f32 %v10229, 0.5
  %v10264 = vmul.f32 %v10230, 0.5
  %v10265 = vmul.f32 %v10231, 0.5
  %v10266 = vmul.f32 %v10232, 0.5
  %v10267 = vmul.f32 %v10233, 0.5
  %v10268 = vmul.f32 %v10234, 0.5
  %v10269 = vmul.f32 %v10235, 0.5
  %v10270 = vmul.f32 %v10236, 0.5
  %v10271 = vmul.f32 %v10237, 0.5
  %v10272 = vmul.f32 %v9904, %v10238
  %v10273 = vmul.f32 %v9957, %v10239
  %v10274 = vmul.f32 %v9906, %v10240
  %v10275 = vmul.f32 %v9959, %v10241
  %v10276 = vmul.f32 %v9909, %v10242
  %v10277 = vmul.f32 %v9962, %v10243
  %v10278 = vmul.f32 %v9911, %v10244
  %v10279 = vmul.f32 %v9964, %v10245
  %v10280 = vmul.f32 %v9914, %v10246
  %v10281 = vmul.f32 %v9967, %v10247
  %v10282 = vmul.f32 %v9916, %v10248
  %v10283 = vmul.f32 %v9969, %v10249
  %v10284 = vmul.f32 %v9919, %v10250
  %v10285 = vmul.f32 %v9972, %v10251
  %v10286 = vmul.f32 %v9921, %v10252
  %v10287 = vmul.f32 %v9974, %v10253
  %v10288 = vmul.f32 %v9924, %v10254
  %v10289 = vmul.f32 %v9977, %v10255
  %v10290 = vmul.f32 %v9926, %v10256
  %v10291 = vmul.f32 %v9979, %v10257
  %v10292 = vmul.f32 %v9929, %v10258
  %v10293 = vmul.f32 %v9982, %v10259
  %v10294 = vmul.f32 %v9931, %v10260
  %v10295 = vmul.f32 %v9984, %v10261
  %v10296 = vmul.f32 %v9934, %v10262
  %v10297 = vmul.f32 %v9987, %v10263
  %v10298 = vmul.f32 %v9936, %v10264
  %v10299 = vmul.f32 %v9989, %v10265
  %v10300 = vmul.f32 %v9939, %v10266
  %v10301 = vmul.f32 %v9992, %v10267
  %v10302 = vmul.f32 %v9941, %v10268
  %v10303 = vmul.f32 %v9994, %v10269
  %v10304 = vmul.f32 %v9944, %v10270
  %v10305 = vmul.f32 %v9997, %v10271
  %v10306 = vpack.c.bf16 %v10274, %v10272
  %v10307 = vpack.c.bf16 %v10275, %v10273
  %v10308 = vpack.c.bf16 %v10278, %v10276
  %v10309 = vpack.c.bf16 %v10279, %v10277
  %v10310 = vpack.c.bf16 %v10282, %v10280
  %v10311 = vpack.c.bf16 %v10283, %v10281
  %v10312 = vpack.c.bf16 %v10286, %v10284
  %v10313 = vpack.c.bf16 %v10287, %v10285
  %v10314 = vpack.c.bf16 %v10290, %v10288
  %v10315 = vpack.c.bf16 %v10291, %v10289
  %v10316 = vpack.c.bf16 %v10294, %v10292
  %v10317 = vpack.c.bf16 %v10295, %v10293
  %v10318 = vpack.c.bf16 %v10298, %v10296
  %v10319 = vpack.c.bf16 %v10299, %v10297
  %v10320 = vpack.c.bf16 %v10302, %v10300
  %v10321 = vpack.c.bf16 %v10303, %v10301
  %v10322 = vpack.c.bf16 %v10304, %v10304
  %v10323 = vpack.c.bf16 %v10305, %v10305
  %s10324 = scalar_lea.vmem %s15, 128
  %v10325 = vld [vmem:[%s10324] sm:$0xf]
  %v10326 = vld [vmem:[%s10324 + $0x4] sm:$0xf]
  %v10327 = vld [vmem:[%s10324 + $0x8] sm:$0xf]
  %v10328 = vld [vmem:[%s10324 + $0xc] sm:$0xf]
  %v10329 = vld [vmem:[%s10324 + $0x10] sm:$0xf]
  %v10330 = vld [vmem:[%s10324 + $0x14] sm:$0xf]
  %v10331 = vld [vmem:[%s10324 + $0x18] sm:$0xf]
  %v10332 = vld [vmem:[%s10324 + $0x1c] sm:$0xf]
  %v10333 = vld [vmem:[%s10324 + $0x20] sm:$0xf]
  %v10334 = vld [vmem:[%s10324 + $0x24] sm:$0xf]
  %v10335 = vld [vmem:[%s10324 + $0x28] sm:$0xf]
  %v10336 = vld [vmem:[%s10324 + $0x2c] sm:$0xf]
  %v10337 = vld [vmem:[%s10324 + $0x30] sm:$0xf]
  %v10338 = vld [vmem:[%s10324 + $0x34] sm:$0xf]
  %v10339 = vld [vmem:[%s10324 + $0x38] sm:$0xf]
  %v10340 = vld [vmem:[%s10324 + $0x3c] sm:$0xf]
  %v10341 = vld [vmem:[%s10324 + $0x40] sm:$0xf]
  %v10342 = vld [vmem:[%s10324 + $0x44] sm:$0xf]
  %v10343 = vld [vmem:[%s10324 + $0x48] sm:$0xf]
  %v10344 = vld [vmem:[%s10324 + $0x4c] sm:$0xf]
  %v10345 = vld [vmem:[%s10324 + $0x50] sm:$0xf]
  %v10346 = vld [vmem:[%s10324 + $0x54] sm:$0xf]
  %v10347 = vld [vmem:[%s10324 + $0x58] sm:$0xf]
  %v10348 = vld [vmem:[%s10324 + $0x5c] sm:$0xf]
  %v10349 = vld [vmem:[%s10324 + $0x60] sm:$0xf]
  %v10350 = vld [vmem:[%s10324 + $0x64] sm:$0xf]
  %v10351 = vld [vmem:[%s10324 + $0x68] sm:$0xf]
  %v10352 = vld [vmem:[%s10324 + $0x6c] sm:$0xf]
  %v10353 = vld [vmem:[%s10324 + $0x70] sm:$0xf]
  %v10354 = vld [vmem:[%s10324 + $0x74] sm:$0xf]
  %v10355 = vld [vmem:[%s10324 + $0x78] sm:$0xf]
  %v10356 = vld [vmem:[%s10324 + $0x7c] sm:$0xf]
  %s10357 = scalar_lea.vmem %s16, 1
  %v10358 = vld [vmem:[%s10357] sm:$0x1]
  %v10360 = vperm.slane %v10358, 0
  %v10394 = vunpack.c.l.b16 %v10325
  %v10395 = vunpack.c.l.b16 %v10326
  %v10396 = vunpack.c.l.b16 %v10327
  %v10397 = vunpack.c.l.b16 %v10328
  %v10398 = vunpack.c.l.b16 %v10329
  %v10399 = vunpack.c.l.b16 %v10330
  %v10400 = vunpack.c.l.b16 %v10331
  %v10401 = vunpack.c.l.b16 %v10332
  %v10402 = vunpack.c.l.b16 %v10333
  %v10403 = vunpack.c.l.b16 %v10334
  %v10404 = vunpack.c.l.b16 %v10335
  %v10405 = vunpack.c.l.b16 %v10336
  %v10406 = vunpack.c.l.b16 %v10337
  %v10407 = vunpack.c.l.b16 %v10338
  %v10408 = vunpack.c.l.b16 %v10339
  %v10409 = vunpack.c.l.b16 %v10340
  %v10410 = vunpack.c.l.b16 %v10341
  %v10411 = vunpack.c.l.b16 %v10342
  %v10412 = vunpack.c.l.b16 %v10343
  %v10413 = vunpack.c.l.b16 %v10344
  %v10414 = vunpack.c.l.b16 %v10345
  %v10415 = vunpack.c.l.b16 %v10346
  %v10416 = vunpack.c.l.b16 %v10347
  %v10417 = vunpack.c.l.b16 %v10348
  %v10418 = vunpack.c.l.b16 %v10349
  %v10419 = vunpack.c.l.b16 %v10350
  %v10420 = vunpack.c.l.b16 %v10351
  %v10421 = vunpack.c.l.b16 %v10352
  %v10422 = vunpack.c.l.b16 %v10353
  %v10423 = vunpack.c.l.b16 %v10354
  %v10424 = vunpack.c.l.b16 %v10355
  %v10425 = vunpack.c.l.b16 %v10356
  %v10426 = vpack.c.b16 %v10395, %v10394
  %v10427 = vpack.c.b16 %v10397, %v10396
  %v10428 = vpack.c.b16 %v10399, %v10398
  %v10429 = vpack.c.b16 %v10401, %v10400
  %v10430 = vpack.c.b16 %v10403, %v10402
  %v10431 = vpack.c.b16 %v10405, %v10404
  %v10432 = vpack.c.b16 %v10407, %v10406
  %v10433 = vpack.c.b16 %v10409, %v10408
  %v10434 = vpack.c.b16 %v10411, %v10410
  %v10435 = vpack.c.b16 %v10413, %v10412
  %v10436 = vpack.c.b16 %v10415, %v10414
  %v10437 = vpack.c.b16 %v10417, %v10416
  %v10438 = vpack.c.b16 %v10419, %v10418
  %v10439 = vpack.c.b16 %v10421, %v10420
  %v10440 = vpack.c.b16 %v10423, %v10422
  %v10441 = vpack.c.b16 %v10425, %v10424
  %10458 = vmatpush.bf16.msra.mxu0 %v10433
  %10459 = vmatpush.bf16.msra.mxu0 %v10432
  %10460 = vmatpush.bf16.msra.mxu0 %v10431
  %10461 = vmatpush.bf16.msra.mxu0 %v10430
  %10462 = vmatpush.bf16.msra.mxu0 %v10429
  %10463 = vmatpush.bf16.msra.mxu0 %v10428
  %10464 = vmatpush.bf16.msra.mxu0 %v10427
  %10465 = vmatpush.bf16.msra.mxu0 %v10426
  %10466 = vmatmul.bf16.gmra.mxu0 %v10306
  %v10467 = vpop.f32.mrf.mxu0
  %v10468 = vadd.f32 %v10360, %v10467
  %v10469 = vpop.f32.mrf.mxu0
  %v10470 = vadd.f32 %v10360, %v10469
  %10471 = vmatmul.bf16.gmra.mxu0 %v10308
  %v10472 = vpop.f32.mrf.mxu0
  %v10473 = vadd.f32 %v10360, %v10472
  %v10474 = vpop.f32.mrf.mxu0
  %v10475 = vadd.f32 %v10360, %v10474
  %10476 = vmatmul.bf16.gmra.mxu0 %v10310
  %v10477 = vpop.f32.mrf.mxu0
  %v10478 = vadd.f32 %v10360, %v10477
  %v10479 = vpop.f32.mrf.mxu0
  %v10480 = vadd.f32 %v10360, %v10479
  %10481 = vmatmul.bf16.gmra.mxu0 %v10312
  %v10482 = vpop.f32.mrf.mxu0
  %v10483 = vadd.f32 %v10360, %v10482
  %v10484 = vpop.f32.mrf.mxu0
  %v10485 = vadd.f32 %v10360, %v10484
  %10486 = vmatmul.bf16.gmra.mxu0 %v10314
  %v10487 = vpop.f32.mrf.mxu0
  %v10488 = vadd.f32 %v10360, %v10487
  %v10489 = vpop.f32.mrf.mxu0
  %v10490 = vadd.f32 %v10360, %v10489
  %10491 = vmatmul.bf16.gmra.mxu0 %v10316
  %v10492 = vpop.f32.mrf.mxu0
  %v10493 = vadd.f32 %v10360, %v10492
  %v10494 = vpop.f32.mrf.mxu0
  %v10495 = vadd.f32 %v10360, %v10494
  %10496 = vmatmul.bf16.gmra.mxu0 %v10318
  %v10497 = vpop.f32.mrf.mxu0
  %v10498 = vadd.f32 %v10360, %v10497
  %v10499 = vpop.f32.mrf.mxu0
  %v10500 = vadd.f32 %v10360, %v10499
  %10501 = vmatmul.bf16.gmra.mxu0 %v10320
  %v10502 = vpop.f32.mrf.mxu0
  %v10503 = vadd.f32 %v10360, %v10502
  %v10504 = vpop.f32.mrf.mxu0
  %v10505 = vadd.f32 %v10360, %v10504
  %10506 = vmatmul.bf16.gmra.mxu0 %v10322
  %v10507 = vpop.f32.mrf.mxu0
  %v10508 = vadd.f32 %v10360, %v10507
  %v10509 = vpop.f32.mrf.mxu0
  %10510 = vdwg.mxu0
  %10511 = vmatpush.bf16.msra.mxu0 %v10441
  %10512 = vmatpush.bf16.msra.mxu0 %v10440
  %10513 = vmatpush.bf16.msra.mxu0 %v10439
  %10514 = vmatpush.bf16.msra.mxu0 %v10438
  %10515 = vmatpush.bf16.msra.mxu0 %v10437
  %10516 = vmatpush.bf16.msra.mxu0 %v10436
  %10517 = vmatpush.bf16.msra.mxu0 %v10435
  %10518 = vmatpush.bf16.msra.mxu0 %v10434
  %10519 = vmatmul.bf16.gmra.mxu0 %v10307
  %v10520 = vpop.f32.mrf.mxu0
  %v10521 = vadd.f32 %v10468, %v10520
  %v10522 = vpop.f32.mrf.mxu0
  %v10523 = vadd.f32 %v10470, %v10522
  %10524 = vmatmul.bf16.gmra.mxu0 %v10309
  %v10525 = vpop.f32.mrf.mxu0
  %v10526 = vadd.f32 %v10473, %v10525
  %v10527 = vpop.f32.mrf.mxu0
  %v10528 = vadd.f32 %v10475, %v10527
  %10529 = vmatmul.bf16.gmra.mxu0 %v10311
  %v10530 = vpop.f32.mrf.mxu0
  %v10531 = vadd.f32 %v10478, %v10530
  %v10532 = vpop.f32.mrf.mxu0
  %v10533 = vadd.f32 %v10480, %v10532
  %10534 = vmatmul.bf16.gmra.mxu0 %v10313
  %v10535 = vpop.f32.mrf.mxu0
  %v10536 = vadd.f32 %v10483, %v10535
  %v10537 = vpop.f32.mrf.mxu0
  %v10538 = vadd.f32 %v10485, %v10537
  %10539 = vmatmul.bf16.gmra.mxu0 %v10315
  %v10540 = vpop.f32.mrf.mxu0
  %v10541 = vadd.f32 %v10488, %v10540
  %v10542 = vpop.f32.mrf.mxu0
  %v10543 = vadd.f32 %v10490, %v10542
  %10544 = vmatmul.bf16.gmra.mxu0 %v10317
  %v10545 = vpop.f32.mrf.mxu0
  %v10546 = vadd.f32 %v10493, %v10545
  %v10547 = vpop.f32.mrf.mxu0
  %v10548 = vadd.f32 %v10495, %v10547
  %10549 = vmatmul.bf16.gmra.mxu0 %v10319
  %v10550 = vpop.f32.mrf.mxu0
  %v10551 = vadd.f32 %v10498, %v10550
  %v10552 = vpop.f32.mrf.mxu0
  %v10553 = vadd.f32 %v10500, %v10552
  %10554 = vmatmul.bf16.gmra.mxu0 %v10321
  %v10555 = vpop.f32.mrf.mxu0
  %v10556 = vadd.f32 %v10503, %v10555
  %v10557 = vpop.f32.mrf.mxu0
  %v10558 = vadd.f32 %v10505, %v10557
  %10559 = vmatmul.bf16.gmra.mxu0 %v10323
  %v10560 = vpop.f32.mrf.mxu0
  %v10561 = vadd.f32 %v10508, %v10560
  %v10562 = vpop.f32.mrf.mxu0
  %10563 = vdwg.mxu0
  %v10564 = vadd.f32 %v9367, %v10521
  %v10565 = vadd.f32 %v9368, %v10523
  %v10566 = vadd.f32 %v9369, %v10526
  %v10567 = vadd.f32 %v9370, %v10528
  %v10568 = vadd.f32 %v9371, %v10531
  %v10569 = vadd.f32 %v9372, %v10533
  %v10570 = vadd.f32 %v9373, %v10536
  %v10571 = vadd.f32 %v9374, %v10538
  %v10572 = vadd.f32 %v9375, %v10541
  %v10573 = vadd.f32 %v9376, %v10543
  %v10574 = vadd.f32 %v9377, %v10546
  %v10575 = vadd.f32 %v9378, %v10548
  %v10576 = vadd.f32 %v9379, %v10551
  %v10577 = vadd.f32 %v9380, %v10553
  %v10578 = vadd.f32 %v9381, %v10556
  %v10579 = vadd.f32 %v9382, %v10558
  %v10580 = vadd.f32 %v9383, %v10561
  %v10581 = vpack.c.bf16 %v10565, %v10564
  %v10582 = vpack.c.bf16 %v10567, %v10566
  %v10583 = vpack.c.bf16 %v10569, %v10568
  %v10584 = vpack.c.bf16 %v10571, %v10570
  %v10585 = vpack.c.bf16 %v10573, %v10572
  %v10586 = vpack.c.bf16 %v10575, %v10574
  %v10587 = vpack.c.bf16 %v10577, %v10576
  %v10588 = vpack.c.bf16 %v10579, %v10578
  %v10589 = vpack.c.bf16 %v10580, %v10580
  %v10590 = vld [vmem:[%s17] sm:$0xf]
  %v10591 = vld [vmem:[%s17 + $0x4] sm:$0xf]
  %v10592 = vld [vmem:[%s17 + $0x8] sm:$0xf]
  %v10593 = vld [vmem:[%s17 + $0xc] sm:$0xf]
  %v10594 = vld [vmem:[%s17 + $0x10] sm:$0xf]
  %v10595 = vld [vmem:[%s17 + $0x14] sm:$0xf]
  %v10596 = vld [vmem:[%s17 + $0x18] sm:$0xf]
  %v10597 = vld [vmem:[%s17 + $0x1c] sm:$0xf]
  %v10598 = vld [vmem:[%s18] sm:$0x1]
  %v10600 = vperm.slane %v10598, 0
  %v10610 = vunpack.c.l.b16 %v10590
  %v10611 = vunpack.c.l.b16 %v10591
  %v10612 = vunpack.c.l.b16 %v10592
  %v10613 = vunpack.c.l.b16 %v10593
  %v10614 = vunpack.c.l.b16 %v10594
  %v10615 = vunpack.c.l.b16 %v10595
  %v10616 = vunpack.c.l.b16 %v10596
  %v10617 = vunpack.c.l.b16 %v10597
  %v10618 = vpack.c.b16 %v10611, %v10610
  %v10619 = vpack.c.b16 %v10613, %v10612
  %v10620 = vpack.c.b16 %v10615, %v10614
  %v10621 = vpack.c.b16 %v10617, %v10616
  %v10627 = vsel %vm277, %v10581, 0
  %v10630 = vsel %vm277, %v10582, 0
  %v10633 = vsel %vm277, %v10583, 0
  %v10636 = vsel %vm277, %v10584, 0
  %v10639 = vsel %vm277, %v10585, 0
  %v10642 = vsel %vm277, %v10586, 0
  %v10645 = vsel %vm277, %v10587, 0
  %v10648 = vsel %vm277, %v10588, 0
  %v10651 = vsel %vm277, %v10589, 0
  %10653 = vmatpush.bf16.msra.mxu0 0
  %10654 = vmatpush.bf16.msra.mxu0 0
  %10655 = vmatpush.bf16.msra.mxu0 0
  %10656 = vmatpush.bf16.msra.mxu0 0
  %10657 = vmatpush.bf16.msra.mxu0 %v10621
  %10658 = vmatpush.bf16.msra.mxu0 %v10620
  %10659 = vmatpush.bf16.msra.mxu0 %v10619
  %10660 = vmatpush.bf16.msra.mxu0 %v10618
  %10661 = vmatmul.bf16.gmra.mxu0 %v10627
  %v10662 = vpop.f32.mrf.mxu0
  %v10663 = vadd.f32 %v10600, %v10662
  %v10664 = vpop.f32.mrf.mxu0
  %v10665 = vadd.f32 %v10600, %v10664
  %10666 = vmatmul.bf16.gmra.mxu0 %v10630
  %v10667 = vpop.f32.mrf.mxu0
  %v10668 = vadd.f32 %v10600, %v10667
  %v10669 = vpop.f32.mrf.mxu0
  %v10670 = vadd.f32 %v10600, %v10669
  %10671 = vmatmul.bf16.gmra.mxu0 %v10633
  %v10672 = vpop.f32.mrf.mxu0
  %v10673 = vadd.f32 %v10600, %v10672
  %v10674 = vpop.f32.mrf.mxu0
  %v10675 = vadd.f32 %v10600, %v10674
  %10676 = vmatmul.bf16.gmra.mxu0 %v10636
  %v10677 = vpop.f32.mrf.mxu0
  %v10678 = vadd.f32 %v10600, %v10677
  %v10679 = vpop.f32.mrf.mxu0
  %v10680 = vadd.f32 %v10600, %v10679
  %10681 = vmatmul.bf16.gmra.mxu0 %v10639
  %v10682 = vpop.f32.mrf.mxu0
  %v10683 = vadd.f32 %v10600, %v10682
  %v10684 = vpop.f32.mrf.mxu0
  %v10685 = vadd.f32 %v10600, %v10684
  %10686 = vmatmul.bf16.gmra.mxu0 %v10642
  %v10687 = vpop.f32.mrf.mxu0
  %v10688 = vadd.f32 %v10600, %v10687
  %v10689 = vpop.f32.mrf.mxu0
  %v10690 = vadd.f32 %v10600, %v10689
  %10691 = vmatmul.bf16.gmra.mxu0 %v10645
  %v10692 = vpop.f32.mrf.mxu0
  %v10693 = vadd.f32 %v10600, %v10692
  %v10694 = vpop.f32.mrf.mxu0
  %v10695 = vadd.f32 %v10600, %v10694
  %10696 = vmatmul.bf16.gmra.mxu0 %v10648
  %v10697 = vpop.f32.mrf.mxu0
  %v10698 = vadd.f32 %v10600, %v10697
  %v10699 = vpop.f32.mrf.mxu0
  %v10700 = vadd.f32 %v10600, %v10699
  %10701 = vmatmul.bf16.gmra.mxu0 %v10651
  %v10702 = vpop.f32.mrf.mxu0
  %v10703 = vadd.f32 %v10600, %v10702
  %v10704 = vpop.f32.mrf.mxu0
  %10705 = vdwg.mxu0
  %10706 = vst.msk [vmem:[%s19] sm:$0xff] %vm187, %v10663
  %10707 = vst.msk [vmem:[%s19 + $0x8] sm:$0xff] %vm187, %v10665
  %10708 = vst.msk [vmem:[%s19 + $0x10] sm:$0xff] %vm187, %v10668
  %10709 = vst.msk [vmem:[%s19 + $0x18] sm:$0xff] %vm187, %v10670
  %10710 = vst.msk [vmem:[%s19 + $0x20] sm:$0xff] %vm187, %v10673
  %10711 = vst.msk [vmem:[%s19 + $0x28] sm:$0xff] %vm187, %v10675
  %10712 = vst.msk [vmem:[%s19 + $0x30] sm:$0xff] %vm187, %v10678
  %10713 = vst.msk [vmem:[%s19 + $0x38] sm:$0xff] %vm187, %v10680
  %10714 = vst.msk [vmem:[%s19 + $0x40] sm:$0xff] %vm187, %v10683
  %10715 = vst.msk [vmem:[%s19 + $0x48] sm:$0xff] %vm187, %v10685
  %10716 = vst.msk [vmem:[%s19 + $0x50] sm:$0xff] %vm187, %v10688
  %10717 = vst.msk [vmem:[%s19 + $0x58] sm:$0xff] %vm187, %v10690
  %10718 = vst.msk [vmem:[%s19 + $0x60] sm:$0xff] %vm187, %v10693
  %10719 = vst.msk [vmem:[%s19 + $0x68] sm:$0xff] %vm187, %v10695
  %10720 = vst.msk [vmem:[%s19 + $0x70] sm:$0xff] %vm187, %v10698
  %10721 = vst.msk [vmem:[%s19 + $0x78] sm:$0xff] %vm187, %v10700
  %10722 = vst.msk [vmem:[%s19 + $0x80] sm:$0xff] %vm187, %v10703
  // Predicated region
  $region78: #{pose_model_forward.1} parent=0 // pred_check
    _
  $region79: #{pose_model_forward.1} parent=0 // pred_check_branch
    %10724 = sbr.rel (0) target = $region81
  $region80: #{pose_model_forward.1} parent=0 // pred_region
    _
  $region81: #{pose_model_forward.1} parent=0 // pred_fallthru
    _
  // Predicated region
  $region82: #{pose_model_forward.1} parent=0 // pred_check
    _
  $region83: #{pose_model_forward.1} parent=0 // pred_check_branch
    %10726 = sbr.rel (0) target = $region85
  $region84: #{pose_model_forward.1} parent=0 // pred_region
    _
  $region85: #{pose_model_forward.1} parent=0 // pred_fallthru
    _

</llo_original>
